<compile_context>
chip_gen: v5e
topology: v5e:2x2
jax: 0.10.0
libtpu: 0.0.40
codegen_flags: <defaults>
</compile_context>

<pallas_src>
import functools
import numpy as np
import jax
import jax.numpy as jnp
from jax import lax
from jax.experimental import pallas as pl
from jax.experimental.pallas import tpu as pltpu

VERTEXNUM = np.array([0, 45, 61, 43, 45, 92, 34, 41, 62, 44, 44, 58, 42,
                      40, 60, 41, 35, 64, 28, 50, 62], dtype=np.int64)
NPARTS = 20
SIZES = VERTEXNUM[1:NPARTS + 1]          # per-part point counts (28..92)
OFFSETS = np.cumsum(VERTEXNUM)           # OFFSETS[i] == start index of part i
TOTAL_PTS = int(OFFSETS[-1])             # 991 points total
DPAD = 8                                 # coord dim padded 3 -> 8

BLUR = 0.05
P = 2
EPS_F = BLUR ** P                        # final Sinkhorn temperature = blur**p
N_ANNEAL = 20                            # annealed Sinkhorn iterations
NEG_INF = -1e30                          # finite "minus infinity" log-weight for padding
ANNEAL_FACTOR = 0.25                     # eps *= 0.25 per step (length scale 0.5, p=2)

BUCKET_NMAX = (48, 64, 96)               # padded part sizes (each a multiple of 8)


def _bucket_assignment():
    buckets = {nb: [] for nb in BUCKET_NMAX}
    for i in range(NPARTS):
        n = int(SIZES[i])
        for nb in BUCKET_NMAX:
            if n <= nb:
                buckets[nb].append(i)
                break
        else:
            raise ValueError(f"part {i} of size {n} exceeds largest bucket")
    return tuple((nb, tuple(idx)) for nb, idx in buckets.items() if idx)


_BUCKETS = _bucket_assignment()          # ((48, 12 parts), (64, 7 parts), (96, 1 part))


def _detect_bf16_exp():
    # bf16 VPU/EUP exists on v6e / v7x; keep everything f32 on v5e and earlier.
    try:
        kind = jax.devices()[0].device_kind.lower()
    except Exception:
        return False
    return ("v6" in kind) or ("v7" in kind) or ("7x" in kind)


_EXP_DTYPE = jnp.bfloat16 if _detect_bf16_exp() else jnp.float32

_CDIMS = (((1,), (1,)), ((), ()))        # contract the last (coordinate) dim


def _make_emd_kernel(nmax):
    nm = nmax

    def kernel(counts_ref, x_ref, y_ref, out_ref):
        part = pl.program_id(0)
        n = counts_ref[part]                             # real point count of this part
        x = x_ref[0, 0]                                  # (nm, DPAD) f32
        y = y_ref[0, 0]

        # uniform log-weights over the first n points; finite "-inf" on padding
        row_idx = lax.broadcasted_iota(jnp.int32, (nm, 1), 0)
        col_idx = lax.broadcasted_iota(jnp.int32, (1, nm), 1)
        logn = jnp.log(n.astype(jnp.float32))
        logw_col = jnp.where(row_idx < n, -logn, NEG_INF)        # (nm, 1)
        logw_row = jnp.where(col_idx < n, -logn, NEG_INF)        # (1, nm)

        # identity matrix: only ever used as an MXU operand for exact transposes
        eye = (lax.broadcasted_iota(jnp.int32, (nm, nm), 0) ==
               lax.broadcasted_iota(jnp.int32, (nm, nm), 1)).astype(jnp.float32)
        ones_col = jnp.ones((nm, 1), _EXP_DTYPE)
        ones_row = jnp.ones((1, nm), _EXP_DTYPE)

        def t_col_to_row(v):      # (nm, 1) -> (1, nm) on the MXU
            return lax.dot_general(v, eye, (((0,), (0,)), ((), ())),
                                   preferred_element_type=jnp.float32)

        def t_row_to_col(v):      # (1, nm) -> (nm, 1) on the MXU
            return lax.dot_general(eye, v, (((1,), (1,)), ((), ())),
                                   preferred_element_type=jnp.float32)

        def softmin_rows(C_s, h_row, eps):
            # reduce over lanes (axis=1); LSE sum on the MXU, max stays on the XLU
            v = h_row - C_s                                          # (nm, nm)
            m = jnp.max(v, axis=1, keepdims=True)                    # (nm, 1)
            e = jnp.exp((v - m).astype(_EXP_DTYPE))
            s = lax.dot_general(e, ones_col, (((1,), (0,)), ((), ())),
                                preferred_element_type=jnp.float32)  # (nm, 1)
            return -eps * (m + jnp.log(s))

        def softmin_cols(C_s, h_col, eps):
            # reduce over sublanes (axis=0)
            v = h_col - C_s
            m = jnp.max(v, axis=0, keepdims=True)                    # (1, nm)
            e = jnp.exp((v - m).astype(_EXP_DTYPE))
            s = lax.dot_general(ones_row, e, (((1,), (0,)), ((), ())),
                                preferred_element_type=jnp.float32)  # (1, nm)
            return -eps * (m + jnp.log(s))

        # cost matrices  C(a, b) = |a - b|^2 / 2   (geomloss p=2 convention)
        x2c = jnp.sum(x * x, axis=1, keepdims=True)                  # (nm, 1)
        y2c = jnp.sum(y * y, axis=1, keepdims=True)
        x2r = t_col_to_row(x2c)                                      # (1, nm)
        y2r = t_col_to_row(y2c)
        xyT = lax.dot_general(x, y, _CDIMS, preferred_element_type=jnp.float32)
        xxT = lax.dot_general(x, x, _CDIMS, preferred_element_type=jnp.float32)
        yyT = lax.dot_general(y, y, _CDIMS, preferred_element_type=jnp.float32)
        Cxy = jnp.maximum(0.5 * (x2c + y2r) - xyT, 0.0)
        Cxx = jnp.maximum(0.5 * (x2c + x2r) - xxT, 0.0)
        Cyy = jnp.maximum(0.5 * (y2c + y2r) - yyT, 0.0)

        # starting temperature ~ squared diameter of the *valid* (unpadded) block
        valid = jnp.logical_and(row_idx < n, col_idx < n)
        eps0 = 2.0 * jnp.max(jnp.where(valid, Cxy, 0.0), keepdims=True) + 1e-6  # (1,1)

        zc = jnp.zeros((nm, 1), jnp.float32)
        zr = jnp.zeros((1, nm), jnp.float32)
        eps_f = jnp.float32(EPS_F)
        decay = jnp.float32(ANNEAL_FACTOR)

        # ---- loop 1: asymmetric x<->y transport; carries (f col, g row) ----
        def body_xy(_, carry):
            f, g, anneal = carry
            eps = jnp.maximum(eps_f, anneal)
            inv = 1.0 / eps
            Cs = Cxy * inv
            ft = softmin_rows(Cs, logw_row + g * inv, eps)           # (nm, 1)
            gt = softmin_cols(Cs, logw_col + f * inv, eps)           # (1, nm)
            return 0.5 * (f + ft), 0.5 * (g + gt), anneal * decay

        f, g, _ = lax.fori_loop(0, N_ANNEAL, body_xy, (zc, zr, eps0))

        # ---- loop 2: symmetric debias on Cxx; carries one row potential ----
        def body_xx(_, carry):
            fxx_r, anneal = carry
            eps = jnp.maximum(eps_f, anneal)
            inv = 1.0 / eps
            Cs = Cxx * inv
            fxx_c = t_row_to_col(fxx_r)
            fxxt = softmin_cols(Cs, logw_col + fxx_c * inv, eps)     # (1, nm)
            return 0.5 * (fxx_r + fxxt), anneal * decay

        fxx_r, _ = lax.fori_loop(0, N_ANNEAL, body_xx, (zr, eps0))

        # ---- loop 3: symmetric debias on Cyy; carries one column potential ----
        def body_yy(_, carry):
            gyy_c, anneal = carry
            eps = jnp.maximum(eps_f, anneal)
            inv = 1.0 / eps
            Cs = Cyy * inv
            gyy_r = t_col_to_row(gyy_c)
            gyyt = softmin_rows(Cs, logw_row + gyy_r * inv, eps)     # (nm, 1)
            return 0.5 * (gyy_c + gyyt), anneal * decay

        gyy_c, _ = lax.fori_loop(0, N_ANNEAL, body_yy, (zc, eps0))

        # final (non-averaged) extrapolation at the target temperature
        inv_f = 1.0 / eps_f
        Cxy_s = Cxy * inv_f
        f_fin = softmin_rows(Cxy_s, logw_row + g * inv_f, eps_f)              # (nm, 1)
        g_fin = softmin_cols(Cxy_s, logw_col + f * inv_f, eps_f)              # (1, nm)
        fxx_fin = softmin_rows(Cxx * inv_f, logw_row + fxx_r * inv_f, eps_f)  # (nm, 1)
        gyy_fin = softmin_cols(Cyy * inv_f, logw_col + gyy_c * inv_f, eps_f)  # (1, nm)

        # debiased Sinkhorn divergence:  <a, f_xy - f_xx> + <b, g_xy - g_yy>
        a_col = jnp.exp(logw_col)
        b_row = jnp.exp(logw_row)
        term_a = jnp.sum(a_col * (f_fin - fxx_fin), keepdims=True)            # (1, 1)
        term_b = jnp.sum(b_row * (g_fin - gyy_fin), keepdims=True)            # (1, 1)
        out_ref[0, 0] = term_a + term_b

    return kernel


@functools.lru_cache(maxsize=None)
def _build_call(nmax, nparts_b, batch):
    return pl.pallas_call(
        _make_emd_kernel(nmax),
        out_shape=jax.ShapeDtypeStruct((nparts_b, batch, 1, 1), jnp.float32),
        grid_spec=pltpu.PrefetchScalarGridSpec(
            num_scalar_prefetch=1,
            grid=(nparts_b, batch),
            in_specs=[
                pl.BlockSpec((1, 1, nmax, DPAD), lambda i, b, c: (i, b, 0, 0)),
                pl.BlockSpec((1, 1, nmax, DPAD), lambda i, b, c: (i, b, 0, 0)),
            ],
            out_specs=pl.BlockSpec((1, 1, 1, 1), lambda i, b, c: (i, b, 0, 0)),
        ),
        compiler_params=pltpu.CompilerParams(
            dimension_semantics=("parallel", "parallel")),
    )


def _pack_bucket(points, part_idxs, nmax):
    # points: (B, 991, 3) -> (len(part_idxs), B, nmax, DPAD), zero padded
    segs = []
    for i in part_idxs:
        start = int(OFFSETS[i])
        npts = int(SIZES[i])
        seg = points[:, start:start + npts, :]
        seg = jnp.pad(seg, ((0, 0), (0, nmax - npts), (0, DPAD - 3)))
        segs.append(seg)
    return jnp.stack(segs, axis=0).astype(jnp.float32)


@jax.jit
def part_wise_emd(predvert, batch_pointclouds):
    """Returns scalar: sum over 20 parts of mean-over-batch Sinkhorn divergence."""
    batch = predvert.shape[0]
    total = jnp.zeros((), jnp.float32)
    for nmax, idxs in _BUCKETS:
        X = _pack_bucket(predvert, idxs, nmax)
        Y = _pack_bucket(batch_pointclouds, idxs, nmax)
        counts = jnp.asarray([int(SIZES[i]) for i in idxs], dtype=jnp.int32)
        out = _build_call(nmax, len(idxs), batch)(counts, X, Y)
        total = total + jnp.sum(out)
    # Loss = sum_parts ( sum_batch(div) / B )
    return total / batch


if __name__ == "__main__":
    key = jax.random.PRNGKey(0)
    k1, k2 = jax.random.split(key)
    B = 2
    predvert = jax.random.normal(k1, (B, TOTAL_PTS, 3), dtype=jnp.float32)
    batch_pointclouds = predvert + 0.05 * jax.random.normal(
        k2, (B, TOTAL_PTS, 3), dtype=jnp.float32)

    loss = part_wise_emd(predvert, batch_pointclouds)
    loss = jax.block_until_ready(loss)
    assert jnp.isfinite(loss), f"non-finite loss: {loss}"
    print("KERNEL_OK")
</pallas_src>

<mosaic_0001>
module attributes {stable_mosaic.version = 11 : i64} {
  func.func @kernel(%arg0: i32, %arg1: i32, %arg2: memref<1xi32, #tpu.memory_space<smem>>, %arg3: memref<1x1x96x8xf32, #tpu.memory_space<vmem>>, %arg4: memref<1x1x96x8xf32, #tpu.memory_space<vmem>>, %arg5: memref<1x1x1x1xf32, #tpu.memory_space<vmem>>) attributes {dimension_semantics = [#tpu.dimension_semantics<parallel>, #tpu.dimension_semantics<parallel>], iteration_bounds = array<i64: 1, 2>, scalar_prefetch = 1 : i64, scratch_operands = 0 : i64, tpu.core_type = #tpu.core_type<tc>, window_params = [{transform_indices = @transform_0, window_bounds = array<i64: 1, 1, 96, 8>}, {transform_indices = @transform_1, window_bounds = array<i64: 1, 1, 96, 8>}, {transform_indices = @transform_2, window_bounds = array<i64: 1, 1, 1, 1>}]} {
    %0 = arith.index_cast %arg0 : i32 to index
    %1 = memref.load %arg2[%0] : memref<1xi32, #tpu.memory_space<smem>>
    %c0 = arith.constant 0 : index
    %c0_0 = arith.constant 0 : index
    %c0_1 = arith.constant 0 : index
    %c0_2 = arith.constant 0 : index
    %2 = vector.load %arg3[%c0, %c0_0, %c0_1, %c0_2] : memref<1x1x96x8xf32, #tpu.memory_space<vmem>>, vector<1x1x96x8xf32>
    %3 = vector.shape_cast %2 : vector<1x1x96x8xf32> to vector<96x8xf32>
    %c0_3 = arith.constant 0 : index
    %c0_4 = arith.constant 0 : index
    %c0_5 = arith.constant 0 : index
    %c0_6 = arith.constant 0 : index
    %4 = vector.load %arg4[%c0_3, %c0_4, %c0_5, %c0_6] : memref<1x1x96x8xf32, #tpu.memory_space<vmem>>, vector<1x1x96x8xf32>
    %5 = vector.shape_cast %4 : vector<1x1x96x8xf32> to vector<96x8xf32>
    %6 = tpu.iota {dimensions = array<i32: 0>} : vector<96x1xi32>
    %7 = tpu.iota {dimensions = array<i32: 1>} : vector<1x96xi32>
    %8 = arith.sitofp %1 : i32 to f32
    %9 = math.log %8 : f32
    %10 = vector.broadcast %1 : i32 to vector<96x1xi32>
    %11 = arith.cmpi slt, %6, %10 : vector<96x1xi32>
    %cst = arith.constant 0.000000e+00 : f32
    %12 = arith.subf %cst, %9 : f32
    %cst_7 = arith.constant -1.000000e+30 : f32
    %13 = vector.broadcast %12 : f32 to vector<96x1xf32>
    %14 = vector.broadcast %cst_7 : f32 to vector<96x1xf32>
    %15 = arith.select %11, %13, %14 : vector<96x1xi1>, vector<96x1xf32>
    %16 = vector.broadcast %1 : i32 to vector<1x96xi32>
    %17 = arith.cmpi slt, %7, %16 : vector<1x96xi32>
    %cst_8 = arith.constant 0.000000e+00 : f32
    %18 = arith.subf %cst_8, %9 : f32
    %cst_9 = arith.constant -1.000000e+30 : f32
    %19 = vector.broadcast %18 : f32 to vector<1x96xf32>
    %20 = vector.broadcast %cst_9 : f32 to vector<1x96xf32>
    %21 = arith.select %17, %19, %20 : vector<1x96xi1>, vector<1x96xf32>
    %22 = tpu.iota {dimensions = array<i32: 0>} : vector<96x96xi32>
    %23 = tpu.iota {dimensions = array<i32: 1>} : vector<96x96xi32>
    %24 = arith.cmpi eq, %22, %23 : vector<96x96xi32>
    %25 = arith.extui %24 : vector<96x96xi1> to vector<96x96xi32>
    %26 = arith.sitofp %25 : vector<96x96xi32> to vector<96x96xf32>
    %cst_10 = arith.constant 1.000000e+00 : f32
    %27 = vector.broadcast %cst_10 : f32 to vector<96x1xf32>
    %cst_11 = arith.constant 1.000000e+00 : f32
    %28 = vector.broadcast %cst_11 : f32 to vector<1x96xf32>
    %29 = arith.mulf %3, %3 : vector<96x8xf32>
    %cst_12 = arith.constant dense<0.000000e+00> : vector<96xf32>
    %30 = vector.multi_reduction <add>, %29, %cst_12 [1] : vector<96x8xf32> to vector<96xf32>
    %31 = vector.shape_cast %30 : vector<96xf32> to vector<96x1xf32>
    %32 = arith.mulf %5, %5 : vector<96x8xf32>
    %cst_13 = arith.constant dense<0.000000e+00> : vector<96xf32>
    %33 = vector.multi_reduction <add>, %32, %cst_13 [1] : vector<96x8xf32> to vector<96xf32>
    %34 = vector.shape_cast %33 : vector<96xf32> to vector<96x1xf32>
    %cst_14 = arith.constant dense<0.000000e+00> : vector<1x96xf32>
    %35 = tpu.matmul %31, %26, %cst_14 {dimension_numbers = #tpu.dot_dimension_numbers<[0], [0], [1], [1], [0, 1, 1, 1], [], []>} : vector<96x1xf32>, vector<96x96xf32>, vector<1x96xf32> -> vector<1x96xf32>
    %cst_15 = arith.constant dense<0.000000e+00> : vector<1x96xf32>
    %36 = tpu.matmul %34, %26, %cst_15 {dimension_numbers = #tpu.dot_dimension_numbers<[0], [0], [1], [1], [0, 1, 1, 1], [], []>} : vector<96x1xf32>, vector<96x96xf32>, vector<1x96xf32> -> vector<1x96xf32>
    %cst_16 = arith.constant dense<0.000000e+00> : vector<96x96xf32>
    %37 = tpu.matmul %3, %5, %cst_16 {dimension_numbers = #tpu.dot_dimension_numbers<[1], [1], [0], [0], [0, 0, 1, 0], [], []>} : vector<96x8xf32>, vector<96x8xf32>, vector<96x96xf32> -> vector<96x96xf32>
    %cst_17 = arith.constant dense<0.000000e+00> : vector<96x96xf32>
    %38 = tpu.matmul %3, %3, %cst_17 {dimension_numbers = #tpu.dot_dimension_numbers<[1], [1], [0], [0], [0, 0, 1, 0], [], []>} : vector<96x8xf32>, vector<96x8xf32>, vector<96x96xf32> -> vector<96x96xf32>
    %cst_18 = arith.constant dense<0.000000e+00> : vector<96x96xf32>
    %39 = tpu.matmul %5, %5, %cst_18 {dimension_numbers = #tpu.dot_dimension_numbers<[1], [1], [0], [0], [0, 0, 1, 0], [], []>} : vector<96x8xf32>, vector<96x8xf32>, vector<96x96xf32> -> vector<96x96xf32>
    %40 = vector.broadcast %31 : vector<96x1xf32> to vector<96x96xf32>
    %41 = vector.broadcast %36 : vector<1x96xf32> to vector<96x96xf32>
    %42 = arith.addf %40, %41 : vector<96x96xf32>
    %cst_19 = arith.constant 5.000000e-01 : f32
    %43 = vector.broadcast %cst_19 : f32 to vector<96x96xf32>
    %44 = arith.mulf %43, %42 : vector<96x96xf32>
    %45 = arith.subf %44, %37 : vector<96x96xf32>
    %cst_20 = arith.constant 0.000000e+00 : f32
    %46 = vector.broadcast %cst_20 : f32 to vector<96x96xf32>
    %47 = arith.maximumf %45, %46 : vector<96x96xf32>
    %48 = vector.broadcast %31 : vector<96x1xf32> to vector<96x96xf32>
    %49 = vector.broadcast %35 : vector<1x96xf32> to vector<96x96xf32>
    %50 = arith.addf %48, %49 : vector<96x96xf32>
    %cst_21 = arith.constant 5.000000e-01 : f32
    %51 = vector.broadcast %cst_21 : f32 to vector<96x96xf32>
    %52 = arith.mulf %51, %50 : vector<96x96xf32>
    %53 = arith.subf %52, %38 : vector<96x96xf32>
    %cst_22 = arith.constant 0.000000e+00 : f32
    %54 = vector.broadcast %cst_22 : f32 to vector<96x96xf32>
    %55 = arith.maximumf %53, %54 : vector<96x96xf32>
    %56 = vector.broadcast %34 : vector<96x1xf32> to vector<96x96xf32>
    %57 = vector.broadcast %36 : vector<1x96xf32> to vector<96x96xf32>
    %58 = arith.addf %56, %57 : vector<96x96xf32>
    %cst_23 = arith.constant 5.000000e-01 : f32
    %59 = vector.broadcast %cst_23 : f32 to vector<96x96xf32>
    %60 = arith.mulf %59, %58 : vector<96x96xf32>
    %61 = arith.subf %60, %39 : vector<96x96xf32>
    %cst_24 = arith.constant 0.000000e+00 : f32
    %62 = vector.broadcast %cst_24 : f32 to vector<96x96xf32>
    %63 = arith.maximumf %61, %62 : vector<96x96xf32>
    %64 = vector.broadcast %1 : i32 to vector<96x1xi32>
    %65 = arith.cmpi slt, %6, %64 : vector<96x1xi32>
    %66 = vector.broadcast %1 : i32 to vector<1x96xi32>
    %67 = arith.cmpi slt, %7, %66 : vector<1x96xi32>
    %68 = vector.broadcast %65 : vector<96x1xi1> to vector<96x96xi1>
    %69 = vector.broadcast %67 : vector<1x96xi1> to vector<96x96xi1>
    %70 = arith.andi %68, %69 : vector<96x96xi1>
    %cst_25 = arith.constant 0.000000e+00 : f32
    %71 = vector.broadcast %cst_25 : f32 to vector<96x96xf32>
    %72 = arith.select %70, %47, %71 : vector<96x96xi1>, vector<96x96xf32>
    %73 = vector.shape_cast %72 : vector<96x96xf32> to vector<1x96x96xf32>
    %cst_26 = arith.constant dense<0xFF800000> : vector<1xf32>
    %74 = vector.multi_reduction <maximumf>, %73, %cst_26 [1, 2] : vector<1x96x96xf32> to vector<1xf32>
    %75 = vector.shape_cast %74 : vector<1xf32> to vector<1x1x1xf32>
    %76 = vector.extract %75[0, 0, 0] : f32 from vector<1x1x1xf32>
    %77 = vector.broadcast %76 : f32 to vector<1x1xf32>
    %cst_27 = arith.constant 2.000000e+00 : f32
    %78 = vector.broadcast %cst_27 : f32 to vector<1x1xf32>
    %79 = arith.mulf %78, %77 : vector<1x1xf32>
    %cst_28 = arith.constant 9.99999997E-7 : f32
    %80 = vector.broadcast %cst_28 : f32 to vector<1x1xf32>
    %81 = arith.addf %79, %80 : vector<1x1xf32>
    %cst_29 = arith.constant 0.000000e+00 : f32
    %82 = vector.broadcast %cst_29 : f32 to vector<96x1xf32>
    %cst_30 = arith.constant 0.000000e+00 : f32
    %83 = vector.broadcast %cst_30 : f32 to vector<1x96xf32>
    %cst_31 = arith.constant 2.500000e-03 : f32
    %cst_32 = arith.constant 2.500000e-01 : f32
    %c0_i32 = arith.constant 0 : i32
    %c20_i32 = arith.constant 20 : i32
    %84 = arith.addi %c0_i32, %c20_i32 : i32
    %c1_i32 = arith.constant 1 : i32
    %85:3 = scf.for %arg6 = %c0_i32 to %84 step %c1_i32 iter_args(%arg7 = %82, %arg8 = %83, %arg9 = %81) -> (vector<96x1xf32>, vector<1x96xf32>, vector<1x1xf32>)  : i32 {
      %181 = vector.broadcast %cst_31 : f32 to vector<1x1xf32>
      %182 = arith.maximumf %181, %arg9 : vector<1x1xf32>
      %cst_67 = arith.constant 1.000000e+00 : f32
      %183 = vector.broadcast %cst_67 : f32 to vector<1x1xf32>
      %184 = arith.divf %183, %182 : vector<1x1xf32>
      %185 = vector.broadcast %184 : vector<1x1xf32> to vector<96x96xf32>
      %186 = arith.mulf %47, %185 : vector<96x96xf32>
      %187 = vector.broadcast %184 : vector<1x1xf32> to vector<1x96xf32>
      %188 = arith.mulf %arg8, %187 : vector<1x96xf32>
      %189 = arith.addf %21, %188 : vector<1x96xf32>
      %190 = vector.broadcast %189 : vector<1x96xf32> to vector<96x96xf32>
      %191 = arith.subf %190, %186 : vector<96x96xf32>
      %cst_68 = arith.constant dense<0xFF800000> : vector<96xf32>
      %192 = vector.multi_reduction <maximumf>, %191, %cst_68 [1] : vector<96x96xf32> to vector<96xf32>
      %193 = vector.shape_cast %192 : vector<96xf32> to vector<96x1xf32>
      %194 = vector.broadcast %193 : vector<96x1xf32> to vector<96x96xf32>
      %195 = arith.subf %191, %194 : vector<96x96xf32>
      %196 = math.exp %195 : vector<96x96xf32>
      %cst_69 = arith.constant dense<0.000000e+00> : vector<96x1xf32>
      %197 = tpu.matmul %196, %27, %cst_69 {dimension_numbers = #tpu.dot_dimension_numbers<[1], [0], [0], [1], [0, 0, 1, 1], [], []>} : vector<96x96xf32>, vector<96x1xf32>, vector<96x1xf32> -> vector<96x1xf32>
      %cst_70 = arith.constant 0.000000e+00 : f32
      %198 = vector.broadcast %cst_70 : f32 to vector<1x1xf32>
      %199 = arith.subf %198, %182 : vector<1x1xf32>
      %200 = math.log %197 : vector<96x1xf32>
      %201 = arith.addf %193, %200 : vector<96x1xf32>
      %202 = vector.broadcast %199 : vector<1x1xf32> to vector<96x1xf32>
      %203 = arith.mulf %202, %201 : vector<96x1xf32>
      %204 = vector.broadcast %184 : vector<1x1xf32> to vector<96x1xf32>
      %205 = arith.mulf %arg7, %204 : vector<96x1xf32>
      %206 = arith.addf %15, %205 : vector<96x1xf32>
      %207 = vector.broadcast %206 : vector<96x1xf32> to vector<96x96xf32>
      %208 = arith.subf %207, %186 : vector<96x96xf32>
      %cst_71 = arith.constant dense<0xFF800000> : vector<96xf32>
      %209 = vector.multi_reduction <maximumf>, %208, %cst_71 [0] : vector<96x96xf32> to vector<96xf32>
      %210 = vector.shape_cast %209 : vector<96xf32> to vector<1x96xf32>
      %211 = vector.broadcast %210 : vector<1x96xf32> to vector<96x96xf32>
      %212 = arith.subf %208, %211 : vector<96x96xf32>
      %213 = math.exp %212 : vector<96x96xf32>
      %cst_72 = arith.constant dense<0.000000e+00> : vector<1x96xf32>
      %214 = tpu.matmul %28, %213, %cst_72 {dimension_numbers = #tpu.dot_dimension_numbers<[1], [0], [0], [1], [0, 0, 1, 1], [], []>} : vector<1x96xf32>, vector<96x96xf32>, vector<1x96xf32> -> vector<1x96xf32>
      %cst_73 = arith.constant 0.000000e+00 : f32
      %215 = vector.broadcast %cst_73 : f32 to vector<1x1xf32>
      %216 = arith.subf %215, %182 : vector<1x1xf32>
      %217 = math.log %214 : vector<1x96xf32>
      %218 = arith.addf %210, %217 : vector<1x96xf32>
      %219 = vector.broadcast %216 : vector<1x1xf32> to vector<1x96xf32>
      %220 = arith.mulf %219, %218 : vector<1x96xf32>
      %221 = arith.addf %arg7, %203 : vector<96x1xf32>
      %cst_74 = arith.constant 5.000000e-01 : f32
      %222 = vector.broadcast %cst_74 : f32 to vector<96x1xf32>
      %223 = arith.mulf %222, %221 : vector<96x1xf32>
      %224 = arith.addf %arg8, %220 : vector<1x96xf32>
      %cst_75 = arith.constant 5.000000e-01 : f32
      %225 = vector.broadcast %cst_75 : f32 to vector<1x96xf32>
      %226 = arith.mulf %225, %224 : vector<1x96xf32>
      %227 = vector.broadcast %cst_32 : f32 to vector<1x1xf32>
      %228 = arith.mulf %arg9, %227 : vector<1x1xf32>
      scf.yield %223, %226, %228 : vector<96x1xf32>, vector<1x96xf32>, vector<1x1xf32>
    }
    %cst_33 = arith.constant 2.500000e-03 : f32
    %cst_34 = arith.constant 2.500000e-01 : f32
    %c0_i32_35 = arith.constant 0 : i32
    %c20_i32_36 = arith.constant 20 : i32
    %86 = arith.addi %c0_i32_35, %c20_i32_36 : i32
    %c1_i32_37 = arith.constant 1 : i32
    %87:2 = scf.for %arg6 = %c0_i32_35 to %86 step %c1_i32_37 iter_args(%arg7 = %83, %arg8 = %81) -> (vector<1x96xf32>, vector<1x1xf32>)  : i32 {
      %181 = vector.broadcast %cst_33 : f32 to vector<1x1xf32>
      %182 = arith.maximumf %181, %arg8 : vector<1x1xf32>
      %cst_67 = arith.constant 1.000000e+00 : f32
      %183 = vector.broadcast %cst_67 : f32 to vector<1x1xf32>
      %184 = arith.divf %183, %182 : vector<1x1xf32>
      %185 = vector.broadcast %184 : vector<1x1xf32> to vector<96x96xf32>
      %186 = arith.mulf %55, %185 : vector<96x96xf32>
      %cst_68 = arith.constant dense<0.000000e+00> : vector<96x1xf32>
      %187 = tpu.matmul %26, %arg7, %cst_68 {dimension_numbers = #tpu.dot_dimension_numbers<[1], [1], [0], [0], [0, 0, 1, 0], [], []>} : vector<96x96xf32>, vector<1x96xf32>, vector<96x1xf32> -> vector<96x1xf32>
      %188 = vector.broadcast %184 : vector<1x1xf32> to vector<96x1xf32>
      %189 = arith.mulf %187, %188 : vector<96x1xf32>
      %190 = arith.addf %15, %189 : vector<96x1xf32>
      %191 = vector.broadcast %190 : vector<96x1xf32> to vector<96x96xf32>
      %192 = arith.subf %191, %186 : vector<96x96xf32>
      %cst_69 = arith.constant dense<0xFF800000> : vector<96xf32>
      %193 = vector.multi_reduction <maximumf>, %192, %cst_69 [0] : vector<96x96xf32> to vector<96xf32>
      %194 = vector.shape_cast %193 : vector<96xf32> to vector<1x96xf32>
      %195 = vector.broadcast %194 : vector<1x96xf32> to vector<96x96xf32>
      %196 = arith.subf %192, %195 : vector<96x96xf32>
      %197 = math.exp %196 : vector<96x96xf32>
      %cst_70 = arith.constant dense<0.000000e+00> : vector<1x96xf32>
      %198 = tpu.matmul %28, %197, %cst_70 {dimension_numbers = #tpu.dot_dimension_numbers<[1], [0], [0], [1], [0, 0, 1, 1], [], []>} : vector<1x96xf32>, vector<96x96xf32>, vector<1x96xf32> -> vector<1x96xf32>
      %cst_71 = arith.constant 0.000000e+00 : f32
      %199 = vector.broadcast %cst_71 : f32 to vector<1x1xf32>
      %200 = arith.subf %199, %182 : vector<1x1xf32>
      %201 = math.log %198 : vector<1x96xf32>
      %202 = arith.addf %194, %201 : vector<1x96xf32>
      %203 = vector.broadcast %200 : vector<1x1xf32> to vector<1x96xf32>
      %204 = arith.mulf %203, %202 : vector<1x96xf32>
      %205 = arith.addf %arg7, %204 : vector<1x96xf32>
      %cst_72 = arith.constant 5.000000e-01 : f32
      %206 = vector.broadcast %cst_72 : f32 to vector<1x96xf32>
      %207 = arith.mulf %206, %205 : vector<1x96xf32>
      %208 = vector.broadcast %cst_34 : f32 to vector<1x1xf32>
      %209 = arith.mulf %arg8, %208 : vector<1x1xf32>
      scf.yield %207, %209 : vector<1x96xf32>, vector<1x1xf32>
    }
    %cst_38 = arith.constant 2.500000e-03 : f32
    %cst_39 = arith.constant 2.500000e-01 : f32
    %c0_i32_40 = arith.constant 0 : i32
    %c20_i32_41 = arith.constant 20 : i32
    %88 = arith.addi %c0_i32_40, %c20_i32_41 : i32
    %c1_i32_42 = arith.constant 1 : i32
    %89:2 = scf.for %arg6 = %c0_i32_40 to %88 step %c1_i32_42 iter_args(%arg7 = %82, %arg8 = %81) -> (vector<96x1xf32>, vector<1x1xf32>)  : i32 {
      %181 = vector.broadcast %cst_38 : f32 to vector<1x1xf32>
      %182 = arith.maximumf %181, %arg8 : vector<1x1xf32>
      %cst_67 = arith.constant 1.000000e+00 : f32
      %183 = vector.broadcast %cst_67 : f32 to vector<1x1xf32>
      %184 = arith.divf %183, %182 : vector<1x1xf32>
      %185 = vector.broadcast %184 : vector<1x1xf32> to vector<96x96xf32>
      %186 = arith.mulf %63, %185 : vector<96x96xf32>
      %cst_68 = arith.constant dense<0.000000e+00> : vector<1x96xf32>
      %187 = tpu.matmul %arg7, %26, %cst_68 {dimension_numbers = #tpu.dot_dimension_numbers<[0], [0], [1], [1], [0, 1, 1, 1], [], []>} : vector<96x1xf32>, vector<96x96xf32>, vector<1x96xf32> -> vector<1x96xf32>
      %188 = vector.broadcast %184 : vector<1x1xf32> to vector<1x96xf32>
      %189 = arith.mulf %187, %188 : vector<1x96xf32>
      %190 = arith.addf %21, %189 : vector<1x96xf32>
      %191 = vector.broadcast %190 : vector<1x96xf32> to vector<96x96xf32>
      %192 = arith.subf %191, %186 : vector<96x96xf32>
      %cst_69 = arith.constant dense<0xFF800000> : vector<96xf32>
      %193 = vector.multi_reduction <maximumf>, %192, %cst_69 [1] : vector<96x96xf32> to vector<96xf32>
      %194 = vector.shape_cast %193 : vector<96xf32> to vector<96x1xf32>
      %195 = vector.broadcast %194 : vector<96x1xf32> to vector<96x96xf32>
      %196 = arith.subf %192, %195 : vector<96x96xf32>
      %197 = math.exp %196 : vector<96x96xf32>
      %cst_70 = arith.constant dense<0.000000e+00> : vector<96x1xf32>
      %198 = tpu.matmul %197, %27, %cst_70 {dimension_numbers = #tpu.dot_dimension_numbers<[1], [0], [0], [1], [0, 0, 1, 1], [], []>} : vector<96x96xf32>, vector<96x1xf32>, vector<96x1xf32> -> vector<96x1xf32>
      %cst_71 = arith.constant 0.000000e+00 : f32
      %199 = vector.broadcast %cst_71 : f32 to vector<1x1xf32>
      %200 = arith.subf %199, %182 : vector<1x1xf32>
      %201 = math.log %198 : vector<96x1xf32>
      %202 = arith.addf %194, %201 : vector<96x1xf32>
      %203 = vector.broadcast %200 : vector<1x1xf32> to vector<96x1xf32>
      %204 = arith.mulf %203, %202 : vector<96x1xf32>
      %205 = arith.addf %arg7, %204 : vector<96x1xf32>
      %cst_72 = arith.constant 5.000000e-01 : f32
      %206 = vector.broadcast %cst_72 : f32 to vector<96x1xf32>
      %207 = arith.mulf %206, %205 : vector<96x1xf32>
      %208 = vector.broadcast %cst_39 : f32 to vector<1x1xf32>
      %209 = arith.mulf %arg8, %208 : vector<1x1xf32>
      scf.yield %207, %209 : vector<96x1xf32>, vector<1x1xf32>
    }
    %cst_43 = arith.constant 1.000000e+00 : f32
    %cst_44 = arith.constant 2.500000e-03 : f32
    %90 = arith.divf %cst_43, %cst_44 : f32
    %91 = vector.broadcast %90 : f32 to vector<96x96xf32>
    %92 = arith.mulf %47, %91 : vector<96x96xf32>
    %93 = vector.broadcast %90 : f32 to vector<1x96xf32>
    %94 = arith.mulf %85#1, %93 : vector<1x96xf32>
    %95 = arith.addf %21, %94 : vector<1x96xf32>
    %96 = vector.broadcast %95 : vector<1x96xf32> to vector<96x96xf32>
    %97 = arith.subf %96, %92 : vector<96x96xf32>
    %cst_45 = arith.constant dense<0xFF800000> : vector<96xf32>
    %98 = vector.multi_reduction <maximumf>, %97, %cst_45 [1] : vector<96x96xf32> to vector<96xf32>
    %99 = vector.shape_cast %98 : vector<96xf32> to vector<96x1xf32>
    %100 = vector.broadcast %99 : vector<96x1xf32> to vector<96x96xf32>
    %101 = arith.subf %97, %100 : vector<96x96xf32>
    %102 = math.exp %101 : vector<96x96xf32>
    %cst_46 = arith.constant dense<0.000000e+00> : vector<96x1xf32>
    %103 = tpu.matmul %102, %27, %cst_46 {dimension_numbers = #tpu.dot_dimension_numbers<[1], [0], [0], [1], [0, 0, 1, 1], [], []>} : vector<96x96xf32>, vector<96x1xf32>, vector<96x1xf32> -> vector<96x1xf32>
    %cst_47 = arith.constant 0.000000e+00 : f32
    %cst_48 = arith.constant 2.500000e-03 : f32
    %104 = arith.subf %cst_47, %cst_48 : f32
    %105 = math.log %103 : vector<96x1xf32>
    %106 = arith.addf %99, %105 : vector<96x1xf32>
    %107 = vector.broadcast %104 : f32 to vector<96x1xf32>
    %108 = arith.mulf %107, %106 : vector<96x1xf32>
    %109 = vector.broadcast %90 : f32 to vector<96x1xf32>
    %110 = arith.mulf %85#0, %109 : vector<96x1xf32>
    %111 = arith.addf %15, %110 : vector<96x1xf32>
    %112 = vector.broadcast %111 : vector<96x1xf32> to vector<96x96xf32>
    %113 = arith.subf %112, %92 : vector<96x96xf32>
    %cst_49 = arith.constant dense<0xFF800000> : vector<96xf32>
    %114 = vector.multi_reduction <maximumf>, %113, %cst_49 [0] : vector<96x96xf32> to vector<96xf32>
    %115 = vector.shape_cast %114 : vector<96xf32> to vector<1x96xf32>
    %116 = vector.broadcast %115 : vector<1x96xf32> to vector<96x96xf32>
    %117 = arith.subf %113, %116 : vector<96x96xf32>
    %118 = math.exp %117 : vector<96x96xf32>
    %cst_50 = arith.constant dense<0.000000e+00> : vector<1x96xf32>
    %119 = tpu.matmul %28, %118, %cst_50 {dimension_numbers = #tpu.dot_dimension_numbers<[1], [0], [0], [1], [0, 0, 1, 1], [], []>} : vector<1x96xf32>, vector<96x96xf32>, vector<1x96xf32> -> vector<1x96xf32>
    %cst_51 = arith.constant 0.000000e+00 : f32
    %cst_52 = arith.constant 2.500000e-03 : f32
    %120 = arith.subf %cst_51, %cst_52 : f32
    %121 = math.log %119 : vector<1x96xf32>
    %122 = arith.addf %115, %121 : vector<1x96xf32>
    %123 = vector.broadcast %120 : f32 to vector<1x96xf32>
    %124 = arith.mulf %123, %122 : vector<1x96xf32>
    %125 = vector.broadcast %90 : f32 to vector<96x96xf32>
    %126 = arith.mulf %55, %125 : vector<96x96xf32>
    %127 = vector.broadcast %90 : f32 to vector<1x96xf32>
    %128 = arith.mulf %87#0, %127 : vector<1x96xf32>
    %129 = arith.addf %21, %128 : vector<1x96xf32>
    %130 = vector.broadcast %129 : vector<1x96xf32> to vector<96x96xf32>
    %131 = arith.subf %130, %126 : vector<96x96xf32>
    %cst_53 = arith.constant dense<0xFF800000> : vector<96xf32>
    %132 = vector.multi_reduction <maximumf>, %131, %cst_53 [1] : vector<96x96xf32> to vector<96xf32>
    %133 = vector.shape_cast %132 : vector<96xf32> to vector<96x1xf32>
    %134 = vector.broadcast %133 : vector<96x1xf32> to vector<96x96xf32>
    %135 = arith.subf %131, %134 : vector<96x96xf32>
    %136 = math.exp %135 : vector<96x96xf32>
    %cst_54 = arith.constant dense<0.000000e+00> : vector<96x1xf32>
    %137 = tpu.matmul %136, %27, %cst_54 {dimension_numbers = #tpu.dot_dimension_numbers<[1], [0], [0], [1], [0, 0, 1, 1], [], []>} : vector<96x96xf32>, vector<96x1xf32>, vector<96x1xf32> -> vector<96x1xf32>
    %cst_55 = arith.constant 0.000000e+00 : f32
    %cst_56 = arith.constant 2.500000e-03 : f32
    %138 = arith.subf %cst_55, %cst_56 : f32
    %139 = math.log %137 : vector<96x1xf32>
    %140 = arith.addf %133, %139 : vector<96x1xf32>
    %141 = vector.broadcast %138 : f32 to vector<96x1xf32>
    %142 = arith.mulf %141, %140 : vector<96x1xf32>
    %143 = vector.broadcast %90 : f32 to vector<96x96xf32>
    %144 = arith.mulf %63, %143 : vector<96x96xf32>
    %145 = vector.broadcast %90 : f32 to vector<96x1xf32>
    %146 = arith.mulf %89#0, %145 : vector<96x1xf32>
    %147 = arith.addf %15, %146 : vector<96x1xf32>
    %148 = vector.broadcast %147 : vector<96x1xf32> to vector<96x96xf32>
    %149 = arith.subf %148, %144 : vector<96x96xf32>
    %cst_57 = arith.constant dense<0xFF800000> : vector<96xf32>
    %150 = vector.multi_reduction <maximumf>, %149, %cst_57 [0] : vector<96x96xf32> to vector<96xf32>
    %151 = vector.shape_cast %150 : vector<96xf32> to vector<1x96xf32>
    %152 = vector.broadcast %151 : vector<1x96xf32> to vector<96x96xf32>
    %153 = arith.subf %149, %152 : vector<96x96xf32>
    %154 = math.exp %153 : vector<96x96xf32>
    %cst_58 = arith.constant dense<0.000000e+00> : vector<1x96xf32>
    %155 = tpu.matmul %28, %154, %cst_58 {dimension_numbers = #tpu.dot_dimension_numbers<[1], [0], [0], [1], [0, 0, 1, 1], [], []>} : vector<1x96xf32>, vector<96x96xf32>, vector<1x96xf32> -> vector<1x96xf32>
    %cst_59 = arith.constant 0.000000e+00 : f32
    %cst_60 = arith.constant 2.500000e-03 : f32
    %156 = arith.subf %cst_59, %cst_60 : f32
    %157 = math.log %155 : vector<1x96xf32>
    %158 = arith.addf %151, %157 : vector<1x96xf32>
    %159 = vector.broadcast %156 : f32 to vector<1x96xf32>
    %160 = arith.mulf %159, %158 : vector<1x96xf32>
    %161 = math.exp %15 : vector<96x1xf32>
    %162 = math.exp %21 : vector<1x96xf32>
    %163 = arith.subf %108, %142 : vector<96x1xf32>
    %164 = arith.mulf %161, %163 : vector<96x1xf32>
    %165 = vector.shape_cast %164 : vector<96x1xf32> to vector<1x96x1xf32>
    %cst_61 = arith.constant dense<0.000000e+00> : vector<1xf32>
    %166 = vector.multi_reduction <add>, %165, %cst_61 [1, 2] : vector<1x96x1xf32> to vector<1xf32>
    %167 = vector.shape_cast %166 : vector<1xf32> to vector<1x1x1xf32>
    %168 = vector.extract %167[0, 0, 0] : f32 from vector<1x1x1xf32>
    %169 = vector.broadcast %168 : f32 to vector<1x1xf32>
    %170 = arith.subf %124, %160 : vector<1x96xf32>
    %171 = arith.mulf %162, %170 : vector<1x96xf32>
    %172 = vector.shape_cast %171 : vector<1x96xf32> to vector<1x1x96xf32>
    %cst_62 = arith.constant dense<0.000000e+00> : vector<1xf32>
    %173 = vector.multi_reduction <add>, %172, %cst_62 [1, 2] : vector<1x1x96xf32> to vector<1xf32>
    %174 = vector.shape_cast %173 : vector<1xf32> to vector<1x1x1xf32>
    %175 = vector.extract %174[0, 0, 0] : f32 from vector<1x1x1xf32>
    %176 = vector.broadcast %175 : f32 to vector<1x1xf32>
    %177 = arith.addf %169, %176 : vector<1x1xf32>
    %c0_63 = arith.constant 0 : index
    %c0_64 = arith.constant 0 : index
    %c0_65 = arith.constant 0 : index
    %c0_66 = arith.constant 0 : index
    %178 = vector.load %arg5[%c0_63, %c0_64, %c0_65, %c0_66] : memref<1x1x1x1xf32, #tpu.memory_space<vmem>>, vector<1x1x1x1xf32>
    %179 = vector.shape_cast %178 : vector<1x1x1x1xf32> to vector<1x1xf32>
    %180 = vector.shape_cast %177 : vector<1x1xf32> to vector<1x1x1x1xf32>
    tpu.vector_store %arg5[%c0_63, %c0_64, %c0_65, %c0_66], %180 {strides = array<i32>} : memref<1x1x1x1xf32, #tpu.memory_space<vmem>>, vector<1x1x1x1xf32>,
    return
  }
  func.func @transform_0(%arg0: i32, %arg1: i32, %arg2: memref<1xi32, #tpu.memory_space<smem>>) -> (i32, i32, i32, i32) {
    %c0_i32 = arith.constant 0 : i32
    %c0_i32_0 = arith.constant 0 : i32
    %c0_i32_1 = arith.constant 0 : i32
    return %arg0, %arg1, %c0_i32, %c0_i32_0 : i32, i32, i32, i32
  }
  func.func @transform_1(%arg0: i32, %arg1: i32, %arg2: memref<1xi32, #tpu.memory_space<smem>>) -> (i32, i32, i32, i32) {
    %c0_i32 = arith.constant 0 : i32
    %c0_i32_0 = arith.constant 0 : i32
    %c0_i32_1 = arith.constant 0 : i32
    return %arg0, %arg1, %c0_i32, %c0_i32_0 : i32, i32, i32, i32
  }
  func.func @transform_2(%arg0: i32, %arg1: i32, %arg2: memref<1xi32, #tpu.memory_space<smem>>) -> (i32, i32, i32, i32) {
    %c0_i32 = arith.constant 0 : i32
    %c0_i32_0 = arith.constant 0 : i32
    %c0_i32_1 = arith.constant 0 : i32
    return %arg0, %arg1, %c0_i32, %c0_i32_0 : i32, i32, i32, i32
  }
}

module attributes {stable_mosaic.version = 11 : i64} {
  func.func @kernel(%arg0: i32, %arg1: i32, %arg2: memref<7xi32, #tpu.memory_space<smem>>, %arg3: memref<1x1x64x8xf32, #tpu.memory_space<vmem>>, %arg4: memref<1x1x64x8xf32, #tpu.memory_space<vmem>>, %arg5: memref<1x1x1x1xf32, #tpu.memory_space<vmem>>) attributes {dimension_semantics = [#tpu.dimension_semantics<parallel>, #tpu.dimension_semantics<parallel>], iteration_bounds = array<i64: 7, 2>, scalar_prefetch = 1 : i64, scratch_operands = 0 : i64, tpu.core_type = #tpu.core_type<tc>, window_params = [{transform_indices = @transform_0, window_bounds = array<i64: 1, 1, 64, 8>}, {transform_indices = @transform_1, window_bounds = array<i64: 1, 1, 64, 8>}, {transform_indices = @transform_2, window_bounds = array<i64: 1, 1, 1, 1>}]} {
    %0 = arith.index_cast %arg0 : i32 to index
    %1 = memref.load %arg2[%0] : memref<7xi32, #tpu.memory_space<smem>>
    %c0 = arith.constant 0 : index
    %c0_0 = arith.constant 0 : index
    %c0_1 = arith.constant 0 : index
    %c0_2 = arith.constant 0 : index
    %2 = vector.load %arg3[%c0, %c0_0, %c0_1, %c0_2] : memref<1x1x64x8xf32, #tpu.memory_space<vmem>>, vector<1x1x64x8xf32>
    %3 = vector.shape_cast %2 : vector<1x1x64x8xf32> to vector<64x8xf32>
    %c0_3 = arith.constant 0 : index
    %c0_4 = arith.constant 0 : index
    %c0_5 = arith.constant 0 : index
    %c0_6 = arith.constant 0 : index
    %4 = vector.load %arg4[%c0_3, %c0_4, %c0_5, %c0_6] : memref<1x1x64x8xf32, #tpu.memory_space<vmem>>, vector<1x1x64x8xf32>
    %5 = vector.shape_cast %4 : vector<1x1x64x8xf32> to vector<64x8xf32>
    %6 = tpu.iota {dimensions = array<i32: 0>} : vector<64x1xi32>
    %7 = tpu.iota {dimensions = array<i32: 1>} : vector<1x64xi32>
    %8 = arith.sitofp %1 : i32 to f32
    %9 = math.log %8 : f32
    %10 = vector.broadcast %1 : i32 to vector<64x1xi32>
    %11 = arith.cmpi slt, %6, %10 : vector<64x1xi32>
    %cst = arith.constant 0.000000e+00 : f32
    %12 = arith.subf %cst, %9 : f32
    %cst_7 = arith.constant -1.000000e+30 : f32
    %13 = vector.broadcast %12 : f32 to vector<64x1xf32>
    %14 = vector.broadcast %cst_7 : f32 to vector<64x1xf32>
    %15 = arith.select %11, %13, %14 : vector<64x1xi1>, vector<64x1xf32>
    %16 = vector.broadcast %1 : i32 to vector<1x64xi32>
    %17 = arith.cmpi slt, %7, %16 : vector<1x64xi32>
    %cst_8 = arith.constant 0.000000e+00 : f32
    %18 = arith.subf %cst_8, %9 : f32
    %cst_9 = arith.constant -1.000000e+30 : f32
    %19 = vector.broadcast %18 : f32 to vector<1x64xf32>
    %20 = vector.broadcast %cst_9 : f32 to vector<1x64xf32>
    %21 = arith.select %17, %19, %20 : vector<1x64xi1>, vector<1x64xf32>
    %22 = tpu.iota {dimensions = array<i32: 0>} : vector<64x64xi32>
    %23 = tpu.iota {dimensions = array<i32: 1>} : vector<64x64xi32>
    %24 = arith.cmpi eq, %22, %23 : vector<64x64xi32>
    %25 = arith.extui %24 : vector<64x64xi1> to vector<64x64xi32>
    %26 = arith.sitofp %25 : vector<64x64xi32> to vector<64x64xf32>
    %cst_10 = arith.constant 1.000000e+00 : f32
    %27 = vector.broadcast %cst_10 : f32 to vector<64x1xf32>
    %cst_11 = arith.constant 1.000000e+00 : f32
    %28 = vector.broadcast %cst_11 : f32 to vector<1x64xf32>
    %29 = arith.mulf %3, %3 : vector<64x8xf32>
    %cst_12 = arith.constant dense<0.000000e+00> : vector<64xf32>
    %30 = vector.multi_reduction <add>, %29, %cst_12 [1] : vector<64x8xf32> to vector<64xf32>
    %31 = vector.shape_cast %30 : vector<64xf32> to vector<64x1xf32>
    %32 = arith.mulf %5, %5 : vector<64x8xf32>
    %cst_13 = arith.constant dense<0.000000e+00> : vector<64xf32>
    %33 = vector.multi_reduction <add>, %32, %cst_13 [1] : vector<64x8xf32> to vector<64xf32>
    %34 = vector.shape_cast %33 : vector<64xf32> to vector<64x1xf32>
    %cst_14 = arith.constant dense<0.000000e+00> : vector<1x64xf32>
    %35 = tpu.matmul %31, %26, %cst_14 {dimension_numbers = #tpu.dot_dimension_numbers<[0], [0], [1], [1], [0, 1, 1, 1], [], []>} : vector<64x1xf32>, vector<64x64xf32>, vector<1x64xf32> -> vector<1x64xf32>
    %cst_15 = arith.constant dense<0.000000e+00> : vector<1x64xf32>
    %36 = tpu.matmul %34, %26, %cst_15 {dimension_numbers = #tpu.dot_dimension_numbers<[0], [0], [1], [1], [0, 1, 1, 1], [], []>} : vector<64x1xf32>, vector<64x64xf32>, vector<1x64xf32> -> vector<1x64xf32>
    %cst_16 = arith.constant dense<0.000000e+00> : vector<64x64xf32>
    %37 = tpu.matmul %3, %5, %cst_16 {dimension_numbers = #tpu.dot_dimension_numbers<[1], [1], [0], [0], [0, 0, 1, 0], [], []>} : vector<64x8xf32>, vector<64x8xf32>, vector<64x64xf32> -> vector<64x64xf32>
    %cst_17 = arith.constant dense<0.000000e+00> : vector<64x64xf32>
    %38 = tpu.matmul %3, %3, %cst_17 {dimension_numbers = #tpu.dot_dimension_numbers<[1], [1], [0], [0], [0, 0, 1, 0], [], []>} : vector<64x8xf32>, vector<64x8xf32>, vector<64x64xf32> -> vector<64x64xf32>
    %cst_18 = arith.constant dense<0.000000e+00> : vector<64x64xf32>
    %39 = tpu.matmul %5, %5, %cst_18 {dimension_numbers = #tpu.dot_dimension_numbers<[1], [1], [0], [0], [0, 0, 1, 0], [], []>} : vector<64x8xf32>, vector<64x8xf32>, vector<64x64xf32> -> vector<64x64xf32>
    %40 = vector.broadcast %31 : vector<64x1xf32> to vector<64x64xf32>
    %41 = vector.broadcast %36 : vector<1x64xf32> to vector<64x64xf32>
    %42 = arith.addf %40, %41 : vector<64x64xf32>
    %cst_19 = arith.constant 5.000000e-01 : f32
    %43 = vector.broadcast %cst_19 : f32 to vector<64x64xf32>
    %44 = arith.mulf %43, %42 : vector<64x64xf32>
    %45 = arith.subf %44, %37 : vector<64x64xf32>
    %cst_20 = arith.constant 0.000000e+00 : f32
    %46 = vector.broadcast %cst_20 : f32 to vector<64x64xf32>
    %47 = arith.maximumf %45, %46 : vector<64x64xf32>
    %48 = vector.broadcast %31 : vector<64x1xf32> to vector<64x64xf32>
    %49 = vector.broadcast %35 : vector<1x64xf32> to vector<64x64xf32>
    %50 = arith.addf %48, %49 : vector<64x64xf32>
    %cst_21 = arith.constant 5.000000e-01 : f32
    %51 = vector.broadcast %cst_21 : f32 to vector<64x64xf32>
    %52 = arith.mulf %51, %50 : vector<64x64xf32>
    %53 = arith.subf %52, %38 : vector<64x64xf32>
    %cst_22 = arith.constant 0.000000e+00 : f32
    %54 = vector.broadcast %cst_22 : f32 to vector<64x64xf32>
    %55 = arith.maximumf %53, %54 : vector<64x64xf32>
    %56 = vector.broadcast %34 : vector<64x1xf32> to vector<64x64xf32>
    %57 = vector.broadcast %36 : vector<1x64xf32> to vector<64x64xf32>
    %58 = arith.addf %56, %57 : vector<64x64xf32>
    %cst_23 = arith.constant 5.000000e-01 : f32
    %59 = vector.broadcast %cst_23 : f32 to vector<64x64xf32>
    %60 = arith.mulf %59, %58 : vector<64x64xf32>
    %61 = arith.subf %60, %39 : vector<64x64xf32>
    %cst_24 = arith.constant 0.000000e+00 : f32
    %62 = vector.broadcast %cst_24 : f32 to vector<64x64xf32>
    %63 = arith.maximumf %61, %62 : vector<64x64xf32>
    %64 = vector.broadcast %1 : i32 to vector<64x1xi32>
    %65 = arith.cmpi slt, %6, %64 : vector<64x1xi32>
    %66 = vector.broadcast %1 : i32 to vector<1x64xi32>
    %67 = arith.cmpi slt, %7, %66 : vector<1x64xi32>
    %68 = vector.broadcast %65 : vector<64x1xi1> to vector<64x64xi1>
    %69 = vector.broadcast %67 : vector<1x64xi1> to vector<64x64xi1>
    %70 = arith.andi %68, %69 : vector<64x64xi1>
    %cst_25 = arith.constant 0.000000e+00 : f32
    %71 = vector.broadcast %cst_25 : f32 to vector<64x64xf32>
    %72 = arith.select %70, %47, %71 : vector<64x64xi1>, vector<64x64xf32>
    %73 = vector.shape_cast %72 : vector<64x64xf32> to vector<1x64x64xf32>
    %cst_26 = arith.constant dense<0xFF800000> : vector<1xf32>
    %74 = vector.multi_reduction <maximumf>, %73, %cst_26 [1, 2] : vector<1x64x64xf32> to vector<1xf32>
    %75 = vector.shape_cast %74 : vector<1xf32> to vector<1x1x1xf32>
    %76 = vector.extract %75[0, 0, 0] : f32 from vector<1x1x1xf32>
    %77 = vector.broadcast %76 : f32 to vector<1x1xf32>
    %cst_27 = arith.constant 2.000000e+00 : f32
    %78 = vector.broadcast %cst_27 : f32 to vector<1x1xf32>
    %79 = arith.mulf %78, %77 : vector<1x1xf32>
    %cst_28 = arith.constant 9.99999997E-7 : f32
    %80 = vector.broadcast %cst_28 : f32 to vector<1x1xf32>
    %81 = arith.addf %79, %80 : vector<1x1xf32>
    %cst_29 = arith.constant 0.000000e+00 : f32
    %82 = vector.broadcast %cst_29 : f32 to vector<64x1xf32>
    %cst_30 = arith.constant 0.000000e+00 : f32
    %83 = vector.broadcast %cst_30 : f32 to vector<1x64xf32>
    %cst_31 = arith.constant 2.500000e-03 : f32
    %cst_32 = arith.constant 2.500000e-01 : f32
    %c0_i32 = arith.constant 0 : i32
    %c20_i32 = arith.constant 20 : i32
    %84 = arith.addi %c0_i32, %c20_i32 : i32
    %c1_i32 = arith.constant 1 : i32
    %85:3 = scf.for %arg6 = %c0_i32 to %84 step %c1_i32 iter_args(%arg7 = %82, %arg8 = %83, %arg9 = %81) -> (vector<64x1xf32>, vector<1x64xf32>, vector<1x1xf32>)  : i32 {
      %181 = vector.broadcast %cst_31 : f32 to vector<1x1xf32>
      %182 = arith.maximumf %181, %arg9 : vector<1x1xf32>
      %cst_67 = arith.constant 1.000000e+00 : f32
      %183 = vector.broadcast %cst_67 : f32 to vector<1x1xf32>
      %184 = arith.divf %183, %182 : vector<1x1xf32>
      %185 = vector.broadcast %184 : vector<1x1xf32> to vector<64x64xf32>
      %186 = arith.mulf %47, %185 : vector<64x64xf32>
      %187 = vector.broadcast %184 : vector<1x1xf32> to vector<1x64xf32>
      %188 = arith.mulf %arg8, %187 : vector<1x64xf32>
      %189 = arith.addf %21, %188 : vector<1x64xf32>
      %190 = vector.broadcast %189 : vector<1x64xf32> to vector<64x64xf32>
      %191 = arith.subf %190, %186 : vector<64x64xf32>
      %cst_68 = arith.constant dense<0xFF800000> : vector<64xf32>
      %192 = vector.multi_reduction <maximumf>, %191, %cst_68 [1] : vector<64x64xf32> to vector<64xf32>
      %193 = vector.shape_cast %192 : vector<64xf32> to vector<64x1xf32>
      %194 = vector.broadcast %193 : vector<64x1xf32> to vector<64x64xf32>
      %195 = arith.subf %191, %194 : vector<64x64xf32>
      %196 = math.exp %195 : vector<64x64xf32>
      %cst_69 = arith.constant dense<0.000000e+00> : vector<64x1xf32>
      %197 = tpu.matmul %196, %27, %cst_69 {dimension_numbers = #tpu.dot_dimension_numbers<[1], [0], [0], [1], [0, 0, 1, 1], [], []>} : vector<64x64xf32>, vector<64x1xf32>, vector<64x1xf32> -> vector<64x1xf32>
      %cst_70 = arith.constant 0.000000e+00 : f32
      %198 = vector.broadcast %cst_70 : f32 to vector<1x1xf32>
      %199 = arith.subf %198, %182 : vector<1x1xf32>
      %200 = math.log %197 : vector<64x1xf32>
      %201 = arith.addf %193, %200 : vector<64x1xf32>
      %202 = vector.broadcast %199 : vector<1x1xf32> to vector<64x1xf32>
      %203 = arith.mulf %202, %201 : vector<64x1xf32>
      %204 = vector.broadcast %184 : vector<1x1xf32> to vector<64x1xf32>
      %205 = arith.mulf %arg7, %204 : vector<64x1xf32>
      %206 = arith.addf %15, %205 : vector<64x1xf32>
      %207 = vector.broadcast %206 : vector<64x1xf32> to vector<64x64xf32>
      %208 = arith.subf %207, %186 : vector<64x64xf32>
      %cst_71 = arith.constant dense<0xFF800000> : vector<64xf32>
      %209 = vector.multi_reduction <maximumf>, %208, %cst_71 [0] : vector<64x64xf32> to vector<64xf32>
      %210 = vector.shape_cast %209 : vector<64xf32> to vector<1x64xf32>
      %211 = vector.broadcast %210 : vector<1x64xf32> to vector<64x64xf32>
      %212 = arith.subf %208, %211 : vector<64x64xf32>
      %213 = math.exp %212 : vector<64x64xf32>
      %cst_72 = arith.constant dense<0.000000e+00> : vector<1x64xf32>
      %214 = tpu.matmul %28, %213, %cst_72 {dimension_numbers = #tpu.dot_dimension_numbers<[1], [0], [0], [1], [0, 0, 1, 1], [], []>} : vector<1x64xf32>, vector<64x64xf32>, vector<1x64xf32> -> vector<1x64xf32>
      %cst_73 = arith.constant 0.000000e+00 : f32
      %215 = vector.broadcast %cst_73 : f32 to vector<1x1xf32>
      %216 = arith.subf %215, %182 : vector<1x1xf32>
      %217 = math.log %214 : vector<1x64xf32>
      %218 = arith.addf %210, %217 : vector<1x64xf32>
      %219 = vector.broadcast %216 : vector<1x1xf32> to vector<1x64xf32>
      %220 = arith.mulf %219, %218 : vector<1x64xf32>
      %221 = arith.addf %arg7, %203 : vector<64x1xf32>
      %cst_74 = arith.constant 5.000000e-01 : f32
      %222 = vector.broadcast %cst_74 : f32 to vector<64x1xf32>
      %223 = arith.mulf %222, %221 : vector<64x1xf32>
      %224 = arith.addf %arg8, %220 : vector<1x64xf32>
      %cst_75 = arith.constant 5.000000e-01 : f32
      %225 = vector.broadcast %cst_75 : f32 to vector<1x64xf32>
      %226 = arith.mulf %225, %224 : vector<1x64xf32>
      %227 = vector.broadcast %cst_32 : f32 to vector<1x1xf32>
      %228 = arith.mulf %arg9, %227 : vector<1x1xf32>
      scf.yield %223, %226, %228 : vector<64x1xf32>, vector<1x64xf32>, vector<1x1xf32>
    }
    %cst_33 = arith.constant 2.500000e-03 : f32
    %cst_34 = arith.constant 2.500000e-01 : f32
    %c0_i32_35 = arith.constant 0 : i32
    %c20_i32_36 = arith.constant 20 : i32
    %86 = arith.addi %c0_i32_35, %c20_i32_36 : i32
    %c1_i32_37 = arith.constant 1 : i32
    %87:2 = scf.for %arg6 = %c0_i32_35 to %86 step %c1_i32_37 iter_args(%arg7 = %83, %arg8 = %81) -> (vector<1x64xf32>, vector<1x1xf32>)  : i32 {
      %181 = vector.broadcast %cst_33 : f32 to vector<1x1xf32>
      %182 = arith.maximumf %181, %arg8 : vector<1x1xf32>
      %cst_67 = arith.constant 1.000000e+00 : f32
      %183 = vector.broadcast %cst_67 : f32 to vector<1x1xf32>
      %184 = arith.divf %183, %182 : vector<1x1xf32>
      %185 = vector.broadcast %184 : vector<1x1xf32> to vector<64x64xf32>
      %186 = arith.mulf %55, %185 : vector<64x64xf32>
      %cst_68 = arith.constant dense<0.000000e+00> : vector<64x1xf32>
      %187 = tpu.matmul %26, %arg7, %cst_68 {dimension_numbers = #tpu.dot_dimension_numbers<[1], [1], [0], [0], [0, 0, 1, 0], [], []>} : vector<64x64xf32>, vector<1x64xf32>, vector<64x1xf32> -> vector<64x1xf32>
      %188 = vector.broadcast %184 : vector<1x1xf32> to vector<64x1xf32>
      %189 = arith.mulf %187, %188 : vector<64x1xf32>
      %190 = arith.addf %15, %189 : vector<64x1xf32>
      %191 = vector.broadcast %190 : vector<64x1xf32> to vector<64x64xf32>
      %192 = arith.subf %191, %186 : vector<64x64xf32>
      %cst_69 = arith.constant dense<0xFF800000> : vector<64xf32>
      %193 = vector.multi_reduction <maximumf>, %192, %cst_69 [0] : vector<64x64xf32> to vector<64xf32>
      %194 = vector.shape_cast %193 : vector<64xf32> to vector<1x64xf32>
      %195 = vector.broadcast %194 : vector<1x64xf32> to vector<64x64xf32>
      %196 = arith.subf %192, %195 : vector<64x64xf32>
      %197 = math.exp %196 : vector<64x64xf32>
      %cst_70 = arith.constant dense<0.000000e+00> : vector<1x64xf32>
      %198 = tpu.matmul %28, %197, %cst_70 {dimension_numbers = #tpu.dot_dimension_numbers<[1], [0], [0], [1], [0, 0, 1, 1], [], []>} : vector<1x64xf32>, vector<64x64xf32>, vector<1x64xf32> -> vector<1x64xf32>
      %cst_71 = arith.constant 0.000000e+00 : f32
      %199 = vector.broadcast %cst_71 : f32 to vector<1x1xf32>
      %200 = arith.subf %199, %182 : vector<1x1xf32>
      %201 = math.log %198 : vector<1x64xf32>
      %202 = arith.addf %194, %201 : vector<1x64xf32>
      %203 = vector.broadcast %200 : vector<1x1xf32> to vector<1x64xf32>
      %204 = arith.mulf %203, %202 : vector<1x64xf32>
      %205 = arith.addf %arg7, %204 : vector<1x64xf32>
      %cst_72 = arith.constant 5.000000e-01 : f32
      %206 = vector.broadcast %cst_72 : f32 to vector<1x64xf32>
      %207 = arith.mulf %206, %205 : vector<1x64xf32>
      %208 = vector.broadcast %cst_34 : f32 to vector<1x1xf32>
      %209 = arith.mulf %arg8, %208 : vector<1x1xf32>
      scf.yield %207, %209 : vector<1x64xf32>, vector<1x1xf32>
    }
    %cst_38 = arith.constant 2.500000e-03 : f32
    %cst_39 = arith.constant 2.500000e-01 : f32
    %c0_i32_40 = arith.constant 0 : i32
    %c20_i32_41 = arith.constant 20 : i32
    %88 = arith.addi %c0_i32_40, %c20_i32_41 : i32
    %c1_i32_42 = arith.constant 1 : i32
    %89:2 = scf.for %arg6 = %c0_i32_40 to %88 step %c1_i32_42 iter_args(%arg7 = %82, %arg8 = %81) -> (vector<64x1xf32>, vector<1x1xf32>)  : i32 {
      %181 = vector.broadcast %cst_38 : f32 to vector<1x1xf32>
      %182 = arith.maximumf %181, %arg8 : vector<1x1xf32>
      %cst_67 = arith.constant 1.000000e+00 : f32
      %183 = vector.broadcast %cst_67 : f32 to vector<1x1xf32>
      %184 = arith.divf %183, %182 : vector<1x1xf32>
      %185 = vector.broadcast %184 : vector<1x1xf32> to vector<64x64xf32>
      %186 = arith.mulf %63, %185 : vector<64x64xf32>
      %cst_68 = arith.constant dense<0.000000e+00> : vector<1x64xf32>
      %187 = tpu.matmul %arg7, %26, %cst_68 {dimension_numbers = #tpu.dot_dimension_numbers<[0], [0], [1], [1], [0, 1, 1, 1], [], []>} : vector<64x1xf32>, vector<64x64xf32>, vector<1x64xf32> -> vector<1x64xf32>
      %188 = vector.broadcast %184 : vector<1x1xf32> to vector<1x64xf32>
      %189 = arith.mulf %187, %188 : vector<1x64xf32>
      %190 = arith.addf %21, %189 : vector<1x64xf32>
      %191 = vector.broadcast %190 : vector<1x64xf32> to vector<64x64xf32>
      %192 = arith.subf %191, %186 : vector<64x64xf32>
      %cst_69 = arith.constant dense<0xFF800000> : vector<64xf32>
      %193 = vector.multi_reduction <maximumf>, %192, %cst_69 [1] : vector<64x64xf32> to vector<64xf32>
      %194 = vector.shape_cast %193 : vector<64xf32> to vector<64x1xf32>
      %195 = vector.broadcast %194 : vector<64x1xf32> to vector<64x64xf32>
      %196 = arith.subf %192, %195 : vector<64x64xf32>
      %197 = math.exp %196 : vector<64x64xf32>
      %cst_70 = arith.constant dense<0.000000e+00> : vector<64x1xf32>
      %198 = tpu.matmul %197, %27, %cst_70 {dimension_numbers = #tpu.dot_dimension_numbers<[1], [0], [0], [1], [0, 0, 1, 1], [], []>} : vector<64x64xf32>, vector<64x1xf32>, vector<64x1xf32> -> vector<64x1xf32>
      %cst_71 = arith.constant 0.000000e+00 : f32
      %199 = vector.broadcast %cst_71 : f32 to vector<1x1xf32>
      %200 = arith.subf %199, %182 : vector<1x1xf32>
      %201 = math.log %198 : vector<64x1xf32>
      %202 = arith.addf %194, %201 : vector<64x1xf32>
      %203 = vector.broadcast %200 : vector<1x1xf32> to vector<64x1xf32>
      %204 = arith.mulf %203, %202 : vector<64x1xf32>
      %205 = arith.addf %arg7, %204 : vector<64x1xf32>
      %cst_72 = arith.constant 5.000000e-01 : f32
      %206 = vector.broadcast %cst_72 : f32 to vector<64x1xf32>
      %207 = arith.mulf %206, %205 : vector<64x1xf32>
      %208 = vector.broadcast %cst_39 : f32 to vector<1x1xf32>
      %209 = arith.mulf %arg8, %208 : vector<1x1xf32>
      scf.yield %207, %209 : vector<64x1xf32>, vector<1x1xf32>
    }
    %cst_43 = arith.constant 1.000000e+00 : f32
    %cst_44 = arith.constant 2.500000e-03 : f32
    %90 = arith.divf %cst_43, %cst_44 : f32
    %91 = vector.broadcast %90 : f32 to vector<64x64xf32>
    %92 = arith.mulf %47, %91 : vector<64x64xf32>
    %93 = vector.broadcast %90 : f32 to vector<1x64xf32>
    %94 = arith.mulf %85#1, %93 : vector<1x64xf32>
    %95 = arith.addf %21, %94 : vector<1x64xf32>
    %96 = vector.broadcast %95 : vector<1x64xf32> to vector<64x64xf32>
    %97 = arith.subf %96, %92 : vector<64x64xf32>
    %cst_45 = arith.constant dense<0xFF800000> : vector<64xf32>
    %98 = vector.multi_reduction <maximumf>, %97, %cst_45 [1] : vector<64x64xf32> to vector<64xf32>
    %99 = vector.shape_cast %98 : vector<64xf32> to vector<64x1xf32>
    %100 = vector.broadcast %99 : vector<64x1xf32> to vector<64x64xf32>
    %101 = arith.subf %97, %100 : vector<64x64xf32>
    %102 = math.exp %101 : vector<64x64xf32>
    %cst_46 = arith.constant dense<0.000000e+00> : vector<64x1xf32>
    %103 = tpu.matmul %102, %27, %cst_46 {dimension_numbers = #tpu.dot_dimension_numbers<[1], [0], [0], [1], [0, 0, 1, 1], [], []>} : vector<64x64xf32>, vector<64x1xf32>, vector<64x1xf32> -> vector<64x1xf32>
    %cst_47 = arith.constant 0.000000e+00 : f32
    %cst_48 = arith.constant 2.500000e-03 : f32
    %104 = arith.subf %cst_47, %cst_48 : f32
    %105 = math.log %103 : vector<64x1xf32>
    %106 = arith.addf %99, %105 : vector<64x1xf32>
    %107 = vector.broadcast %104 : f32 to vector<64x1xf32>
    %108 = arith.mulf %107, %106 : vector<64x1xf32>
    %109 = vector.broadcast %90 : f32 to vector<64x1xf32>
    %110 = arith.mulf %85#0, %109 : vector<64x1xf32>
    %111 = arith.addf %15, %110 : vector<64x1xf32>
    %112 = vector.broadcast %111 : vector<64x1xf32> to vector<64x64xf32>
    %113 = arith.subf %112, %92 : vector<64x64xf32>
    %cst_49 = arith.constant dense<0xFF800000> : vector<64xf32>
    %114 = vector.multi_reduction <maximumf>, %113, %cst_49 [0] : vector<64x64xf32> to vector<64xf32>
    %115 = vector.shape_cast %114 : vector<64xf32> to vector<1x64xf32>
    %116 = vector.broadcast %115 : vector<1x64xf32> to vector<64x64xf32>
    %117 = arith.subf %113, %116 : vector<64x64xf32>
    %118 = math.exp %117 : vector<64x64xf32>
    %cst_50 = arith.constant dense<0.000000e+00> : vector<1x64xf32>
    %119 = tpu.matmul %28, %118, %cst_50 {dimension_numbers = #tpu.dot_dimension_numbers<[1], [0], [0], [1], [0, 0, 1, 1], [], []>} : vector<1x64xf32>, vector<64x64xf32>, vector<1x64xf32> -> vector<1x64xf32>
    %cst_51 = arith.constant 0.000000e+00 : f32
    %cst_52 = arith.constant 2.500000e-03 : f32
    %120 = arith.subf %cst_51, %cst_52 : f32
    %121 = math.log %119 : vector<1x64xf32>
    %122 = arith.addf %115, %121 : vector<1x64xf32>
    %123 = vector.broadcast %120 : f32 to vector<1x64xf32>
    %124 = arith.mulf %123, %122 : vector<1x64xf32>
    %125 = vector.broadcast %90 : f32 to vector<64x64xf32>
    %126 = arith.mulf %55, %125 : vector<64x64xf32>
    %127 = vector.broadcast %90 : f32 to vector<1x64xf32>
    %128 = arith.mulf %87#0, %127 : vector<1x64xf32>
    %129 = arith.addf %21, %128 : vector<1x64xf32>
    %130 = vector.broadcast %129 : vector<1x64xf32> to vector<64x64xf32>
    %131 = arith.subf %130, %126 : vector<64x64xf32>
    %cst_53 = arith.constant dense<0xFF800000> : vector<64xf32>
    %132 = vector.multi_reduction <maximumf>, %131, %cst_53 [1] : vector<64x64xf32> to vector<64xf32>
    %133 = vector.shape_cast %132 : vector<64xf32> to vector<64x1xf32>
    %134 = vector.broadcast %133 : vector<64x1xf32> to vector<64x64xf32>
    %135 = arith.subf %131, %134 : vector<64x64xf32>
    %136 = math.exp %135 : vector<64x64xf32>
    %cst_54 = arith.constant dense<0.000000e+00> : vector<64x1xf32>
    %137 = tpu.matmul %136, %27, %cst_54 {dimension_numbers = #tpu.dot_dimension_numbers<[1], [0], [0], [1], [0, 0, 1, 1], [], []>} : vector<64x64xf32>, vector<64x1xf32>, vector<64x1xf32> -> vector<64x1xf32>
    %cst_55 = arith.constant 0.000000e+00 : f32
    %cst_56 = arith.constant 2.500000e-03 : f32
    %138 = arith.subf %cst_55, %cst_56 : f32
    %139 = math.log %137 : vector<64x1xf32>
    %140 = arith.addf %133, %139 : vector<64x1xf32>
    %141 = vector.broadcast %138 : f32 to vector<64x1xf32>
    %142 = arith.mulf %141, %140 : vector<64x1xf32>
    %143 = vector.broadcast %90 : f32 to vector<64x64xf32>
    %144 = arith.mulf %63, %143 : vector<64x64xf32>
    %145 = vector.broadcast %90 : f32 to vector<64x1xf32>
    %146 = arith.mulf %89#0, %145 : vector<64x1xf32>
    %147 = arith.addf %15, %146 : vector<64x1xf32>
    %148 = vector.broadcast %147 : vector<64x1xf32> to vector<64x64xf32>
    %149 = arith.subf %148, %144 : vector<64x64xf32>
    %cst_57 = arith.constant dense<0xFF800000> : vector<64xf32>
    %150 = vector.multi_reduction <maximumf>, %149, %cst_57 [0] : vector<64x64xf32> to vector<64xf32>
    %151 = vector.shape_cast %150 : vector<64xf32> to vector<1x64xf32>
    %152 = vector.broadcast %151 : vector<1x64xf32> to vector<64x64xf32>
    %153 = arith.subf %149, %152 : vector<64x64xf32>
    %154 = math.exp %153 : vector<64x64xf32>
    %cst_58 = arith.constant dense<0.000000e+00> : vector<1x64xf32>
    %155 = tpu.matmul %28, %154, %cst_58 {dimension_numbers = #tpu.dot_dimension_numbers<[1], [0], [0], [1], [0, 0, 1, 1], [], []>} : vector<1x64xf32>, vector<64x64xf32>, vector<1x64xf32> -> vector<1x64xf32>
    %cst_59 = arith.constant 0.000000e+00 : f32
    %cst_60 = arith.constant 2.500000e-03 : f32
    %156 = arith.subf %cst_59, %cst_60 : f32
    %157 = math.log %155 : vector<1x64xf32>
    %158 = arith.addf %151, %157 : vector<1x64xf32>
    %159 = vector.broadcast %156 : f32 to vector<1x64xf32>
    %160 = arith.mulf %159, %158 : vector<1x64xf32>
    %161 = math.exp %15 : vector<64x1xf32>
    %162 = math.exp %21 : vector<1x64xf32>
    %163 = arith.subf %108, %142 : vector<64x1xf32>
    %164 = arith.mulf %161, %163 : vector<64x1xf32>
    %165 = vector.shape_cast %164 : vector<64x1xf32> to vector<1x64x1xf32>
    %cst_61 = arith.constant dense<0.000000e+00> : vector<1xf32>
    %166 = vector.multi_reduction <add>, %165, %cst_61 [1, 2] : vector<1x64x1xf32> to vector<1xf32>
    %167 = vector.shape_cast %166 : vector<1xf32> to vector<1x1x1xf32>
    %168 = vector.extract %167[0, 0, 0] : f32 from vector<1x1x1xf32>
    %169 = vector.broadcast %168 : f32 to vector<1x1xf32>
    %170 = arith.subf %124, %160 : vector<1x64xf32>
    %171 = arith.mulf %162, %170 : vector<1x64xf32>
    %172 = vector.shape_cast %171 : vector<1x64xf32> to vector<1x1x64xf32>
    %cst_62 = arith.constant dense<0.000000e+00> : vector<1xf32>
    %173 = vector.multi_reduction <add>, %172, %cst_62 [1, 2] : vector<1x1x64xf32> to vector<1xf32>
    %174 = vector.shape_cast %173 : vector<1xf32> to vector<1x1x1xf32>
    %175 = vector.extract %174[0, 0, 0] : f32 from vector<1x1x1xf32>
    %176 = vector.broadcast %175 : f32 to vector<1x1xf32>
    %177 = arith.addf %169, %176 : vector<1x1xf32>
    %c0_63 = arith.constant 0 : index
    %c0_64 = arith.constant 0 : index
    %c0_65 = arith.constant 0 : index
    %c0_66 = arith.constant 0 : index
    %178 = vector.load %arg5[%c0_63, %c0_64, %c0_65, %c0_66] : memref<1x1x1x1xf32, #tpu.memory_space<vmem>>, vector<1x1x1x1xf32>
    %179 = vector.shape_cast %178 : vector<1x1x1x1xf32> to vector<1x1xf32>
    %180 = vector.shape_cast %177 : vector<1x1xf32> to vector<1x1x1x1xf32>
    tpu.vector_store %arg5[%c0_63, %c0_64, %c0_65, %c0_66], %180 {strides = array<i32>} : memref<1x1x1x1xf32, #tpu.memory_space<vmem>>, vector<1x1x1x1xf32>,
    return
  }
  func.func @transform_0(%arg0: i32, %arg1: i32, %arg2: memref<7xi32, #tpu.memory_space<smem>>) -> (i32, i32, i32, i32) {
    %c0_i32 = arith.constant 0 : i32
    %c0_i32_0 = arith.constant 0 : i32
    %c0_i32_1 = arith.constant 0 : i32
    return %arg0, %arg1, %c0_i32, %c0_i32_0 : i32, i32, i32, i32
  }
  func.func @transform_1(%arg0: i32, %arg1: i32, %arg2: memref<7xi32, #tpu.memory_space<smem>>) -> (i32, i32, i32, i32) {
    %c0_i32 = arith.constant 0 : i32
    %c0_i32_0 = arith.constant 0 : i32
    %c0_i32_1 = arith.constant 0 : i32
    return %arg0, %arg1, %c0_i32, %c0_i32_0 : i32, i32, i32, i32
  }
  func.func @transform_2(%arg0: i32, %arg1: i32, %arg2: memref<7xi32, #tpu.memory_space<smem>>) -> (i32, i32, i32, i32) {
    %c0_i32 = arith.constant 0 : i32
    %c0_i32_0 = arith.constant 0 : i32
    %c0_i32_1 = arith.constant 0 : i32
    return %arg0, %arg1, %c0_i32, %c0_i32_0 : i32, i32, i32, i32
  }
}

module attributes {stable_mosaic.version = 11 : i64} {
  func.func @kernel(%arg0: i32, %arg1: i32, %arg2: memref<12xi32, #tpu.memory_space<smem>>, %arg3: memref<1x1x48x8xf32, #tpu.memory_space<vmem>>, %arg4: memref<1x1x48x8xf32, #tpu.memory_space<vmem>>, %arg5: memref<1x1x1x1xf32, #tpu.memory_space<vmem>>) attributes {dimension_semantics = [#tpu.dimension_semantics<parallel>, #tpu.dimension_semantics<parallel>], iteration_bounds = array<i64: 12, 2>, scalar_prefetch = 1 : i64, scratch_operands = 0 : i64, tpu.core_type = #tpu.core_type<tc>, window_params = [{transform_indices = @transform_0, window_bounds = array<i64: 1, 1, 48, 8>}, {transform_indices = @transform_1, window_bounds = array<i64: 1, 1, 48, 8>}, {transform_indices = @transform_2, window_bounds = array<i64: 1, 1, 1, 1>}]} {
    %0 = arith.index_cast %arg0 : i32 to index
    %1 = memref.load %arg2[%0] : memref<12xi32, #tpu.memory_space<smem>>
    %c0 = arith.constant 0 : index
    %c0_0 = arith.constant 0 : index
    %c0_1 = arith.constant 0 : index
    %c0_2 = arith.constant 0 : index
    %2 = vector.load %arg3[%c0, %c0_0, %c0_1, %c0_2] : memref<1x1x48x8xf32, #tpu.memory_space<vmem>>, vector<1x1x48x8xf32>
    %3 = vector.shape_cast %2 : vector<1x1x48x8xf32> to vector<48x8xf32>
    %c0_3 = arith.constant 0 : index
    %c0_4 = arith.constant 0 : index
    %c0_5 = arith.constant 0 : index
    %c0_6 = arith.constant 0 : index
    %4 = vector.load %arg4[%c0_3, %c0_4, %c0_5, %c0_6] : memref<1x1x48x8xf32, #tpu.memory_space<vmem>>, vector<1x1x48x8xf32>
    %5 = vector.shape_cast %4 : vector<1x1x48x8xf32> to vector<48x8xf32>
    %6 = tpu.iota {dimensions = array<i32: 0>} : vector<48x1xi32>
    %7 = tpu.iota {dimensions = array<i32: 1>} : vector<1x48xi32>
    %8 = arith.sitofp %1 : i32 to f32
    %9 = math.log %8 : f32
    %10 = vector.broadcast %1 : i32 to vector<48x1xi32>
    %11 = arith.cmpi slt, %6, %10 : vector<48x1xi32>
    %cst = arith.constant 0.000000e+00 : f32
    %12 = arith.subf %cst, %9 : f32
    %cst_7 = arith.constant -1.000000e+30 : f32
    %13 = vector.broadcast %12 : f32 to vector<48x1xf32>
    %14 = vector.broadcast %cst_7 : f32 to vector<48x1xf32>
    %15 = arith.select %11, %13, %14 : vector<48x1xi1>, vector<48x1xf32>
    %16 = vector.broadcast %1 : i32 to vector<1x48xi32>
    %17 = arith.cmpi slt, %7, %16 : vector<1x48xi32>
    %cst_8 = arith.constant 0.000000e+00 : f32
    %18 = arith.subf %cst_8, %9 : f32
    %cst_9 = arith.constant -1.000000e+30 : f32
    %19 = vector.broadcast %18 : f32 to vector<1x48xf32>
    %20 = vector.broadcast %cst_9 : f32 to vector<1x48xf32>
    %21 = arith.select %17, %19, %20 : vector<1x48xi1>, vector<1x48xf32>
    %22 = tpu.iota {dimensions = array<i32: 0>} : vector<48x48xi32>
    %23 = tpu.iota {dimensions = array<i32: 1>} : vector<48x48xi32>
    %24 = arith.cmpi eq, %22, %23 : vector<48x48xi32>
    %25 = arith.extui %24 : vector<48x48xi1> to vector<48x48xi32>
    %26 = arith.sitofp %25 : vector<48x48xi32> to vector<48x48xf32>
    %cst_10 = arith.constant 1.000000e+00 : f32
    %27 = vector.broadcast %cst_10 : f32 to vector<48x1xf32>
    %cst_11 = arith.constant 1.000000e+00 : f32
    %28 = vector.broadcast %cst_11 : f32 to vector<1x48xf32>
    %29 = arith.mulf %3, %3 : vector<48x8xf32>
    %cst_12 = arith.constant dense<0.000000e+00> : vector<48xf32>
    %30 = vector.multi_reduction <add>, %29, %cst_12 [1] : vector<48x8xf32> to vector<48xf32>
    %31 = vector.shape_cast %30 : vector<48xf32> to vector<48x1xf32>
    %32 = arith.mulf %5, %5 : vector<48x8xf32>
    %cst_13 = arith.constant dense<0.000000e+00> : vector<48xf32>
    %33 = vector.multi_reduction <add>, %32, %cst_13 [1] : vector<48x8xf32> to vector<48xf32>
    %34 = vector.shape_cast %33 : vector<48xf32> to vector<48x1xf32>
    %cst_14 = arith.constant dense<0.000000e+00> : vector<1x48xf32>
    %35 = tpu.matmul %31, %26, %cst_14 {dimension_numbers = #tpu.dot_dimension_numbers<[0], [0], [1], [1], [0, 1, 1, 1], [], []>} : vector<48x1xf32>, vector<48x48xf32>, vector<1x48xf32> -> vector<1x48xf32>
    %cst_15 = arith.constant dense<0.000000e+00> : vector<1x48xf32>
    %36 = tpu.matmul %34, %26, %cst_15 {dimension_numbers = #tpu.dot_dimension_numbers<[0], [0], [1], [1], [0, 1, 1, 1], [], []>} : vector<48x1xf32>, vector<48x48xf32>, vector<1x48xf32> -> vector<1x48xf32>
    %cst_16 = arith.constant dense<0.000000e+00> : vector<48x48xf32>
    %37 = tpu.matmul %3, %5, %cst_16 {dimension_numbers = #tpu.dot_dimension_numbers<[1], [1], [0], [0], [0, 0, 1, 0], [], []>} : vector<48x8xf32>, vector<48x8xf32>, vector<48x48xf32> -> vector<48x48xf32>
    %cst_17 = arith.constant dense<0.000000e+00> : vector<48x48xf32>
    %38 = tpu.matmul %3, %3, %cst_17 {dimension_numbers = #tpu.dot_dimension_numbers<[1], [1], [0], [0], [0, 0, 1, 0], [], []>} : vector<48x8xf32>, vector<48x8xf32>, vector<48x48xf32> -> vector<48x48xf32>
    %cst_18 = arith.constant dense<0.000000e+00> : vector<48x48xf32>
    %39 = tpu.matmul %5, %5, %cst_18 {dimension_numbers = #tpu.dot_dimension_numbers<[1], [1], [0], [0], [0, 0, 1, 0], [], []>} : vector<48x8xf32>, vector<48x8xf32>, vector<48x48xf32> -> vector<48x48xf32>
    %40 = vector.broadcast %31 : vector<48x1xf32> to vector<48x48xf32>
    %41 = vector.broadcast %36 : vector<1x48xf32> to vector<48x48xf32>
    %42 = arith.addf %40, %41 : vector<48x48xf32>
    %cst_19 = arith.constant 5.000000e-01 : f32
    %43 = vector.broadcast %cst_19 : f32 to vector<48x48xf32>
    %44 = arith.mulf %43, %42 : vector<48x48xf32>
    %45 = arith.subf %44, %37 : vector<48x48xf32>
    %cst_20 = arith.constant 0.000000e+00 : f32
    %46 = vector.broadcast %cst_20 : f32 to vector<48x48xf32>
    %47 = arith.maximumf %45, %46 : vector<48x48xf32>
    %48 = vector.broadcast %31 : vector<48x1xf32> to vector<48x48xf32>
    %49 = vector.broadcast %35 : vector<1x48xf32> to vector<48x48xf32>
    %50 = arith.addf %48, %49 : vector<48x48xf32>
    %cst_21 = arith.constant 5.000000e-01 : f32
    %51 = vector.broadcast %cst_21 : f32 to vector<48x48xf32>
    %52 = arith.mulf %51, %50 : vector<48x48xf32>
    %53 = arith.subf %52, %38 : vector<48x48xf32>
    %cst_22 = arith.constant 0.000000e+00 : f32
    %54 = vector.broadcast %cst_22 : f32 to vector<48x48xf32>
    %55 = arith.maximumf %53, %54 : vector<48x48xf32>
    %56 = vector.broadcast %34 : vector<48x1xf32> to vector<48x48xf32>
    %57 = vector.broadcast %36 : vector<1x48xf32> to vector<48x48xf32>
    %58 = arith.addf %56, %57 : vector<48x48xf32>
    %cst_23 = arith.constant 5.000000e-01 : f32
    %59 = vector.broadcast %cst_23 : f32 to vector<48x48xf32>
    %60 = arith.mulf %59, %58 : vector<48x48xf32>
    %61 = arith.subf %60, %39 : vector<48x48xf32>
    %cst_24 = arith.constant 0.000000e+00 : f32
    %62 = vector.broadcast %cst_24 : f32 to vector<48x48xf32>
    %63 = arith.maximumf %61, %62 : vector<48x48xf32>
    %64 = vector.broadcast %1 : i32 to vector<48x1xi32>
    %65 = arith.cmpi slt, %6, %64 : vector<48x1xi32>
    %66 = vector.broadcast %1 : i32 to vector<1x48xi32>
    %67 = arith.cmpi slt, %7, %66 : vector<1x48xi32>
    %68 = vector.broadcast %65 : vector<48x1xi1> to vector<48x48xi1>
    %69 = vector.broadcast %67 : vector<1x48xi1> to vector<48x48xi1>
    %70 = arith.andi %68, %69 : vector<48x48xi1>
    %cst_25 = arith.constant 0.000000e+00 : f32
    %71 = vector.broadcast %cst_25 : f32 to vector<48x48xf32>
    %72 = arith.select %70, %47, %71 : vector<48x48xi1>, vector<48x48xf32>
    %73 = vector.shape_cast %72 : vector<48x48xf32> to vector<1x48x48xf32>
    %cst_26 = arith.constant dense<0xFF800000> : vector<1xf32>
    %74 = vector.multi_reduction <maximumf>, %73, %cst_26 [1, 2] : vector<1x48x48xf32> to vector<1xf32>
    %75 = vector.shape_cast %74 : vector<1xf32> to vector<1x1x1xf32>
    %76 = vector.extract %75[0, 0, 0] : f32 from vector<1x1x1xf32>
    %77 = vector.broadcast %76 : f32 to vector<1x1xf32>
    %cst_27 = arith.constant 2.000000e+00 : f32
    %78 = vector.broadcast %cst_27 : f32 to vector<1x1xf32>
    %79 = arith.mulf %78, %77 : vector<1x1xf32>
    %cst_28 = arith.constant 9.99999997E-7 : f32
    %80 = vector.broadcast %cst_28 : f32 to vector<1x1xf32>
    %81 = arith.addf %79, %80 : vector<1x1xf32>
    %cst_29 = arith.constant 0.000000e+00 : f32
    %82 = vector.broadcast %cst_29 : f32 to vector<48x1xf32>
    %cst_30 = arith.constant 0.000000e+00 : f32
    %83 = vector.broadcast %cst_30 : f32 to vector<1x48xf32>
    %cst_31 = arith.constant 2.500000e-03 : f32
    %cst_32 = arith.constant 2.500000e-01 : f32
    %c0_i32 = arith.constant 0 : i32
    %c20_i32 = arith.constant 20 : i32
    %84 = arith.addi %c0_i32, %c20_i32 : i32
    %c1_i32 = arith.constant 1 : i32
    %85:3 = scf.for %arg6 = %c0_i32 to %84 step %c1_i32 iter_args(%arg7 = %82, %arg8 = %83, %arg9 = %81) -> (vector<48x1xf32>, vector<1x48xf32>, vector<1x1xf32>)  : i32 {
      %181 = vector.broadcast %cst_31 : f32 to vector<1x1xf32>
      %182 = arith.maximumf %181, %arg9 : vector<1x1xf32>
      %cst_67 = arith.constant 1.000000e+00 : f32
      %183 = vector.broadcast %cst_67 : f32 to vector<1x1xf32>
      %184 = arith.divf %183, %182 : vector<1x1xf32>
      %185 = vector.broadcast %184 : vector<1x1xf32> to vector<48x48xf32>
      %186 = arith.mulf %47, %185 : vector<48x48xf32>
      %187 = vector.broadcast %184 : vector<1x1xf32> to vector<1x48xf32>
      %188 = arith.mulf %arg8, %187 : vector<1x48xf32>
      %189 = arith.addf %21, %188 : vector<1x48xf32>
      %190 = vector.broadcast %189 : vector<1x48xf32> to vector<48x48xf32>
      %191 = arith.subf %190, %186 : vector<48x48xf32>
      %cst_68 = arith.constant dense<0xFF800000> : vector<48xf32>
      %192 = vector.multi_reduction <maximumf>, %191, %cst_68 [1] : vector<48x48xf32> to vector<48xf32>
      %193 = vector.shape_cast %192 : vector<48xf32> to vector<48x1xf32>
      %194 = vector.broadcast %193 : vector<48x1xf32> to vector<48x48xf32>
      %195 = arith.subf %191, %194 : vector<48x48xf32>
      %196 = math.exp %195 : vector<48x48xf32>
      %cst_69 = arith.constant dense<0.000000e+00> : vector<48x1xf32>
      %197 = tpu.matmul %196, %27, %cst_69 {dimension_numbers = #tpu.dot_dimension_numbers<[1], [0], [0], [1], [0, 0, 1, 1], [], []>} : vector<48x48xf32>, vector<48x1xf32>, vector<48x1xf32> -> vector<48x1xf32>
      %cst_70 = arith.constant 0.000000e+00 : f32
      %198 = vector.broadcast %cst_70 : f32 to vector<1x1xf32>
      %199 = arith.subf %198, %182 : vector<1x1xf32>
      %200 = math.log %197 : vector<48x1xf32>
      %201 = arith.addf %193, %200 : vector<48x1xf32>
      %202 = vector.broadcast %199 : vector<1x1xf32> to vector<48x1xf32>
      %203 = arith.mulf %202, %201 : vector<48x1xf32>
      %204 = vector.broadcast %184 : vector<1x1xf32> to vector<48x1xf32>
      %205 = arith.mulf %arg7, %204 : vector<48x1xf32>
      %206 = arith.addf %15, %205 : vector<48x1xf32>
      %207 = vector.broadcast %206 : vector<48x1xf32> to vector<48x48xf32>
      %208 = arith.subf %207, %186 : vector<48x48xf32>
      %cst_71 = arith.constant dense<0xFF800000> : vector<48xf32>
      %209 = vector.multi_reduction <maximumf>, %208, %cst_71 [0] : vector<48x48xf32> to vector<48xf32>
      %210 = vector.shape_cast %209 : vector<48xf32> to vector<1x48xf32>
      %211 = vector.broadcast %210 : vector<1x48xf32> to vector<48x48xf32>
      %212 = arith.subf %208, %211 : vector<48x48xf32>
      %213 = math.exp %212 : vector<48x48xf32>
      %cst_72 = arith.constant dense<0.000000e+00> : vector<1x48xf32>
      %214 = tpu.matmul %28, %213, %cst_72 {dimension_numbers = #tpu.dot_dimension_numbers<[1], [0], [0], [1], [0, 0, 1, 1], [], []>} : vector<1x48xf32>, vector<48x48xf32>, vector<1x48xf32> -> vector<1x48xf32>
      %cst_73 = arith.constant 0.000000e+00 : f32
      %215 = vector.broadcast %cst_73 : f32 to vector<1x1xf32>
      %216 = arith.subf %215, %182 : vector<1x1xf32>
      %217 = math.log %214 : vector<1x48xf32>
      %218 = arith.addf %210, %217 : vector<1x48xf32>
      %219 = vector.broadcast %216 : vector<1x1xf32> to vector<1x48xf32>
      %220 = arith.mulf %219, %218 : vector<1x48xf32>
      %221 = arith.addf %arg7, %203 : vector<48x1xf32>
      %cst_74 = arith.constant 5.000000e-01 : f32
      %222 = vector.broadcast %cst_74 : f32 to vector<48x1xf32>
      %223 = arith.mulf %222, %221 : vector<48x1xf32>
      %224 = arith.addf %arg8, %220 : vector<1x48xf32>
      %cst_75 = arith.constant 5.000000e-01 : f32
      %225 = vector.broadcast %cst_75 : f32 to vector<1x48xf32>
      %226 = arith.mulf %225, %224 : vector<1x48xf32>
      %227 = vector.broadcast %cst_32 : f32 to vector<1x1xf32>
      %228 = arith.mulf %arg9, %227 : vector<1x1xf32>
      scf.yield %223, %226, %228 : vector<48x1xf32>, vector<1x48xf32>, vector<1x1xf32>
    }
    %cst_33 = arith.constant 2.500000e-03 : f32
    %cst_34 = arith.constant 2.500000e-01 : f32
    %c0_i32_35 = arith.constant 0 : i32
    %c20_i32_36 = arith.constant 20 : i32
    %86 = arith.addi %c0_i32_35, %c20_i32_36 : i32
    %c1_i32_37 = arith.constant 1 : i32
    %87:2 = scf.for %arg6 = %c0_i32_35 to %86 step %c1_i32_37 iter_args(%arg7 = %83, %arg8 = %81) -> (vector<1x48xf32>, vector<1x1xf32>)  : i32 {
      %181 = vector.broadcast %cst_33 : f32 to vector<1x1xf32>
      %182 = arith.maximumf %181, %arg8 : vector<1x1xf32>
      %cst_67 = arith.constant 1.000000e+00 : f32
      %183 = vector.broadcast %cst_67 : f32 to vector<1x1xf32>
      %184 = arith.divf %183, %182 : vector<1x1xf32>
      %185 = vector.broadcast %184 : vector<1x1xf32> to vector<48x48xf32>
      %186 = arith.mulf %55, %185 : vector<48x48xf32>
      %cst_68 = arith.constant dense<0.000000e+00> : vector<48x1xf32>
      %187 = tpu.matmul %26, %arg7, %cst_68 {dimension_numbers = #tpu.dot_dimension_numbers<[1], [1], [0], [0], [0, 0, 1, 0], [], []>} : vector<48x48xf32>, vector<1x48xf32>, vector<48x1xf32> -> vector<48x1xf32>
      %188 = vector.broadcast %184 : vector<1x1xf32> to vector<48x1xf32>
      %189 = arith.mulf %187, %188 : vector<48x1xf32>
      %190 = arith.addf %15, %189 : vector<48x1xf32>
      %191 = vector.broadcast %190 : vector<48x1xf32> to vector<48x48xf32>
      %192 = arith.subf %191, %186 : vector<48x48xf32>
      %cst_69 = arith.constant dense<0xFF800000> : vector<48xf32>
      %193 = vector.multi_reduction <maximumf>, %192, %cst_69 [0] : vector<48x48xf32> to vector<48xf32>
      %194 = vector.shape_cast %193 : vector<48xf32> to vector<1x48xf32>
      %195 = vector.broadcast %194 : vector<1x48xf32> to vector<48x48xf32>
      %196 = arith.subf %192, %195 : vector<48x48xf32>
      %197 = math.exp %196 : vector<48x48xf32>
      %cst_70 = arith.constant dense<0.000000e+00> : vector<1x48xf32>
      %198 = tpu.matmul %28, %197, %cst_70 {dimension_numbers = #tpu.dot_dimension_numbers<[1], [0], [0], [1], [0, 0, 1, 1], [], []>} : vector<1x48xf32>, vector<48x48xf32>, vector<1x48xf32> -> vector<1x48xf32>
      %cst_71 = arith.constant 0.000000e+00 : f32
      %199 = vector.broadcast %cst_71 : f32 to vector<1x1xf32>
      %200 = arith.subf %199, %182 : vector<1x1xf32>
      %201 = math.log %198 : vector<1x48xf32>
      %202 = arith.addf %194, %201 : vector<1x48xf32>
      %203 = vector.broadcast %200 : vector<1x1xf32> to vector<1x48xf32>
      %204 = arith.mulf %203, %202 : vector<1x48xf32>
      %205 = arith.addf %arg7, %204 : vector<1x48xf32>
      %cst_72 = arith.constant 5.000000e-01 : f32
      %206 = vector.broadcast %cst_72 : f32 to vector<1x48xf32>
      %207 = arith.mulf %206, %205 : vector<1x48xf32>
      %208 = vector.broadcast %cst_34 : f32 to vector<1x1xf32>
      %209 = arith.mulf %arg8, %208 : vector<1x1xf32>
      scf.yield %207, %209 : vector<1x48xf32>, vector<1x1xf32>
    }
    %cst_38 = arith.constant 2.500000e-03 : f32
    %cst_39 = arith.constant 2.500000e-01 : f32
    %c0_i32_40 = arith.constant 0 : i32
    %c20_i32_41 = arith.constant 20 : i32
    %88 = arith.addi %c0_i32_40, %c20_i32_41 : i32
    %c1_i32_42 = arith.constant 1 : i32
    %89:2 = scf.for %arg6 = %c0_i32_40 to %88 step %c1_i32_42 iter_args(%arg7 = %82, %arg8 = %81) -> (vector<48x1xf32>, vector<1x1xf32>)  : i32 {
      %181 = vector.broadcast %cst_38 : f32 to vector<1x1xf32>
      %182 = arith.maximumf %181, %arg8 : vector<1x1xf32>
      %cst_67 = arith.constant 1.000000e+00 : f32
      %183 = vector.broadcast %cst_67 : f32 to vector<1x1xf32>
      %184 = arith.divf %183, %182 : vector<1x1xf32>
      %185 = vector.broadcast %184 : vector<1x1xf32> to vector<48x48xf32>
      %186 = arith.mulf %63, %185 : vector<48x48xf32>
      %cst_68 = arith.constant dense<0.000000e+00> : vector<1x48xf32>
      %187 = tpu.matmul %arg7, %26, %cst_68 {dimension_numbers = #tpu.dot_dimension_numbers<[0], [0], [1], [1], [0, 1, 1, 1], [], []>} : vector<48x1xf32>, vector<48x48xf32>, vector<1x48xf32> -> vector<1x48xf32>
      %188 = vector.broadcast %184 : vector<1x1xf32> to vector<1x48xf32>
      %189 = arith.mulf %187, %188 : vector<1x48xf32>
      %190 = arith.addf %21, %189 : vector<1x48xf32>
      %191 = vector.broadcast %190 : vector<1x48xf32> to vector<48x48xf32>
      %192 = arith.subf %191, %186 : vector<48x48xf32>
      %cst_69 = arith.constant dense<0xFF800000> : vector<48xf32>
      %193 = vector.multi_reduction <maximumf>, %192, %cst_69 [1] : vector<48x48xf32> to vector<48xf32>
      %194 = vector.shape_cast %193 : vector<48xf32> to vector<48x1xf32>
      %195 = vector.broadcast %194 : vector<48x1xf32> to vector<48x48xf32>
      %196 = arith.subf %192, %195 : vector<48x48xf32>
      %197 = math.exp %196 : vector<48x48xf32>
      %cst_70 = arith.constant dense<0.000000e+00> : vector<48x1xf32>
      %198 = tpu.matmul %197, %27, %cst_70 {dimension_numbers = #tpu.dot_dimension_numbers<[1], [0], [0], [1], [0, 0, 1, 1], [], []>} : vector<48x48xf32>, vector<48x1xf32>, vector<48x1xf32> -> vector<48x1xf32>
      %cst_71 = arith.constant 0.000000e+00 : f32
      %199 = vector.broadcast %cst_71 : f32 to vector<1x1xf32>
      %200 = arith.subf %199, %182 : vector<1x1xf32>
      %201 = math.log %198 : vector<48x1xf32>
      %202 = arith.addf %194, %201 : vector<48x1xf32>
      %203 = vector.broadcast %200 : vector<1x1xf32> to vector<48x1xf32>
      %204 = arith.mulf %203, %202 : vector<48x1xf32>
      %205 = arith.addf %arg7, %204 : vector<48x1xf32>
      %cst_72 = arith.constant 5.000000e-01 : f32
      %206 = vector.broadcast %cst_72 : f32 to vector<48x1xf32>
      %207 = arith.mulf %206, %205 : vector<48x1xf32>
      %208 = vector.broadcast %cst_39 : f32 to vector<1x1xf32>
      %209 = arith.mulf %arg8, %208 : vector<1x1xf32>
      scf.yield %207, %209 : vector<48x1xf32>, vector<1x1xf32>
    }
    %cst_43 = arith.constant 1.000000e+00 : f32
    %cst_44 = arith.constant 2.500000e-03 : f32
    %90 = arith.divf %cst_43, %cst_44 : f32
    %91 = vector.broadcast %90 : f32 to vector<48x48xf32>
    %92 = arith.mulf %47, %91 : vector<48x48xf32>
    %93 = vector.broadcast %90 : f32 to vector<1x48xf32>
    %94 = arith.mulf %85#1, %93 : vector<1x48xf32>
    %95 = arith.addf %21, %94 : vector<1x48xf32>
    %96 = vector.broadcast %95 : vector<1x48xf32> to vector<48x48xf32>
    %97 = arith.subf %96, %92 : vector<48x48xf32>
    %cst_45 = arith.constant dense<0xFF800000> : vector<48xf32>
    %98 = vector.multi_reduction <maximumf>, %97, %cst_45 [1] : vector<48x48xf32> to vector<48xf32>
    %99 = vector.shape_cast %98 : vector<48xf32> to vector<48x1xf32>
    %100 = vector.broadcast %99 : vector<48x1xf32> to vector<48x48xf32>
    %101 = arith.subf %97, %100 : vector<48x48xf32>
    %102 = math.exp %101 : vector<48x48xf32>
    %cst_46 = arith.constant dense<0.000000e+00> : vector<48x1xf32>
    %103 = tpu.matmul %102, %27, %cst_46 {dimension_numbers = #tpu.dot_dimension_numbers<[1], [0], [0], [1], [0, 0, 1, 1], [], []>} : vector<48x48xf32>, vector<48x1xf32>, vector<48x1xf32> -> vector<48x1xf32>
    %cst_47 = arith.constant 0.000000e+00 : f32
    %cst_48 = arith.constant 2.500000e-03 : f32
    %104 = arith.subf %cst_47, %cst_48 : f32
    %105 = math.log %103 : vector<48x1xf32>
    %106 = arith.addf %99, %105 : vector<48x1xf32>
    %107 = vector.broadcast %104 : f32 to vector<48x1xf32>
    %108 = arith.mulf %107, %106 : vector<48x1xf32>
    %109 = vector.broadcast %90 : f32 to vector<48x1xf32>
    %110 = arith.mulf %85#0, %109 : vector<48x1xf32>
    %111 = arith.addf %15, %110 : vector<48x1xf32>
    %112 = vector.broadcast %111 : vector<48x1xf32> to vector<48x48xf32>
    %113 = arith.subf %112, %92 : vector<48x48xf32>
    %cst_49 = arith.constant dense<0xFF800000> : vector<48xf32>
    %114 = vector.multi_reduction <maximumf>, %113, %cst_49 [0] : vector<48x48xf32> to vector<48xf32>
    %115 = vector.shape_cast %114 : vector<48xf32> to vector<1x48xf32>
    %116 = vector.broadcast %115 : vector<1x48xf32> to vector<48x48xf32>
    %117 = arith.subf %113, %116 : vector<48x48xf32>
    %118 = math.exp %117 : vector<48x48xf32>
    %cst_50 = arith.constant dense<0.000000e+00> : vector<1x48xf32>
    %119 = tpu.matmul %28, %118, %cst_50 {dimension_numbers = #tpu.dot_dimension_numbers<[1], [0], [0], [1], [0, 0, 1, 1], [], []>} : vector<1x48xf32>, vector<48x48xf32>, vector<1x48xf32> -> vector<1x48xf32>
    %cst_51 = arith.constant 0.000000e+00 : f32
    %cst_52 = arith.constant 2.500000e-03 : f32
    %120 = arith.subf %cst_51, %cst_52 : f32
    %121 = math.log %119 : vector<1x48xf32>
    %122 = arith.addf %115, %121 : vector<1x48xf32>
    %123 = vector.broadcast %120 : f32 to vector<1x48xf32>
    %124 = arith.mulf %123, %122 : vector<1x48xf32>
    %125 = vector.broadcast %90 : f32 to vector<48x48xf32>
    %126 = arith.mulf %55, %125 : vector<48x48xf32>
    %127 = vector.broadcast %90 : f32 to vector<1x48xf32>
    %128 = arith.mulf %87#0, %127 : vector<1x48xf32>
    %129 = arith.addf %21, %128 : vector<1x48xf32>
    %130 = vector.broadcast %129 : vector<1x48xf32> to vector<48x48xf32>
    %131 = arith.subf %130, %126 : vector<48x48xf32>
    %cst_53 = arith.constant dense<0xFF800000> : vector<48xf32>
    %132 = vector.multi_reduction <maximumf>, %131, %cst_53 [1] : vector<48x48xf32> to vector<48xf32>
    %133 = vector.shape_cast %132 : vector<48xf32> to vector<48x1xf32>
    %134 = vector.broadcast %133 : vector<48x1xf32> to vector<48x48xf32>
    %135 = arith.subf %131, %134 : vector<48x48xf32>
    %136 = math.exp %135 : vector<48x48xf32>
    %cst_54 = arith.constant dense<0.000000e+00> : vector<48x1xf32>
    %137 = tpu.matmul %136, %27, %cst_54 {dimension_numbers = #tpu.dot_dimension_numbers<[1], [0], [0], [1], [0, 0, 1, 1], [], []>} : vector<48x48xf32>, vector<48x1xf32>, vector<48x1xf32> -> vector<48x1xf32>
    %cst_55 = arith.constant 0.000000e+00 : f32
    %cst_56 = arith.constant 2.500000e-03 : f32
    %138 = arith.subf %cst_55, %cst_56 : f32
    %139 = math.log %137 : vector<48x1xf32>
    %140 = arith.addf %133, %139 : vector<48x1xf32>
    %141 = vector.broadcast %138 : f32 to vector<48x1xf32>
    %142 = arith.mulf %141, %140 : vector<48x1xf32>
    %143 = vector.broadcast %90 : f32 to vector<48x48xf32>
    %144 = arith.mulf %63, %143 : vector<48x48xf32>
    %145 = vector.broadcast %90 : f32 to vector<48x1xf32>
    %146 = arith.mulf %89#0, %145 : vector<48x1xf32>
    %147 = arith.addf %15, %146 : vector<48x1xf32>
    %148 = vector.broadcast %147 : vector<48x1xf32> to vector<48x48xf32>
    %149 = arith.subf %148, %144 : vector<48x48xf32>
    %cst_57 = arith.constant dense<0xFF800000> : vector<48xf32>
    %150 = vector.multi_reduction <maximumf>, %149, %cst_57 [0] : vector<48x48xf32> to vector<48xf32>
    %151 = vector.shape_cast %150 : vector<48xf32> to vector<1x48xf32>
    %152 = vector.broadcast %151 : vector<1x48xf32> to vector<48x48xf32>
    %153 = arith.subf %149, %152 : vector<48x48xf32>
    %154 = math.exp %153 : vector<48x48xf32>
    %cst_58 = arith.constant dense<0.000000e+00> : vector<1x48xf32>
    %155 = tpu.matmul %28, %154, %cst_58 {dimension_numbers = #tpu.dot_dimension_numbers<[1], [0], [0], [1], [0, 0, 1, 1], [], []>} : vector<1x48xf32>, vector<48x48xf32>, vector<1x48xf32> -> vector<1x48xf32>
    %cst_59 = arith.constant 0.000000e+00 : f32
    %cst_60 = arith.constant 2.500000e-03 : f32
    %156 = arith.subf %cst_59, %cst_60 : f32
    %157 = math.log %155 : vector<1x48xf32>
    %158 = arith.addf %151, %157 : vector<1x48xf32>
    %159 = vector.broadcast %156 : f32 to vector<1x48xf32>
    %160 = arith.mulf %159, %158 : vector<1x48xf32>
    %161 = math.exp %15 : vector<48x1xf32>
    %162 = math.exp %21 : vector<1x48xf32>
    %163 = arith.subf %108, %142 : vector<48x1xf32>
    %164 = arith.mulf %161, %163 : vector<48x1xf32>
    %165 = vector.shape_cast %164 : vector<48x1xf32> to vector<1x48x1xf32>
    %cst_61 = arith.constant dense<0.000000e+00> : vector<1xf32>
    %166 = vector.multi_reduction <add>, %165, %cst_61 [1, 2] : vector<1x48x1xf32> to vector<1xf32>
    %167 = vector.shape_cast %166 : vector<1xf32> to vector<1x1x1xf32>
    %168 = vector.extract %167[0, 0, 0] : f32 from vector<1x1x1xf32>
    %169 = vector.broadcast %168 : f32 to vector<1x1xf32>
    %170 = arith.subf %124, %160 : vector<1x48xf32>
    %171 = arith.mulf %162, %170 : vector<1x48xf32>
    %172 = vector.shape_cast %171 : vector<1x48xf32> to vector<1x1x48xf32>
    %cst_62 = arith.constant dense<0.000000e+00> : vector<1xf32>
    %173 = vector.multi_reduction <add>, %172, %cst_62 [1, 2] : vector<1x1x48xf32> to vector<1xf32>
    %174 = vector.shape_cast %173 : vector<1xf32> to vector<1x1x1xf32>
    %175 = vector.extract %174[0, 0, 0] : f32 from vector<1x1x1xf32>
    %176 = vector.broadcast %175 : f32 to vector<1x1xf32>
    %177 = arith.addf %169, %176 : vector<1x1xf32>
    %c0_63 = arith.constant 0 : index
    %c0_64 = arith.constant 0 : index
    %c0_65 = arith.constant 0 : index
    %c0_66 = arith.constant 0 : index
    %178 = vector.load %arg5[%c0_63, %c0_64, %c0_65, %c0_66] : memref<1x1x1x1xf32, #tpu.memory_space<vmem>>, vector<1x1x1x1xf32>
    %179 = vector.shape_cast %178 : vector<1x1x1x1xf32> to vector<1x1xf32>
    %180 = vector.shape_cast %177 : vector<1x1xf32> to vector<1x1x1x1xf32>
    tpu.vector_store %arg5[%c0_63, %c0_64, %c0_65, %c0_66], %180 {strides = array<i32>} : memref<1x1x1x1xf32, #tpu.memory_space<vmem>>, vector<1x1x1x1xf32>,
    return
  }
  func.func @transform_0(%arg0: i32, %arg1: i32, %arg2: memref<12xi32, #tpu.memory_space<smem>>) -> (i32, i32, i32, i32) {
    %c0_i32 = arith.constant 0 : i32
    %c0_i32_0 = arith.constant 0 : i32
    %c0_i32_1 = arith.constant 0 : i32
    return %arg0, %arg1, %c0_i32, %c0_i32_0 : i32, i32, i32, i32
  }
  func.func @transform_1(%arg0: i32, %arg1: i32, %arg2: memref<12xi32, #tpu.memory_space<smem>>) -> (i32, i32, i32, i32) {
    %c0_i32 = arith.constant 0 : i32
    %c0_i32_0 = arith.constant 0 : i32
    %c0_i32_1 = arith.constant 0 : i32
    return %arg0, %arg1, %c0_i32, %c0_i32_0 : i32, i32, i32, i32
  }
  func.func @transform_2(%arg0: i32, %arg1: i32, %arg2: memref<12xi32, #tpu.memory_space<smem>>) -> (i32, i32, i32, i32) {
    %c0_i32 = arith.constant 0 : i32
    %c0_i32_0 = arith.constant 0 : i32
    %c0_i32_1 = arith.constant 0 : i32
    return %arg0, %arg1, %c0_i32, %c0_i32_0 : i32, i32, i32, i32
  }
}

</mosaic_0001>

<llo_original>
// kernel: part_wise_emd.3
$region0: #{part_wise_emd.3}
  #allocation0 [shape = 'u32[]', space=smem, size = 0x4, offset = 0x4, fixed_abs, tag = 'smem constant byte address 0x4 - core index']
  #allocation1 [shape = 'u32[72,128]{1,0:T(1,128)}', space=vmem, size = 0x9000, scoped, tag = 'internal scratch']
  #allocation2 [shape = 's32[1]{0}', space=sflag, size = 0x4, scoped, tag = 'scoped memory for part_wise_emd.3']
  #allocation3 [shape = 'u8[512]{0}', space=smem, size = 0x200, scoped, tag = 'prefetched SMEM operand 0']
  %s0 = inlined_call_operand.vmem [shape: s32[12], index: 0, kind: input, shape index: {}]
  %s1 = inlined_call_operand.vmem [shape: f32[12,2,48,8], index: 1, kind: input, shape index: {}]
  %s2 = inlined_call_operand.vmem [shape: f32[12,2,48,8], index: 2, kind: input, shape index: {}]
  %s3 = inlined_call_operand.vmem [shape: f32[12,2,1,1], index: 3, kind: output, shape index: {}]
  %s4 = sld [smem:[#allocation0]]
  $region62: #{part_wise_emd.3} parent=0
    _
  %s6 = ssub.s32 1, %s4
  %s7 = scalar_select 0, %s6, %s4
  %s9 = sshll.u32 %s0, 4
  %s10 = int_to_ptr.vmem [resolvable:$true] %s9
  %12 = dma.vmem_to_smem %s10, 16, [#allocation3], [#allocation2]
  %14 = dma.done [#allocation2], 16
  %15 = sfence
  loop: start=0, step=1, limit=26
  $region2: #{part_wise_emd.3} parent=0 // loop_pre_header
    _
  $region3: #{part_wise_emd.3} parent=0 // loop_header
    %s17 = sphi 0, %s21
    %p18 = scmp.ge.s32.totalorder %s17, 26
    %s24 = sphi 0, %s36
    %s25 = sphi 0, %s32
    %s26 = sphi 0, %s24
    %s27 = sphi 0, %s25
    %s28 = sphi 0, %s26
    %s29 = sphi 0, %s27
    %s41 = sphi 0, %s43
    %s44 = sphi 0, %s41
    %s45 = sphi 0, %s44
    %s61 = sphi 0, %s45
    %s69 = sphi 0, %s71
    %s72 = sphi 0, %s69
    %s73 = sphi 0, %s72
    %s89 = sphi 0, %s73
    %s97 = sphi 0, %s99
    %s100 = sphi 0, %s97
    %s101 = sphi 0, %s100
    %s117 = sphi 0, %s101
  $region4: #{part_wise_emd.3} parent=0 // loop_header_branch
    %20 = sbr.rel (%p18) target = $region8
  $region5: #{part_wise_emd.3} parent=0 // loop_body
    %s22 = ssub.s32 %s17, 1
    %s23 = ssub.s32 %s17, 2
    %s30 = sadd.s32 1, %s25
    %p31 = scmp.ge.s32.totalorder %s30, 2
    %s32 = scalar_select %p31, 0, %s30
    %s33 = sadd.s32 1, %s24
    %s34 = scalar_select %p31, %s33, %s24
    %p35 = scmp.ge.s32.totalorder %s34, 12
    %s36 = scalar_select %p35, 0, %s34
    %s37 = ssub.s32 %s24, %s36
    %s38 = ssub.s32 %s25, %s32
    %s39 = sor.u32 %s37, %s38
    %p40 = scmp.eq.s32.totalorder %s39, 0
    %s42 = sadd.s32 %s41, 1
    %s43 = scalar_select %p40, %s41, %s42
    %p46 = pneg %p40
    %p47 = scmp.eq.s32.totalorder %s17, 23
    %p48 = por %p46, %p47
    %p49 = scmp.ne.s32.totalorder %s41, %s44
    %p50 = scmp.eq.s32.totalorder %s17, 0
    %p51 = por %p49, %p50
    %p52 = scmp.ne.s32.totalorder %s41, %s44
    %p53 = scmp.eq.s32.totalorder %s22, 23
    %p54 = por %p52, %p53
    %p55 = scmp.ne.s32.totalorder %s44, %s45
    %p56 = scmp.eq.s32.totalorder %s22, 0
    %p57 = por %p55, %p56
    %p58 = scmp.ne.s32.totalorder %s44, %s45
    %p59 = scmp.eq.s32.totalorder %s23, 23
    %p60 = por %p58, %p59
    %p62 = scmp.ne.s32.totalorder %s45, %s61
    %p63 = scmp.eq.s32.totalorder %s23, 0
    %p64 = por %p62, %p63
    %s65 = ssub.s32 %s24, %s36
    %s66 = ssub.s32 %s25, %s32
    %s67 = sor.u32 %s65, %s66
    %p68 = scmp.eq.s32.totalorder %s67, 0
    %s70 = sadd.s32 %s69, 1
    %s71 = scalar_select %p68, %s69, %s70
    %p74 = pneg %p68
    %p75 = scmp.eq.s32.totalorder %s17, 23
    %p76 = por %p74, %p75
    %p77 = scmp.ne.s32.totalorder %s69, %s72
    %p78 = scmp.eq.s32.totalorder %s17, 0
    %p79 = por %p77, %p78
    %p80 = scmp.ne.s32.totalorder %s69, %s72
    %p81 = scmp.eq.s32.totalorder %s22, 23
    %p82 = por %p80, %p81
    %p83 = scmp.ne.s32.totalorder %s72, %s73
    %p84 = scmp.eq.s32.totalorder %s22, 0
    %p85 = por %p83, %p84
    %p86 = scmp.ne.s32.totalorder %s72, %s73
    %p87 = scmp.eq.s32.totalorder %s23, 23
    %p88 = por %p86, %p87
    %p90 = scmp.ne.s32.totalorder %s73, %s89
    %p91 = scmp.eq.s32.totalorder %s23, 0
    %p92 = por %p90, %p91
    %s93 = ssub.s32 %s24, %s36
    %s94 = ssub.s32 %s25, %s32
    %s95 = sor.u32 %s93, %s94
    %p96 = scmp.eq.s32.totalorder %s95, 0
    %s98 = sadd.s32 %s97, 1
    %s99 = scalar_select %p96, %s97, %s98
    %p102 = pneg %p96
    %p103 = scmp.eq.s32.totalorder %s17, 23
    %p104 = por %p102, %p103
    %p105 = scmp.ne.s32.totalorder %s97, %s100
    %p106 = scmp.eq.s32.totalorder %s17, 0
    %p107 = por %p105, %p106
    %p108 = scmp.ne.s32.totalorder %s97, %s100
    %p109 = scmp.eq.s32.totalorder %s22, 23
    %p110 = por %p108, %p109
    %p111 = scmp.ne.s32.totalorder %s100, %s101
    %p112 = scmp.eq.s32.totalorder %s22, 0
    %p113 = por %p111, %p112
    %p114 = scmp.ne.s32.totalorder %s100, %s101
    %p115 = scmp.eq.s32.totalorder %s23, 23
    %p116 = por %p114, %p115
    %p118 = scmp.ne.s32.totalorder %s101, %s117
    %p119 = scmp.eq.s32.totalorder %s23, 0
    %p120 = por %p118, %p119
    %p121 = scmp.le.s32.totalorder 1, %s17
    %p122 = scmp.lt.s32.totalorder %s17, 25
    %p123 = pnand %p121, %p122
    %p124 = pneg %p123
    // Predicated region
    $region9: #{part_wise_emd.3} parent=5 // pred_check
      _
    $region10: #{part_wise_emd.3} parent=5 // pred_check_branch
      %126 = sbr.rel (%p123) target = $region12
    $region11: #{part_wise_emd.3} parent=5 // pred_region
      %s127 = ssub.s32 %s17, 1
    $region12: #{part_wise_emd.3} parent=5 // pred_fallthru
      _
    %p128 = scmp.lt.s32.totalorder %s17, 24
    // Predicated region
    $region13: #{part_wise_emd.3} parent=5 // pred_check
      %p129 = pneg %p128
    $region14: #{part_wise_emd.3} parent=5 // pred_check_branch
      %131 = sbr.rel (%p129) target = $region16
    $region15: #{part_wise_emd.3} parent=5 // pred_region
      // Predicated region
      $region17: #{part_wise_emd.3} parent=15 // pred_check
        %p132 = pneg %p51
      $region18: #{part_wise_emd.3} parent=15 // pred_check_branch
        %134 = sbr.rel (%p132) target = $region20
      $region19: #{part_wise_emd.3} parent=15 // pred_region
        %p135 = scmp.lt.s32.totalorder %s24, 11
        %s136 = scalar_select %p135, %s24, 11
        %p137 = scmp.lt.s32.totalorder %s25, 1
        %s138 = scalar_select %p137, %s25, 1
        %s139 = smul.addr %s138, 6
        %s140 = smul.addr %s136, 12
        %s141 = sadd.s32 %s139, %s140
        %s142 = smul.addr %s141, 8
        %s143 = scalar_lea.vmem %s1, %s142
      $region20: #{part_wise_emd.3} parent=15 // pred_fallthru
        _
      // Predicated region
      $region21: #{part_wise_emd.3} parent=15 // pred_check
        %p144 = pneg %p79
      $region22: #{part_wise_emd.3} parent=15 // pred_check_branch
        %146 = sbr.rel (%p144) target = $region24
      $region23: #{part_wise_emd.3} parent=15 // pred_region
        %p147 = scmp.lt.s32.totalorder %s24, 11
        %s148 = scalar_select %p147, %s24, 11
        %p149 = scmp.lt.s32.totalorder %s25, 1
        %s150 = scalar_select %p149, %s25, 1
        %s151 = smul.addr %s150, 6
        %s152 = smul.addr %s148, 12
        %s153 = sadd.s32 %s151, %s152
        %s154 = smul.addr %s153, 8
        %s155 = scalar_lea.vmem %s2, %s154
      $region24: #{part_wise_emd.3} parent=15 // pred_fallthru
        _
    $region16: #{part_wise_emd.3} parent=5 // pred_fallthru
      _
    %p156 = scmp.le.s32.totalorder 1, %s17
    %p157 = scmp.lt.s32.totalorder %s17, 25
    %p158 = pnand %p156, %p157
    %p159 = pneg %p158
    // Predicated region
    $region25: #{part_wise_emd.3} parent=5 // pred_check
      _
    $region26: #{part_wise_emd.3} parent=5 // pred_check_branch
      %161 = sbr.rel (%p158) target = $region28
    $region27: #{part_wise_emd.3} parent=5 // pred_region
      %s162 = ssub.s32 %s17, 1
      %p163 = scmp.lt.s32.totalorder %s26, 11
      %s164 = scalar_select %p163, %s26, 11
      %p165 = scmp.lt.s32.totalorder %s27, 1
      %s166 = scalar_select %p165, %s27, 1
      %s167 = smul.addr %s166, 6
      %s168 = smul.addr %s164, 12
      %s169 = sadd.s32 %s167, %s168
      %s170 = smul.addr %s169, 8
      %s171 = scalar_lea.vmem %s1, %s170
      %p172 = pneg %p57
      %p173 = pneg %p54
      %p174 = scmp.lt.s32.totalorder %s26, 11
      %s175 = scalar_select %p174, %s26, 11
      %p176 = scmp.lt.s32.totalorder %s27, 1
      %s177 = scalar_select %p176, %s27, 1
      %s178 = smul.addr %s177, 6
      %s179 = smul.addr %s175, 12
      %s180 = sadd.s32 %s178, %s179
      %s181 = smul.addr %s180, 8
      %s182 = scalar_lea.vmem %s2, %s181
      %p183 = pneg %p85
      %p184 = pneg %p82
      %p185 = pneg %p113
      %p186 = pneg %p110
      %p187 = scmp.lt.s32.totalorder %s26, 11
      %s188 = scalar_select %p187, %s26, 11
      %p189 = scmp.lt.s32.totalorder %s27, 1
      %s190 = scalar_select %p189, %s27, 1
      %s191 = smul.addr %s188, 2
      %s192 = sadd.s32 %s190, %s191
      %s193 = scalar_lea.vmem %s3, %s192
      %p194 = scmp.lt.s32.totalorder %s26, 11
      %s195 = scalar_select %p194, %s26, 11
      %p196 = scmp.lt.s32.totalorder %s27, 1
      %s197 = scalar_select %p196, %s27, 1
      %s198 = smul.addr %s197, 6
      %s199 = smul.addr %s195, 12
      %s200 = sadd.s32 %s198, %s199
      %s201 = smul.addr %s200, 8
      %s202 = scalar_lea.vmem %s1, %s201
      %p203 = scmp.lt.s32.totalorder %s26, 11
      %s204 = scalar_select %p203, %s26, 11
      %p205 = scmp.lt.s32.totalorder %s27, 1
      %s206 = scalar_select %p205, %s27, 1
      %s207 = smul.addr %s206, 6
      %s208 = smul.addr %s204, 12
      %s209 = sadd.s32 %s207, %s208
      %s210 = smul.addr %s209, 8
      %s211 = scalar_lea.vmem %s2, %s210
      %p212 = scmp.lt.s32.totalorder %s26, 11
      %s213 = scalar_select %p212, %s26, 11
      %p214 = scmp.lt.s32.totalorder %s27, 1
      %s215 = scalar_select %p214, %s27, 1
      %s216 = smul.addr %s213, 2
      %s217 = sadd.s32 %s215, %s216
      %s218 = scalar_lea.vmem %s3, %s217
      %s219 = sld [smem:[#allocation3 + %s26]]
      %v220 = vld [vmem:[%s202] sm:$0xff]
      %v221 = vld [vmem:[%s202 + $0x8] sm:$0xff]
      %v222 = vld [vmem:[%s202 + $0x10] sm:$0xff]
      %v223 = vld [vmem:[%s202 + $0x18] sm:$0xff]
      %v224 = vld [vmem:[%s202 + $0x20] sm:$0xff]
      %v225 = vld [vmem:[%s202 + $0x28] sm:$0xff]
      %v226 = vld [vmem:[%s211] sm:$0xff]
      %v227 = vld [vmem:[%s211 + $0x8] sm:$0xff]
      %v228 = vld [vmem:[%s211 + $0x10] sm:$0xff]
      %v229 = vld [vmem:[%s211 + $0x18] sm:$0xff]
      %v230 = vld [vmem:[%s211 + $0x20] sm:$0xff]
      %v231 = vld [vmem:[%s211 + $0x28] sm:$0xff]
      %v232 = vlaneseq
      %v233 = vshrl.u32 %v232, 7
      %v234 = vadd.s32 %v233, 8
      %v235 = vadd.s32 %v233, 16
      %v236 = vadd.s32 %v233, 24
      %v237 = vadd.s32 %v233, 32
      %v238 = vadd.s32 %v233, 40
      %v239 = vlaneseq
      %v240 = vand.u32 %v239, 127
      %s241 = scvt.s32.f32 %s219
      %v242 = vstv %s241
      %v243 = vlog2.pop %v242
      %v244 = vmul.f32 %v243, 0.6931472
      %s245 = vtos %v244
      %v246 = vstv %s219
      %vm247 = vcmp.lt.s32.totalorder %v233, %v246
      %vm248 = vcmp.lt.s32.totalorder %v234, %v246
      %vm249 = vcmp.lt.s32.totalorder %v235, %v246
      %vm250 = vcmp.lt.s32.totalorder %v236, %v246
      %vm251 = vcmp.lt.s32.totalorder %v237, %v246
      %vm252 = vcmp.lt.s32.totalorder %v238, %v246
      %s253 = ssub.f32 0.0, %s245
      %v254 = vstv %s253
      %v255 = vsel %vm247, %v254, -1e+30
      %v256 = vsel %vm248, %v254, -1e+30
      %v257 = vsel %vm249, %v254, -1e+30
      %v258 = vsel %vm250, %v254, -1e+30
      %v259 = vsel %vm251, %v254, -1e+30
      %v260 = vsel %vm252, %v254, -1e+30
      %vm261 = vcmp.lt.s32.totalorder %v240, %v246
      %v262 = vsel %vm261, %v254, -1e+30
      %vm263 = vcmp.eq.s32.totalorder %v233, %v240
      %vm264 = vcmp.eq.s32.totalorder %v234, %v240
      %vm265 = vcmp.eq.s32.totalorder %v235, %v240
      %vm266 = vcmp.eq.s32.totalorder %v236, %v240
      %vm267 = vcmp.eq.s32.totalorder %v237, %v240
      %vm268 = vcmp.eq.s32.totalorder %v238, %v240
      %v269 = vsel %vm263, 1, 0
      %v270 = vsel %vm264, 1, 0
      %v271 = vsel %vm265, 1, 0
      %v272 = vsel %vm266, 1, 0
      %v273 = vsel %vm267, 1, 0
      %v274 = vsel %vm268, 1, 0
      %v275 = vcvt.s32.f32 %v269
      %v276 = vcvt.s32.f32 %v270
      %v277 = vcvt.s32.f32 %v271
      %v278 = vcvt.s32.f32 %v272
      %v279 = vcvt.s32.f32 %v273
      %v280 = vcvt.s32.f32 %v274
      %v281 = vmul.f32 %v220, %v220
      %v282 = vmul.f32 %v221, %v221
      %v283 = vmul.f32 %v222, %v222
      %v284 = vmul.f32 %v223, %v223
      %v285 = vmul.f32 %v224, %v224
      %v286 = vmul.f32 %v225, %v225
      %vm287 = vcmask 64512
      %v288 = vsel %vm287, %v281, 0.0
      %289 = vadd.xlane.f32.xlu0 %v288
      %v290 = vpop.xlane.xlu0 %289
      %v291 = vsel %vm287, %v282, 0.0
      %292 = vadd.xlane.f32.xlu0 %v291
      %v293 = vpop.xlane.xlu0 %292
      %v294 = vsel %vm287, %v283, 0.0
      %295 = vadd.xlane.f32.xlu0 %v294
      %v296 = vpop.xlane.xlu0 %295
      %v297 = vsel %vm287, %v284, 0.0
      %298 = vadd.xlane.f32.xlu0 %v297
      %v299 = vpop.xlane.xlu0 %298
      %v300 = vsel %vm287, %v285, 0.0
      %301 = vadd.xlane.f32.xlu0 %v300
      %v302 = vpop.xlane.xlu0 %301
      %v303 = vsel %vm287, %v286, 0.0
      %304 = vadd.xlane.f32.xlu0 %v303
      %v305 = vpop.xlane.xlu0 %304
      %v306 = vmul.f32 %v226, %v226
      %v307 = vmul.f32 %v227, %v227
      %v308 = vmul.f32 %v228, %v228
      %v309 = vmul.f32 %v229, %v229
      %v310 = vmul.f32 %v230, %v230
      %v311 = vmul.f32 %v231, %v231
      %v312 = vsel %vm287, %v306, 0.0
      %313 = vadd.xlane.f32.xlu0 %v312
      %v314 = vpop.xlane.xlu0 %313
      %v315 = vsel %vm287, %v307, 0.0
      %316 = vadd.xlane.f32.xlu0 %v315
      %v317 = vpop.xlane.xlu0 %316
      %v318 = vsel %vm287, %v308, 0.0
      %319 = vadd.xlane.f32.xlu0 %v318
      %v320 = vpop.xlane.xlu0 %319
      %v321 = vsel %vm287, %v309, 0.0
      %322 = vadd.xlane.f32.xlu0 %v321
      %v323 = vpop.xlane.xlu0 %322
      %v324 = vsel %vm287, %v310, 0.0
      %325 = vadd.xlane.f32.xlu0 %v324
      %v326 = vpop.xlane.xlu0 %325
      %v327 = vsel %vm287, %v311, 0.0
      %328 = vadd.xlane.f32.xlu0 %v327
      %v329 = vpop.xlane.xlu0 %328
      %330 = vxpose.xlu0.b32.start [1/16] %v290, 128
      %331 = vxpose.xlu0.b32.cont [2/16] %v293, 128
      %332 = vxpose.xlu0.b32.cont [3/16] %v296, 128
      %333 = vxpose.xlu0.b32.cont [4/16] %v299, 128
      %334 = vxpose.xlu0.b32.cont [5/16] %v302, 128
      %335 = vxpose.xlu0.b32.cont [6/16] %v305, 128
      %336 = vxpose.xlu0.b32.cont [7/16] 0.0, 128
      %337 = vxpose.xlu0.b32.cont [8/16] 0.0, 128
      %338 = vxpose.xlu0.b32.cont [9/16] 0.0, 128
      %339 = vxpose.xlu0.b32.cont [10/16] 0.0, 128
      %340 = vxpose.xlu0.b32.cont [11/16] 0.0, 128
      %341 = vxpose.xlu0.b32.cont [12/16] 0.0, 128
      %342 = vxpose.xlu0.b32.cont [13/16] 0.0, 128
      %343 = vxpose.xlu0.b32.cont [14/16] 0.0, 128
      %344 = vxpose.xlu0.b32.cont [15/16] 0.0, 128
      %345 = vxpose.xlu0.b32.end [16/16] 0.0, 128
      %v346 = vpop.trf.xlu0
      %v347 = vpop.trf.xlu0
      %v348 = vpop.trf.xlu0
      %v349 = vpop.trf.xlu0
      %v350 = vpop.trf.xlu0
      %v351 = vpop.trf.xlu0
      %v352 = vpop.trf.xlu0
      %v353 = vpop.trf.xlu0
      %v354 = vpop.trf.xlu0
      %v355 = vpop.trf.xlu0
      %v356 = vpop.trf.xlu0
      %v357 = vpop.trf.xlu0
      %v358 = vpop.trf.xlu0
      %v359 = vpop.trf.xlu0
      %v360 = vpop.trf.xlu0
      %v361 = vpop.trf.xlu0
      %vm362 = vcmask 392192
      %v364 = vsel %vm362, %v346, 0
      %366 = vmatpush.msra.mxu0 0.0
      %367 = vmatpush.msra.mxu0 0.0
      %368 = vmatpush.msra.mxu0 0.0
      %369 = vmatpush.msra.mxu0 0.0
      %370 = vmatpush.msra.mxu0 0.0
      %371 = vmatpush.msra.mxu0 0.0
      %372 = vmatpush.msra.mxu0 0.0
      %373 = vmatpush.msra.mxu0 0.0
      %374 = vmatpush.msra.mxu0 0.0
      %375 = vmatpush.msra.mxu0 0.0
      %376 = vmatpush.msra.mxu0 %v280
      %377 = vmatpush.msra.mxu0 %v279
      %378 = vmatpush.msra.mxu0 %v278
      %379 = vmatpush.msra.mxu0 %v277
      %380 = vmatpush.msra.mxu0 %v276
      %381 = vmatpush.msra.mxu0 %v275
      %382 = vmatmul.f32.gmra.mxu0 %v364
      %v383 = vpop.f32.mrf.mxu0
      %v384 = vadd.f32 0.0, %v383
      %385 = vdwg.mxu0
      %386 = vxpose.xlu0.b32.start [1/16] %v314, 128
      %387 = vxpose.xlu0.b32.cont [2/16] %v317, 128
      %388 = vxpose.xlu0.b32.cont [3/16] %v320, 128
      %389 = vxpose.xlu0.b32.cont [4/16] %v323, 128
      %390 = vxpose.xlu0.b32.cont [5/16] %v326, 128
      %391 = vxpose.xlu0.b32.cont [6/16] %v329, 128
      %392 = vxpose.xlu0.b32.cont [7/16] 0.0, 128
      %393 = vxpose.xlu0.b32.cont [8/16] 0.0, 128
      %394 = vxpose.xlu0.b32.cont [9/16] 0.0, 128
      %395 = vxpose.xlu0.b32.cont [10/16] 0.0, 128
      %396 = vxpose.xlu0.b32.cont [11/16] 0.0, 128
      %397 = vxpose.xlu0.b32.cont [12/16] 0.0, 128
      %398 = vxpose.xlu0.b32.cont [13/16] 0.0, 128
      %399 = vxpose.xlu0.b32.cont [14/16] 0.0, 128
      %400 = vxpose.xlu0.b32.cont [15/16] 0.0, 128
      %401 = vxpose.xlu0.b32.end [16/16] 0.0, 128
      %v402 = vpop.trf.xlu0
      %v403 = vpop.trf.xlu0
      %v404 = vpop.trf.xlu0
      %v405 = vpop.trf.xlu0
      %v406 = vpop.trf.xlu0
      %v407 = vpop.trf.xlu0
      %v408 = vpop.trf.xlu0
      %v409 = vpop.trf.xlu0
      %v410 = vpop.trf.xlu0
      %v411 = vpop.trf.xlu0
      %v412 = vpop.trf.xlu0
      %v413 = vpop.trf.xlu0
      %v414 = vpop.trf.xlu0
      %v415 = vpop.trf.xlu0
      %v416 = vpop.trf.xlu0
      %v417 = vpop.trf.xlu0
      %v419 = vsel %vm362, %v402, 0
      %421 = vmatpush.msra.mxu0 0.0
      %422 = vmatpush.msra.mxu0 0.0
      %423 = vmatpush.msra.mxu0 0.0
      %424 = vmatpush.msra.mxu0 0.0
      %425 = vmatpush.msra.mxu0 0.0
      %426 = vmatpush.msra.mxu0 0.0
      %427 = vmatpush.msra.mxu0 0.0
      %428 = vmatpush.msra.mxu0 0.0
      %429 = vmatpush.msra.mxu0 0.0
      %430 = vmatpush.msra.mxu0 0.0
      %431 = vmatpush.msra.mxu0 %v280
      %432 = vmatpush.msra.mxu0 %v279
      %433 = vmatpush.msra.mxu0 %v278
      %434 = vmatpush.msra.mxu0 %v277
      %435 = vmatpush.msra.mxu0 %v276
      %436 = vmatpush.msra.mxu0 %v275
      %437 = vmatmul.f32.gmra.mxu0 %v419
      %v438 = vpop.f32.mrf.mxu0
      %v439 = vadd.f32 0.0, %v438
      %440 = vdwg.mxu0
      %v442 = vsel %vm287, %v220, 0
      %v445 = vsel %vm287, %v221, 0
      %v448 = vsel %vm287, %v222, 0
      %v451 = vsel %vm287, %v223, 0
      %v454 = vsel %vm287, %v224, 0
      %v457 = vsel %vm287, %v225, 0
      %v460 = vsel %vm287, %v226, 0
      %v463 = vsel %vm287, %v227, 0
      %v466 = vsel %vm287, %v228, 0
      %v469 = vsel %vm287, %v229, 0
      %v472 = vsel %vm287, %v230, 0
      %v475 = vsel %vm287, %v231, 0
      %477 = vmatpush.xpose.msra.mxu0 0.0
      %478 = vmatpush.xpose.msra.mxu0 0.0
      %479 = vmatpush.xpose.msra.mxu0 0.0
      %480 = vmatpush.xpose.msra.mxu0 0.0
      %481 = vmatpush.xpose.msra.mxu0 0.0
      %482 = vmatpush.xpose.msra.mxu0 0.0
      %483 = vmatpush.xpose.msra.mxu0 0.0
      %484 = vmatpush.xpose.msra.mxu0 0.0
      %485 = vmatpush.xpose.msra.mxu0 0.0
      %486 = vmatpush.xpose.msra.mxu0 0.0
      %487 = vmatpush.xpose.msra.mxu0 %v475
      %488 = vmatpush.xpose.msra.mxu0 %v472
      %489 = vmatpush.xpose.msra.mxu0 %v469
      %490 = vmatpush.xpose.msra.mxu0 %v466
      %491 = vmatpush.xpose.msra.mxu0 %v463
      %492 = vmatpush.xpose.msra.mxu0 %v460
      %493 = vmatmul.f32.gmra.mxu0 %v442
      %v494 = vpop.f32.mrf.mxu0
      %v495 = vadd.f32 0.0, %v494
      %496 = vmatmul.f32.gmra.mxu0 %v445
      %v497 = vpop.f32.mrf.mxu0
      %v498 = vadd.f32 0.0, %v497
      %499 = vmatmul.f32.gmra.mxu0 %v448
      %v500 = vpop.f32.mrf.mxu0
      %v501 = vadd.f32 0.0, %v500
      %502 = vmatmul.f32.gmra.mxu0 %v451
      %v503 = vpop.f32.mrf.mxu0
      %v504 = vadd.f32 0.0, %v503
      %505 = vmatmul.f32.gmra.mxu0 %v454
      %v506 = vpop.f32.mrf.mxu0
      %v507 = vadd.f32 0.0, %v506
      %508 = vmatmul.f32.gmra.mxu0 %v457
      %v509 = vpop.f32.mrf.mxu0
      %v510 = vadd.f32 0.0, %v509
      %511 = vdwg.mxu0
      %512 = vmatpush.xpose.msra.mxu0 0.0
      %513 = vmatpush.xpose.msra.mxu0 0.0
      %514 = vmatpush.xpose.msra.mxu0 0.0
      %515 = vmatpush.xpose.msra.mxu0 0.0
      %516 = vmatpush.xpose.msra.mxu0 0.0
      %517 = vmatpush.xpose.msra.mxu0 0.0
      %518 = vmatpush.xpose.msra.mxu0 0.0
      %519 = vmatpush.xpose.msra.mxu0 0.0
      %520 = vmatpush.xpose.msra.mxu0 0.0
      %521 = vmatpush.xpose.msra.mxu0 0.0
      %522 = vmatpush.xpose.msra.mxu0 %v457
      %523 = vmatpush.xpose.msra.mxu0 %v454
      %524 = vmatpush.xpose.msra.mxu0 %v451
      %525 = vmatpush.xpose.msra.mxu0 %v448
      %526 = vmatpush.xpose.msra.mxu0 %v445
      %527 = vmatpush.xpose.msra.mxu0 %v442
      %528 = vmatmul.f32.gmra.mxu0 %v442
      %v529 = vpop.f32.mrf.mxu0
      %v530 = vadd.f32 0.0, %v529
      %531 = vmatmul.f32.gmra.mxu0 %v445
      %v532 = vpop.f32.mrf.mxu0
      %v533 = vadd.f32 0.0, %v532
      %534 = vmatmul.f32.gmra.mxu0 %v448
      %v535 = vpop.f32.mrf.mxu0
      %v536 = vadd.f32 0.0, %v535
      %537 = vmatmul.f32.gmra.mxu0 %v451
      %v538 = vpop.f32.mrf.mxu0
      %v539 = vadd.f32 0.0, %v538
      %540 = vmatmul.f32.gmra.mxu0 %v454
      %v541 = vpop.f32.mrf.mxu0
      %v542 = vadd.f32 0.0, %v541
      %543 = vmatmul.f32.gmra.mxu0 %v457
      %v544 = vpop.f32.mrf.mxu0
      %v545 = vadd.f32 0.0, %v544
      %546 = vdwg.mxu0
      %547 = vmatpush.xpose.msra.mxu0 0.0
      %548 = vmatpush.xpose.msra.mxu0 0.0
      %549 = vmatpush.xpose.msra.mxu0 0.0
      %550 = vmatpush.xpose.msra.mxu0 0.0
      %551 = vmatpush.xpose.msra.mxu0 0.0
      %552 = vmatpush.xpose.msra.mxu0 0.0
      %553 = vmatpush.xpose.msra.mxu0 0.0
      %554 = vmatpush.xpose.msra.mxu0 0.0
      %555 = vmatpush.xpose.msra.mxu0 0.0
      %556 = vmatpush.xpose.msra.mxu0 0.0
      %557 = vmatpush.xpose.msra.mxu0 %v475
      %558 = vmatpush.xpose.msra.mxu0 %v472
      %559 = vmatpush.xpose.msra.mxu0 %v469
      %560 = vmatpush.xpose.msra.mxu0 %v466
      %561 = vmatpush.xpose.msra.mxu0 %v463
      %562 = vmatpush.xpose.msra.mxu0 %v460
      %563 = vmatmul.f32.gmra.mxu0 %v460
      %v564 = vpop.f32.mrf.mxu0
      %v565 = vadd.f32 0.0, %v564
      %566 = vmatmul.f32.gmra.mxu0 %v463
      %v567 = vpop.f32.mrf.mxu0
      %v568 = vadd.f32 0.0, %v567
      %569 = vmatmul.f32.gmra.mxu0 %v466
      %v570 = vpop.f32.mrf.mxu0
      %v571 = vadd.f32 0.0, %v570
      %572 = vmatmul.f32.gmra.mxu0 %v469
      %v573 = vpop.f32.mrf.mxu0
      %v574 = vadd.f32 0.0, %v573
      %575 = vmatmul.f32.gmra.mxu0 %v472
      %v576 = vpop.f32.mrf.mxu0
      %v577 = vadd.f32 0.0, %v576
      %578 = vmatmul.f32.gmra.mxu0 %v475
      %v579 = vpop.f32.mrf.mxu0
      %v580 = vadd.f32 0.0, %v579
      %581 = vdwg.mxu0
      %v582 = vperm.slane %v439, 0
      %v583 = vadd.f32 %v290, %v582
      %v584 = vadd.f32 %v293, %v582
      %v585 = vadd.f32 %v296, %v582
      %v586 = vadd.f32 %v299, %v582
      %v587 = vadd.f32 %v302, %v582
      %v588 = vadd.f32 %v305, %v582
      %v589 = vmul.f32 %v583, 0.5
      %v590 = vmul.f32 %v584, 0.5
      %v591 = vmul.f32 %v585, 0.5
      %v592 = vmul.f32 %v586, 0.5
      %v593 = vmul.f32 %v587, 0.5
      %v594 = vmul.f32 %v588, 0.5
      %v595 = vsub.f32 %v589, %v495
      %v596 = vsub.f32 %v590, %v498
      %v597 = vsub.f32 %v591, %v501
      %v598 = vsub.f32 %v592, %v504
      %v599 = vsub.f32 %v593, %v507
      %v600 = vsub.f32 %v594, %v510
      %v601 = vmax.f32 %v595, 0.0
      %v602 = vmax.f32 %v596, 0.0
      %v603 = vmax.f32 %v597, 0.0
      %v604 = vmax.f32 %v598, 0.0
      %v605 = vmax.f32 %v599, 0.0
      %v606 = vmax.f32 %v600, 0.0
      %v607 = vperm.slane %v384, 0
      %v608 = vadd.f32 %v290, %v607
      %v609 = vadd.f32 %v293, %v607
      %v610 = vadd.f32 %v296, %v607
      %v611 = vadd.f32 %v299, %v607
      %v612 = vadd.f32 %v302, %v607
      %v613 = vadd.f32 %v305, %v607
      %v614 = vmul.f32 %v608, 0.5
      %v615 = vmul.f32 %v609, 0.5
      %v616 = vmul.f32 %v610, 0.5
      %v617 = vmul.f32 %v611, 0.5
      %v618 = vmul.f32 %v612, 0.5
      %v619 = vmul.f32 %v613, 0.5
      %v620 = vsub.f32 %v614, %v530
      %v621 = vsub.f32 %v615, %v533
      %v622 = vsub.f32 %v616, %v536
      %v623 = vsub.f32 %v617, %v539
      %v624 = vsub.f32 %v618, %v542
      %v625 = vsub.f32 %v619, %v545
      %v626 = vmax.f32 %v620, 0.0
      %v627 = vmax.f32 %v621, 0.0
      %v628 = vmax.f32 %v622, 0.0
      %v629 = vmax.f32 %v623, 0.0
      %v630 = vmax.f32 %v624, 0.0
      %v631 = vmax.f32 %v625, 0.0
      %v632 = vadd.f32 %v314, %v582
      %v633 = vadd.f32 %v317, %v582
      %v634 = vadd.f32 %v320, %v582
      %v635 = vadd.f32 %v323, %v582
      %v636 = vadd.f32 %v326, %v582
      %v637 = vadd.f32 %v329, %v582
      %v638 = vmul.f32 %v632, 0.5
      %v639 = vmul.f32 %v633, 0.5
      %v640 = vmul.f32 %v634, 0.5
      %v641 = vmul.f32 %v635, 0.5
      %v642 = vmul.f32 %v636, 0.5
      %v643 = vmul.f32 %v637, 0.5
      %v644 = vsub.f32 %v638, %v565
      %v645 = vsub.f32 %v639, %v568
      %v646 = vsub.f32 %v640, %v571
      %v647 = vsub.f32 %v641, %v574
      %v648 = vsub.f32 %v642, %v577
      %v649 = vsub.f32 %v643, %v580
      %v650 = vmax.f32 %v644, 0.0
      %v651 = vmax.f32 %v645, 0.0
      %v652 = vmax.f32 %v646, 0.0
      %v653 = vmax.f32 %v647, 0.0
      %v654 = vmax.f32 %v648, 0.0
      %v655 = vmax.f32 %v649, 0.0
      %v656 = vsel %vm247, 1, 0
      %v657 = vsel %vm248, 1, 0
      %v658 = vsel %vm249, 1, 0
      %v659 = vsel %vm250, 1, 0
      %v660 = vsel %vm251, 1, 0
      %v661 = vsel %vm252, 1, 0
      %vm662 = vcmp.eq.s32.totalorder %v656, 1
      %vm663 = vcmp.eq.s32.totalorder %v657, 1
      %vm664 = vcmp.eq.s32.totalorder %v658, 1
      %vm665 = vcmp.eq.s32.totalorder %v659, 1
      %vm666 = vcmp.eq.s32.totalorder %v660, 1
      %vm667 = vcmp.eq.s32.totalorder %v661, 1
      %v668 = vsel %vm261, 1, 0
      %vm669 = vcmp.eq.s32.totalorder %v668, 1
      %vm670 = vmand %vm662, %vm669
      %vm671 = vmand %vm663, %vm669
      %vm672 = vmand %vm664, %vm669
      %vm673 = vmand %vm665, %vm669
      %vm674 = vmand %vm666, %vm669
      %vm675 = vmand %vm667, %vm669
      %v676 = vsel %vm670, %v601, 0.0
      %v677 = vsel %vm671, %v602, 0.0
      %v678 = vsel %vm672, %v603, 0.0
      %v679 = vsel %vm673, %v604, 0.0
      %v680 = vsel %vm674, %v605, 0.0
      %v681 = vsel %vm675, %v606, 0.0
      %v682 = vsel %vm362, %v676, -inf
      %v683 = vsel %vm362, %v677, -inf
      %v684 = vsel %vm362, %v678, -inf
      %v685 = vsel %vm362, %v679, -inf
      %v686 = vsel %vm362, %v680, -inf
      %v687 = vmax.f32 %v682, %v686
      %v688 = vsel %vm362, %v681, -inf
      %v689 = vmax.f32 %v683, %v688
      %v690 = vmax.f32 %v687, %v689
      %v691 = vmax.f32 %v684, %v685
      %v692 = vmax.f32 %v690, %v691
      %693 = vmax.xlane.f32.xlu0 %v692
      %v694 = vpop.xlane.xlu0 %693
      %v695 = vrot.slane %v694, 4
      %v696 = vmax.f32 %v694, %v695
      %v697 = vrot.slane %v696, 2
      %v698 = vmax.f32 %v696, %v697
      %v699 = vrot.slane %v698, 1
      %v700 = vmax.f32 %v698, %v699
      %s701 = vtos %v700
      %v702 = vstv %s701
      %v703 = vmul.f32 %v702, 2.0
      %v704 = vadd.f32 %v703, 1e-06
      loop: start=0, step=1, limit=20
      $region29: #{part_wise_emd.3} parent=27 // loop_pre_header
        _
      $region30: #{part_wise_emd.3} parent=27 // loop_header
        %s706 = sphi 0, %s710
        %p707 = scmp.ge.s32.totalorder %s706, 20
        %v711 = vphi 0.0, %v980
        %v712 = vphi 0.0, %v981
        %v713 = vphi 0.0, %v982
        %v714 = vphi 0.0, %v983
        %v715 = vphi 0.0, %v984
        %v716 = vphi 0.0, %v985
        %v717 = vphi 0.0, %v987
        %v718 = vphi %v704, %v988
      $region31: #{part_wise_emd.3} parent=27 // loop_header_branch
        %709 = sbr.rel (%p707) target = $region35
      $region32: #{part_wise_emd.3} parent=27 // loop_body
        %v719 = vmax.f32 %v718, 0.0025
        %v720 = vrcp.pop %v719
        %v721 = vmul.f32 %v719, %v720
        %v722 = vsub.f32 1.0, %v721
        %v723 = vmul.f32 %v720, %v722
        %v724 = vadd.f32 %v720, %v723
        %vm725 = vweird.f32 %v719
        %vm726 = vweird.f32 %v720
        %vm727 = vmor %vm725, %vm726
        %v728 = vsel %vm727, %v720, %v724
        %v729 = vand.u32 2147483647, %v719
        %vm730 = vcmp.eq.f32.partialorder %v729, 8.507059e+37
        %v731 = vand.u32 %v719, 2147483648
        %v732 = vor.u32 1.1754944e-38, %v731
        %v733 = vsel %vm730, %v732, %v728
        %v734 = vmul.f32 1.0, %v733
        %v735 = vmul.f32 %v601, %v734
        %v736 = vmul.f32 %v602, %v734
        %v737 = vmul.f32 %v603, %v734
        %v738 = vmul.f32 %v604, %v734
        %v739 = vmul.f32 %v605, %v734
        %v740 = vmul.f32 %v606, %v734
        %v741 = vmul.f32 %v717, %v734
        %v742 = vadd.f32 %v262, %v741
        %v743 = vperm.slane %v742, 0
        %v744 = vsub.f32 %v743, %v735
        %v745 = vsub.f32 %v743, %v736
        %v746 = vsub.f32 %v743, %v737
        %v747 = vsub.f32 %v743, %v738
        %v748 = vsub.f32 %v743, %v739
        %v749 = vsub.f32 %v743, %v740
        %v750 = vsel %vm362, %v744, -inf
        %751 = vmax.xlane.f32.xlu0 %v750
        %v752 = vpop.xlane.xlu0 %751
        %v753 = vsel %vm362, %v745, -inf
        %754 = vmax.xlane.f32.xlu0 %v753
        %v755 = vpop.xlane.xlu0 %754
        %v756 = vsel %vm362, %v746, -inf
        %757 = vmax.xlane.f32.xlu0 %v756
        %v758 = vpop.xlane.xlu0 %757
        %v759 = vsel %vm362, %v747, -inf
        %760 = vmax.xlane.f32.xlu0 %v759
        %v761 = vpop.xlane.xlu0 %760
        %v762 = vsel %vm362, %v748, -inf
        %763 = vmax.xlane.f32.xlu0 %v762
        %v764 = vpop.xlane.xlu0 %763
        %v765 = vsel %vm362, %v749, -inf
        %766 = vmax.xlane.f32.xlu0 %v765
        %v767 = vpop.xlane.xlu0 %766
        %v768 = vsub.f32 %v744, %v752
        %v769 = vsub.f32 %v745, %v755
        %v770 = vsub.f32 %v746, %v758
        %v771 = vsub.f32 %v747, %v761
        %v772 = vsub.f32 %v748, %v764
        %v773 = vsub.f32 %v749, %v767
        %v774 = vmul.f32 %v768, 1.442695
        %v775 = vpow.pop %v774
        %v776 = vmul.f32 %v769, 1.442695
        %v777 = vpow.pop %v776
        %v778 = vmul.f32 %v770, 1.442695
        %v779 = vpow.pop %v778
        %v780 = vmul.f32 %v771, 1.442695
        %v781 = vpow.pop %v780
        %v782 = vmul.f32 %v772, 1.442695
        %v783 = vpow.pop %v782
        %v784 = vmul.f32 %v773, 1.442695
        %v785 = vpow.pop %v784
        %v787 = vsel %vm362, %v775, 0
        %v790 = vsel %vm362, %v777, 0
        %v793 = vsel %vm362, %v779, 0
        %v796 = vsel %vm362, %v781, 0
        %v799 = vsel %vm362, %v783, 0
        %v802 = vsel %vm362, %v785, 0
        %804 = vmatpush.msra.mxu0 0.0
        %805 = vmatpush.msra.mxu0 0.0
        %806 = vmatpush.msra.mxu0 0.0
        %807 = vmatpush.msra.mxu0 0.0
        %808 = vmatpush.msra.mxu0 0.0
        %809 = vmatpush.msra.mxu0 0.0
        %810 = vmatpush.msra.mxu0 0.0
        %811 = vmatpush.msra.mxu0 0.0
        %812 = vmatpush.msra.mxu0 0.0
        %813 = vmatpush.msra.mxu0 0.0
        %814 = vmatpush.msra.mxu0 1.0
        %815 = vmatpush.msra.mxu0 1.0
        %816 = vmatpush.msra.mxu0 1.0
        %817 = vmatpush.msra.mxu0 1.0
        %818 = vmatpush.msra.mxu0 1.0
        %819 = vmatpush.msra.mxu0 1.0
        %820 = vmatmul.f32.gmra.mxu0 %v787
        %v821 = vpop.f32.mrf.mxu0
        %v822 = vadd.f32 0.0, %v821
        %823 = vmatmul.f32.gmra.mxu0 %v790
        %v824 = vpop.f32.mrf.mxu0
        %v825 = vadd.f32 0.0, %v824
        %826 = vmatmul.f32.gmra.mxu0 %v793
        %v827 = vpop.f32.mrf.mxu0
        %v828 = vadd.f32 0.0, %v827
        %829 = vmatmul.f32.gmra.mxu0 %v796
        %v830 = vpop.f32.mrf.mxu0
        %v831 = vadd.f32 0.0, %v830
        %832 = vmatmul.f32.gmra.mxu0 %v799
        %v833 = vpop.f32.mrf.mxu0
        %v834 = vadd.f32 0.0, %v833
        %835 = vmatmul.f32.gmra.mxu0 %v802
        %v836 = vpop.f32.mrf.mxu0
        %v837 = vadd.f32 0.0, %v836
        %838 = vdwg.mxu0
        %v839 = vsub.f32 0.0, %v719
        %v840 = vlog2.pop %v822
        %v841 = vmul.f32 %v840, 0.6931472
        %v842 = vlog2.pop %v825
        %v843 = vmul.f32 %v842, 0.6931472
        %v844 = vlog2.pop %v828
        %v845 = vmul.f32 %v844, 0.6931472
        %v846 = vlog2.pop %v831
        %v847 = vmul.f32 %v846, 0.6931472
        %v848 = vlog2.pop %v834
        %v849 = vmul.f32 %v848, 0.6931472
        %v850 = vlog2.pop %v837
        %v851 = vmul.f32 %v850, 0.6931472
        %v852 = vadd.f32 %v752, %v841
        %v853 = vadd.f32 %v755, %v843
        %v854 = vadd.f32 %v758, %v845
        %v855 = vadd.f32 %v761, %v847
        %v856 = vadd.f32 %v764, %v849
        %v857 = vadd.f32 %v767, %v851
        %v858 = vmul.f32 %v839, %v852
        %v859 = vmul.f32 %v839, %v853
        %v860 = vmul.f32 %v839, %v854
        %v861 = vmul.f32 %v839, %v855
        %v862 = vmul.f32 %v839, %v856
        %v863 = vmul.f32 %v839, %v857
        %v864 = vmul.f32 %v711, %v734
        %v865 = vmul.f32 %v712, %v734
        %v866 = vmul.f32 %v713, %v734
        %v867 = vmul.f32 %v714, %v734
        %v868 = vmul.f32 %v715, %v734
        %v869 = vmul.f32 %v716, %v734
        %v870 = vadd.f32 %v255, %v864
        %v871 = vadd.f32 %v256, %v865
        %v872 = vadd.f32 %v257, %v866
        %v873 = vadd.f32 %v258, %v867
        %v874 = vadd.f32 %v259, %v868
        %v875 = vadd.f32 %v260, %v869
        %877 = vset.pattern.permute.xlu0 0
        %878 = vperm.xlu0 %877, %v870
        %v879 = vpop.permute.xlu0 %878
        %882 = vset.pattern.permute.xlu0 0
        %883 = vperm.xlu0 %882, %v871
        %v884 = vpop.permute.xlu0 %883
        %887 = vset.pattern.permute.xlu0 0
        %888 = vperm.xlu0 %887, %v872
        %v889 = vpop.permute.xlu0 %888
        %892 = vset.pattern.permute.xlu0 0
        %893 = vperm.xlu0 %892, %v873
        %v894 = vpop.permute.xlu0 %893
        %897 = vset.pattern.permute.xlu0 0
        %898 = vperm.xlu0 %897, %v874
        %v899 = vpop.permute.xlu0 %898
        %902 = vset.pattern.permute.xlu0 0
        %903 = vperm.xlu0 %902, %v875
        %v904 = vpop.permute.xlu0 %903
        %v906 = vsub.f32 %v879, %v735
        %v907 = vsub.f32 %v884, %v736
        %v908 = vsub.f32 %v889, %v737
        %v909 = vsub.f32 %v894, %v738
        %v910 = vsub.f32 %v899, %v739
        %v911 = vsub.f32 %v904, %v740
        %v912 = vsel %vm362, %v906, -inf
        %v913 = vsel %vm362, %v907, -inf
        %v914 = vsel %vm362, %v908, -inf
        %v915 = vsel %vm362, %v909, -inf
        %v916 = vsel %vm362, %v910, -inf
        %v917 = vmax.f32 %v912, %v916
        %v918 = vsel %vm362, %v911, -inf
        %v919 = vmax.f32 %v913, %v918
        %v920 = vmax.f32 %v917, %v919
        %v921 = vmax.f32 %v914, %v915
        %v922 = vmax.f32 %v920, %v921
        %v923 = vrot.slane %v922, 4
        %v924 = vmax.f32 %v922, %v923
        %v925 = vrot.slane %v924, 2
        %v926 = vmax.f32 %v924, %v925
        %v927 = vrot.slane %v926, 1
        %v928 = vmax.f32 %v926, %v927
        %v929 = vsub.f32 %v906, %v928
        %v930 = vsub.f32 %v907, %v928
        %v931 = vsub.f32 %v908, %v928
        %v932 = vsub.f32 %v909, %v928
        %v933 = vsub.f32 %v910, %v928
        %v934 = vsub.f32 %v911, %v928
        %v935 = vmul.f32 %v929, 1.442695
        %v936 = vpow.pop %v935
        %v937 = vmul.f32 %v930, 1.442695
        %v938 = vpow.pop %v937
        %v939 = vmul.f32 %v931, 1.442695
        %v940 = vpow.pop %v939
        %v941 = vmul.f32 %v932, 1.442695
        %v942 = vpow.pop %v941
        %v943 = vmul.f32 %v933, 1.442695
        %v944 = vpow.pop %v943
        %v945 = vmul.f32 %v934, 1.442695
        %v946 = vpow.pop %v945
        %v948 = vsel %vm362, 1.0, 0
        %950 = vmatpush.msra.mxu0 0.0
        %951 = vmatpush.msra.mxu0 0.0
        %952 = vmatpush.msra.mxu0 0.0
        %953 = vmatpush.msra.mxu0 0.0
        %954 = vmatpush.msra.mxu0 0.0
        %955 = vmatpush.msra.mxu0 0.0
        %956 = vmatpush.msra.mxu0 0.0
        %957 = vmatpush.msra.mxu0 0.0
        %958 = vmatpush.msra.mxu0 0.0
        %959 = vmatpush.msra.mxu0 0.0
        %960 = vmatpush.msra.mxu0 %v946
        %961 = vmatpush.msra.mxu0 %v944
        %962 = vmatpush.msra.mxu0 %v942
        %963 = vmatpush.msra.mxu0 %v940
        %964 = vmatpush.msra.mxu0 %v938
        %965 = vmatpush.msra.mxu0 %v936
        %966 = vmatmul.f32.gmra.mxu0 %v948
        %v967 = vpop.f32.mrf.mxu0
        %v968 = vadd.f32 0.0, %v967
        %969 = vdwg.mxu0
        %v970 = vlog2.pop %v968
        %v971 = vmul.f32 %v970, 0.6931472
        %v972 = vadd.f32 %v928, %v971
        %v973 = vmul.f32 %v839, %v972
        %v974 = vadd.f32 %v711, %v858
        %v975 = vadd.f32 %v712, %v859
        %v976 = vadd.f32 %v713, %v860
        %v977 = vadd.f32 %v714, %v861
        %v978 = vadd.f32 %v715, %v862
        %v979 = vadd.f32 %v716, %v863
        %v980 = vmul.f32 %v974, 0.5
        %v981 = vmul.f32 %v975, 0.5
        %v982 = vmul.f32 %v976, 0.5
        %v983 = vmul.f32 %v977, 0.5
        %v984 = vmul.f32 %v978, 0.5
        %v985 = vmul.f32 %v979, 0.5
        %v986 = vadd.f32 %v717, %v973
        %v987 = vmul.f32 %v986, 0.5
        %v988 = vmul.f32 %v718, 0.25
      $region33: #{part_wise_emd.3} parent=27 // loop_footer
        %s710 = sadd.s32 1, %s706
      $region34: #{part_wise_emd.3} parent=27 // loop_footer_branch
        %705 = sbr.rel target = $region30
      $region35: #{part_wise_emd.3} parent=27 // loop_exit
        _
      loop: start=0, step=1, limit=20
      $region36: #{part_wise_emd.3} parent=27 // loop_pre_header
        _
      $region37: #{part_wise_emd.3} parent=27 // loop_header
        %s990 = sphi 0, %s994
        %p991 = scmp.ge.s32.totalorder %s990, 20
        %v995 = vphi 0.0, %v1126
        %v996 = vphi %v704, %v1127
      $region38: #{part_wise_emd.3} parent=27 // loop_header_branch
        %993 = sbr.rel (%p991) target = $region42
      $region39: #{part_wise_emd.3} parent=27 // loop_body
        %v997 = vmax.f32 %v996, 0.0025
        %v998 = vrcp.pop %v997
        %v999 = vmul.f32 %v997, %v998
        %v1000 = vsub.f32 1.0, %v999
        %v1001 = vmul.f32 %v998, %v1000
        %v1002 = vadd.f32 %v998, %v1001
        %vm1003 = vweird.f32 %v997
        %vm1004 = vweird.f32 %v998
        %vm1005 = vmor %vm1003, %vm1004
        %v1006 = vsel %vm1005, %v998, %v1002
        %v1007 = vand.u32 2147483647, %v997
        %vm1008 = vcmp.eq.f32.partialorder %v1007, 8.507059e+37
        %v1009 = vand.u32 %v997, 2147483648
        %v1010 = vor.u32 1.1754944e-38, %v1009
        %v1011 = vsel %vm1008, %v1010, %v1006
        %v1012 = vmul.f32 1.0, %v1011
        %v1013 = vmul.f32 %v626, %v1012
        %v1014 = vmul.f32 %v627, %v1012
        %v1015 = vmul.f32 %v628, %v1012
        %v1016 = vmul.f32 %v629, %v1012
        %v1017 = vmul.f32 %v630, %v1012
        %v1018 = vmul.f32 %v631, %v1012
        %v1019 = vperm.slane %v995, 0
        %v1020 = vmul.f32 %v275, %v1019
        %v1021 = vmul.f32 %v276, %v1019
        %v1022 = vmul.f32 %v277, %v1019
        %v1023 = vmul.f32 %v278, %v1019
        %v1024 = vmul.f32 %v279, %v1019
        %v1025 = vmul.f32 %v280, %v1019
        %v1026 = vsel %vm362, %v1020, 0.0
        %1027 = vadd.xlane.f32.xlu0 %v1026
        %v1028 = vpop.xlane.xlu0 %1027
        %v1029 = vsel %vm362, %v1021, 0.0
        %1030 = vadd.xlane.f32.xlu0 %v1029
        %v1031 = vpop.xlane.xlu0 %1030
        %v1032 = vsel %vm362, %v1022, 0.0
        %1033 = vadd.xlane.f32.xlu0 %v1032
        %v1034 = vpop.xlane.xlu0 %1033
        %v1035 = vsel %vm362, %v1023, 0.0
        %1036 = vadd.xlane.f32.xlu0 %v1035
        %v1037 = vpop.xlane.xlu0 %1036
        %v1038 = vsel %vm362, %v1024, 0.0
        %1039 = vadd.xlane.f32.xlu0 %v1038
        %v1040 = vpop.xlane.xlu0 %1039
        %v1041 = vsel %vm362, %v1025, 0.0
        %1042 = vadd.xlane.f32.xlu0 %v1041
        %v1043 = vpop.xlane.xlu0 %1042
        %v1044 = vmul.f32 %v1028, %v1012
        %v1045 = vmul.f32 %v1031, %v1012
        %v1046 = vmul.f32 %v1034, %v1012
        %v1047 = vmul.f32 %v1037, %v1012
        %v1048 = vmul.f32 %v1040, %v1012
        %v1049 = vmul.f32 %v1043, %v1012
        %v1050 = vadd.f32 %v255, %v1044
        %v1051 = vadd.f32 %v256, %v1045
        %v1052 = vadd.f32 %v257, %v1046
        %v1053 = vadd.f32 %v258, %v1047
        %v1054 = vadd.f32 %v259, %v1048
        %v1055 = vadd.f32 %v260, %v1049
        %v1056 = vsub.f32 %v1050, %v1013
        %v1057 = vsub.f32 %v1051, %v1014
        %v1058 = vsub.f32 %v1052, %v1015
        %v1059 = vsub.f32 %v1053, %v1016
        %v1060 = vsub.f32 %v1054, %v1017
        %v1061 = vsub.f32 %v1055, %v1018
        %v1062 = vsel %vm362, %v1056, -inf
        %v1063 = vsel %vm362, %v1057, -inf
        %v1064 = vsel %vm362, %v1058, -inf
        %v1065 = vsel %vm362, %v1059, -inf
        %v1066 = vsel %vm362, %v1060, -inf
        %v1067 = vmax.f32 %v1062, %v1066
        %v1068 = vsel %vm362, %v1061, -inf
        %v1069 = vmax.f32 %v1063, %v1068
        %v1070 = vmax.f32 %v1067, %v1069
        %v1071 = vmax.f32 %v1064, %v1065
        %v1072 = vmax.f32 %v1070, %v1071
        %v1073 = vrot.slane %v1072, 4
        %v1074 = vmax.f32 %v1072, %v1073
        %v1075 = vrot.slane %v1074, 2
        %v1076 = vmax.f32 %v1074, %v1075
        %v1077 = vrot.slane %v1076, 1
        %v1078 = vmax.f32 %v1076, %v1077
        %v1079 = vsub.f32 %v1056, %v1078
        %v1080 = vsub.f32 %v1057, %v1078
        %v1081 = vsub.f32 %v1058, %v1078
        %v1082 = vsub.f32 %v1059, %v1078
        %v1083 = vsub.f32 %v1060, %v1078
        %v1084 = vsub.f32 %v1061, %v1078
        %v1085 = vmul.f32 %v1079, 1.442695
        %v1086 = vpow.pop %v1085
        %v1087 = vmul.f32 %v1080, 1.442695
        %v1088 = vpow.pop %v1087
        %v1089 = vmul.f32 %v1081, 1.442695
        %v1090 = vpow.pop %v1089
        %v1091 = vmul.f32 %v1082, 1.442695
        %v1092 = vpow.pop %v1091
        %v1093 = vmul.f32 %v1083, 1.442695
        %v1094 = vpow.pop %v1093
        %v1095 = vmul.f32 %v1084, 1.442695
        %v1096 = vpow.pop %v1095
        %v1098 = vsel %vm362, 1.0, 0
        %1100 = vmatpush.msra.mxu0 0.0
        %1101 = vmatpush.msra.mxu0 0.0
        %1102 = vmatpush.msra.mxu0 0.0
        %1103 = vmatpush.msra.mxu0 0.0
        %1104 = vmatpush.msra.mxu0 0.0
        %1105 = vmatpush.msra.mxu0 0.0
        %1106 = vmatpush.msra.mxu0 0.0
        %1107 = vmatpush.msra.mxu0 0.0
        %1108 = vmatpush.msra.mxu0 0.0
        %1109 = vmatpush.msra.mxu0 0.0
        %1110 = vmatpush.msra.mxu0 %v1096
        %1111 = vmatpush.msra.mxu0 %v1094
        %1112 = vmatpush.msra.mxu0 %v1092
        %1113 = vmatpush.msra.mxu0 %v1090
        %1114 = vmatpush.msra.mxu0 %v1088
        %1115 = vmatpush.msra.mxu0 %v1086
        %1116 = vmatmul.f32.gmra.mxu0 %v1098
        %v1117 = vpop.f32.mrf.mxu0
        %v1118 = vadd.f32 0.0, %v1117
        %1119 = vdwg.mxu0
        %v1120 = vsub.f32 0.0, %v997
        %v1121 = vlog2.pop %v1118
        %v1122 = vmul.f32 %v1121, 0.6931472
        %v1123 = vadd.f32 %v1078, %v1122
        %v1124 = vmul.f32 %v1120, %v1123
        %v1125 = vadd.f32 %v995, %v1124
        %v1126 = vmul.f32 %v1125, 0.5
        %v1127 = vmul.f32 %v996, 0.25
      $region40: #{part_wise_emd.3} parent=27 // loop_footer
        %s994 = sadd.s32 1, %s990
      $region41: #{part_wise_emd.3} parent=27 // loop_footer_branch
        %989 = sbr.rel target = $region37
      $region42: #{part_wise_emd.3} parent=27 // loop_exit
        _
      loop: start=0, step=1, limit=20
      $region43: #{part_wise_emd.3} parent=27 // loop_pre_header
        _
      $region44: #{part_wise_emd.3} parent=27 // loop_header
        %s1129 = sphi 0, %s1133
        %p1130 = scmp.ge.s32.totalorder %s1129, 20
        %v1134 = vphi 0.0, %v1347
        %v1135 = vphi 0.0, %v1348
        %v1136 = vphi 0.0, %v1349
        %v1137 = vphi 0.0, %v1350
        %v1138 = vphi 0.0, %v1351
        %v1139 = vphi 0.0, %v1352
        %v1140 = vphi %v704, %v1353
      $region45: #{part_wise_emd.3} parent=27 // loop_header_branch
        %1132 = sbr.rel (%p1130) target = $region49
      $region46: #{part_wise_emd.3} parent=27 // loop_body
        %v1141 = vmax.f32 %v1140, 0.0025
        %v1142 = vrcp.pop %v1141
        %v1143 = vmul.f32 %v1141, %v1142
        %v1144 = vsub.f32 1.0, %v1143
        %v1145 = vmul.f32 %v1142, %v1144
        %v1146 = vadd.f32 %v1142, %v1145
        %vm1147 = vweird.f32 %v1141
        %vm1148 = vweird.f32 %v1142
        %vm1149 = vmor %vm1147, %vm1148
        %v1150 = vsel %vm1149, %v1142, %v1146
        %v1151 = vand.u32 2147483647, %v1141
        %vm1152 = vcmp.eq.f32.partialorder %v1151, 8.507059e+37
        %v1153 = vand.u32 %v1141, 2147483648
        %v1154 = vor.u32 1.1754944e-38, %v1153
        %v1155 = vsel %vm1152, %v1154, %v1150
        %v1156 = vmul.f32 1.0, %v1155
        %v1157 = vmul.f32 %v650, %v1156
        %v1158 = vmul.f32 %v651, %v1156
        %v1159 = vmul.f32 %v652, %v1156
        %v1160 = vmul.f32 %v653, %v1156
        %v1161 = vmul.f32 %v654, %v1156
        %v1162 = vmul.f32 %v655, %v1156
        %1163 = vxpose.xlu0.b32.start [1/16] %v1134, 128
        %1164 = vxpose.xlu0.b32.cont [2/16] %v1135, 128
        %1165 = vxpose.xlu0.b32.cont [3/16] %v1136, 128
        %1166 = vxpose.xlu0.b32.cont [4/16] %v1137, 128
        %1167 = vxpose.xlu0.b32.cont [5/16] %v1138, 128
        %1168 = vxpose.xlu0.b32.cont [6/16] %v1139, 128
        %1169 = vxpose.xlu0.b32.cont [7/16] 0.0, 128
        %1170 = vxpose.xlu0.b32.cont [8/16] 0.0, 128
        %1171 = vxpose.xlu0.b32.cont [9/16] 0.0, 128
        %1172 = vxpose.xlu0.b32.cont [10/16] 0.0, 128
        %1173 = vxpose.xlu0.b32.cont [11/16] 0.0, 128
        %1174 = vxpose.xlu0.b32.cont [12/16] 0.0, 128
        %1175 = vxpose.xlu0.b32.cont [13/16] 0.0, 128
        %1176 = vxpose.xlu0.b32.cont [14/16] 0.0, 128
        %1177 = vxpose.xlu0.b32.cont [15/16] 0.0, 128
        %1178 = vxpose.xlu0.b32.end [16/16] 0.0, 128
        %v1179 = vpop.trf.xlu0
        %v1180 = vpop.trf.xlu0
        %v1181 = vpop.trf.xlu0
        %v1182 = vpop.trf.xlu0
        %v1183 = vpop.trf.xlu0
        %v1184 = vpop.trf.xlu0
        %v1185 = vpop.trf.xlu0
        %v1186 = vpop.trf.xlu0
        %v1187 = vpop.trf.xlu0
        %v1188 = vpop.trf.xlu0
        %v1189 = vpop.trf.xlu0
        %v1190 = vpop.trf.xlu0
        %v1191 = vpop.trf.xlu0
        %v1192 = vpop.trf.xlu0
        %v1193 = vpop.trf.xlu0
        %v1194 = vpop.trf.xlu0
        %v1196 = vsel %vm362, %v1179, 0
        %1198 = vmatpush.msra.mxu0 0.0
        %1199 = vmatpush.msra.mxu0 0.0
        %1200 = vmatpush.msra.mxu0 0.0
        %1201 = vmatpush.msra.mxu0 0.0
        %1202 = vmatpush.msra.mxu0 0.0
        %1203 = vmatpush.msra.mxu0 0.0
        %1204 = vmatpush.msra.mxu0 0.0
        %1205 = vmatpush.msra.mxu0 0.0
        %1206 = vmatpush.msra.mxu0 0.0
        %1207 = vmatpush.msra.mxu0 0.0
        %1208 = vmatpush.msra.mxu0 %v280
        %1209 = vmatpush.msra.mxu0 %v279
        %1210 = vmatpush.msra.mxu0 %v278
        %1211 = vmatpush.msra.mxu0 %v277
        %1212 = vmatpush.msra.mxu0 %v276
        %1213 = vmatpush.msra.mxu0 %v275
        %1214 = vmatmul.f32.gmra.mxu0 %v1196
        %v1215 = vpop.f32.mrf.mxu0
        %v1216 = vadd.f32 0.0, %v1215
        %1217 = vdwg.mxu0
        %v1218 = vmul.f32 %v1216, %v1156
        %v1219 = vadd.f32 %v262, %v1218
        %v1220 = vperm.slane %v1219, 0
        %v1221 = vsub.f32 %v1220, %v1157
        %v1222 = vsub.f32 %v1220, %v1158
        %v1223 = vsub.f32 %v1220, %v1159
        %v1224 = vsub.f32 %v1220, %v1160
        %v1225 = vsub.f32 %v1220, %v1161
        %v1226 = vsub.f32 %v1220, %v1162
        %v1227 = vsel %vm362, %v1221, -inf
        %1228 = vmax.xlane.f32.xlu0 %v1227
        %v1229 = vpop.xlane.xlu0 %1228
        %v1230 = vsel %vm362, %v1222, -inf
        %1231 = vmax.xlane.f32.xlu0 %v1230
        %v1232 = vpop.xlane.xlu0 %1231
        %v1233 = vsel %vm362, %v1223, -inf
        %1234 = vmax.xlane.f32.xlu0 %v1233
        %v1235 = vpop.xlane.xlu0 %1234
        %v1236 = vsel %vm362, %v1224, -inf
        %1237 = vmax.xlane.f32.xlu0 %v1236
        %v1238 = vpop.xlane.xlu0 %1237
        %v1239 = vsel %vm362, %v1225, -inf
        %1240 = vmax.xlane.f32.xlu0 %v1239
        %v1241 = vpop.xlane.xlu0 %1240
        %v1242 = vsel %vm362, %v1226, -inf
        %1243 = vmax.xlane.f32.xlu0 %v1242
        %v1244 = vpop.xlane.xlu0 %1243
        %v1245 = vsub.f32 %v1221, %v1229
        %v1246 = vsub.f32 %v1222, %v1232
        %v1247 = vsub.f32 %v1223, %v1235
        %v1248 = vsub.f32 %v1224, %v1238
        %v1249 = vsub.f32 %v1225, %v1241
        %v1250 = vsub.f32 %v1226, %v1244
        %v1251 = vmul.f32 %v1245, 1.442695
        %v1252 = vpow.pop %v1251
        %v1253 = vmul.f32 %v1246, 1.442695
        %v1254 = vpow.pop %v1253
        %v1255 = vmul.f32 %v1247, 1.442695
        %v1256 = vpow.pop %v1255
        %v1257 = vmul.f32 %v1248, 1.442695
        %v1258 = vpow.pop %v1257
        %v1259 = vmul.f32 %v1249, 1.442695
        %v1260 = vpow.pop %v1259
        %v1261 = vmul.f32 %v1250, 1.442695
        %v1262 = vpow.pop %v1261
        %v1264 = vsel %vm362, %v1252, 0
        %v1267 = vsel %vm362, %v1254, 0
        %v1270 = vsel %vm362, %v1256, 0
        %v1273 = vsel %vm362, %v1258, 0
        %v1276 = vsel %vm362, %v1260, 0
        %v1279 = vsel %vm362, %v1262, 0
        %1281 = vmatpush.msra.mxu0 0.0
        %1282 = vmatpush.msra.mxu0 0.0
        %1283 = vmatpush.msra.mxu0 0.0
        %1284 = vmatpush.msra.mxu0 0.0
        %1285 = vmatpush.msra.mxu0 0.0
        %1286 = vmatpush.msra.mxu0 0.0
        %1287 = vmatpush.msra.mxu0 0.0
        %1288 = vmatpush.msra.mxu0 0.0
        %1289 = vmatpush.msra.mxu0 0.0
        %1290 = vmatpush.msra.mxu0 0.0
        %1291 = vmatpush.msra.mxu0 1.0
        %1292 = vmatpush.msra.mxu0 1.0
        %1293 = vmatpush.msra.mxu0 1.0
        %1294 = vmatpush.msra.mxu0 1.0
        %1295 = vmatpush.msra.mxu0 1.0
        %1296 = vmatpush.msra.mxu0 1.0
        %1297 = vmatmul.f32.gmra.mxu0 %v1264
        %v1298 = vpop.f32.mrf.mxu0
        %v1299 = vadd.f32 0.0, %v1298
        %1300 = vmatmul.f32.gmra.mxu0 %v1267
        %v1301 = vpop.f32.mrf.mxu0
        %v1302 = vadd.f32 0.0, %v1301
        %1303 = vmatmul.f32.gmra.mxu0 %v1270
        %v1304 = vpop.f32.mrf.mxu0
        %v1305 = vadd.f32 0.0, %v1304
        %1306 = vmatmul.f32.gmra.mxu0 %v1273
        %v1307 = vpop.f32.mrf.mxu0
        %v1308 = vadd.f32 0.0, %v1307
        %1309 = vmatmul.f32.gmra.mxu0 %v1276
        %v1310 = vpop.f32.mrf.mxu0
        %v1311 = vadd.f32 0.0, %v1310
        %1312 = vmatmul.f32.gmra.mxu0 %v1279
        %v1313 = vpop.f32.mrf.mxu0
        %v1314 = vadd.f32 0.0, %v1313
        %1315 = vdwg.mxu0
        %v1316 = vsub.f32 0.0, %v1141
        %v1317 = vlog2.pop %v1299
        %v1318 = vmul.f32 %v1317, 0.6931472
        %v1319 = vlog2.pop %v1302
        %v1320 = vmul.f32 %v1319, 0.6931472
        %v1321 = vlog2.pop %v1305
        %v1322 = vmul.f32 %v1321, 0.6931472
        %v1323 = vlog2.pop %v1308
        %v1324 = vmul.f32 %v1323, 0.6931472
        %v1325 = vlog2.pop %v1311
        %v1326 = vmul.f32 %v1325, 0.6931472
        %v1327 = vlog2.pop %v1314
        %v1328 = vmul.f32 %v1327, 0.6931472
        %v1329 = vadd.f32 %v1229, %v1318
        %v1330 = vadd.f32 %v1232, %v1320
        %v1331 = vadd.f32 %v1235, %v1322
        %v1332 = vadd.f32 %v1238, %v1324
        %v1333 = vadd.f32 %v1241, %v1326
        %v1334 = vadd.f32 %v1244, %v1328
        %v1335 = vmul.f32 %v1316, %v1329
        %v1336 = vmul.f32 %v1316, %v1330
        %v1337 = vmul.f32 %v1316, %v1331
        %v1338 = vmul.f32 %v1316, %v1332
        %v1339 = vmul.f32 %v1316, %v1333
        %v1340 = vmul.f32 %v1316, %v1334
        %v1341 = vadd.f32 %v1134, %v1335
        %v1342 = vadd.f32 %v1135, %v1336
        %v1343 = vadd.f32 %v1136, %v1337
        %v1344 = vadd.f32 %v1137, %v1338
        %v1345 = vadd.f32 %v1138, %v1339
        %v1346 = vadd.f32 %v1139, %v1340
        %v1347 = vmul.f32 %v1341, 0.5
        %v1348 = vmul.f32 %v1342, 0.5
        %v1349 = vmul.f32 %v1343, 0.5
        %v1350 = vmul.f32 %v1344, 0.5
        %v1351 = vmul.f32 %v1345, 0.5
        %v1352 = vmul.f32 %v1346, 0.5
        %v1353 = vmul.f32 %v1140, 0.25
      $region47: #{part_wise_emd.3} parent=27 // loop_footer
        %s1133 = sadd.s32 1, %s1129
      $region48: #{part_wise_emd.3} parent=27 // loop_footer_branch
        %1128 = sbr.rel target = $region44
      $region49: #{part_wise_emd.3} parent=27 // loop_exit
        _
      %v1354 = vmul.f32 %v601, 400.0
      %v1355 = vmul.f32 %v602, 400.0
      %v1356 = vmul.f32 %v603, 400.0
      %v1357 = vmul.f32 %v604, 400.0
      %v1358 = vmul.f32 %v605, 400.0
      %v1359 = vmul.f32 %v606, 400.0
      %v1360 = vmul.f32 %v717, 400.0
      %v1361 = vadd.f32 %v262, %v1360
      %v1362 = vperm.slane %v1361, 0
      %v1363 = vsub.f32 %v1362, %v1354
      %v1364 = vsub.f32 %v1362, %v1355
      %v1365 = vsub.f32 %v1362, %v1356
      %v1366 = vsub.f32 %v1362, %v1357
      %v1367 = vsub.f32 %v1362, %v1358
      %v1368 = vsub.f32 %v1362, %v1359
      %v1369 = vsel %vm362, %v1363, -inf
      %1370 = vmax.xlane.f32.xlu0 %v1369
      %v1371 = vpop.xlane.xlu0 %1370
      %v1372 = vsel %vm362, %v1364, -inf
      %1373 = vmax.xlane.f32.xlu0 %v1372
      %v1374 = vpop.xlane.xlu0 %1373
      %v1375 = vsel %vm362, %v1365, -inf
      %1376 = vmax.xlane.f32.xlu0 %v1375
      %v1377 = vpop.xlane.xlu0 %1376
      %v1378 = vsel %vm362, %v1366, -inf
      %1379 = vmax.xlane.f32.xlu0 %v1378
      %v1380 = vpop.xlane.xlu0 %1379
      %v1381 = vsel %vm362, %v1367, -inf
      %1382 = vmax.xlane.f32.xlu0 %v1381
      %v1383 = vpop.xlane.xlu0 %1382
      %v1384 = vsel %vm362, %v1368, -inf
      %1385 = vmax.xlane.f32.xlu0 %v1384
      %v1386 = vpop.xlane.xlu0 %1385
      %v1387 = vsub.f32 %v1363, %v1371
      %v1388 = vsub.f32 %v1364, %v1374
      %v1389 = vsub.f32 %v1365, %v1377
      %v1390 = vsub.f32 %v1366, %v1380
      %v1391 = vsub.f32 %v1367, %v1383
      %v1392 = vsub.f32 %v1368, %v1386
      %v1393 = vmul.f32 %v1387, 1.442695
      %v1394 = vpow.pop %v1393
      %v1395 = vmul.f32 %v1388, 1.442695
      %v1396 = vpow.pop %v1395
      %v1397 = vmul.f32 %v1389, 1.442695
      %v1398 = vpow.pop %v1397
      %v1399 = vmul.f32 %v1390, 1.442695
      %v1400 = vpow.pop %v1399
      %v1401 = vmul.f32 %v1391, 1.442695
      %v1402 = vpow.pop %v1401
      %v1403 = vmul.f32 %v1392, 1.442695
      %v1404 = vpow.pop %v1403
      %v1406 = vsel %vm362, %v1394, 0
      %v1409 = vsel %vm362, %v1396, 0
      %v1412 = vsel %vm362, %v1398, 0
      %v1415 = vsel %vm362, %v1400, 0
      %v1418 = vsel %vm362, %v1402, 0
      %v1421 = vsel %vm362, %v1404, 0
      %1423 = vmatpush.msra.mxu0 0.0
      %1424 = vmatpush.msra.mxu0 0.0
      %1425 = vmatpush.msra.mxu0 0.0
      %1426 = vmatpush.msra.mxu0 0.0
      %1427 = vmatpush.msra.mxu0 0.0
      %1428 = vmatpush.msra.mxu0 0.0
      %1429 = vmatpush.msra.mxu0 0.0
      %1430 = vmatpush.msra.mxu0 0.0
      %1431 = vmatpush.msra.mxu0 0.0
      %1432 = vmatpush.msra.mxu0 0.0
      %1433 = vmatpush.msra.mxu0 1.0
      %1434 = vmatpush.msra.mxu0 1.0
      %1435 = vmatpush.msra.mxu0 1.0
      %1436 = vmatpush.msra.mxu0 1.0
      %1437 = vmatpush.msra.mxu0 1.0
      %1438 = vmatpush.msra.mxu0 1.0
      %1439 = vmatmul.f32.gmra.mxu0 %v1406
      %v1440 = vpop.f32.mrf.mxu0
      %v1441 = vadd.f32 0.0, %v1440
      %1442 = vmatmul.f32.gmra.mxu0 %v1409
      %v1443 = vpop.f32.mrf.mxu0
      %v1444 = vadd.f32 0.0, %v1443
      %1445 = vmatmul.f32.gmra.mxu0 %v1412
      %v1446 = vpop.f32.mrf.mxu0
      %v1447 = vadd.f32 0.0, %v1446
      %1448 = vmatmul.f32.gmra.mxu0 %v1415
      %v1449 = vpop.f32.mrf.mxu0
      %v1450 = vadd.f32 0.0, %v1449
      %1451 = vmatmul.f32.gmra.mxu0 %v1418
      %v1452 = vpop.f32.mrf.mxu0
      %v1453 = vadd.f32 0.0, %v1452
      %1454 = vmatmul.f32.gmra.mxu0 %v1421
      %v1455 = vpop.f32.mrf.mxu0
      %v1456 = vadd.f32 0.0, %v1455
      %1457 = vdwg.mxu0
      %v1458 = vlog2.pop %v1441
      %v1459 = vmul.f32 %v1458, 0.6931472
      %v1460 = vlog2.pop %v1444
      %v1461 = vmul.f32 %v1460, 0.6931472
      %v1462 = vlog2.pop %v1447
      %v1463 = vmul.f32 %v1462, 0.6931472
      %v1464 = vlog2.pop %v1450
      %v1465 = vmul.f32 %v1464, 0.6931472
      %v1466 = vlog2.pop %v1453
      %v1467 = vmul.f32 %v1466, 0.6931472
      %v1468 = vlog2.pop %v1456
      %v1469 = vmul.f32 %v1468, 0.6931472
      %v1470 = vadd.f32 %v1371, %v1459
      %v1471 = vadd.f32 %v1374, %v1461
      %v1472 = vadd.f32 %v1377, %v1463
      %v1473 = vadd.f32 %v1380, %v1465
      %v1474 = vadd.f32 %v1383, %v1467
      %v1475 = vadd.f32 %v1386, %v1469
      %v1476 = vmul.f32 %v1470, -0.0025
      %v1477 = vmul.f32 %v1471, -0.0025
      %v1478 = vmul.f32 %v1472, -0.0025
      %v1479 = vmul.f32 %v1473, -0.0025
      %v1480 = vmul.f32 %v1474, -0.0025
      %v1481 = vmul.f32 %v1475, -0.0025
      %v1482 = vmul.f32 %v711, 400.0
      %v1483 = vmul.f32 %v712, 400.0
      %v1484 = vmul.f32 %v713, 400.0
      %v1485 = vmul.f32 %v714, 400.0
      %v1486 = vmul.f32 %v715, 400.0
      %v1487 = vmul.f32 %v716, 400.0
      %v1488 = vadd.f32 %v255, %v1482
      %v1489 = vadd.f32 %v256, %v1483
      %v1490 = vadd.f32 %v257, %v1484
      %v1491 = vadd.f32 %v258, %v1485
      %v1492 = vadd.f32 %v259, %v1486
      %v1493 = vadd.f32 %v260, %v1487
      %1495 = vset.pattern.permute.xlu0 0
      %1496 = vperm.xlu0 %1495, %v1488
      %v1497 = vpop.permute.xlu0 %1496
      %1500 = vset.pattern.permute.xlu0 0
      %1501 = vperm.xlu0 %1500, %v1489
      %v1502 = vpop.permute.xlu0 %1501
      %1505 = vset.pattern.permute.xlu0 0
      %1506 = vperm.xlu0 %1505, %v1490
      %v1507 = vpop.permute.xlu0 %1506
      %1510 = vset.pattern.permute.xlu0 0
      %1511 = vperm.xlu0 %1510, %v1491
      %v1512 = vpop.permute.xlu0 %1511
      %1515 = vset.pattern.permute.xlu0 0
      %1516 = vperm.xlu0 %1515, %v1492
      %v1517 = vpop.permute.xlu0 %1516
      %1520 = vset.pattern.permute.xlu0 0
      %1521 = vperm.xlu0 %1520, %v1493
      %v1522 = vpop.permute.xlu0 %1521
      %v1524 = vsub.f32 %v1497, %v1354
      %v1525 = vsub.f32 %v1502, %v1355
      %v1526 = vsub.f32 %v1507, %v1356
      %v1527 = vsub.f32 %v1512, %v1357
      %v1528 = vsub.f32 %v1517, %v1358
      %v1529 = vsub.f32 %v1522, %v1359
      %v1530 = vsel %vm362, %v1524, -inf
      %v1531 = vsel %vm362, %v1525, -inf
      %v1532 = vsel %vm362, %v1526, -inf
      %v1533 = vsel %vm362, %v1527, -inf
      %v1534 = vsel %vm362, %v1528, -inf
      %v1535 = vmax.f32 %v1530, %v1534
      %v1536 = vsel %vm362, %v1529, -inf
      %v1537 = vmax.f32 %v1531, %v1536
      %v1538 = vmax.f32 %v1535, %v1537
      %v1539 = vmax.f32 %v1532, %v1533
      %v1540 = vmax.f32 %v1538, %v1539
      %v1541 = vrot.slane %v1540, 4
      %v1542 = vmax.f32 %v1540, %v1541
      %v1543 = vrot.slane %v1542, 2
      %v1544 = vmax.f32 %v1542, %v1543
      %v1545 = vrot.slane %v1544, 1
      %v1546 = vmax.f32 %v1544, %v1545
      %v1547 = vsub.f32 %v1524, %v1546
      %v1548 = vsub.f32 %v1525, %v1546
      %v1549 = vsub.f32 %v1526, %v1546
      %v1550 = vsub.f32 %v1527, %v1546
      %v1551 = vsub.f32 %v1528, %v1546
      %v1552 = vsub.f32 %v1529, %v1546
      %v1553 = vmul.f32 %v1547, 1.442695
      %v1554 = vpow.pop %v1553
      %v1555 = vmul.f32 %v1548, 1.442695
      %v1556 = vpow.pop %v1555
      %v1557 = vmul.f32 %v1549, 1.442695
      %v1558 = vpow.pop %v1557
      %v1559 = vmul.f32 %v1550, 1.442695
      %v1560 = vpow.pop %v1559
      %v1561 = vmul.f32 %v1551, 1.442695
      %v1562 = vpow.pop %v1561
      %v1563 = vmul.f32 %v1552, 1.442695
      %v1564 = vpow.pop %v1563
      %v1566 = vsel %vm362, 1.0, 0
      %1568 = vmatpush.msra.mxu0 0.0
      %1569 = vmatpush.msra.mxu0 0.0
      %1570 = vmatpush.msra.mxu0 0.0
      %1571 = vmatpush.msra.mxu0 0.0
      %1572 = vmatpush.msra.mxu0 0.0
      %1573 = vmatpush.msra.mxu0 0.0
      %1574 = vmatpush.msra.mxu0 0.0
      %1575 = vmatpush.msra.mxu0 0.0
      %1576 = vmatpush.msra.mxu0 0.0
      %1577 = vmatpush.msra.mxu0 0.0
      %1578 = vmatpush.msra.mxu0 %v1564
      %1579 = vmatpush.msra.mxu0 %v1562
      %1580 = vmatpush.msra.mxu0 %v1560
      %1581 = vmatpush.msra.mxu0 %v1558
      %1582 = vmatpush.msra.mxu0 %v1556
      %1583 = vmatpush.msra.mxu0 %v1554
      %1584 = vmatmul.f32.gmra.mxu0 %v1566
      %v1585 = vpop.f32.mrf.mxu0
      %v1586 = vadd.f32 0.0, %v1585
      %1587 = vdwg.mxu0
      %v1588 = vlog2.pop %v1586
      %v1589 = vmul.f32 %v1588, 0.6931472
      %v1590 = vadd.f32 %v1546, %v1589
      %v1591 = vmul.f32 %v1590, -0.0025
      %v1592 = vmul.f32 %v626, 400.0
      %v1593 = vmul.f32 %v627, 400.0
      %v1594 = vmul.f32 %v628, 400.0
      %v1595 = vmul.f32 %v629, 400.0
      %v1596 = vmul.f32 %v630, 400.0
      %v1597 = vmul.f32 %v631, 400.0
      %v1598 = vmul.f32 %v995, 400.0
      %v1599 = vadd.f32 %v262, %v1598
      %v1600 = vperm.slane %v1599, 0
      %v1601 = vsub.f32 %v1600, %v1592
      %v1602 = vsub.f32 %v1600, %v1593
      %v1603 = vsub.f32 %v1600, %v1594
      %v1604 = vsub.f32 %v1600, %v1595
      %v1605 = vsub.f32 %v1600, %v1596
      %v1606 = vsub.f32 %v1600, %v1597
      %v1607 = vsel %vm362, %v1601, -inf
      %1608 = vmax.xlane.f32.xlu0 %v1607
      %v1609 = vpop.xlane.xlu0 %1608
      %v1610 = vsel %vm362, %v1602, -inf
      %1611 = vmax.xlane.f32.xlu0 %v1610
      %v1612 = vpop.xlane.xlu0 %1611
      %v1613 = vsel %vm362, %v1603, -inf
      %1614 = vmax.xlane.f32.xlu0 %v1613
      %v1615 = vpop.xlane.xlu0 %1614
      %v1616 = vsel %vm362, %v1604, -inf
      %1617 = vmax.xlane.f32.xlu0 %v1616
      %v1618 = vpop.xlane.xlu0 %1617
      %v1619 = vsel %vm362, %v1605, -inf
      %1620 = vmax.xlane.f32.xlu0 %v1619
      %v1621 = vpop.xlane.xlu0 %1620
      %v1622 = vsel %vm362, %v1606, -inf
      %1623 = vmax.xlane.f32.xlu0 %v1622
      %v1624 = vpop.xlane.xlu0 %1623
      %v1625 = vsub.f32 %v1601, %v1609
      %v1626 = vsub.f32 %v1602, %v1612
      %v1627 = vsub.f32 %v1603, %v1615
      %v1628 = vsub.f32 %v1604, %v1618
      %v1629 = vsub.f32 %v1605, %v1621
      %v1630 = vsub.f32 %v1606, %v1624
      %v1631 = vmul.f32 %v1625, 1.442695
      %v1632 = vpow.pop %v1631
      %v1633 = vmul.f32 %v1626, 1.442695
      %v1634 = vpow.pop %v1633
      %v1635 = vmul.f32 %v1627, 1.442695
      %v1636 = vpow.pop %v1635
      %v1637 = vmul.f32 %v1628, 1.442695
      %v1638 = vpow.pop %v1637
      %v1639 = vmul.f32 %v1629, 1.442695
      %v1640 = vpow.pop %v1639
      %v1641 = vmul.f32 %v1630, 1.442695
      %v1642 = vpow.pop %v1641
      %v1644 = vsel %vm362, %v1632, 0
      %v1647 = vsel %vm362, %v1634, 0
      %v1650 = vsel %vm362, %v1636, 0
      %v1653 = vsel %vm362, %v1638, 0
      %v1656 = vsel %vm362, %v1640, 0
      %v1659 = vsel %vm362, %v1642, 0
      %1661 = vmatpush.msra.mxu0 0.0
      %1662 = vmatpush.msra.mxu0 0.0
      %1663 = vmatpush.msra.mxu0 0.0
      %1664 = vmatpush.msra.mxu0 0.0
      %1665 = vmatpush.msra.mxu0 0.0
      %1666 = vmatpush.msra.mxu0 0.0
      %1667 = vmatpush.msra.mxu0 0.0
      %1668 = vmatpush.msra.mxu0 0.0
      %1669 = vmatpush.msra.mxu0 0.0
      %1670 = vmatpush.msra.mxu0 0.0
      %1671 = vmatpush.msra.mxu0 1.0
      %1672 = vmatpush.msra.mxu0 1.0
      %1673 = vmatpush.msra.mxu0 1.0
      %1674 = vmatpush.msra.mxu0 1.0
      %1675 = vmatpush.msra.mxu0 1.0
      %1676 = vmatpush.msra.mxu0 1.0
      %1677 = vmatmul.f32.gmra.mxu0 %v1644
      %v1678 = vpop.f32.mrf.mxu0
      %v1679 = vadd.f32 0.0, %v1678
      %1680 = vmatmul.f32.gmra.mxu0 %v1647
      %v1681 = vpop.f32.mrf.mxu0
      %v1682 = vadd.f32 0.0, %v1681
      %1683 = vmatmul.f32.gmra.mxu0 %v1650
      %v1684 = vpop.f32.mrf.mxu0
      %v1685 = vadd.f32 0.0, %v1684
      %1686 = vmatmul.f32.gmra.mxu0 %v1653
      %v1687 = vpop.f32.mrf.mxu0
      %v1688 = vadd.f32 0.0, %v1687
      %1689 = vmatmul.f32.gmra.mxu0 %v1656
      %v1690 = vpop.f32.mrf.mxu0
      %v1691 = vadd.f32 0.0, %v1690
      %1692 = vmatmul.f32.gmra.mxu0 %v1659
      %v1693 = vpop.f32.mrf.mxu0
      %v1694 = vadd.f32 0.0, %v1693
      %1695 = vdwg.mxu0
      %v1696 = vlog2.pop %v1679
      %v1697 = vmul.f32 %v1696, 0.6931472
      %v1698 = vlog2.pop %v1682
      %v1699 = vmul.f32 %v1698, 0.6931472
      %v1700 = vlog2.pop %v1685
      %v1701 = vmul.f32 %v1700, 0.6931472
      %v1702 = vlog2.pop %v1688
      %v1703 = vmul.f32 %v1702, 0.6931472
      %v1704 = vlog2.pop %v1691
      %v1705 = vmul.f32 %v1704, 0.6931472
      %v1706 = vlog2.pop %v1694
      %v1707 = vmul.f32 %v1706, 0.6931472
      %v1708 = vadd.f32 %v1609, %v1697
      %v1709 = vadd.f32 %v1612, %v1699
      %v1710 = vadd.f32 %v1615, %v1701
      %v1711 = vadd.f32 %v1618, %v1703
      %v1712 = vadd.f32 %v1621, %v1705
      %v1713 = vadd.f32 %v1624, %v1707
      %v1714 = vmul.f32 %v1708, -0.0025
      %v1715 = vmul.f32 %v1709, -0.0025
      %v1716 = vmul.f32 %v1710, -0.0025
      %v1717 = vmul.f32 %v1711, -0.0025
      %v1718 = vmul.f32 %v1712, -0.0025
      %v1719 = vmul.f32 %v1713, -0.0025
      %v1720 = vmul.f32 %v650, 400.0
      %v1721 = vmul.f32 %v651, 400.0
      %v1722 = vmul.f32 %v652, 400.0
      %v1723 = vmul.f32 %v653, 400.0
      %v1724 = vmul.f32 %v654, 400.0
      %v1725 = vmul.f32 %v655, 400.0
      %v1726 = vmul.f32 %v1134, 400.0
      %v1727 = vmul.f32 %v1135, 400.0
      %v1728 = vmul.f32 %v1136, 400.0
      %v1729 = vmul.f32 %v1137, 400.0
      %v1730 = vmul.f32 %v1138, 400.0
      %v1731 = vmul.f32 %v1139, 400.0
      %v1732 = vadd.f32 %v255, %v1726
      %v1733 = vadd.f32 %v256, %v1727
      %v1734 = vadd.f32 %v257, %v1728
      %v1735 = vadd.f32 %v258, %v1729
      %v1736 = vadd.f32 %v259, %v1730
      %v1737 = vadd.f32 %v260, %v1731
      %1739 = vset.pattern.permute.xlu0 0
      %1740 = vperm.xlu0 %1739, %v1732
      %v1741 = vpop.permute.xlu0 %1740
      %1744 = vset.pattern.permute.xlu0 0
      %1745 = vperm.xlu0 %1744, %v1733
      %v1746 = vpop.permute.xlu0 %1745
      %1749 = vset.pattern.permute.xlu0 0
      %1750 = vperm.xlu0 %1749, %v1734
      %v1751 = vpop.permute.xlu0 %1750
      %1754 = vset.pattern.permute.xlu0 0
      %1755 = vperm.xlu0 %1754, %v1735
      %v1756 = vpop.permute.xlu0 %1755
      %1759 = vset.pattern.permute.xlu0 0
      %1760 = vperm.xlu0 %1759, %v1736
      %v1761 = vpop.permute.xlu0 %1760
      %1764 = vset.pattern.permute.xlu0 0
      %1765 = vperm.xlu0 %1764, %v1737
      %v1766 = vpop.permute.xlu0 %1765
      %v1768 = vsub.f32 %v1741, %v1720
      %v1769 = vsub.f32 %v1746, %v1721
      %v1770 = vsub.f32 %v1751, %v1722
      %v1771 = vsub.f32 %v1756, %v1723
      %v1772 = vsub.f32 %v1761, %v1724
      %v1773 = vsub.f32 %v1766, %v1725
      %v1774 = vsel %vm362, %v1768, -inf
      %v1775 = vsel %vm362, %v1769, -inf
      %v1776 = vsel %vm362, %v1770, -inf
      %v1777 = vsel %vm362, %v1771, -inf
      %v1778 = vsel %vm362, %v1772, -inf
      %v1779 = vmax.f32 %v1774, %v1778
      %v1780 = vsel %vm362, %v1773, -inf
      %v1781 = vmax.f32 %v1775, %v1780
      %v1782 = vmax.f32 %v1779, %v1781
      %v1783 = vmax.f32 %v1776, %v1777
      %v1784 = vmax.f32 %v1782, %v1783
      %v1785 = vrot.slane %v1784, 4
      %v1786 = vmax.f32 %v1784, %v1785
      %v1787 = vrot.slane %v1786, 2
      %v1788 = vmax.f32 %v1786, %v1787
      %v1789 = vrot.slane %v1788, 1
      %v1790 = vmax.f32 %v1788, %v1789
      %v1791 = vsub.f32 %v1768, %v1790
      %v1792 = vsub.f32 %v1769, %v1790
      %v1793 = vsub.f32 %v1770, %v1790
      %v1794 = vsub.f32 %v1771, %v1790
      %v1795 = vsub.f32 %v1772, %v1790
      %v1796 = vsub.f32 %v1773, %v1790
      %v1797 = vmul.f32 %v1791, 1.442695
      %v1798 = vpow.pop %v1797
      %v1799 = vmul.f32 %v1792, 1.442695
      %v1800 = vpow.pop %v1799
      %v1801 = vmul.f32 %v1793, 1.442695
      %v1802 = vpow.pop %v1801
      %v1803 = vmul.f32 %v1794, 1.442695
      %v1804 = vpow.pop %v1803
      %v1805 = vmul.f32 %v1795, 1.442695
      %v1806 = vpow.pop %v1805
      %v1807 = vmul.f32 %v1796, 1.442695
      %v1808 = vpow.pop %v1807
      %1809 = vmatpush.msra.mxu0 0.0
      %1810 = vmatpush.msra.mxu0 0.0
      %1811 = vmatpush.msra.mxu0 0.0
      %1812 = vmatpush.msra.mxu0 0.0
      %1813 = vmatpush.msra.mxu0 0.0
      %1814 = vmatpush.msra.mxu0 0.0
      %1815 = vmatpush.msra.mxu0 0.0
      %1816 = vmatpush.msra.mxu0 0.0
      %1817 = vmatpush.msra.mxu0 0.0
      %1818 = vmatpush.msra.mxu0 0.0
      %1819 = vmatpush.msra.mxu0 %v1808
      %1820 = vmatpush.msra.mxu0 %v1806
      %1821 = vmatpush.msra.mxu0 %v1804
      %1822 = vmatpush.msra.mxu0 %v1802
      %1823 = vmatpush.msra.mxu0 %v1800
      %1824 = vmatpush.msra.mxu0 %v1798
      %1825 = vmatmul.f32.gmra.mxu0 %v1566
      %v1826 = vpop.f32.mrf.mxu0
      %v1827 = vadd.f32 0.0, %v1826
      %1828 = vdwg.mxu0
      %v1829 = vlog2.pop %v1827
      %v1830 = vmul.f32 %v1829, 0.6931472
      %v1831 = vadd.f32 %v1790, %v1830
      %v1832 = vmul.f32 %v1831, -0.0025
      %v1833 = vmul.f32 %v255, 1.442695
      %v1834 = vpow.pop %v1833
      %v1835 = vmul.f32 %v256, 1.442695
      %v1836 = vpow.pop %v1835
      %v1837 = vmul.f32 %v257, 1.442695
      %v1838 = vpow.pop %v1837
      %v1839 = vmul.f32 %v258, 1.442695
      %v1840 = vpow.pop %v1839
      %v1841 = vmul.f32 %v259, 1.442695
      %v1842 = vpow.pop %v1841
      %v1843 = vmul.f32 %v260, 1.442695
      %v1844 = vpow.pop %v1843
      %v1845 = vmul.f32 %v262, 1.442695
      %v1846 = vpow.pop %v1845
      %v1847 = vsub.f32 %v1476, %v1714
      %v1848 = vsub.f32 %v1477, %v1715
      %v1849 = vsub.f32 %v1478, %v1716
      %v1850 = vsub.f32 %v1479, %v1717
      %v1851 = vsub.f32 %v1480, %v1718
      %v1852 = vsub.f32 %v1481, %v1719
      %v1853 = vmul.f32 %v1834, %v1847
      %v1854 = vmul.f32 %v1836, %v1848
      %v1855 = vmul.f32 %v1838, %v1849
      %v1856 = vmul.f32 %v1840, %v1850
      %v1857 = vmul.f32 %v1842, %v1851
      %v1858 = vmul.f32 %v1844, %v1852
      %vm1859 = vcmask 7168
      %v1860 = vsel %vm1859, %v1853, 0.0
      %v1861 = vsel %vm1859, %v1854, 0.0
      %v1862 = vadd.f32 %v1860, %v1861
      %v1863 = vsel %vm1859, %v1855, 0.0
      %v1864 = vadd.f32 %v1862, %v1863
      %v1865 = vsel %vm1859, %v1856, 0.0
      %v1866 = vadd.f32 %v1864, %v1865
      %v1867 = vsel %vm1859, %v1857, 0.0
      %v1868 = vadd.f32 %v1866, %v1867
      %v1869 = vsel %vm1859, %v1858, 0.0
      %v1870 = vadd.f32 %v1868, %v1869
      %1871 = vadd.xlane.f32.xlu0 %v1870
      %v1872 = vpop.xlane.xlu0 %1871
      %v1873 = vrot.slane %v1872, 4
      %v1874 = vadd.f32 %v1872, %v1873
      %v1875 = vrot.slane %v1874, 2
      %v1876 = vadd.f32 %v1874, %v1875
      %v1877 = vrot.slane %v1876, 1
      %v1878 = vadd.f32 %v1876, %v1877
      %s1879 = vtos %v1878
      %v1880 = vstv %s1879
      %v1881 = vsub.f32 %v1591, %v1832
      %v1882 = vmul.f32 %v1846, %v1881
      %vm1883 = vcmask 385024
      %v1884 = vsel %vm1883, %v1882, 0.0
      %1885 = vadd.xlane.f32.xlu0 %v1884
      %v1886 = vpop.xlane.xlu0 %1885
      %v1887 = vrot.slane %v1886, 4
      %v1888 = vadd.f32 %v1886, %v1887
      %v1889 = vrot.slane %v1888, 2
      %v1890 = vadd.f32 %v1888, %v1889
      %v1891 = vrot.slane %v1890, 1
      %v1892 = vadd.f32 %v1890, %v1891
      %s1893 = vtos %v1892
      %v1894 = vstv %s1893
      %v1895 = vadd.f32 %v1880, %v1894
      %vm1896 = vcmask 0
      %1897 = vst.msk [vmem:[%s218] sm:$0x1] %vm1896, %v1895
      %p1898 = scmp.lt.s32.totalorder %s26, 11
      %s1899 = scalar_select %p1898, %s26, 11
      %p1900 = scmp.lt.s32.totalorder %s27, 1
      %s1901 = scalar_select %p1900, %s27, 1
      %s1902 = smul.addr %s1899, 2
      %s1903 = sadd.s32 %s1901, %s1902
      %s1904 = scalar_lea.vmem %s3, %s1903
      // Predicated region
      $region50: #{part_wise_emd.3} parent=27 // pred_check
        %p1905 = pneg %p110
      $region51: #{part_wise_emd.3} parent=27 // pred_check_branch
        %1907 = sbr.rel (%p1905) target = $region53
      $region52: #{part_wise_emd.3} parent=27 // pred_region
        _
      $region53: #{part_wise_emd.3} parent=27 // pred_fallthru
        _
    $region28: #{part_wise_emd.3} parent=5 // pred_fallthru
      _
    %p1908 = scmp.le.s32.totalorder 2, %s17
    // Predicated region
    $region54: #{part_wise_emd.3} parent=5 // pred_check
      %p1909 = pneg %p1908
    $region55: #{part_wise_emd.3} parent=5 // pred_check_branch
      %1911 = sbr.rel (%p1909) target = $region57
    $region56: #{part_wise_emd.3} parent=5 // pred_region
      %s1912 = ssub.s32 %s17, 2
      // Predicated region
      $region58: #{part_wise_emd.3} parent=56 // pred_check
        %p1913 = pneg %p116
      $region59: #{part_wise_emd.3} parent=56 // pred_check_branch
        %1915 = sbr.rel (%p1913) target = $region61
      $region60: #{part_wise_emd.3} parent=56 // pred_region
        %p1916 = scmp.lt.s32.totalorder %s28, 11
        %s1917 = scalar_select %p1916, %s28, 11
        %p1918 = scmp.lt.s32.totalorder %s29, 1
        %s1919 = scalar_select %p1918, %s29, 1
        %s1920 = smul.addr %s1917, 2
        %s1921 = sadd.s32 %s1919, %s1920
        %s1922 = scalar_lea.vmem %s3, %s1921
      $region61: #{part_wise_emd.3} parent=56 // pred_fallthru
        _
    $region57: #{part_wise_emd.3} parent=5 // pred_fallthru
      _
  $region6: #{part_wise_emd.3} parent=0 // loop_footer
    %s21 = sadd.s32 1, %s17
  $region7: #{part_wise_emd.3} parent=0 // loop_footer_branch
    %16 = sbr.rel target = $region3
  $region8: #{part_wise_emd.3} parent=0 // loop_exit
    _

// kernel: part_wise_emd.4
$region0: #{part_wise_emd.4}
  #allocation0 [shape = 'u32[]', space=smem, size = 0x4, offset = 0x4, fixed_abs, tag = 'smem constant byte address 0x4 - core index']
  #allocation1 [shape = 'u32[72,128]{1,0:T(1,128)}', space=vmem, size = 0x9000, scoped, tag = 'internal scratch']
  #allocation2 [shape = 's32[1]{0}', space=sflag, size = 0x4, scoped, tag = 'scoped memory for part_wise_emd.4']
  #allocation3 [shape = 'u8[512]{0}', space=smem, size = 0x200, scoped, tag = 'prefetched SMEM operand 0']
  %s0 = inlined_call_operand.vmem [shape: s32[7], index: 0, kind: input, shape index: {}]
  %s1 = inlined_call_operand.vmem [shape: f32[7,2,64,8], index: 1, kind: input, shape index: {}]
  %s2 = inlined_call_operand.vmem [shape: f32[7,2,64,8], index: 2, kind: input, shape index: {}]
  %s3 = inlined_call_operand.vmem [shape: f32[7,2,1,1], index: 3, kind: output, shape index: {}]
  %s4 = sld [smem:[#allocation0]]
  $region62: #{part_wise_emd.4} parent=0
    _
  %s6 = ssub.s32 1, %s4
  %s7 = scalar_select 0, %s6, %s4
  %s9 = sshll.u32 %s0, 4
  %s10 = int_to_ptr.vmem [resolvable:$true] %s9
  %12 = dma.vmem_to_smem %s10, 16, [#allocation3], [#allocation2]
  %14 = dma.done [#allocation2], 16
  %15 = sfence
  loop: start=0, step=1, limit=16
  $region2: #{part_wise_emd.4} parent=0 // loop_pre_header
    _
  $region3: #{part_wise_emd.4} parent=0 // loop_header
    %s17 = sphi 0, %s21
    %p18 = scmp.ge.s32.totalorder %s17, 16
    %s24 = sphi 0, %s36
    %s25 = sphi 0, %s32
    %s26 = sphi 0, %s24
    %s27 = sphi 0, %s25
    %s28 = sphi 0, %s26
    %s29 = sphi 0, %s27
    %s41 = sphi 0, %s43
    %s44 = sphi 0, %s41
    %s45 = sphi 0, %s44
    %s61 = sphi 0, %s45
    %s69 = sphi 0, %s71
    %s72 = sphi 0, %s69
    %s73 = sphi 0, %s72
    %s89 = sphi 0, %s73
    %s97 = sphi 0, %s99
    %s100 = sphi 0, %s97
    %s101 = sphi 0, %s100
    %s117 = sphi 0, %s101
  $region4: #{part_wise_emd.4} parent=0 // loop_header_branch
    %20 = sbr.rel (%p18) target = $region8
  $region5: #{part_wise_emd.4} parent=0 // loop_body
    %s22 = ssub.s32 %s17, 1
    %s23 = ssub.s32 %s17, 2
    %s30 = sadd.s32 1, %s25
    %p31 = scmp.ge.s32.totalorder %s30, 2
    %s32 = scalar_select %p31, 0, %s30
    %s33 = sadd.s32 1, %s24
    %s34 = scalar_select %p31, %s33, %s24
    %p35 = scmp.ge.s32.totalorder %s34, 7
    %s36 = scalar_select %p35, 0, %s34
    %s37 = ssub.s32 %s24, %s36
    %s38 = ssub.s32 %s25, %s32
    %s39 = sor.u32 %s37, %s38
    %p40 = scmp.eq.s32.totalorder %s39, 0
    %s42 = sadd.s32 %s41, 1
    %s43 = scalar_select %p40, %s41, %s42
    %p46 = pneg %p40
    %p47 = scmp.eq.s32.totalorder %s17, 13
    %p48 = por %p46, %p47
    %p49 = scmp.ne.s32.totalorder %s41, %s44
    %p50 = scmp.eq.s32.totalorder %s17, 0
    %p51 = por %p49, %p50
    %p52 = scmp.ne.s32.totalorder %s41, %s44
    %p53 = scmp.eq.s32.totalorder %s22, 13
    %p54 = por %p52, %p53
    %p55 = scmp.ne.s32.totalorder %s44, %s45
    %p56 = scmp.eq.s32.totalorder %s22, 0
    %p57 = por %p55, %p56
    %p58 = scmp.ne.s32.totalorder %s44, %s45
    %p59 = scmp.eq.s32.totalorder %s23, 13
    %p60 = por %p58, %p59
    %p62 = scmp.ne.s32.totalorder %s45, %s61
    %p63 = scmp.eq.s32.totalorder %s23, 0
    %p64 = por %p62, %p63
    %s65 = ssub.s32 %s24, %s36
    %s66 = ssub.s32 %s25, %s32
    %s67 = sor.u32 %s65, %s66
    %p68 = scmp.eq.s32.totalorder %s67, 0
    %s70 = sadd.s32 %s69, 1
    %s71 = scalar_select %p68, %s69, %s70
    %p74 = pneg %p68
    %p75 = scmp.eq.s32.totalorder %s17, 13
    %p76 = por %p74, %p75
    %p77 = scmp.ne.s32.totalorder %s69, %s72
    %p78 = scmp.eq.s32.totalorder %s17, 0
    %p79 = por %p77, %p78
    %p80 = scmp.ne.s32.totalorder %s69, %s72
    %p81 = scmp.eq.s32.totalorder %s22, 13
    %p82 = por %p80, %p81
    %p83 = scmp.ne.s32.totalorder %s72, %s73
    %p84 = scmp.eq.s32.totalorder %s22, 0
    %p85 = por %p83, %p84
    %p86 = scmp.ne.s32.totalorder %s72, %s73
    %p87 = scmp.eq.s32.totalorder %s23, 13
    %p88 = por %p86, %p87
    %p90 = scmp.ne.s32.totalorder %s73, %s89
    %p91 = scmp.eq.s32.totalorder %s23, 0
    %p92 = por %p90, %p91
    %s93 = ssub.s32 %s24, %s36
    %s94 = ssub.s32 %s25, %s32
    %s95 = sor.u32 %s93, %s94
    %p96 = scmp.eq.s32.totalorder %s95, 0
    %s98 = sadd.s32 %s97, 1
    %s99 = scalar_select %p96, %s97, %s98
    %p102 = pneg %p96
    %p103 = scmp.eq.s32.totalorder %s17, 13
    %p104 = por %p102, %p103
    %p105 = scmp.ne.s32.totalorder %s97, %s100
    %p106 = scmp.eq.s32.totalorder %s17, 0
    %p107 = por %p105, %p106
    %p108 = scmp.ne.s32.totalorder %s97, %s100
    %p109 = scmp.eq.s32.totalorder %s22, 13
    %p110 = por %p108, %p109
    %p111 = scmp.ne.s32.totalorder %s100, %s101
    %p112 = scmp.eq.s32.totalorder %s22, 0
    %p113 = por %p111, %p112
    %p114 = scmp.ne.s32.totalorder %s100, %s101
    %p115 = scmp.eq.s32.totalorder %s23, 13
    %p116 = por %p114, %p115
    %p118 = scmp.ne.s32.totalorder %s101, %s117
    %p119 = scmp.eq.s32.totalorder %s23, 0
    %p120 = por %p118, %p119
    %p121 = scmp.le.s32.totalorder 1, %s17
    %p122 = scmp.lt.s32.totalorder %s17, 15
    %p123 = pnand %p121, %p122
    %p124 = pneg %p123
    // Predicated region
    $region9: #{part_wise_emd.4} parent=5 // pred_check
      _
    $region10: #{part_wise_emd.4} parent=5 // pred_check_branch
      %126 = sbr.rel (%p123) target = $region12
    $region11: #{part_wise_emd.4} parent=5 // pred_region
      %s127 = ssub.s32 %s17, 1
    $region12: #{part_wise_emd.4} parent=5 // pred_fallthru
      _
    %p128 = scmp.lt.s32.totalorder %s17, 14
    // Predicated region
    $region13: #{part_wise_emd.4} parent=5 // pred_check
      %p129 = pneg %p128
    $region14: #{part_wise_emd.4} parent=5 // pred_check_branch
      %131 = sbr.rel (%p129) target = $region16
    $region15: #{part_wise_emd.4} parent=5 // pred_region
      // Predicated region
      $region17: #{part_wise_emd.4} parent=15 // pred_check
        %p132 = pneg %p51
      $region18: #{part_wise_emd.4} parent=15 // pred_check_branch
        %134 = sbr.rel (%p132) target = $region20
      $region19: #{part_wise_emd.4} parent=15 // pred_region
        %p135 = scmp.lt.s32.totalorder %s24, 6
        %s136 = scalar_select %p135, %s24, 6
        %p137 = scmp.lt.s32.totalorder %s25, 1
        %s138 = scalar_select %p137, %s25, 1
        %s139 = smul.addr %s138, 8
        %s140 = smul.addr %s136, 16
        %s141 = sadd.s32 %s139, %s140
        %s142 = smul.addr %s141, 8
        %s143 = scalar_lea.vmem %s1, %s142
      $region20: #{part_wise_emd.4} parent=15 // pred_fallthru
        _
      // Predicated region
      $region21: #{part_wise_emd.4} parent=15 // pred_check
        %p144 = pneg %p79
      $region22: #{part_wise_emd.4} parent=15 // pred_check_branch
        %146 = sbr.rel (%p144) target = $region24
      $region23: #{part_wise_emd.4} parent=15 // pred_region
        %p147 = scmp.lt.s32.totalorder %s24, 6
        %s148 = scalar_select %p147, %s24, 6
        %p149 = scmp.lt.s32.totalorder %s25, 1
        %s150 = scalar_select %p149, %s25, 1
        %s151 = smul.addr %s150, 8
        %s152 = smul.addr %s148, 16
        %s153 = sadd.s32 %s151, %s152
        %s154 = smul.addr %s153, 8
        %s155 = scalar_lea.vmem %s2, %s154
      $region24: #{part_wise_emd.4} parent=15 // pred_fallthru
        _
    $region16: #{part_wise_emd.4} parent=5 // pred_fallthru
      _
    %p156 = scmp.le.s32.totalorder 1, %s17
    %p157 = scmp.lt.s32.totalorder %s17, 15
    %p158 = pnand %p156, %p157
    %p159 = pneg %p158
    // Predicated region
    $region25: #{part_wise_emd.4} parent=5 // pred_check
      _
    $region26: #{part_wise_emd.4} parent=5 // pred_check_branch
      %161 = sbr.rel (%p158) target = $region28
    $region27: #{part_wise_emd.4} parent=5 // pred_region
      %s162 = ssub.s32 %s17, 1
      %p163 = scmp.lt.s32.totalorder %s26, 6
      %s164 = scalar_select %p163, %s26, 6
      %p165 = scmp.lt.s32.totalorder %s27, 1
      %s166 = scalar_select %p165, %s27, 1
      %s167 = smul.addr %s166, 8
      %s168 = smul.addr %s164, 16
      %s169 = sadd.s32 %s167, %s168
      %s170 = smul.addr %s169, 8
      %s171 = scalar_lea.vmem %s1, %s170
      %p172 = pneg %p57
      %p173 = pneg %p54
      %p174 = scmp.lt.s32.totalorder %s26, 6
      %s175 = scalar_select %p174, %s26, 6
      %p176 = scmp.lt.s32.totalorder %s27, 1
      %s177 = scalar_select %p176, %s27, 1
      %s178 = smul.addr %s177, 8
      %s179 = smul.addr %s175, 16
      %s180 = sadd.s32 %s178, %s179
      %s181 = smul.addr %s180, 8
      %s182 = scalar_lea.vmem %s2, %s181
      %p183 = pneg %p85
      %p184 = pneg %p82
      %p185 = pneg %p113
      %p186 = pneg %p110
      %p187 = scmp.lt.s32.totalorder %s26, 6
      %s188 = scalar_select %p187, %s26, 6
      %p189 = scmp.lt.s32.totalorder %s27, 1
      %s190 = scalar_select %p189, %s27, 1
      %s191 = smul.addr %s188, 2
      %s192 = sadd.s32 %s190, %s191
      %s193 = scalar_lea.vmem %s3, %s192
      %p194 = scmp.lt.s32.totalorder %s26, 6
      %s195 = scalar_select %p194, %s26, 6
      %p196 = scmp.lt.s32.totalorder %s27, 1
      %s197 = scalar_select %p196, %s27, 1
      %s198 = smul.addr %s197, 8
      %s199 = smul.addr %s195, 16
      %s200 = sadd.s32 %s198, %s199
      %s201 = smul.addr %s200, 8
      %s202 = scalar_lea.vmem %s1, %s201
      %p203 = scmp.lt.s32.totalorder %s26, 6
      %s204 = scalar_select %p203, %s26, 6
      %p205 = scmp.lt.s32.totalorder %s27, 1
      %s206 = scalar_select %p205, %s27, 1
      %s207 = smul.addr %s206, 8
      %s208 = smul.addr %s204, 16
      %s209 = sadd.s32 %s207, %s208
      %s210 = smul.addr %s209, 8
      %s211 = scalar_lea.vmem %s2, %s210
      %p212 = scmp.lt.s32.totalorder %s26, 6
      %s213 = scalar_select %p212, %s26, 6
      %p214 = scmp.lt.s32.totalorder %s27, 1
      %s215 = scalar_select %p214, %s27, 1
      %s216 = smul.addr %s213, 2
      %s217 = sadd.s32 %s215, %s216
      %s218 = scalar_lea.vmem %s3, %s217
      %s219 = sld [smem:[#allocation3 + %s26]]
      %v220 = vld [vmem:[%s202] sm:$0xff]
      %v221 = vld [vmem:[%s202 + $0x8] sm:$0xff]
      %v222 = vld [vmem:[%s202 + $0x10] sm:$0xff]
      %v223 = vld [vmem:[%s202 + $0x18] sm:$0xff]
      %v224 = vld [vmem:[%s202 + $0x20] sm:$0xff]
      %v225 = vld [vmem:[%s202 + $0x28] sm:$0xff]
      %v226 = vld [vmem:[%s202 + $0x30] sm:$0xff]
      %v227 = vld [vmem:[%s202 + $0x38] sm:$0xff]
      %v228 = vld [vmem:[%s211] sm:$0xff]
      %v229 = vld [vmem:[%s211 + $0x8] sm:$0xff]
      %v230 = vld [vmem:[%s211 + $0x10] sm:$0xff]
      %v231 = vld [vmem:[%s211 + $0x18] sm:$0xff]
      %v232 = vld [vmem:[%s211 + $0x20] sm:$0xff]
      %v233 = vld [vmem:[%s211 + $0x28] sm:$0xff]
      %v234 = vld [vmem:[%s211 + $0x30] sm:$0xff]
      %v235 = vld [vmem:[%s211 + $0x38] sm:$0xff]
      %v236 = vlaneseq
      %v237 = vshrl.u32 %v236, 7
      %v238 = vadd.s32 %v237, 8
      %v239 = vadd.s32 %v237, 16
      %v240 = vadd.s32 %v237, 24
      %v241 = vadd.s32 %v237, 32
      %v242 = vadd.s32 %v237, 40
      %v243 = vadd.s32 %v237, 48
      %v244 = vadd.s32 %v237, 56
      %v245 = vlaneseq
      %v246 = vand.u32 %v245, 127
      %s247 = scvt.s32.f32 %s219
      %v248 = vstv %s247
      %v249 = vlog2.pop %v248
      %v250 = vmul.f32 %v249, 0.6931472
      %s251 = vtos %v250
      %v252 = vstv %s219
      %vm253 = vcmp.lt.s32.totalorder %v237, %v252
      %vm254 = vcmp.lt.s32.totalorder %v238, %v252
      %vm255 = vcmp.lt.s32.totalorder %v239, %v252
      %vm256 = vcmp.lt.s32.totalorder %v240, %v252
      %vm257 = vcmp.lt.s32.totalorder %v241, %v252
      %vm258 = vcmp.lt.s32.totalorder %v242, %v252
      %vm259 = vcmp.lt.s32.totalorder %v243, %v252
      %vm260 = vcmp.lt.s32.totalorder %v244, %v252
      %s261 = ssub.f32 0.0, %s251
      %v262 = vstv %s261
      %v263 = vsel %vm253, %v262, -1e+30
      %v264 = vsel %vm254, %v262, -1e+30
      %v265 = vsel %vm255, %v262, -1e+30
      %v266 = vsel %vm256, %v262, -1e+30
      %v267 = vsel %vm257, %v262, -1e+30
      %v268 = vsel %vm258, %v262, -1e+30
      %v269 = vsel %vm259, %v262, -1e+30
      %v270 = vsel %vm260, %v262, -1e+30
      %vm271 = vcmp.lt.s32.totalorder %v246, %v252
      %v272 = vsel %vm271, %v262, -1e+30
      %vm273 = vcmp.eq.s32.totalorder %v237, %v246
      %vm274 = vcmp.eq.s32.totalorder %v238, %v246
      %vm275 = vcmp.eq.s32.totalorder %v239, %v246
      %vm276 = vcmp.eq.s32.totalorder %v240, %v246
      %vm277 = vcmp.eq.s32.totalorder %v241, %v246
      %vm278 = vcmp.eq.s32.totalorder %v242, %v246
      %vm279 = vcmp.eq.s32.totalorder %v243, %v246
      %vm280 = vcmp.eq.s32.totalorder %v244, %v246
      %v281 = vsel %vm273, 1, 0
      %v282 = vsel %vm274, 1, 0
      %v283 = vsel %vm275, 1, 0
      %v284 = vsel %vm276, 1, 0
      %v285 = vsel %vm277, 1, 0
      %v286 = vsel %vm278, 1, 0
      %v287 = vsel %vm279, 1, 0
      %v288 = vsel %vm280, 1, 0
      %v289 = vcvt.s32.f32 %v281
      %v290 = vcvt.s32.f32 %v282
      %v291 = vcvt.s32.f32 %v283
      %v292 = vcvt.s32.f32 %v284
      %v293 = vcvt.s32.f32 %v285
      %v294 = vcvt.s32.f32 %v286
      %v295 = vcvt.s32.f32 %v287
      %v296 = vcvt.s32.f32 %v288
      %v297 = vmul.f32 %v220, %v220
      %v298 = vmul.f32 %v221, %v221
      %v299 = vmul.f32 %v222, %v222
      %v300 = vmul.f32 %v223, %v223
      %v301 = vmul.f32 %v224, %v224
      %v302 = vmul.f32 %v225, %v225
      %v303 = vmul.f32 %v226, %v226
      %v304 = vmul.f32 %v227, %v227
      %vm305 = vcmask 64512
      %v306 = vsel %vm305, %v297, 0.0
      %307 = vadd.xlane.f32.xlu0 %v306
      %v308 = vpop.xlane.xlu0 %307
      %v309 = vsel %vm305, %v298, 0.0
      %310 = vadd.xlane.f32.xlu0 %v309
      %v311 = vpop.xlane.xlu0 %310
      %v312 = vsel %vm305, %v299, 0.0
      %313 = vadd.xlane.f32.xlu0 %v312
      %v314 = vpop.xlane.xlu0 %313
      %v315 = vsel %vm305, %v300, 0.0
      %316 = vadd.xlane.f32.xlu0 %v315
      %v317 = vpop.xlane.xlu0 %316
      %v318 = vsel %vm305, %v301, 0.0
      %319 = vadd.xlane.f32.xlu0 %v318
      %v320 = vpop.xlane.xlu0 %319
      %v321 = vsel %vm305, %v302, 0.0
      %322 = vadd.xlane.f32.xlu0 %v321
      %v323 = vpop.xlane.xlu0 %322
      %v324 = vsel %vm305, %v303, 0.0
      %325 = vadd.xlane.f32.xlu0 %v324
      %v326 = vpop.xlane.xlu0 %325
      %v327 = vsel %vm305, %v304, 0.0
      %328 = vadd.xlane.f32.xlu0 %v327
      %v329 = vpop.xlane.xlu0 %328
      %v330 = vmul.f32 %v228, %v228
      %v331 = vmul.f32 %v229, %v229
      %v332 = vmul.f32 %v230, %v230
      %v333 = vmul.f32 %v231, %v231
      %v334 = vmul.f32 %v232, %v232
      %v335 = vmul.f32 %v233, %v233
      %v336 = vmul.f32 %v234, %v234
      %v337 = vmul.f32 %v235, %v235
      %v338 = vsel %vm305, %v330, 0.0
      %339 = vadd.xlane.f32.xlu0 %v338
      %v340 = vpop.xlane.xlu0 %339
      %v341 = vsel %vm305, %v331, 0.0
      %342 = vadd.xlane.f32.xlu0 %v341
      %v343 = vpop.xlane.xlu0 %342
      %v344 = vsel %vm305, %v332, 0.0
      %345 = vadd.xlane.f32.xlu0 %v344
      %v346 = vpop.xlane.xlu0 %345
      %v347 = vsel %vm305, %v333, 0.0
      %348 = vadd.xlane.f32.xlu0 %v347
      %v349 = vpop.xlane.xlu0 %348
      %v350 = vsel %vm305, %v334, 0.0
      %351 = vadd.xlane.f32.xlu0 %v350
      %v352 = vpop.xlane.xlu0 %351
      %v353 = vsel %vm305, %v335, 0.0
      %354 = vadd.xlane.f32.xlu0 %v353
      %v355 = vpop.xlane.xlu0 %354
      %v356 = vsel %vm305, %v336, 0.0
      %357 = vadd.xlane.f32.xlu0 %v356
      %v358 = vpop.xlane.xlu0 %357
      %v359 = vsel %vm305, %v337, 0.0
      %360 = vadd.xlane.f32.xlu0 %v359
      %v361 = vpop.xlane.xlu0 %360
      %362 = vxpose.xlu0.b32.start [1/16] %v308, 128
      %363 = vxpose.xlu0.b32.cont [2/16] %v311, 128
      %364 = vxpose.xlu0.b32.cont [3/16] %v314, 128
      %365 = vxpose.xlu0.b32.cont [4/16] %v317, 128
      %366 = vxpose.xlu0.b32.cont [5/16] %v320, 128
      %367 = vxpose.xlu0.b32.cont [6/16] %v323, 128
      %368 = vxpose.xlu0.b32.cont [7/16] %v326, 128
      %369 = vxpose.xlu0.b32.cont [8/16] %v329, 128
      %370 = vxpose.xlu0.b32.cont [9/16] 0.0, 128
      %371 = vxpose.xlu0.b32.cont [10/16] 0.0, 128
      %372 = vxpose.xlu0.b32.cont [11/16] 0.0, 128
      %373 = vxpose.xlu0.b32.cont [12/16] 0.0, 128
      %374 = vxpose.xlu0.b32.cont [13/16] 0.0, 128
      %375 = vxpose.xlu0.b32.cont [14/16] 0.0, 128
      %376 = vxpose.xlu0.b32.cont [15/16] 0.0, 128
      %377 = vxpose.xlu0.b32.end [16/16] 0.0, 128
      %v378 = vpop.trf.xlu0
      %v379 = vpop.trf.xlu0
      %v380 = vpop.trf.xlu0
      %v381 = vpop.trf.xlu0
      %v382 = vpop.trf.xlu0
      %v383 = vpop.trf.xlu0
      %v384 = vpop.trf.xlu0
      %v385 = vpop.trf.xlu0
      %v386 = vpop.trf.xlu0
      %v387 = vpop.trf.xlu0
      %v388 = vpop.trf.xlu0
      %v389 = vpop.trf.xlu0
      %v390 = vpop.trf.xlu0
      %v391 = vpop.trf.xlu0
      %v392 = vpop.trf.xlu0
      %v393 = vpop.trf.xlu0
      %vm394 = vcmask 523264
      %v396 = vsel %vm394, %v378, 0
      %398 = vmatpush.msra.mxu0 0.0
      %399 = vmatpush.msra.mxu0 0.0
      %400 = vmatpush.msra.mxu0 0.0
      %401 = vmatpush.msra.mxu0 0.0
      %402 = vmatpush.msra.mxu0 0.0
      %403 = vmatpush.msra.mxu0 0.0
      %404 = vmatpush.msra.mxu0 0.0
      %405 = vmatpush.msra.mxu0 0.0
      %406 = vmatpush.msra.mxu0 %v296
      %407 = vmatpush.msra.mxu0 %v295
      %408 = vmatpush.msra.mxu0 %v294
      %409 = vmatpush.msra.mxu0 %v293
      %410 = vmatpush.msra.mxu0 %v292
      %411 = vmatpush.msra.mxu0 %v291
      %412 = vmatpush.msra.mxu0 %v290
      %413 = vmatpush.msra.mxu0 %v289
      %414 = vmatmul.f32.gmra.mxu0 %v396
      %v415 = vpop.f32.mrf.mxu0
      %v416 = vadd.f32 0.0, %v415
      %417 = vdwg.mxu0
      %418 = vxpose.xlu0.b32.start [1/16] %v340, 128
      %419 = vxpose.xlu0.b32.cont [2/16] %v343, 128
      %420 = vxpose.xlu0.b32.cont [3/16] %v346, 128
      %421 = vxpose.xlu0.b32.cont [4/16] %v349, 128
      %422 = vxpose.xlu0.b32.cont [5/16] %v352, 128
      %423 = vxpose.xlu0.b32.cont [6/16] %v355, 128
      %424 = vxpose.xlu0.b32.cont [7/16] %v358, 128
      %425 = vxpose.xlu0.b32.cont [8/16] %v361, 128
      %426 = vxpose.xlu0.b32.cont [9/16] 0.0, 128
      %427 = vxpose.xlu0.b32.cont [10/16] 0.0, 128
      %428 = vxpose.xlu0.b32.cont [11/16] 0.0, 128
      %429 = vxpose.xlu0.b32.cont [12/16] 0.0, 128
      %430 = vxpose.xlu0.b32.cont [13/16] 0.0, 128
      %431 = vxpose.xlu0.b32.cont [14/16] 0.0, 128
      %432 = vxpose.xlu0.b32.cont [15/16] 0.0, 128
      %433 = vxpose.xlu0.b32.end [16/16] 0.0, 128
      %v434 = vpop.trf.xlu0
      %v435 = vpop.trf.xlu0
      %v436 = vpop.trf.xlu0
      %v437 = vpop.trf.xlu0
      %v438 = vpop.trf.xlu0
      %v439 = vpop.trf.xlu0
      %v440 = vpop.trf.xlu0
      %v441 = vpop.trf.xlu0
      %v442 = vpop.trf.xlu0
      %v443 = vpop.trf.xlu0
      %v444 = vpop.trf.xlu0
      %v445 = vpop.trf.xlu0
      %v446 = vpop.trf.xlu0
      %v447 = vpop.trf.xlu0
      %v448 = vpop.trf.xlu0
      %v449 = vpop.trf.xlu0
      %v451 = vsel %vm394, %v434, 0
      %453 = vmatpush.msra.mxu0 0.0
      %454 = vmatpush.msra.mxu0 0.0
      %455 = vmatpush.msra.mxu0 0.0
      %456 = vmatpush.msra.mxu0 0.0
      %457 = vmatpush.msra.mxu0 0.0
      %458 = vmatpush.msra.mxu0 0.0
      %459 = vmatpush.msra.mxu0 0.0
      %460 = vmatpush.msra.mxu0 0.0
      %461 = vmatpush.msra.mxu0 %v296
      %462 = vmatpush.msra.mxu0 %v295
      %463 = vmatpush.msra.mxu0 %v294
      %464 = vmatpush.msra.mxu0 %v293
      %465 = vmatpush.msra.mxu0 %v292
      %466 = vmatpush.msra.mxu0 %v291
      %467 = vmatpush.msra.mxu0 %v290
      %468 = vmatpush.msra.mxu0 %v289
      %469 = vmatmul.f32.gmra.mxu0 %v451
      %v470 = vpop.f32.mrf.mxu0
      %v471 = vadd.f32 0.0, %v470
      %472 = vdwg.mxu0
      %v474 = vsel %vm305, %v220, 0
      %v477 = vsel %vm305, %v221, 0
      %v480 = vsel %vm305, %v222, 0
      %v483 = vsel %vm305, %v223, 0
      %v486 = vsel %vm305, %v224, 0
      %v489 = vsel %vm305, %v225, 0
      %v492 = vsel %vm305, %v226, 0
      %v495 = vsel %vm305, %v227, 0
      %v498 = vsel %vm305, %v228, 0
      %v501 = vsel %vm305, %v229, 0
      %v504 = vsel %vm305, %v230, 0
      %v507 = vsel %vm305, %v231, 0
      %v510 = vsel %vm305, %v232, 0
      %v513 = vsel %vm305, %v233, 0
      %v516 = vsel %vm305, %v234, 0
      %v519 = vsel %vm305, %v235, 0
      %521 = vmatpush.xpose.msra.mxu0 0.0
      %522 = vmatpush.xpose.msra.mxu0 0.0
      %523 = vmatpush.xpose.msra.mxu0 0.0
      %524 = vmatpush.xpose.msra.mxu0 0.0
      %525 = vmatpush.xpose.msra.mxu0 0.0
      %526 = vmatpush.xpose.msra.mxu0 0.0
      %527 = vmatpush.xpose.msra.mxu0 0.0
      %528 = vmatpush.xpose.msra.mxu0 0.0
      %529 = vmatpush.xpose.msra.mxu0 %v519
      %530 = vmatpush.xpose.msra.mxu0 %v516
      %531 = vmatpush.xpose.msra.mxu0 %v513
      %532 = vmatpush.xpose.msra.mxu0 %v510
      %533 = vmatpush.xpose.msra.mxu0 %v507
      %534 = vmatpush.xpose.msra.mxu0 %v504
      %535 = vmatpush.xpose.msra.mxu0 %v501
      %536 = vmatpush.xpose.msra.mxu0 %v498
      %537 = vmatmul.f32.gmra.mxu0 %v474
      %v538 = vpop.f32.mrf.mxu0
      %v539 = vadd.f32 0.0, %v538
      %540 = vmatmul.f32.gmra.mxu0 %v477
      %v541 = vpop.f32.mrf.mxu0
      %v542 = vadd.f32 0.0, %v541
      %543 = vmatmul.f32.gmra.mxu0 %v480
      %v544 = vpop.f32.mrf.mxu0
      %v545 = vadd.f32 0.0, %v544
      %546 = vmatmul.f32.gmra.mxu0 %v483
      %v547 = vpop.f32.mrf.mxu0
      %v548 = vadd.f32 0.0, %v547
      %549 = vmatmul.f32.gmra.mxu0 %v486
      %v550 = vpop.f32.mrf.mxu0
      %v551 = vadd.f32 0.0, %v550
      %552 = vmatmul.f32.gmra.mxu0 %v489
      %v553 = vpop.f32.mrf.mxu0
      %v554 = vadd.f32 0.0, %v553
      %555 = vmatmul.f32.gmra.mxu0 %v492
      %v556 = vpop.f32.mrf.mxu0
      %v557 = vadd.f32 0.0, %v556
      %558 = vmatmul.f32.gmra.mxu0 %v495
      %v559 = vpop.f32.mrf.mxu0
      %v560 = vadd.f32 0.0, %v559
      %561 = vdwg.mxu0
      %562 = vmatpush.xpose.msra.mxu0 0.0
      %563 = vmatpush.xpose.msra.mxu0 0.0
      %564 = vmatpush.xpose.msra.mxu0 0.0
      %565 = vmatpush.xpose.msra.mxu0 0.0
      %566 = vmatpush.xpose.msra.mxu0 0.0
      %567 = vmatpush.xpose.msra.mxu0 0.0
      %568 = vmatpush.xpose.msra.mxu0 0.0
      %569 = vmatpush.xpose.msra.mxu0 0.0
      %570 = vmatpush.xpose.msra.mxu0 %v495
      %571 = vmatpush.xpose.msra.mxu0 %v492
      %572 = vmatpush.xpose.msra.mxu0 %v489
      %573 = vmatpush.xpose.msra.mxu0 %v486
      %574 = vmatpush.xpose.msra.mxu0 %v483
      %575 = vmatpush.xpose.msra.mxu0 %v480
      %576 = vmatpush.xpose.msra.mxu0 %v477
      %577 = vmatpush.xpose.msra.mxu0 %v474
      %578 = vmatmul.f32.gmra.mxu0 %v474
      %v579 = vpop.f32.mrf.mxu0
      %v580 = vadd.f32 0.0, %v579
      %581 = vmatmul.f32.gmra.mxu0 %v477
      %v582 = vpop.f32.mrf.mxu0
      %v583 = vadd.f32 0.0, %v582
      %584 = vmatmul.f32.gmra.mxu0 %v480
      %v585 = vpop.f32.mrf.mxu0
      %v586 = vadd.f32 0.0, %v585
      %587 = vmatmul.f32.gmra.mxu0 %v483
      %v588 = vpop.f32.mrf.mxu0
      %v589 = vadd.f32 0.0, %v588
      %590 = vmatmul.f32.gmra.mxu0 %v486
      %v591 = vpop.f32.mrf.mxu0
      %v592 = vadd.f32 0.0, %v591
      %593 = vmatmul.f32.gmra.mxu0 %v489
      %v594 = vpop.f32.mrf.mxu0
      %v595 = vadd.f32 0.0, %v594
      %596 = vmatmul.f32.gmra.mxu0 %v492
      %v597 = vpop.f32.mrf.mxu0
      %v598 = vadd.f32 0.0, %v597
      %599 = vmatmul.f32.gmra.mxu0 %v495
      %v600 = vpop.f32.mrf.mxu0
      %v601 = vadd.f32 0.0, %v600
      %602 = vdwg.mxu0
      %603 = vmatpush.xpose.msra.mxu0 0.0
      %604 = vmatpush.xpose.msra.mxu0 0.0
      %605 = vmatpush.xpose.msra.mxu0 0.0
      %606 = vmatpush.xpose.msra.mxu0 0.0
      %607 = vmatpush.xpose.msra.mxu0 0.0
      %608 = vmatpush.xpose.msra.mxu0 0.0
      %609 = vmatpush.xpose.msra.mxu0 0.0
      %610 = vmatpush.xpose.msra.mxu0 0.0
      %611 = vmatpush.xpose.msra.mxu0 %v519
      %612 = vmatpush.xpose.msra.mxu0 %v516
      %613 = vmatpush.xpose.msra.mxu0 %v513
      %614 = vmatpush.xpose.msra.mxu0 %v510
      %615 = vmatpush.xpose.msra.mxu0 %v507
      %616 = vmatpush.xpose.msra.mxu0 %v504
      %617 = vmatpush.xpose.msra.mxu0 %v501
      %618 = vmatpush.xpose.msra.mxu0 %v498
      %619 = vmatmul.f32.gmra.mxu0 %v498
      %v620 = vpop.f32.mrf.mxu0
      %v621 = vadd.f32 0.0, %v620
      %622 = vmatmul.f32.gmra.mxu0 %v501
      %v623 = vpop.f32.mrf.mxu0
      %v624 = vadd.f32 0.0, %v623
      %625 = vmatmul.f32.gmra.mxu0 %v504
      %v626 = vpop.f32.mrf.mxu0
      %v627 = vadd.f32 0.0, %v626
      %628 = vmatmul.f32.gmra.mxu0 %v507
      %v629 = vpop.f32.mrf.mxu0
      %v630 = vadd.f32 0.0, %v629
      %631 = vmatmul.f32.gmra.mxu0 %v510
      %v632 = vpop.f32.mrf.mxu0
      %v633 = vadd.f32 0.0, %v632
      %634 = vmatmul.f32.gmra.mxu0 %v513
      %v635 = vpop.f32.mrf.mxu0
      %v636 = vadd.f32 0.0, %v635
      %637 = vmatmul.f32.gmra.mxu0 %v516
      %v638 = vpop.f32.mrf.mxu0
      %v639 = vadd.f32 0.0, %v638
      %640 = vmatmul.f32.gmra.mxu0 %v519
      %v641 = vpop.f32.mrf.mxu0
      %v642 = vadd.f32 0.0, %v641
      %643 = vdwg.mxu0
      %v644 = vperm.slane %v471, 0
      %v645 = vadd.f32 %v308, %v644
      %v646 = vadd.f32 %v311, %v644
      %v647 = vadd.f32 %v314, %v644
      %v648 = vadd.f32 %v317, %v644
      %v649 = vadd.f32 %v320, %v644
      %v650 = vadd.f32 %v323, %v644
      %v651 = vadd.f32 %v326, %v644
      %v652 = vadd.f32 %v329, %v644
      %v653 = vmul.f32 %v645, 0.5
      %v654 = vmul.f32 %v646, 0.5
      %v655 = vmul.f32 %v647, 0.5
      %v656 = vmul.f32 %v648, 0.5
      %v657 = vmul.f32 %v649, 0.5
      %v658 = vmul.f32 %v650, 0.5
      %v659 = vmul.f32 %v651, 0.5
      %v660 = vmul.f32 %v652, 0.5
      %v661 = vsub.f32 %v653, %v539
      %v662 = vsub.f32 %v654, %v542
      %v663 = vsub.f32 %v655, %v545
      %v664 = vsub.f32 %v656, %v548
      %v665 = vsub.f32 %v657, %v551
      %v666 = vsub.f32 %v658, %v554
      %v667 = vsub.f32 %v659, %v557
      %v668 = vsub.f32 %v660, %v560
      %v669 = vmax.f32 %v661, 0.0
      %v670 = vmax.f32 %v662, 0.0
      %v671 = vmax.f32 %v663, 0.0
      %v672 = vmax.f32 %v664, 0.0
      %v673 = vmax.f32 %v665, 0.0
      %v674 = vmax.f32 %v666, 0.0
      %v675 = vmax.f32 %v667, 0.0
      %v676 = vmax.f32 %v668, 0.0
      %v677 = vperm.slane %v416, 0
      %v678 = vadd.f32 %v308, %v677
      %v679 = vadd.f32 %v311, %v677
      %v680 = vadd.f32 %v314, %v677
      %v681 = vadd.f32 %v317, %v677
      %v682 = vadd.f32 %v320, %v677
      %v683 = vadd.f32 %v323, %v677
      %v684 = vadd.f32 %v326, %v677
      %v685 = vadd.f32 %v329, %v677
      %v686 = vmul.f32 %v678, 0.5
      %v687 = vmul.f32 %v679, 0.5
      %v688 = vmul.f32 %v680, 0.5
      %v689 = vmul.f32 %v681, 0.5
      %v690 = vmul.f32 %v682, 0.5
      %v691 = vmul.f32 %v683, 0.5
      %v692 = vmul.f32 %v684, 0.5
      %v693 = vmul.f32 %v685, 0.5
      %v694 = vsub.f32 %v686, %v580
      %v695 = vsub.f32 %v687, %v583
      %v696 = vsub.f32 %v688, %v586
      %v697 = vsub.f32 %v689, %v589
      %v698 = vsub.f32 %v690, %v592
      %v699 = vsub.f32 %v691, %v595
      %v700 = vsub.f32 %v692, %v598
      %v701 = vsub.f32 %v693, %v601
      %v702 = vmax.f32 %v694, 0.0
      %v703 = vmax.f32 %v695, 0.0
      %v704 = vmax.f32 %v696, 0.0
      %v705 = vmax.f32 %v697, 0.0
      %v706 = vmax.f32 %v698, 0.0
      %v707 = vmax.f32 %v699, 0.0
      %v708 = vmax.f32 %v700, 0.0
      %v709 = vmax.f32 %v701, 0.0
      %v710 = vadd.f32 %v340, %v644
      %v711 = vadd.f32 %v343, %v644
      %v712 = vadd.f32 %v346, %v644
      %v713 = vadd.f32 %v349, %v644
      %v714 = vadd.f32 %v352, %v644
      %v715 = vadd.f32 %v355, %v644
      %v716 = vadd.f32 %v358, %v644
      %v717 = vadd.f32 %v361, %v644
      %v718 = vmul.f32 %v710, 0.5
      %v719 = vmul.f32 %v711, 0.5
      %v720 = vmul.f32 %v712, 0.5
      %v721 = vmul.f32 %v713, 0.5
      %v722 = vmul.f32 %v714, 0.5
      %v723 = vmul.f32 %v715, 0.5
      %v724 = vmul.f32 %v716, 0.5
      %v725 = vmul.f32 %v717, 0.5
      %v726 = vsub.f32 %v718, %v621
      %v727 = vsub.f32 %v719, %v624
      %v728 = vsub.f32 %v720, %v627
      %v729 = vsub.f32 %v721, %v630
      %v730 = vsub.f32 %v722, %v633
      %v731 = vsub.f32 %v723, %v636
      %v732 = vsub.f32 %v724, %v639
      %v733 = vsub.f32 %v725, %v642
      %v734 = vmax.f32 %v726, 0.0
      %v735 = vmax.f32 %v727, 0.0
      %v736 = vmax.f32 %v728, 0.0
      %v737 = vmax.f32 %v729, 0.0
      %v738 = vmax.f32 %v730, 0.0
      %v739 = vmax.f32 %v731, 0.0
      %v740 = vmax.f32 %v732, 0.0
      %v741 = vmax.f32 %v733, 0.0
      %v742 = vsel %vm253, 1, 0
      %v743 = vsel %vm254, 1, 0
      %v744 = vsel %vm255, 1, 0
      %v745 = vsel %vm256, 1, 0
      %v746 = vsel %vm257, 1, 0
      %v747 = vsel %vm258, 1, 0
      %v748 = vsel %vm259, 1, 0
      %v749 = vsel %vm260, 1, 0
      %vm750 = vcmp.eq.s32.totalorder %v742, 1
      %vm751 = vcmp.eq.s32.totalorder %v743, 1
      %vm752 = vcmp.eq.s32.totalorder %v744, 1
      %vm753 = vcmp.eq.s32.totalorder %v745, 1
      %vm754 = vcmp.eq.s32.totalorder %v746, 1
      %vm755 = vcmp.eq.s32.totalorder %v747, 1
      %vm756 = vcmp.eq.s32.totalorder %v748, 1
      %vm757 = vcmp.eq.s32.totalorder %v749, 1
      %v758 = vsel %vm271, 1, 0
      %vm759 = vcmp.eq.s32.totalorder %v758, 1
      %vm760 = vmand %vm750, %vm759
      %vm761 = vmand %vm751, %vm759
      %vm762 = vmand %vm752, %vm759
      %vm763 = vmand %vm753, %vm759
      %vm764 = vmand %vm754, %vm759
      %vm765 = vmand %vm755, %vm759
      %vm766 = vmand %vm756, %vm759
      %vm767 = vmand %vm757, %vm759
      %v768 = vsel %vm760, %v669, 0.0
      %v769 = vsel %vm761, %v670, 0.0
      %v770 = vsel %vm762, %v671, 0.0
      %v771 = vsel %vm763, %v672, 0.0
      %v772 = vsel %vm764, %v673, 0.0
      %v773 = vsel %vm765, %v674, 0.0
      %v774 = vsel %vm766, %v675, 0.0
      %v775 = vsel %vm767, %v676, 0.0
      %v776 = vsel %vm394, %v768, -inf
      %v777 = vsel %vm394, %v769, -inf
      %v778 = vsel %vm394, %v770, -inf
      %v779 = vsel %vm394, %v771, -inf
      %v780 = vsel %vm394, %v772, -inf
      %v781 = vmax.f32 %v776, %v780
      %v782 = vsel %vm394, %v773, -inf
      %v783 = vmax.f32 %v777, %v782
      %v784 = vsel %vm394, %v774, -inf
      %v785 = vmax.f32 %v778, %v784
      %v786 = vsel %vm394, %v775, -inf
      %v787 = vmax.f32 %v779, %v786
      %v788 = vmax.f32 %v781, %v783
      %v789 = vmax.f32 %v785, %v787
      %v790 = vmax.f32 %v788, %v789
      %791 = vmax.xlane.f32.xlu0 %v790
      %v792 = vpop.xlane.xlu0 %791
      %v793 = vrot.slane %v792, 4
      %v794 = vmax.f32 %v792, %v793
      %v795 = vrot.slane %v794, 2
      %v796 = vmax.f32 %v794, %v795
      %v797 = vrot.slane %v796, 1
      %v798 = vmax.f32 %v796, %v797
      %s799 = vtos %v798
      %v800 = vstv %s799
      %v801 = vmul.f32 %v800, 2.0
      %v802 = vadd.f32 %v801, 1e-06
      loop: start=0, step=1, limit=20
      $region29: #{part_wise_emd.4} parent=27 // loop_pre_header
        _
      $region30: #{part_wise_emd.4} parent=27 // loop_header
        %s804 = sphi 0, %s808
        %p805 = scmp.ge.s32.totalorder %s804, 20
        %v809 = vphi 0.0, %v1144
        %v810 = vphi 0.0, %v1145
        %v811 = vphi 0.0, %v1146
        %v812 = vphi 0.0, %v1147
        %v813 = vphi 0.0, %v1148
        %v814 = vphi 0.0, %v1149
        %v815 = vphi 0.0, %v1150
        %v816 = vphi 0.0, %v1151
        %v817 = vphi 0.0, %v1153
        %v818 = vphi %v802, %v1154
      $region31: #{part_wise_emd.4} parent=27 // loop_header_branch
        %807 = sbr.rel (%p805) target = $region35
      $region32: #{part_wise_emd.4} parent=27 // loop_body
        %v819 = vmax.f32 %v818, 0.0025
        %v820 = vrcp.pop %v819
        %v821 = vmul.f32 %v819, %v820
        %v822 = vsub.f32 1.0, %v821
        %v823 = vmul.f32 %v820, %v822
        %v824 = vadd.f32 %v820, %v823
        %vm825 = vweird.f32 %v819
        %vm826 = vweird.f32 %v820
        %vm827 = vmor %vm825, %vm826
        %v828 = vsel %vm827, %v820, %v824
        %v829 = vand.u32 2147483647, %v819
        %vm830 = vcmp.eq.f32.partialorder %v829, 8.507059e+37
        %v831 = vand.u32 %v819, 2147483648
        %v832 = vor.u32 1.1754944e-38, %v831
        %v833 = vsel %vm830, %v832, %v828
        %v834 = vmul.f32 1.0, %v833
        %v835 = vmul.f32 %v669, %v834
        %v836 = vmul.f32 %v670, %v834
        %v837 = vmul.f32 %v671, %v834
        %v838 = vmul.f32 %v672, %v834
        %v839 = vmul.f32 %v673, %v834
        %v840 = vmul.f32 %v674, %v834
        %v841 = vmul.f32 %v675, %v834
        %v842 = vmul.f32 %v676, %v834
        %v843 = vmul.f32 %v817, %v834
        %v844 = vadd.f32 %v272, %v843
        %v845 = vperm.slane %v844, 0
        %v846 = vsub.f32 %v845, %v835
        %v847 = vsub.f32 %v845, %v836
        %v848 = vsub.f32 %v845, %v837
        %v849 = vsub.f32 %v845, %v838
        %v850 = vsub.f32 %v845, %v839
        %v851 = vsub.f32 %v845, %v840
        %v852 = vsub.f32 %v845, %v841
        %v853 = vsub.f32 %v845, %v842
        %v854 = vsel %vm394, %v846, -inf
        %855 = vmax.xlane.f32.xlu0 %v854
        %v856 = vpop.xlane.xlu0 %855
        %v857 = vsel %vm394, %v847, -inf
        %858 = vmax.xlane.f32.xlu0 %v857
        %v859 = vpop.xlane.xlu0 %858
        %v860 = vsel %vm394, %v848, -inf
        %861 = vmax.xlane.f32.xlu0 %v860
        %v862 = vpop.xlane.xlu0 %861
        %v863 = vsel %vm394, %v849, -inf
        %864 = vmax.xlane.f32.xlu0 %v863
        %v865 = vpop.xlane.xlu0 %864
        %v866 = vsel %vm394, %v850, -inf
        %867 = vmax.xlane.f32.xlu0 %v866
        %v868 = vpop.xlane.xlu0 %867
        %v869 = vsel %vm394, %v851, -inf
        %870 = vmax.xlane.f32.xlu0 %v869
        %v871 = vpop.xlane.xlu0 %870
        %v872 = vsel %vm394, %v852, -inf
        %873 = vmax.xlane.f32.xlu0 %v872
        %v874 = vpop.xlane.xlu0 %873
        %v875 = vsel %vm394, %v853, -inf
        %876 = vmax.xlane.f32.xlu0 %v875
        %v877 = vpop.xlane.xlu0 %876
        %v878 = vsub.f32 %v846, %v856
        %v879 = vsub.f32 %v847, %v859
        %v880 = vsub.f32 %v848, %v862
        %v881 = vsub.f32 %v849, %v865
        %v882 = vsub.f32 %v850, %v868
        %v883 = vsub.f32 %v851, %v871
        %v884 = vsub.f32 %v852, %v874
        %v885 = vsub.f32 %v853, %v877
        %v886 = vmul.f32 %v878, 1.442695
        %v887 = vpow.pop %v886
        %v888 = vmul.f32 %v879, 1.442695
        %v889 = vpow.pop %v888
        %v890 = vmul.f32 %v880, 1.442695
        %v891 = vpow.pop %v890
        %v892 = vmul.f32 %v881, 1.442695
        %v893 = vpow.pop %v892
        %v894 = vmul.f32 %v882, 1.442695
        %v895 = vpow.pop %v894
        %v896 = vmul.f32 %v883, 1.442695
        %v897 = vpow.pop %v896
        %v898 = vmul.f32 %v884, 1.442695
        %v899 = vpow.pop %v898
        %v900 = vmul.f32 %v885, 1.442695
        %v901 = vpow.pop %v900
        %v903 = vsel %vm394, %v887, 0
        %v906 = vsel %vm394, %v889, 0
        %v909 = vsel %vm394, %v891, 0
        %v912 = vsel %vm394, %v893, 0
        %v915 = vsel %vm394, %v895, 0
        %v918 = vsel %vm394, %v897, 0
        %v921 = vsel %vm394, %v899, 0
        %v924 = vsel %vm394, %v901, 0
        %926 = vmatpush.msra.mxu0 0.0
        %927 = vmatpush.msra.mxu0 0.0
        %928 = vmatpush.msra.mxu0 0.0
        %929 = vmatpush.msra.mxu0 0.0
        %930 = vmatpush.msra.mxu0 0.0
        %931 = vmatpush.msra.mxu0 0.0
        %932 = vmatpush.msra.mxu0 0.0
        %933 = vmatpush.msra.mxu0 0.0
        %934 = vmatpush.msra.mxu0 1.0
        %935 = vmatpush.msra.mxu0 1.0
        %936 = vmatpush.msra.mxu0 1.0
        %937 = vmatpush.msra.mxu0 1.0
        %938 = vmatpush.msra.mxu0 1.0
        %939 = vmatpush.msra.mxu0 1.0
        %940 = vmatpush.msra.mxu0 1.0
        %941 = vmatpush.msra.mxu0 1.0
        %942 = vmatmul.f32.gmra.mxu0 %v903
        %v943 = vpop.f32.mrf.mxu0
        %v944 = vadd.f32 0.0, %v943
        %945 = vmatmul.f32.gmra.mxu0 %v906
        %v946 = vpop.f32.mrf.mxu0
        %v947 = vadd.f32 0.0, %v946
        %948 = vmatmul.f32.gmra.mxu0 %v909
        %v949 = vpop.f32.mrf.mxu0
        %v950 = vadd.f32 0.0, %v949
        %951 = vmatmul.f32.gmra.mxu0 %v912
        %v952 = vpop.f32.mrf.mxu0
        %v953 = vadd.f32 0.0, %v952
        %954 = vmatmul.f32.gmra.mxu0 %v915
        %v955 = vpop.f32.mrf.mxu0
        %v956 = vadd.f32 0.0, %v955
        %957 = vmatmul.f32.gmra.mxu0 %v918
        %v958 = vpop.f32.mrf.mxu0
        %v959 = vadd.f32 0.0, %v958
        %960 = vmatmul.f32.gmra.mxu0 %v921
        %v961 = vpop.f32.mrf.mxu0
        %v962 = vadd.f32 0.0, %v961
        %963 = vmatmul.f32.gmra.mxu0 %v924
        %v964 = vpop.f32.mrf.mxu0
        %v965 = vadd.f32 0.0, %v964
        %966 = vdwg.mxu0
        %v967 = vsub.f32 0.0, %v819
        %v968 = vlog2.pop %v944
        %v969 = vmul.f32 %v968, 0.6931472
        %v970 = vlog2.pop %v947
        %v971 = vmul.f32 %v970, 0.6931472
        %v972 = vlog2.pop %v950
        %v973 = vmul.f32 %v972, 0.6931472
        %v974 = vlog2.pop %v953
        %v975 = vmul.f32 %v974, 0.6931472
        %v976 = vlog2.pop %v956
        %v977 = vmul.f32 %v976, 0.6931472
        %v978 = vlog2.pop %v959
        %v979 = vmul.f32 %v978, 0.6931472
        %v980 = vlog2.pop %v962
        %v981 = vmul.f32 %v980, 0.6931472
        %v982 = vlog2.pop %v965
        %v983 = vmul.f32 %v982, 0.6931472
        %v984 = vadd.f32 %v856, %v969
        %v985 = vadd.f32 %v859, %v971
        %v986 = vadd.f32 %v862, %v973
        %v987 = vadd.f32 %v865, %v975
        %v988 = vadd.f32 %v868, %v977
        %v989 = vadd.f32 %v871, %v979
        %v990 = vadd.f32 %v874, %v981
        %v991 = vadd.f32 %v877, %v983
        %v992 = vmul.f32 %v967, %v984
        %v993 = vmul.f32 %v967, %v985
        %v994 = vmul.f32 %v967, %v986
        %v995 = vmul.f32 %v967, %v987
        %v996 = vmul.f32 %v967, %v988
        %v997 = vmul.f32 %v967, %v989
        %v998 = vmul.f32 %v967, %v990
        %v999 = vmul.f32 %v967, %v991
        %v1000 = vmul.f32 %v809, %v834
        %v1001 = vmul.f32 %v810, %v834
        %v1002 = vmul.f32 %v811, %v834
        %v1003 = vmul.f32 %v812, %v834
        %v1004 = vmul.f32 %v813, %v834
        %v1005 = vmul.f32 %v814, %v834
        %v1006 = vmul.f32 %v815, %v834
        %v1007 = vmul.f32 %v816, %v834
        %v1008 = vadd.f32 %v263, %v1000
        %v1009 = vadd.f32 %v264, %v1001
        %v1010 = vadd.f32 %v265, %v1002
        %v1011 = vadd.f32 %v266, %v1003
        %v1012 = vadd.f32 %v267, %v1004
        %v1013 = vadd.f32 %v268, %v1005
        %v1014 = vadd.f32 %v269, %v1006
        %v1015 = vadd.f32 %v270, %v1007
        %1017 = vset.pattern.permute.xlu0 0
        %1018 = vperm.xlu0 %1017, %v1008
        %v1019 = vpop.permute.xlu0 %1018
        %1022 = vset.pattern.permute.xlu0 0
        %1023 = vperm.xlu0 %1022, %v1009
        %v1024 = vpop.permute.xlu0 %1023
        %1027 = vset.pattern.permute.xlu0 0
        %1028 = vperm.xlu0 %1027, %v1010
        %v1029 = vpop.permute.xlu0 %1028
        %1032 = vset.pattern.permute.xlu0 0
        %1033 = vperm.xlu0 %1032, %v1011
        %v1034 = vpop.permute.xlu0 %1033
        %1037 = vset.pattern.permute.xlu0 0
        %1038 = vperm.xlu0 %1037, %v1012
        %v1039 = vpop.permute.xlu0 %1038
        %1042 = vset.pattern.permute.xlu0 0
        %1043 = vperm.xlu0 %1042, %v1013
        %v1044 = vpop.permute.xlu0 %1043
        %1047 = vset.pattern.permute.xlu0 0
        %1048 = vperm.xlu0 %1047, %v1014
        %v1049 = vpop.permute.xlu0 %1048
        %1052 = vset.pattern.permute.xlu0 0
        %1053 = vperm.xlu0 %1052, %v1015
        %v1054 = vpop.permute.xlu0 %1053
        %v1056 = vsub.f32 %v1019, %v835
        %v1057 = vsub.f32 %v1024, %v836
        %v1058 = vsub.f32 %v1029, %v837
        %v1059 = vsub.f32 %v1034, %v838
        %v1060 = vsub.f32 %v1039, %v839
        %v1061 = vsub.f32 %v1044, %v840
        %v1062 = vsub.f32 %v1049, %v841
        %v1063 = vsub.f32 %v1054, %v842
        %v1064 = vsel %vm394, %v1056, -inf
        %v1065 = vsel %vm394, %v1057, -inf
        %v1066 = vsel %vm394, %v1058, -inf
        %v1067 = vsel %vm394, %v1059, -inf
        %v1068 = vsel %vm394, %v1060, -inf
        %v1069 = vmax.f32 %v1064, %v1068
        %v1070 = vsel %vm394, %v1061, -inf
        %v1071 = vmax.f32 %v1065, %v1070
        %v1072 = vsel %vm394, %v1062, -inf
        %v1073 = vmax.f32 %v1066, %v1072
        %v1074 = vsel %vm394, %v1063, -inf
        %v1075 = vmax.f32 %v1067, %v1074
        %v1076 = vmax.f32 %v1069, %v1071
        %v1077 = vmax.f32 %v1073, %v1075
        %v1078 = vmax.f32 %v1076, %v1077
        %v1079 = vrot.slane %v1078, 4
        %v1080 = vmax.f32 %v1078, %v1079
        %v1081 = vrot.slane %v1080, 2
        %v1082 = vmax.f32 %v1080, %v1081
        %v1083 = vrot.slane %v1082, 1
        %v1084 = vmax.f32 %v1082, %v1083
        %v1085 = vsub.f32 %v1056, %v1084
        %v1086 = vsub.f32 %v1057, %v1084
        %v1087 = vsub.f32 %v1058, %v1084
        %v1088 = vsub.f32 %v1059, %v1084
        %v1089 = vsub.f32 %v1060, %v1084
        %v1090 = vsub.f32 %v1061, %v1084
        %v1091 = vsub.f32 %v1062, %v1084
        %v1092 = vsub.f32 %v1063, %v1084
        %v1093 = vmul.f32 %v1085, 1.442695
        %v1094 = vpow.pop %v1093
        %v1095 = vmul.f32 %v1086, 1.442695
        %v1096 = vpow.pop %v1095
        %v1097 = vmul.f32 %v1087, 1.442695
        %v1098 = vpow.pop %v1097
        %v1099 = vmul.f32 %v1088, 1.442695
        %v1100 = vpow.pop %v1099
        %v1101 = vmul.f32 %v1089, 1.442695
        %v1102 = vpow.pop %v1101
        %v1103 = vmul.f32 %v1090, 1.442695
        %v1104 = vpow.pop %v1103
        %v1105 = vmul.f32 %v1091, 1.442695
        %v1106 = vpow.pop %v1105
        %v1107 = vmul.f32 %v1092, 1.442695
        %v1108 = vpow.pop %v1107
        %v1110 = vsel %vm394, 1.0, 0
        %1112 = vmatpush.msra.mxu0 0.0
        %1113 = vmatpush.msra.mxu0 0.0
        %1114 = vmatpush.msra.mxu0 0.0
        %1115 = vmatpush.msra.mxu0 0.0
        %1116 = vmatpush.msra.mxu0 0.0
        %1117 = vmatpush.msra.mxu0 0.0
        %1118 = vmatpush.msra.mxu0 0.0
        %1119 = vmatpush.msra.mxu0 0.0
        %1120 = vmatpush.msra.mxu0 %v1108
        %1121 = vmatpush.msra.mxu0 %v1106
        %1122 = vmatpush.msra.mxu0 %v1104
        %1123 = vmatpush.msra.mxu0 %v1102
        %1124 = vmatpush.msra.mxu0 %v1100
        %1125 = vmatpush.msra.mxu0 %v1098
        %1126 = vmatpush.msra.mxu0 %v1096
        %1127 = vmatpush.msra.mxu0 %v1094
        %1128 = vmatmul.f32.gmra.mxu0 %v1110
        %v1129 = vpop.f32.mrf.mxu0
        %v1130 = vadd.f32 0.0, %v1129
        %1131 = vdwg.mxu0
        %v1132 = vlog2.pop %v1130
        %v1133 = vmul.f32 %v1132, 0.6931472
        %v1134 = vadd.f32 %v1084, %v1133
        %v1135 = vmul.f32 %v967, %v1134
        %v1136 = vadd.f32 %v809, %v992
        %v1137 = vadd.f32 %v810, %v993
        %v1138 = vadd.f32 %v811, %v994
        %v1139 = vadd.f32 %v812, %v995
        %v1140 = vadd.f32 %v813, %v996
        %v1141 = vadd.f32 %v814, %v997
        %v1142 = vadd.f32 %v815, %v998
        %v1143 = vadd.f32 %v816, %v999
        %v1144 = vmul.f32 %v1136, 0.5
        %v1145 = vmul.f32 %v1137, 0.5
        %v1146 = vmul.f32 %v1138, 0.5
        %v1147 = vmul.f32 %v1139, 0.5
        %v1148 = vmul.f32 %v1140, 0.5
        %v1149 = vmul.f32 %v1141, 0.5
        %v1150 = vmul.f32 %v1142, 0.5
        %v1151 = vmul.f32 %v1143, 0.5
        %v1152 = vadd.f32 %v817, %v1135
        %v1153 = vmul.f32 %v1152, 0.5
        %v1154 = vmul.f32 %v818, 0.25
      $region33: #{part_wise_emd.4} parent=27 // loop_footer
        %s808 = sadd.s32 1, %s804
      $region34: #{part_wise_emd.4} parent=27 // loop_footer_branch
        %803 = sbr.rel target = $region30
      $region35: #{part_wise_emd.4} parent=27 // loop_exit
        _
      loop: start=0, step=1, limit=20
      $region36: #{part_wise_emd.4} parent=27 // loop_pre_header
        _
      $region37: #{part_wise_emd.4} parent=27 // loop_header
        %s1156 = sphi 0, %s1160
        %p1157 = scmp.ge.s32.totalorder %s1156, 20
        %v1161 = vphi 0.0, %v1318
        %v1162 = vphi %v802, %v1319
      $region38: #{part_wise_emd.4} parent=27 // loop_header_branch
        %1159 = sbr.rel (%p1157) target = $region42
      $region39: #{part_wise_emd.4} parent=27 // loop_body
        %v1163 = vmax.f32 %v1162, 0.0025
        %v1164 = vrcp.pop %v1163
        %v1165 = vmul.f32 %v1163, %v1164
        %v1166 = vsub.f32 1.0, %v1165
        %v1167 = vmul.f32 %v1164, %v1166
        %v1168 = vadd.f32 %v1164, %v1167
        %vm1169 = vweird.f32 %v1163
        %vm1170 = vweird.f32 %v1164
        %vm1171 = vmor %vm1169, %vm1170
        %v1172 = vsel %vm1171, %v1164, %v1168
        %v1173 = vand.u32 2147483647, %v1163
        %vm1174 = vcmp.eq.f32.partialorder %v1173, 8.507059e+37
        %v1175 = vand.u32 %v1163, 2147483648
        %v1176 = vor.u32 1.1754944e-38, %v1175
        %v1177 = vsel %vm1174, %v1176, %v1172
        %v1178 = vmul.f32 1.0, %v1177
        %v1179 = vmul.f32 %v702, %v1178
        %v1180 = vmul.f32 %v703, %v1178
        %v1181 = vmul.f32 %v704, %v1178
        %v1182 = vmul.f32 %v705, %v1178
        %v1183 = vmul.f32 %v706, %v1178
        %v1184 = vmul.f32 %v707, %v1178
        %v1185 = vmul.f32 %v708, %v1178
        %v1186 = vmul.f32 %v709, %v1178
        %v1187 = vperm.slane %v1161, 0
        %v1188 = vmul.f32 %v289, %v1187
        %v1189 = vmul.f32 %v290, %v1187
        %v1190 = vmul.f32 %v291, %v1187
        %v1191 = vmul.f32 %v292, %v1187
        %v1192 = vmul.f32 %v293, %v1187
        %v1193 = vmul.f32 %v294, %v1187
        %v1194 = vmul.f32 %v295, %v1187
        %v1195 = vmul.f32 %v296, %v1187
        %v1196 = vsel %vm394, %v1188, 0.0
        %1197 = vadd.xlane.f32.xlu0 %v1196
        %v1198 = vpop.xlane.xlu0 %1197
        %v1199 = vsel %vm394, %v1189, 0.0
        %1200 = vadd.xlane.f32.xlu0 %v1199
        %v1201 = vpop.xlane.xlu0 %1200
        %v1202 = vsel %vm394, %v1190, 0.0
        %1203 = vadd.xlane.f32.xlu0 %v1202
        %v1204 = vpop.xlane.xlu0 %1203
        %v1205 = vsel %vm394, %v1191, 0.0
        %1206 = vadd.xlane.f32.xlu0 %v1205
        %v1207 = vpop.xlane.xlu0 %1206
        %v1208 = vsel %vm394, %v1192, 0.0
        %1209 = vadd.xlane.f32.xlu0 %v1208
        %v1210 = vpop.xlane.xlu0 %1209
        %v1211 = vsel %vm394, %v1193, 0.0
        %1212 = vadd.xlane.f32.xlu0 %v1211
        %v1213 = vpop.xlane.xlu0 %1212
        %v1214 = vsel %vm394, %v1194, 0.0
        %1215 = vadd.xlane.f32.xlu0 %v1214
        %v1216 = vpop.xlane.xlu0 %1215
        %v1217 = vsel %vm394, %v1195, 0.0
        %1218 = vadd.xlane.f32.xlu0 %v1217
        %v1219 = vpop.xlane.xlu0 %1218
        %v1220 = vmul.f32 %v1198, %v1178
        %v1221 = vmul.f32 %v1201, %v1178
        %v1222 = vmul.f32 %v1204, %v1178
        %v1223 = vmul.f32 %v1207, %v1178
        %v1224 = vmul.f32 %v1210, %v1178
        %v1225 = vmul.f32 %v1213, %v1178
        %v1226 = vmul.f32 %v1216, %v1178
        %v1227 = vmul.f32 %v1219, %v1178
        %v1228 = vadd.f32 %v263, %v1220
        %v1229 = vadd.f32 %v264, %v1221
        %v1230 = vadd.f32 %v265, %v1222
        %v1231 = vadd.f32 %v266, %v1223
        %v1232 = vadd.f32 %v267, %v1224
        %v1233 = vadd.f32 %v268, %v1225
        %v1234 = vadd.f32 %v269, %v1226
        %v1235 = vadd.f32 %v270, %v1227
        %v1236 = vsub.f32 %v1228, %v1179
        %v1237 = vsub.f32 %v1229, %v1180
        %v1238 = vsub.f32 %v1230, %v1181
        %v1239 = vsub.f32 %v1231, %v1182
        %v1240 = vsub.f32 %v1232, %v1183
        %v1241 = vsub.f32 %v1233, %v1184
        %v1242 = vsub.f32 %v1234, %v1185
        %v1243 = vsub.f32 %v1235, %v1186
        %v1244 = vsel %vm394, %v1236, -inf
        %v1245 = vsel %vm394, %v1237, -inf
        %v1246 = vsel %vm394, %v1238, -inf
        %v1247 = vsel %vm394, %v1239, -inf
        %v1248 = vsel %vm394, %v1240, -inf
        %v1249 = vmax.f32 %v1244, %v1248
        %v1250 = vsel %vm394, %v1241, -inf
        %v1251 = vmax.f32 %v1245, %v1250
        %v1252 = vsel %vm394, %v1242, -inf
        %v1253 = vmax.f32 %v1246, %v1252
        %v1254 = vsel %vm394, %v1243, -inf
        %v1255 = vmax.f32 %v1247, %v1254
        %v1256 = vmax.f32 %v1249, %v1251
        %v1257 = vmax.f32 %v1253, %v1255
        %v1258 = vmax.f32 %v1256, %v1257
        %v1259 = vrot.slane %v1258, 4
        %v1260 = vmax.f32 %v1258, %v1259
        %v1261 = vrot.slane %v1260, 2
        %v1262 = vmax.f32 %v1260, %v1261
        %v1263 = vrot.slane %v1262, 1
        %v1264 = vmax.f32 %v1262, %v1263
        %v1265 = vsub.f32 %v1236, %v1264
        %v1266 = vsub.f32 %v1237, %v1264
        %v1267 = vsub.f32 %v1238, %v1264
        %v1268 = vsub.f32 %v1239, %v1264
        %v1269 = vsub.f32 %v1240, %v1264
        %v1270 = vsub.f32 %v1241, %v1264
        %v1271 = vsub.f32 %v1242, %v1264
        %v1272 = vsub.f32 %v1243, %v1264
        %v1273 = vmul.f32 %v1265, 1.442695
        %v1274 = vpow.pop %v1273
        %v1275 = vmul.f32 %v1266, 1.442695
        %v1276 = vpow.pop %v1275
        %v1277 = vmul.f32 %v1267, 1.442695
        %v1278 = vpow.pop %v1277
        %v1279 = vmul.f32 %v1268, 1.442695
        %v1280 = vpow.pop %v1279
        %v1281 = vmul.f32 %v1269, 1.442695
        %v1282 = vpow.pop %v1281
        %v1283 = vmul.f32 %v1270, 1.442695
        %v1284 = vpow.pop %v1283
        %v1285 = vmul.f32 %v1271, 1.442695
        %v1286 = vpow.pop %v1285
        %v1287 = vmul.f32 %v1272, 1.442695
        %v1288 = vpow.pop %v1287
        %v1290 = vsel %vm394, 1.0, 0
        %1292 = vmatpush.msra.mxu0 0.0
        %1293 = vmatpush.msra.mxu0 0.0
        %1294 = vmatpush.msra.mxu0 0.0
        %1295 = vmatpush.msra.mxu0 0.0
        %1296 = vmatpush.msra.mxu0 0.0
        %1297 = vmatpush.msra.mxu0 0.0
        %1298 = vmatpush.msra.mxu0 0.0
        %1299 = vmatpush.msra.mxu0 0.0
        %1300 = vmatpush.msra.mxu0 %v1288
        %1301 = vmatpush.msra.mxu0 %v1286
        %1302 = vmatpush.msra.mxu0 %v1284
        %1303 = vmatpush.msra.mxu0 %v1282
        %1304 = vmatpush.msra.mxu0 %v1280
        %1305 = vmatpush.msra.mxu0 %v1278
        %1306 = vmatpush.msra.mxu0 %v1276
        %1307 = vmatpush.msra.mxu0 %v1274
        %1308 = vmatmul.f32.gmra.mxu0 %v1290
        %v1309 = vpop.f32.mrf.mxu0
        %v1310 = vadd.f32 0.0, %v1309
        %1311 = vdwg.mxu0
        %v1312 = vsub.f32 0.0, %v1163
        %v1313 = vlog2.pop %v1310
        %v1314 = vmul.f32 %v1313, 0.6931472
        %v1315 = vadd.f32 %v1264, %v1314
        %v1316 = vmul.f32 %v1312, %v1315
        %v1317 = vadd.f32 %v1161, %v1316
        %v1318 = vmul.f32 %v1317, 0.5
        %v1319 = vmul.f32 %v1162, 0.25
      $region40: #{part_wise_emd.4} parent=27 // loop_footer
        %s1160 = sadd.s32 1, %s1156
      $region41: #{part_wise_emd.4} parent=27 // loop_footer_branch
        %1155 = sbr.rel target = $region37
      $region42: #{part_wise_emd.4} parent=27 // loop_exit
        _
      loop: start=0, step=1, limit=20
      $region43: #{part_wise_emd.4} parent=27 // loop_pre_header
        _
      $region44: #{part_wise_emd.4} parent=27 // loop_header
        %s1321 = sphi 0, %s1325
        %p1322 = scmp.ge.s32.totalorder %s1321, 20
        %v1326 = vphi 0.0, %v1579
        %v1327 = vphi 0.0, %v1580
        %v1328 = vphi 0.0, %v1581
        %v1329 = vphi 0.0, %v1582
        %v1330 = vphi 0.0, %v1583
        %v1331 = vphi 0.0, %v1584
        %v1332 = vphi 0.0, %v1585
        %v1333 = vphi 0.0, %v1586
        %v1334 = vphi %v802, %v1587
      $region45: #{part_wise_emd.4} parent=27 // loop_header_branch
        %1324 = sbr.rel (%p1322) target = $region49
      $region46: #{part_wise_emd.4} parent=27 // loop_body
        %v1335 = vmax.f32 %v1334, 0.0025
        %v1336 = vrcp.pop %v1335
        %v1337 = vmul.f32 %v1335, %v1336
        %v1338 = vsub.f32 1.0, %v1337
        %v1339 = vmul.f32 %v1336, %v1338
        %v1340 = vadd.f32 %v1336, %v1339
        %vm1341 = vweird.f32 %v1335
        %vm1342 = vweird.f32 %v1336
        %vm1343 = vmor %vm1341, %vm1342
        %v1344 = vsel %vm1343, %v1336, %v1340
        %v1345 = vand.u32 2147483647, %v1335
        %vm1346 = vcmp.eq.f32.partialorder %v1345, 8.507059e+37
        %v1347 = vand.u32 %v1335, 2147483648
        %v1348 = vor.u32 1.1754944e-38, %v1347
        %v1349 = vsel %vm1346, %v1348, %v1344
        %v1350 = vmul.f32 1.0, %v1349
        %v1351 = vmul.f32 %v734, %v1350
        %v1352 = vmul.f32 %v735, %v1350
        %v1353 = vmul.f32 %v736, %v1350
        %v1354 = vmul.f32 %v737, %v1350
        %v1355 = vmul.f32 %v738, %v1350
        %v1356 = vmul.f32 %v739, %v1350
        %v1357 = vmul.f32 %v740, %v1350
        %v1358 = vmul.f32 %v741, %v1350
        %1359 = vxpose.xlu0.b32.start [1/16] %v1326, 128
        %1360 = vxpose.xlu0.b32.cont [2/16] %v1327, 128
        %1361 = vxpose.xlu0.b32.cont [3/16] %v1328, 128
        %1362 = vxpose.xlu0.b32.cont [4/16] %v1329, 128
        %1363 = vxpose.xlu0.b32.cont [5/16] %v1330, 128
        %1364 = vxpose.xlu0.b32.cont [6/16] %v1331, 128
        %1365 = vxpose.xlu0.b32.cont [7/16] %v1332, 128
        %1366 = vxpose.xlu0.b32.cont [8/16] %v1333, 128
        %1367 = vxpose.xlu0.b32.cont [9/16] 0.0, 128
        %1368 = vxpose.xlu0.b32.cont [10/16] 0.0, 128
        %1369 = vxpose.xlu0.b32.cont [11/16] 0.0, 128
        %1370 = vxpose.xlu0.b32.cont [12/16] 0.0, 128
        %1371 = vxpose.xlu0.b32.cont [13/16] 0.0, 128
        %1372 = vxpose.xlu0.b32.cont [14/16] 0.0, 128
        %1373 = vxpose.xlu0.b32.cont [15/16] 0.0, 128
        %1374 = vxpose.xlu0.b32.end [16/16] 0.0, 128
        %v1375 = vpop.trf.xlu0
        %v1376 = vpop.trf.xlu0
        %v1377 = vpop.trf.xlu0
        %v1378 = vpop.trf.xlu0
        %v1379 = vpop.trf.xlu0
        %v1380 = vpop.trf.xlu0
        %v1381 = vpop.trf.xlu0
        %v1382 = vpop.trf.xlu0
        %v1383 = vpop.trf.xlu0
        %v1384 = vpop.trf.xlu0
        %v1385 = vpop.trf.xlu0
        %v1386 = vpop.trf.xlu0
        %v1387 = vpop.trf.xlu0
        %v1388 = vpop.trf.xlu0
        %v1389 = vpop.trf.xlu0
        %v1390 = vpop.trf.xlu0
        %v1392 = vsel %vm394, %v1375, 0
        %1394 = vmatpush.msra.mxu0 0.0
        %1395 = vmatpush.msra.mxu0 0.0
        %1396 = vmatpush.msra.mxu0 0.0
        %1397 = vmatpush.msra.mxu0 0.0
        %1398 = vmatpush.msra.mxu0 0.0
        %1399 = vmatpush.msra.mxu0 0.0
        %1400 = vmatpush.msra.mxu0 0.0
        %1401 = vmatpush.msra.mxu0 0.0
        %1402 = vmatpush.msra.mxu0 %v296
        %1403 = vmatpush.msra.mxu0 %v295
        %1404 = vmatpush.msra.mxu0 %v294
        %1405 = vmatpush.msra.mxu0 %v293
        %1406 = vmatpush.msra.mxu0 %v292
        %1407 = vmatpush.msra.mxu0 %v291
        %1408 = vmatpush.msra.mxu0 %v290
        %1409 = vmatpush.msra.mxu0 %v289
        %1410 = vmatmul.f32.gmra.mxu0 %v1392
        %v1411 = vpop.f32.mrf.mxu0
        %v1412 = vadd.f32 0.0, %v1411
        %1413 = vdwg.mxu0
        %v1414 = vmul.f32 %v1412, %v1350
        %v1415 = vadd.f32 %v272, %v1414
        %v1416 = vperm.slane %v1415, 0
        %v1417 = vsub.f32 %v1416, %v1351
        %v1418 = vsub.f32 %v1416, %v1352
        %v1419 = vsub.f32 %v1416, %v1353
        %v1420 = vsub.f32 %v1416, %v1354
        %v1421 = vsub.f32 %v1416, %v1355
        %v1422 = vsub.f32 %v1416, %v1356
        %v1423 = vsub.f32 %v1416, %v1357
        %v1424 = vsub.f32 %v1416, %v1358
        %v1425 = vsel %vm394, %v1417, -inf
        %1426 = vmax.xlane.f32.xlu0 %v1425
        %v1427 = vpop.xlane.xlu0 %1426
        %v1428 = vsel %vm394, %v1418, -inf
        %1429 = vmax.xlane.f32.xlu0 %v1428
        %v1430 = vpop.xlane.xlu0 %1429
        %v1431 = vsel %vm394, %v1419, -inf
        %1432 = vmax.xlane.f32.xlu0 %v1431
        %v1433 = vpop.xlane.xlu0 %1432
        %v1434 = vsel %vm394, %v1420, -inf
        %1435 = vmax.xlane.f32.xlu0 %v1434
        %v1436 = vpop.xlane.xlu0 %1435
        %v1437 = vsel %vm394, %v1421, -inf
        %1438 = vmax.xlane.f32.xlu0 %v1437
        %v1439 = vpop.xlane.xlu0 %1438
        %v1440 = vsel %vm394, %v1422, -inf
        %1441 = vmax.xlane.f32.xlu0 %v1440
        %v1442 = vpop.xlane.xlu0 %1441
        %v1443 = vsel %vm394, %v1423, -inf
        %1444 = vmax.xlane.f32.xlu0 %v1443
        %v1445 = vpop.xlane.xlu0 %1444
        %v1446 = vsel %vm394, %v1424, -inf
        %1447 = vmax.xlane.f32.xlu0 %v1446
        %v1448 = vpop.xlane.xlu0 %1447
        %v1449 = vsub.f32 %v1417, %v1427
        %v1450 = vsub.f32 %v1418, %v1430
        %v1451 = vsub.f32 %v1419, %v1433
        %v1452 = vsub.f32 %v1420, %v1436
        %v1453 = vsub.f32 %v1421, %v1439
        %v1454 = vsub.f32 %v1422, %v1442
        %v1455 = vsub.f32 %v1423, %v1445
        %v1456 = vsub.f32 %v1424, %v1448
        %v1457 = vmul.f32 %v1449, 1.442695
        %v1458 = vpow.pop %v1457
        %v1459 = vmul.f32 %v1450, 1.442695
        %v1460 = vpow.pop %v1459
        %v1461 = vmul.f32 %v1451, 1.442695
        %v1462 = vpow.pop %v1461
        %v1463 = vmul.f32 %v1452, 1.442695
        %v1464 = vpow.pop %v1463
        %v1465 = vmul.f32 %v1453, 1.442695
        %v1466 = vpow.pop %v1465
        %v1467 = vmul.f32 %v1454, 1.442695
        %v1468 = vpow.pop %v1467
        %v1469 = vmul.f32 %v1455, 1.442695
        %v1470 = vpow.pop %v1469
        %v1471 = vmul.f32 %v1456, 1.442695
        %v1472 = vpow.pop %v1471
        %v1474 = vsel %vm394, %v1458, 0
        %v1477 = vsel %vm394, %v1460, 0
        %v1480 = vsel %vm394, %v1462, 0
        %v1483 = vsel %vm394, %v1464, 0
        %v1486 = vsel %vm394, %v1466, 0
        %v1489 = vsel %vm394, %v1468, 0
        %v1492 = vsel %vm394, %v1470, 0
        %v1495 = vsel %vm394, %v1472, 0
        %1497 = vmatpush.msra.mxu0 0.0
        %1498 = vmatpush.msra.mxu0 0.0
        %1499 = vmatpush.msra.mxu0 0.0
        %1500 = vmatpush.msra.mxu0 0.0
        %1501 = vmatpush.msra.mxu0 0.0
        %1502 = vmatpush.msra.mxu0 0.0
        %1503 = vmatpush.msra.mxu0 0.0
        %1504 = vmatpush.msra.mxu0 0.0
        %1505 = vmatpush.msra.mxu0 1.0
        %1506 = vmatpush.msra.mxu0 1.0
        %1507 = vmatpush.msra.mxu0 1.0
        %1508 = vmatpush.msra.mxu0 1.0
        %1509 = vmatpush.msra.mxu0 1.0
        %1510 = vmatpush.msra.mxu0 1.0
        %1511 = vmatpush.msra.mxu0 1.0
        %1512 = vmatpush.msra.mxu0 1.0
        %1513 = vmatmul.f32.gmra.mxu0 %v1474
        %v1514 = vpop.f32.mrf.mxu0
        %v1515 = vadd.f32 0.0, %v1514
        %1516 = vmatmul.f32.gmra.mxu0 %v1477
        %v1517 = vpop.f32.mrf.mxu0
        %v1518 = vadd.f32 0.0, %v1517
        %1519 = vmatmul.f32.gmra.mxu0 %v1480
        %v1520 = vpop.f32.mrf.mxu0
        %v1521 = vadd.f32 0.0, %v1520
        %1522 = vmatmul.f32.gmra.mxu0 %v1483
        %v1523 = vpop.f32.mrf.mxu0
        %v1524 = vadd.f32 0.0, %v1523
        %1525 = vmatmul.f32.gmra.mxu0 %v1486
        %v1526 = vpop.f32.mrf.mxu0
        %v1527 = vadd.f32 0.0, %v1526
        %1528 = vmatmul.f32.gmra.mxu0 %v1489
        %v1529 = vpop.f32.mrf.mxu0
        %v1530 = vadd.f32 0.0, %v1529
        %1531 = vmatmul.f32.gmra.mxu0 %v1492
        %v1532 = vpop.f32.mrf.mxu0
        %v1533 = vadd.f32 0.0, %v1532
        %1534 = vmatmul.f32.gmra.mxu0 %v1495
        %v1535 = vpop.f32.mrf.mxu0
        %v1536 = vadd.f32 0.0, %v1535
        %1537 = vdwg.mxu0
        %v1538 = vsub.f32 0.0, %v1335
        %v1539 = vlog2.pop %v1515
        %v1540 = vmul.f32 %v1539, 0.6931472
        %v1541 = vlog2.pop %v1518
        %v1542 = vmul.f32 %v1541, 0.6931472
        %v1543 = vlog2.pop %v1521
        %v1544 = vmul.f32 %v1543, 0.6931472
        %v1545 = vlog2.pop %v1524
        %v1546 = vmul.f32 %v1545, 0.6931472
        %v1547 = vlog2.pop %v1527
        %v1548 = vmul.f32 %v1547, 0.6931472
        %v1549 = vlog2.pop %v1530
        %v1550 = vmul.f32 %v1549, 0.6931472
        %v1551 = vlog2.pop %v1533
        %v1552 = vmul.f32 %v1551, 0.6931472
        %v1553 = vlog2.pop %v1536
        %v1554 = vmul.f32 %v1553, 0.6931472
        %v1555 = vadd.f32 %v1427, %v1540
        %v1556 = vadd.f32 %v1430, %v1542
        %v1557 = vadd.f32 %v1433, %v1544
        %v1558 = vadd.f32 %v1436, %v1546
        %v1559 = vadd.f32 %v1439, %v1548
        %v1560 = vadd.f32 %v1442, %v1550
        %v1561 = vadd.f32 %v1445, %v1552
        %v1562 = vadd.f32 %v1448, %v1554
        %v1563 = vmul.f32 %v1538, %v1555
        %v1564 = vmul.f32 %v1538, %v1556
        %v1565 = vmul.f32 %v1538, %v1557
        %v1566 = vmul.f32 %v1538, %v1558
        %v1567 = vmul.f32 %v1538, %v1559
        %v1568 = vmul.f32 %v1538, %v1560
        %v1569 = vmul.f32 %v1538, %v1561
        %v1570 = vmul.f32 %v1538, %v1562
        %v1571 = vadd.f32 %v1326, %v1563
        %v1572 = vadd.f32 %v1327, %v1564
        %v1573 = vadd.f32 %v1328, %v1565
        %v1574 = vadd.f32 %v1329, %v1566
        %v1575 = vadd.f32 %v1330, %v1567
        %v1576 = vadd.f32 %v1331, %v1568
        %v1577 = vadd.f32 %v1332, %v1569
        %v1578 = vadd.f32 %v1333, %v1570
        %v1579 = vmul.f32 %v1571, 0.5
        %v1580 = vmul.f32 %v1572, 0.5
        %v1581 = vmul.f32 %v1573, 0.5
        %v1582 = vmul.f32 %v1574, 0.5
        %v1583 = vmul.f32 %v1575, 0.5
        %v1584 = vmul.f32 %v1576, 0.5
        %v1585 = vmul.f32 %v1577, 0.5
        %v1586 = vmul.f32 %v1578, 0.5
        %v1587 = vmul.f32 %v1334, 0.25
      $region47: #{part_wise_emd.4} parent=27 // loop_footer
        %s1325 = sadd.s32 1, %s1321
      $region48: #{part_wise_emd.4} parent=27 // loop_footer_branch
        %1320 = sbr.rel target = $region44
      $region49: #{part_wise_emd.4} parent=27 // loop_exit
        _
      %v1588 = vmul.f32 %v669, 400.0
      %v1589 = vmul.f32 %v670, 400.0
      %v1590 = vmul.f32 %v671, 400.0
      %v1591 = vmul.f32 %v672, 400.0
      %v1592 = vmul.f32 %v673, 400.0
      %v1593 = vmul.f32 %v674, 400.0
      %v1594 = vmul.f32 %v675, 400.0
      %v1595 = vmul.f32 %v676, 400.0
      %v1596 = vmul.f32 %v817, 400.0
      %v1597 = vadd.f32 %v272, %v1596
      %v1598 = vperm.slane %v1597, 0
      %v1599 = vsub.f32 %v1598, %v1588
      %v1600 = vsub.f32 %v1598, %v1589
      %v1601 = vsub.f32 %v1598, %v1590
      %v1602 = vsub.f32 %v1598, %v1591
      %v1603 = vsub.f32 %v1598, %v1592
      %v1604 = vsub.f32 %v1598, %v1593
      %v1605 = vsub.f32 %v1598, %v1594
      %v1606 = vsub.f32 %v1598, %v1595
      %v1607 = vsel %vm394, %v1599, -inf
      %1608 = vmax.xlane.f32.xlu0 %v1607
      %v1609 = vpop.xlane.xlu0 %1608
      %v1610 = vsel %vm394, %v1600, -inf
      %1611 = vmax.xlane.f32.xlu0 %v1610
      %v1612 = vpop.xlane.xlu0 %1611
      %v1613 = vsel %vm394, %v1601, -inf
      %1614 = vmax.xlane.f32.xlu0 %v1613
      %v1615 = vpop.xlane.xlu0 %1614
      %v1616 = vsel %vm394, %v1602, -inf
      %1617 = vmax.xlane.f32.xlu0 %v1616
      %v1618 = vpop.xlane.xlu0 %1617
      %v1619 = vsel %vm394, %v1603, -inf
      %1620 = vmax.xlane.f32.xlu0 %v1619
      %v1621 = vpop.xlane.xlu0 %1620
      %v1622 = vsel %vm394, %v1604, -inf
      %1623 = vmax.xlane.f32.xlu0 %v1622
      %v1624 = vpop.xlane.xlu0 %1623
      %v1625 = vsel %vm394, %v1605, -inf
      %1626 = vmax.xlane.f32.xlu0 %v1625
      %v1627 = vpop.xlane.xlu0 %1626
      %v1628 = vsel %vm394, %v1606, -inf
      %1629 = vmax.xlane.f32.xlu0 %v1628
      %v1630 = vpop.xlane.xlu0 %1629
      %v1631 = vsub.f32 %v1599, %v1609
      %v1632 = vsub.f32 %v1600, %v1612
      %v1633 = vsub.f32 %v1601, %v1615
      %v1634 = vsub.f32 %v1602, %v1618
      %v1635 = vsub.f32 %v1603, %v1621
      %v1636 = vsub.f32 %v1604, %v1624
      %v1637 = vsub.f32 %v1605, %v1627
      %v1638 = vsub.f32 %v1606, %v1630
      %v1639 = vmul.f32 %v1631, 1.442695
      %v1640 = vpow.pop %v1639
      %v1641 = vmul.f32 %v1632, 1.442695
      %v1642 = vpow.pop %v1641
      %v1643 = vmul.f32 %v1633, 1.442695
      %v1644 = vpow.pop %v1643
      %v1645 = vmul.f32 %v1634, 1.442695
      %v1646 = vpow.pop %v1645
      %v1647 = vmul.f32 %v1635, 1.442695
      %v1648 = vpow.pop %v1647
      %v1649 = vmul.f32 %v1636, 1.442695
      %v1650 = vpow.pop %v1649
      %v1651 = vmul.f32 %v1637, 1.442695
      %v1652 = vpow.pop %v1651
      %v1653 = vmul.f32 %v1638, 1.442695
      %v1654 = vpow.pop %v1653
      %v1656 = vsel %vm394, %v1640, 0
      %v1659 = vsel %vm394, %v1642, 0
      %v1662 = vsel %vm394, %v1644, 0
      %v1665 = vsel %vm394, %v1646, 0
      %v1668 = vsel %vm394, %v1648, 0
      %v1671 = vsel %vm394, %v1650, 0
      %v1674 = vsel %vm394, %v1652, 0
      %v1677 = vsel %vm394, %v1654, 0
      %1679 = vmatpush.msra.mxu0 0.0
      %1680 = vmatpush.msra.mxu0 0.0
      %1681 = vmatpush.msra.mxu0 0.0
      %1682 = vmatpush.msra.mxu0 0.0
      %1683 = vmatpush.msra.mxu0 0.0
      %1684 = vmatpush.msra.mxu0 0.0
      %1685 = vmatpush.msra.mxu0 0.0
      %1686 = vmatpush.msra.mxu0 0.0
      %1687 = vmatpush.msra.mxu0 1.0
      %1688 = vmatpush.msra.mxu0 1.0
      %1689 = vmatpush.msra.mxu0 1.0
      %1690 = vmatpush.msra.mxu0 1.0
      %1691 = vmatpush.msra.mxu0 1.0
      %1692 = vmatpush.msra.mxu0 1.0
      %1693 = vmatpush.msra.mxu0 1.0
      %1694 = vmatpush.msra.mxu0 1.0
      %1695 = vmatmul.f32.gmra.mxu0 %v1656
      %v1696 = vpop.f32.mrf.mxu0
      %v1697 = vadd.f32 0.0, %v1696
      %1698 = vmatmul.f32.gmra.mxu0 %v1659
      %v1699 = vpop.f32.mrf.mxu0
      %v1700 = vadd.f32 0.0, %v1699
      %1701 = vmatmul.f32.gmra.mxu0 %v1662
      %v1702 = vpop.f32.mrf.mxu0
      %v1703 = vadd.f32 0.0, %v1702
      %1704 = vmatmul.f32.gmra.mxu0 %v1665
      %v1705 = vpop.f32.mrf.mxu0
      %v1706 = vadd.f32 0.0, %v1705
      %1707 = vmatmul.f32.gmra.mxu0 %v1668
      %v1708 = vpop.f32.mrf.mxu0
      %v1709 = vadd.f32 0.0, %v1708
      %1710 = vmatmul.f32.gmra.mxu0 %v1671
      %v1711 = vpop.f32.mrf.mxu0
      %v1712 = vadd.f32 0.0, %v1711
      %1713 = vmatmul.f32.gmra.mxu0 %v1674
      %v1714 = vpop.f32.mrf.mxu0
      %v1715 = vadd.f32 0.0, %v1714
      %1716 = vmatmul.f32.gmra.mxu0 %v1677
      %v1717 = vpop.f32.mrf.mxu0
      %v1718 = vadd.f32 0.0, %v1717
      %1719 = vdwg.mxu0
      %v1720 = vlog2.pop %v1697
      %v1721 = vmul.f32 %v1720, 0.6931472
      %v1722 = vlog2.pop %v1700
      %v1723 = vmul.f32 %v1722, 0.6931472
      %v1724 = vlog2.pop %v1703
      %v1725 = vmul.f32 %v1724, 0.6931472
      %v1726 = vlog2.pop %v1706
      %v1727 = vmul.f32 %v1726, 0.6931472
      %v1728 = vlog2.pop %v1709
      %v1729 = vmul.f32 %v1728, 0.6931472
      %v1730 = vlog2.pop %v1712
      %v1731 = vmul.f32 %v1730, 0.6931472
      %v1732 = vlog2.pop %v1715
      %v1733 = vmul.f32 %v1732, 0.6931472
      %v1734 = vlog2.pop %v1718
      %v1735 = vmul.f32 %v1734, 0.6931472
      %v1736 = vadd.f32 %v1609, %v1721
      %v1737 = vadd.f32 %v1612, %v1723
      %v1738 = vadd.f32 %v1615, %v1725
      %v1739 = vadd.f32 %v1618, %v1727
      %v1740 = vadd.f32 %v1621, %v1729
      %v1741 = vadd.f32 %v1624, %v1731
      %v1742 = vadd.f32 %v1627, %v1733
      %v1743 = vadd.f32 %v1630, %v1735
      %v1744 = vmul.f32 %v1736, -0.0025
      %v1745 = vmul.f32 %v1737, -0.0025
      %v1746 = vmul.f32 %v1738, -0.0025
      %v1747 = vmul.f32 %v1739, -0.0025
      %v1748 = vmul.f32 %v1740, -0.0025
      %v1749 = vmul.f32 %v1741, -0.0025
      %v1750 = vmul.f32 %v1742, -0.0025
      %v1751 = vmul.f32 %v1743, -0.0025
      %v1752 = vmul.f32 %v809, 400.0
      %v1753 = vmul.f32 %v810, 400.0
      %v1754 = vmul.f32 %v811, 400.0
      %v1755 = vmul.f32 %v812, 400.0
      %v1756 = vmul.f32 %v813, 400.0
      %v1757 = vmul.f32 %v814, 400.0
      %v1758 = vmul.f32 %v815, 400.0
      %v1759 = vmul.f32 %v816, 400.0
      %v1760 = vadd.f32 %v263, %v1752
      %v1761 = vadd.f32 %v264, %v1753
      %v1762 = vadd.f32 %v265, %v1754
      %v1763 = vadd.f32 %v266, %v1755
      %v1764 = vadd.f32 %v267, %v1756
      %v1765 = vadd.f32 %v268, %v1757
      %v1766 = vadd.f32 %v269, %v1758
      %v1767 = vadd.f32 %v270, %v1759
      %1769 = vset.pattern.permute.xlu0 0
      %1770 = vperm.xlu0 %1769, %v1760
      %v1771 = vpop.permute.xlu0 %1770
      %1774 = vset.pattern.permute.xlu0 0
      %1775 = vperm.xlu0 %1774, %v1761
      %v1776 = vpop.permute.xlu0 %1775
      %1779 = vset.pattern.permute.xlu0 0
      %1780 = vperm.xlu0 %1779, %v1762
      %v1781 = vpop.permute.xlu0 %1780
      %1784 = vset.pattern.permute.xlu0 0
      %1785 = vperm.xlu0 %1784, %v1763
      %v1786 = vpop.permute.xlu0 %1785
      %1789 = vset.pattern.permute.xlu0 0
      %1790 = vperm.xlu0 %1789, %v1764
      %v1791 = vpop.permute.xlu0 %1790
      %1794 = vset.pattern.permute.xlu0 0
      %1795 = vperm.xlu0 %1794, %v1765
      %v1796 = vpop.permute.xlu0 %1795
      %1799 = vset.pattern.permute.xlu0 0
      %1800 = vperm.xlu0 %1799, %v1766
      %v1801 = vpop.permute.xlu0 %1800
      %1804 = vset.pattern.permute.xlu0 0
      %1805 = vperm.xlu0 %1804, %v1767
      %v1806 = vpop.permute.xlu0 %1805
      %v1808 = vsub.f32 %v1771, %v1588
      %v1809 = vsub.f32 %v1776, %v1589
      %v1810 = vsub.f32 %v1781, %v1590
      %v1811 = vsub.f32 %v1786, %v1591
      %v1812 = vsub.f32 %v1791, %v1592
      %v1813 = vsub.f32 %v1796, %v1593
      %v1814 = vsub.f32 %v1801, %v1594
      %v1815 = vsub.f32 %v1806, %v1595
      %v1816 = vsel %vm394, %v1808, -inf
      %v1817 = vsel %vm394, %v1809, -inf
      %v1818 = vsel %vm394, %v1810, -inf
      %v1819 = vsel %vm394, %v1811, -inf
      %v1820 = vsel %vm394, %v1812, -inf
      %v1821 = vmax.f32 %v1816, %v1820
      %v1822 = vsel %vm394, %v1813, -inf
      %v1823 = vmax.f32 %v1817, %v1822
      %v1824 = vsel %vm394, %v1814, -inf
      %v1825 = vmax.f32 %v1818, %v1824
      %v1826 = vsel %vm394, %v1815, -inf
      %v1827 = vmax.f32 %v1819, %v1826
      %v1828 = vmax.f32 %v1821, %v1823
      %v1829 = vmax.f32 %v1825, %v1827
      %v1830 = vmax.f32 %v1828, %v1829
      %v1831 = vrot.slane %v1830, 4
      %v1832 = vmax.f32 %v1830, %v1831
      %v1833 = vrot.slane %v1832, 2
      %v1834 = vmax.f32 %v1832, %v1833
      %v1835 = vrot.slane %v1834, 1
      %v1836 = vmax.f32 %v1834, %v1835
      %v1837 = vsub.f32 %v1808, %v1836
      %v1838 = vsub.f32 %v1809, %v1836
      %v1839 = vsub.f32 %v1810, %v1836
      %v1840 = vsub.f32 %v1811, %v1836
      %v1841 = vsub.f32 %v1812, %v1836
      %v1842 = vsub.f32 %v1813, %v1836
      %v1843 = vsub.f32 %v1814, %v1836
      %v1844 = vsub.f32 %v1815, %v1836
      %v1845 = vmul.f32 %v1837, 1.442695
      %v1846 = vpow.pop %v1845
      %v1847 = vmul.f32 %v1838, 1.442695
      %v1848 = vpow.pop %v1847
      %v1849 = vmul.f32 %v1839, 1.442695
      %v1850 = vpow.pop %v1849
      %v1851 = vmul.f32 %v1840, 1.442695
      %v1852 = vpow.pop %v1851
      %v1853 = vmul.f32 %v1841, 1.442695
      %v1854 = vpow.pop %v1853
      %v1855 = vmul.f32 %v1842, 1.442695
      %v1856 = vpow.pop %v1855
      %v1857 = vmul.f32 %v1843, 1.442695
      %v1858 = vpow.pop %v1857
      %v1859 = vmul.f32 %v1844, 1.442695
      %v1860 = vpow.pop %v1859
      %v1862 = vsel %vm394, 1.0, 0
      %1864 = vmatpush.msra.mxu0 0.0
      %1865 = vmatpush.msra.mxu0 0.0
      %1866 = vmatpush.msra.mxu0 0.0
      %1867 = vmatpush.msra.mxu0 0.0
      %1868 = vmatpush.msra.mxu0 0.0
      %1869 = vmatpush.msra.mxu0 0.0
      %1870 = vmatpush.msra.mxu0 0.0
      %1871 = vmatpush.msra.mxu0 0.0
      %1872 = vmatpush.msra.mxu0 %v1860
      %1873 = vmatpush.msra.mxu0 %v1858
      %1874 = vmatpush.msra.mxu0 %v1856
      %1875 = vmatpush.msra.mxu0 %v1854
      %1876 = vmatpush.msra.mxu0 %v1852
      %1877 = vmatpush.msra.mxu0 %v1850
      %1878 = vmatpush.msra.mxu0 %v1848
      %1879 = vmatpush.msra.mxu0 %v1846
      %1880 = vmatmul.f32.gmra.mxu0 %v1862
      %v1881 = vpop.f32.mrf.mxu0
      %v1882 = vadd.f32 0.0, %v1881
      %1883 = vdwg.mxu0
      %v1884 = vlog2.pop %v1882
      %v1885 = vmul.f32 %v1884, 0.6931472
      %v1886 = vadd.f32 %v1836, %v1885
      %v1887 = vmul.f32 %v1886, -0.0025
      %v1888 = vmul.f32 %v702, 400.0
      %v1889 = vmul.f32 %v703, 400.0
      %v1890 = vmul.f32 %v704, 400.0
      %v1891 = vmul.f32 %v705, 400.0
      %v1892 = vmul.f32 %v706, 400.0
      %v1893 = vmul.f32 %v707, 400.0
      %v1894 = vmul.f32 %v708, 400.0
      %v1895 = vmul.f32 %v709, 400.0
      %v1896 = vmul.f32 %v1161, 400.0
      %v1897 = vadd.f32 %v272, %v1896
      %v1898 = vperm.slane %v1897, 0
      %v1899 = vsub.f32 %v1898, %v1888
      %v1900 = vsub.f32 %v1898, %v1889
      %v1901 = vsub.f32 %v1898, %v1890
      %v1902 = vsub.f32 %v1898, %v1891
      %v1903 = vsub.f32 %v1898, %v1892
      %v1904 = vsub.f32 %v1898, %v1893
      %v1905 = vsub.f32 %v1898, %v1894
      %v1906 = vsub.f32 %v1898, %v1895
      %v1907 = vsel %vm394, %v1899, -inf
      %1908 = vmax.xlane.f32.xlu0 %v1907
      %v1909 = vpop.xlane.xlu0 %1908
      %v1910 = vsel %vm394, %v1900, -inf
      %1911 = vmax.xlane.f32.xlu0 %v1910
      %v1912 = vpop.xlane.xlu0 %1911
      %v1913 = vsel %vm394, %v1901, -inf
      %1914 = vmax.xlane.f32.xlu0 %v1913
      %v1915 = vpop.xlane.xlu0 %1914
      %v1916 = vsel %vm394, %v1902, -inf
      %1917 = vmax.xlane.f32.xlu0 %v1916
      %v1918 = vpop.xlane.xlu0 %1917
      %v1919 = vsel %vm394, %v1903, -inf
      %1920 = vmax.xlane.f32.xlu0 %v1919
      %v1921 = vpop.xlane.xlu0 %1920
      %v1922 = vsel %vm394, %v1904, -inf
      %1923 = vmax.xlane.f32.xlu0 %v1922
      %v1924 = vpop.xlane.xlu0 %1923
      %v1925 = vsel %vm394, %v1905, -inf
      %1926 = vmax.xlane.f32.xlu0 %v1925
      %v1927 = vpop.xlane.xlu0 %1926
      %v1928 = vsel %vm394, %v1906, -inf
      %1929 = vmax.xlane.f32.xlu0 %v1928
      %v1930 = vpop.xlane.xlu0 %1929
      %v1931 = vsub.f32 %v1899, %v1909
      %v1932 = vsub.f32 %v1900, %v1912
      %v1933 = vsub.f32 %v1901, %v1915
      %v1934 = vsub.f32 %v1902, %v1918
      %v1935 = vsub.f32 %v1903, %v1921
      %v1936 = vsub.f32 %v1904, %v1924
      %v1937 = vsub.f32 %v1905, %v1927
      %v1938 = vsub.f32 %v1906, %v1930
      %v1939 = vmul.f32 %v1931, 1.442695
      %v1940 = vpow.pop %v1939
      %v1941 = vmul.f32 %v1932, 1.442695
      %v1942 = vpow.pop %v1941
      %v1943 = vmul.f32 %v1933, 1.442695
      %v1944 = vpow.pop %v1943
      %v1945 = vmul.f32 %v1934, 1.442695
      %v1946 = vpow.pop %v1945
      %v1947 = vmul.f32 %v1935, 1.442695
      %v1948 = vpow.pop %v1947
      %v1949 = vmul.f32 %v1936, 1.442695
      %v1950 = vpow.pop %v1949
      %v1951 = vmul.f32 %v1937, 1.442695
      %v1952 = vpow.pop %v1951
      %v1953 = vmul.f32 %v1938, 1.442695
      %v1954 = vpow.pop %v1953
      %v1956 = vsel %vm394, %v1940, 0
      %v1959 = vsel %vm394, %v1942, 0
      %v1962 = vsel %vm394, %v1944, 0
      %v1965 = vsel %vm394, %v1946, 0
      %v1968 = vsel %vm394, %v1948, 0
      %v1971 = vsel %vm394, %v1950, 0
      %v1974 = vsel %vm394, %v1952, 0
      %v1977 = vsel %vm394, %v1954, 0
      %1979 = vmatpush.msra.mxu0 0.0
      %1980 = vmatpush.msra.mxu0 0.0
      %1981 = vmatpush.msra.mxu0 0.0
      %1982 = vmatpush.msra.mxu0 0.0
      %1983 = vmatpush.msra.mxu0 0.0
      %1984 = vmatpush.msra.mxu0 0.0
      %1985 = vmatpush.msra.mxu0 0.0
      %1986 = vmatpush.msra.mxu0 0.0
      %1987 = vmatpush.msra.mxu0 1.0
      %1988 = vmatpush.msra.mxu0 1.0
      %1989 = vmatpush.msra.mxu0 1.0
      %1990 = vmatpush.msra.mxu0 1.0
      %1991 = vmatpush.msra.mxu0 1.0
      %1992 = vmatpush.msra.mxu0 1.0
      %1993 = vmatpush.msra.mxu0 1.0
      %1994 = vmatpush.msra.mxu0 1.0
      %1995 = vmatmul.f32.gmra.mxu0 %v1956
      %v1996 = vpop.f32.mrf.mxu0
      %v1997 = vadd.f32 0.0, %v1996
      %1998 = vmatmul.f32.gmra.mxu0 %v1959
      %v1999 = vpop.f32.mrf.mxu0
      %v2000 = vadd.f32 0.0, %v1999
      %2001 = vmatmul.f32.gmra.mxu0 %v1962
      %v2002 = vpop.f32.mrf.mxu0
      %v2003 = vadd.f32 0.0, %v2002
      %2004 = vmatmul.f32.gmra.mxu0 %v1965
      %v2005 = vpop.f32.mrf.mxu0
      %v2006 = vadd.f32 0.0, %v2005
      %2007 = vmatmul.f32.gmra.mxu0 %v1968
      %v2008 = vpop.f32.mrf.mxu0
      %v2009 = vadd.f32 0.0, %v2008
      %2010 = vmatmul.f32.gmra.mxu0 %v1971
      %v2011 = vpop.f32.mrf.mxu0
      %v2012 = vadd.f32 0.0, %v2011
      %2013 = vmatmul.f32.gmra.mxu0 %v1974
      %v2014 = vpop.f32.mrf.mxu0
      %v2015 = vadd.f32 0.0, %v2014
      %2016 = vmatmul.f32.gmra.mxu0 %v1977
      %v2017 = vpop.f32.mrf.mxu0
      %v2018 = vadd.f32 0.0, %v2017
      %2019 = vdwg.mxu0
      %v2020 = vlog2.pop %v1997
      %v2021 = vmul.f32 %v2020, 0.6931472
      %v2022 = vlog2.pop %v2000
      %v2023 = vmul.f32 %v2022, 0.6931472
      %v2024 = vlog2.pop %v2003
      %v2025 = vmul.f32 %v2024, 0.6931472
      %v2026 = vlog2.pop %v2006
      %v2027 = vmul.f32 %v2026, 0.6931472
      %v2028 = vlog2.pop %v2009
      %v2029 = vmul.f32 %v2028, 0.6931472
      %v2030 = vlog2.pop %v2012
      %v2031 = vmul.f32 %v2030, 0.6931472
      %v2032 = vlog2.pop %v2015
      %v2033 = vmul.f32 %v2032, 0.6931472
      %v2034 = vlog2.pop %v2018
      %v2035 = vmul.f32 %v2034, 0.6931472
      %v2036 = vadd.f32 %v1909, %v2021
      %v2037 = vadd.f32 %v1912, %v2023
      %v2038 = vadd.f32 %v1915, %v2025
      %v2039 = vadd.f32 %v1918, %v2027
      %v2040 = vadd.f32 %v1921, %v2029
      %v2041 = vadd.f32 %v1924, %v2031
      %v2042 = vadd.f32 %v1927, %v2033
      %v2043 = vadd.f32 %v1930, %v2035
      %v2044 = vmul.f32 %v2036, -0.0025
      %v2045 = vmul.f32 %v2037, -0.0025
      %v2046 = vmul.f32 %v2038, -0.0025
      %v2047 = vmul.f32 %v2039, -0.0025
      %v2048 = vmul.f32 %v2040, -0.0025
      %v2049 = vmul.f32 %v2041, -0.0025
      %v2050 = vmul.f32 %v2042, -0.0025
      %v2051 = vmul.f32 %v2043, -0.0025
      %v2052 = vmul.f32 %v734, 400.0
      %v2053 = vmul.f32 %v735, 400.0
      %v2054 = vmul.f32 %v736, 400.0
      %v2055 = vmul.f32 %v737, 400.0
      %v2056 = vmul.f32 %v738, 400.0
      %v2057 = vmul.f32 %v739, 400.0
      %v2058 = vmul.f32 %v740, 400.0
      %v2059 = vmul.f32 %v741, 400.0
      %v2060 = vmul.f32 %v1326, 400.0
      %v2061 = vmul.f32 %v1327, 400.0
      %v2062 = vmul.f32 %v1328, 400.0
      %v2063 = vmul.f32 %v1329, 400.0
      %v2064 = vmul.f32 %v1330, 400.0
      %v2065 = vmul.f32 %v1331, 400.0
      %v2066 = vmul.f32 %v1332, 400.0
      %v2067 = vmul.f32 %v1333, 400.0
      %v2068 = vadd.f32 %v263, %v2060
      %v2069 = vadd.f32 %v264, %v2061
      %v2070 = vadd.f32 %v265, %v2062
      %v2071 = vadd.f32 %v266, %v2063
      %v2072 = vadd.f32 %v267, %v2064
      %v2073 = vadd.f32 %v268, %v2065
      %v2074 = vadd.f32 %v269, %v2066
      %v2075 = vadd.f32 %v270, %v2067
      %2077 = vset.pattern.permute.xlu0 0
      %2078 = vperm.xlu0 %2077, %v2068
      %v2079 = vpop.permute.xlu0 %2078
      %2082 = vset.pattern.permute.xlu0 0
      %2083 = vperm.xlu0 %2082, %v2069
      %v2084 = vpop.permute.xlu0 %2083
      %2087 = vset.pattern.permute.xlu0 0
      %2088 = vperm.xlu0 %2087, %v2070
      %v2089 = vpop.permute.xlu0 %2088
      %2092 = vset.pattern.permute.xlu0 0
      %2093 = vperm.xlu0 %2092, %v2071
      %v2094 = vpop.permute.xlu0 %2093
      %2097 = vset.pattern.permute.xlu0 0
      %2098 = vperm.xlu0 %2097, %v2072
      %v2099 = vpop.permute.xlu0 %2098
      %2102 = vset.pattern.permute.xlu0 0
      %2103 = vperm.xlu0 %2102, %v2073
      %v2104 = vpop.permute.xlu0 %2103
      %2107 = vset.pattern.permute.xlu0 0
      %2108 = vperm.xlu0 %2107, %v2074
      %v2109 = vpop.permute.xlu0 %2108
      %2112 = vset.pattern.permute.xlu0 0
      %2113 = vperm.xlu0 %2112, %v2075
      %v2114 = vpop.permute.xlu0 %2113
      %v2116 = vsub.f32 %v2079, %v2052
      %v2117 = vsub.f32 %v2084, %v2053
      %v2118 = vsub.f32 %v2089, %v2054
      %v2119 = vsub.f32 %v2094, %v2055
      %v2120 = vsub.f32 %v2099, %v2056
      %v2121 = vsub.f32 %v2104, %v2057
      %v2122 = vsub.f32 %v2109, %v2058
      %v2123 = vsub.f32 %v2114, %v2059
      %v2124 = vsel %vm394, %v2116, -inf
      %v2125 = vsel %vm394, %v2117, -inf
      %v2126 = vsel %vm394, %v2118, -inf
      %v2127 = vsel %vm394, %v2119, -inf
      %v2128 = vsel %vm394, %v2120, -inf
      %v2129 = vmax.f32 %v2124, %v2128
      %v2130 = vsel %vm394, %v2121, -inf
      %v2131 = vmax.f32 %v2125, %v2130
      %v2132 = vsel %vm394, %v2122, -inf
      %v2133 = vmax.f32 %v2126, %v2132
      %v2134 = vsel %vm394, %v2123, -inf
      %v2135 = vmax.f32 %v2127, %v2134
      %v2136 = vmax.f32 %v2129, %v2131
      %v2137 = vmax.f32 %v2133, %v2135
      %v2138 = vmax.f32 %v2136, %v2137
      %v2139 = vrot.slane %v2138, 4
      %v2140 = vmax.f32 %v2138, %v2139
      %v2141 = vrot.slane %v2140, 2
      %v2142 = vmax.f32 %v2140, %v2141
      %v2143 = vrot.slane %v2142, 1
      %v2144 = vmax.f32 %v2142, %v2143
      %v2145 = vsub.f32 %v2116, %v2144
      %v2146 = vsub.f32 %v2117, %v2144
      %v2147 = vsub.f32 %v2118, %v2144
      %v2148 = vsub.f32 %v2119, %v2144
      %v2149 = vsub.f32 %v2120, %v2144
      %v2150 = vsub.f32 %v2121, %v2144
      %v2151 = vsub.f32 %v2122, %v2144
      %v2152 = vsub.f32 %v2123, %v2144
      %v2153 = vmul.f32 %v2145, 1.442695
      %v2154 = vpow.pop %v2153
      %v2155 = vmul.f32 %v2146, 1.442695
      %v2156 = vpow.pop %v2155
      %v2157 = vmul.f32 %v2147, 1.442695
      %v2158 = vpow.pop %v2157
      %v2159 = vmul.f32 %v2148, 1.442695
      %v2160 = vpow.pop %v2159
      %v2161 = vmul.f32 %v2149, 1.442695
      %v2162 = vpow.pop %v2161
      %v2163 = vmul.f32 %v2150, 1.442695
      %v2164 = vpow.pop %v2163
      %v2165 = vmul.f32 %v2151, 1.442695
      %v2166 = vpow.pop %v2165
      %v2167 = vmul.f32 %v2152, 1.442695
      %v2168 = vpow.pop %v2167
      %2169 = vmatpush.msra.mxu0 0.0
      %2170 = vmatpush.msra.mxu0 0.0
      %2171 = vmatpush.msra.mxu0 0.0
      %2172 = vmatpush.msra.mxu0 0.0
      %2173 = vmatpush.msra.mxu0 0.0
      %2174 = vmatpush.msra.mxu0 0.0
      %2175 = vmatpush.msra.mxu0 0.0
      %2176 = vmatpush.msra.mxu0 0.0
      %2177 = vmatpush.msra.mxu0 %v2168
      %2178 = vmatpush.msra.mxu0 %v2166
      %2179 = vmatpush.msra.mxu0 %v2164
      %2180 = vmatpush.msra.mxu0 %v2162
      %2181 = vmatpush.msra.mxu0 %v2160
      %2182 = vmatpush.msra.mxu0 %v2158
      %2183 = vmatpush.msra.mxu0 %v2156
      %2184 = vmatpush.msra.mxu0 %v2154
      %2185 = vmatmul.f32.gmra.mxu0 %v1862
      %v2186 = vpop.f32.mrf.mxu0
      %v2187 = vadd.f32 0.0, %v2186
      %2188 = vdwg.mxu0
      %v2189 = vlog2.pop %v2187
      %v2190 = vmul.f32 %v2189, 0.6931472
      %v2191 = vadd.f32 %v2144, %v2190
      %v2192 = vmul.f32 %v2191, -0.0025
      %v2193 = vmul.f32 %v263, 1.442695
      %v2194 = vpow.pop %v2193
      %v2195 = vmul.f32 %v264, 1.442695
      %v2196 = vpow.pop %v2195
      %v2197 = vmul.f32 %v265, 1.442695
      %v2198 = vpow.pop %v2197
      %v2199 = vmul.f32 %v266, 1.442695
      %v2200 = vpow.pop %v2199
      %v2201 = vmul.f32 %v267, 1.442695
      %v2202 = vpow.pop %v2201
      %v2203 = vmul.f32 %v268, 1.442695
      %v2204 = vpow.pop %v2203
      %v2205 = vmul.f32 %v269, 1.442695
      %v2206 = vpow.pop %v2205
      %v2207 = vmul.f32 %v270, 1.442695
      %v2208 = vpow.pop %v2207
      %v2209 = vmul.f32 %v272, 1.442695
      %v2210 = vpow.pop %v2209
      %v2211 = vsub.f32 %v1744, %v2044
      %v2212 = vsub.f32 %v1745, %v2045
      %v2213 = vsub.f32 %v1746, %v2046
      %v2214 = vsub.f32 %v1747, %v2047
      %v2215 = vsub.f32 %v1748, %v2048
      %v2216 = vsub.f32 %v1749, %v2049
      %v2217 = vsub.f32 %v1750, %v2050
      %v2218 = vsub.f32 %v1751, %v2051
      %v2219 = vmul.f32 %v2194, %v2211
      %v2220 = vmul.f32 %v2196, %v2212
      %v2221 = vmul.f32 %v2198, %v2213
      %v2222 = vmul.f32 %v2200, %v2214
      %v2223 = vmul.f32 %v2202, %v2215
      %v2224 = vmul.f32 %v2204, %v2216
      %v2225 = vmul.f32 %v2206, %v2217
      %v2226 = vmul.f32 %v2208, %v2218
      %vm2227 = vcmask 7168
      %v2228 = vsel %vm2227, %v2219, 0.0
      %v2229 = vsel %vm2227, %v2220, 0.0
      %v2230 = vadd.f32 %v2228, %v2229
      %v2231 = vsel %vm2227, %v2221, 0.0
      %v2232 = vadd.f32 %v2230, %v2231
      %v2233 = vsel %vm2227, %v2222, 0.0
      %v2234 = vadd.f32 %v2232, %v2233
      %v2235 = vsel %vm2227, %v2223, 0.0
      %v2236 = vadd.f32 %v2234, %v2235
      %v2237 = vsel %vm2227, %v2224, 0.0
      %v2238 = vadd.f32 %v2236, %v2237
      %v2239 = vsel %vm2227, %v2225, 0.0
      %v2240 = vadd.f32 %v2238, %v2239
      %v2241 = vsel %vm2227, %v2226, 0.0
      %v2242 = vadd.f32 %v2240, %v2241
      %2243 = vadd.xlane.f32.xlu0 %v2242
      %v2244 = vpop.xlane.xlu0 %2243
      %v2245 = vrot.slane %v2244, 4
      %v2246 = vadd.f32 %v2244, %v2245
      %v2247 = vrot.slane %v2246, 2
      %v2248 = vadd.f32 %v2246, %v2247
      %v2249 = vrot.slane %v2248, 1
      %v2250 = vadd.f32 %v2248, %v2249
      %s2251 = vtos %v2250
      %v2252 = vstv %s2251
      %v2253 = vsub.f32 %v1887, %v2192
      %v2254 = vmul.f32 %v2210, %v2253
      %vm2255 = vcmask 516096
      %v2256 = vsel %vm2255, %v2254, 0.0
      %2257 = vadd.xlane.f32.xlu0 %v2256
      %v2258 = vpop.xlane.xlu0 %2257
      %v2259 = vrot.slane %v2258, 4
      %v2260 = vadd.f32 %v2258, %v2259
      %v2261 = vrot.slane %v2260, 2
      %v2262 = vadd.f32 %v2260, %v2261
      %v2263 = vrot.slane %v2262, 1
      %v2264 = vadd.f32 %v2262, %v2263
      %s2265 = vtos %v2264
      %v2266 = vstv %s2265
      %v2267 = vadd.f32 %v2252, %v2266
      %vm2268 = vcmask 0
      %2269 = vst.msk [vmem:[%s218] sm:$0x1] %vm2268, %v2267
      %p2270 = scmp.lt.s32.totalorder %s26, 6
      %s2271 = scalar_select %p2270, %s26, 6
      %p2272 = scmp.lt.s32.totalorder %s27, 1
      %s2273 = scalar_select %p2272, %s27, 1
      %s2274 = smul.addr %s2271, 2
      %s2275 = sadd.s32 %s2273, %s2274
      %s2276 = scalar_lea.vmem %s3, %s2275
      // Predicated region
      $region50: #{part_wise_emd.4} parent=27 // pred_check
        %p2277 = pneg %p110
      $region51: #{part_wise_emd.4} parent=27 // pred_check_branch
        %2279 = sbr.rel (%p2277) target = $region53
      $region52: #{part_wise_emd.4} parent=27 // pred_region
        _
      $region53: #{part_wise_emd.4} parent=27 // pred_fallthru
        _
    $region28: #{part_wise_emd.4} parent=5 // pred_fallthru
      _
    %p2280 = scmp.le.s32.totalorder 2, %s17
    // Predicated region
    $region54: #{part_wise_emd.4} parent=5 // pred_check
      %p2281 = pneg %p2280
    $region55: #{part_wise_emd.4} parent=5 // pred_check_branch
      %2283 = sbr.rel (%p2281) target = $region57
    $region56: #{part_wise_emd.4} parent=5 // pred_region
      %s2284 = ssub.s32 %s17, 2
      // Predicated region
      $region58: #{part_wise_emd.4} parent=56 // pred_check
        %p2285 = pneg %p116
      $region59: #{part_wise_emd.4} parent=56 // pred_check_branch
        %2287 = sbr.rel (%p2285) target = $region61
      $region60: #{part_wise_emd.4} parent=56 // pred_region
        %p2288 = scmp.lt.s32.totalorder %s28, 6
        %s2289 = scalar_select %p2288, %s28, 6
        %p2290 = scmp.lt.s32.totalorder %s29, 1
        %s2291 = scalar_select %p2290, %s29, 1
        %s2292 = smul.addr %s2289, 2
        %s2293 = sadd.s32 %s2291, %s2292
        %s2294 = scalar_lea.vmem %s3, %s2293
      $region61: #{part_wise_emd.4} parent=56 // pred_fallthru
        _
    $region57: #{part_wise_emd.4} parent=5 // pred_fallthru
      _
  $region6: #{part_wise_emd.4} parent=0 // loop_footer
    %s21 = sadd.s32 1, %s17
  $region7: #{part_wise_emd.4} parent=0 // loop_footer_branch
    %16 = sbr.rel target = $region3
  $region8: #{part_wise_emd.4} parent=0 // loop_exit
    _

// kernel: part_wise_emd.5
$region0: #{part_wise_emd.5}
  #allocation0 [shape = 'u32[]', space=smem, size = 0x4, offset = 0x4, fixed_abs, tag = 'smem constant byte address 0x4 - core index']
  #allocation1 [shape = 'u32[72,128]{1,0:T(1,128)}', space=vmem, size = 0x9000, scoped, tag = 'internal scratch']
  #allocation2 [shape = 's32[1]{0}', space=sflag, size = 0x4, scoped, tag = 'scoped memory for part_wise_emd.5']
  #allocation3 [shape = 's32[1]{0:T(128)S(6)}', space=smem, size = 0x200, scoped, tag = 'prefetched SMEM operand 0']
  %s0 = inlined_call_operand.<no memory space> [shape: s32[1], index: 0, kind: input, shape index: {}]
  %s1 = inlined_call_operand.vmem [shape: f32[1,2,96,8], index: 1, kind: input, shape index: {}]
  %s2 = inlined_call_operand.vmem [shape: f32[1,2,96,8], index: 2, kind: input, shape index: {}]
  %s3 = inlined_call_operand.vmem [shape: f32[1,2,1,1], index: 3, kind: output, shape index: {}]
  %s4 = sld [smem:[#allocation0]]
  $region62: #{part_wise_emd.5} parent=0
    _
  %s6 = ssub.s32 1, %s4
  %s7 = scalar_select 0, %s6, %s4
  %8 = sst [smem:[#allocation3]] %s0
  loop: start=0, step=1, limit=4
  $region2: #{part_wise_emd.5} parent=0 // loop_pre_header
    _
  $region3: #{part_wise_emd.5} parent=0 // loop_header
    %s10 = sphi 0, %s14
    %p11 = scmp.ge.s32.totalorder %s10, 4
    %s17 = sphi 0, %s29
    %s18 = sphi 0, %s25
    %s19 = sphi 0, %s17
    %s20 = sphi 0, %s18
    %s21 = sphi 0, %s19
    %s22 = sphi 0, %s20
    %s34 = sphi 0, %s36
    %s37 = sphi 0, %s34
    %s38 = sphi 0, %s37
    %s54 = sphi 0, %s38
    %s62 = sphi 0, %s64
    %s65 = sphi 0, %s62
    %s66 = sphi 0, %s65
    %s82 = sphi 0, %s66
    %s90 = sphi 0, %s92
    %s93 = sphi 0, %s90
    %s94 = sphi 0, %s93
    %s110 = sphi 0, %s94
  $region4: #{part_wise_emd.5} parent=0 // loop_header_branch
    %13 = sbr.rel (%p11) target = $region8
  $region5: #{part_wise_emd.5} parent=0 // loop_body
    %s15 = ssub.s32 %s10, 1
    %s16 = ssub.s32 %s10, 2
    %s23 = sadd.s32 1, %s18
    %p24 = scmp.ge.s32.totalorder %s23, 2
    %s25 = scalar_select %p24, 0, %s23
    %s26 = sadd.s32 1, %s17
    %s27 = scalar_select %p24, %s26, %s17
    %p28 = scmp.ge.s32.totalorder %s27, 1
    %s29 = scalar_select %p28, 0, %s27
    %s30 = ssub.s32 %s17, %s29
    %s31 = ssub.s32 %s18, %s25
    %s32 = sor.u32 %s30, %s31
    %p33 = scmp.eq.s32.totalorder %s32, 0
    %s35 = sadd.s32 %s34, 1
    %s36 = scalar_select %p33, %s34, %s35
    %p39 = pneg %p33
    %p40 = scmp.eq.s32.totalorder %s10, 1
    %p41 = por %p39, %p40
    %p42 = scmp.ne.s32.totalorder %s34, %s37
    %p43 = scmp.eq.s32.totalorder %s10, 0
    %p44 = por %p42, %p43
    %p45 = scmp.ne.s32.totalorder %s34, %s37
    %p46 = scmp.eq.s32.totalorder %s15, 1
    %p47 = por %p45, %p46
    %p48 = scmp.ne.s32.totalorder %s37, %s38
    %p49 = scmp.eq.s32.totalorder %s15, 0
    %p50 = por %p48, %p49
    %p51 = scmp.ne.s32.totalorder %s37, %s38
    %p52 = scmp.eq.s32.totalorder %s16, 1
    %p53 = por %p51, %p52
    %p55 = scmp.ne.s32.totalorder %s38, %s54
    %p56 = scmp.eq.s32.totalorder %s16, 0
    %p57 = por %p55, %p56
    %s58 = ssub.s32 %s17, %s29
    %s59 = ssub.s32 %s18, %s25
    %s60 = sor.u32 %s58, %s59
    %p61 = scmp.eq.s32.totalorder %s60, 0
    %s63 = sadd.s32 %s62, 1
    %s64 = scalar_select %p61, %s62, %s63
    %p67 = pneg %p61
    %p68 = scmp.eq.s32.totalorder %s10, 1
    %p69 = por %p67, %p68
    %p70 = scmp.ne.s32.totalorder %s62, %s65
    %p71 = scmp.eq.s32.totalorder %s10, 0
    %p72 = por %p70, %p71
    %p73 = scmp.ne.s32.totalorder %s62, %s65
    %p74 = scmp.eq.s32.totalorder %s15, 1
    %p75 = por %p73, %p74
    %p76 = scmp.ne.s32.totalorder %s65, %s66
    %p77 = scmp.eq.s32.totalorder %s15, 0
    %p78 = por %p76, %p77
    %p79 = scmp.ne.s32.totalorder %s65, %s66
    %p80 = scmp.eq.s32.totalorder %s16, 1
    %p81 = por %p79, %p80
    %p83 = scmp.ne.s32.totalorder %s66, %s82
    %p84 = scmp.eq.s32.totalorder %s16, 0
    %p85 = por %p83, %p84
    %s86 = ssub.s32 %s17, %s29
    %s87 = ssub.s32 %s18, %s25
    %s88 = sor.u32 %s86, %s87
    %p89 = scmp.eq.s32.totalorder %s88, 0
    %s91 = sadd.s32 %s90, 1
    %s92 = scalar_select %p89, %s90, %s91
    %p95 = pneg %p89
    %p96 = scmp.eq.s32.totalorder %s10, 1
    %p97 = por %p95, %p96
    %p98 = scmp.ne.s32.totalorder %s90, %s93
    %p99 = scmp.eq.s32.totalorder %s10, 0
    %p100 = por %p98, %p99
    %p101 = scmp.ne.s32.totalorder %s90, %s93
    %p102 = scmp.eq.s32.totalorder %s15, 1
    %p103 = por %p101, %p102
    %p104 = scmp.ne.s32.totalorder %s93, %s94
    %p105 = scmp.eq.s32.totalorder %s15, 0
    %p106 = por %p104, %p105
    %p107 = scmp.ne.s32.totalorder %s93, %s94
    %p108 = scmp.eq.s32.totalorder %s16, 1
    %p109 = por %p107, %p108
    %p111 = scmp.ne.s32.totalorder %s94, %s110
    %p112 = scmp.eq.s32.totalorder %s16, 0
    %p113 = por %p111, %p112
    %p114 = scmp.le.s32.totalorder 1, %s10
    %p115 = scmp.lt.s32.totalorder %s10, 3
    %p116 = pnand %p114, %p115
    %p117 = pneg %p116
    // Predicated region
    $region9: #{part_wise_emd.5} parent=5 // pred_check
      _
    $region10: #{part_wise_emd.5} parent=5 // pred_check_branch
      %119 = sbr.rel (%p116) target = $region12
    $region11: #{part_wise_emd.5} parent=5 // pred_region
      %s120 = ssub.s32 %s10, 1
    $region12: #{part_wise_emd.5} parent=5 // pred_fallthru
      _
    %p121 = scmp.lt.s32.totalorder %s10, 2
    // Predicated region
    $region13: #{part_wise_emd.5} parent=5 // pred_check
      %p122 = pneg %p121
    $region14: #{part_wise_emd.5} parent=5 // pred_check_branch
      %124 = sbr.rel (%p122) target = $region16
    $region15: #{part_wise_emd.5} parent=5 // pred_region
      // Predicated region
      $region17: #{part_wise_emd.5} parent=15 // pred_check
        %p125 = pneg %p44
      $region18: #{part_wise_emd.5} parent=15 // pred_check_branch
        %127 = sbr.rel (%p125) target = $region20
      $region19: #{part_wise_emd.5} parent=15 // pred_region
        %p128 = scmp.lt.s32.totalorder %s17, 0
        %s129 = scalar_select %p128, %s17, 0
        %p130 = scmp.lt.s32.totalorder %s18, 1
        %s131 = scalar_select %p130, %s18, 1
        %s132 = smul.addr %s131, 12
        %s133 = smul.addr %s129, 24
        %s134 = sadd.s32 %s132, %s133
        %s135 = smul.addr %s134, 8
        %s136 = scalar_lea.vmem %s1, %s135
      $region20: #{part_wise_emd.5} parent=15 // pred_fallthru
        _
      // Predicated region
      $region21: #{part_wise_emd.5} parent=15 // pred_check
        %p137 = pneg %p72
      $region22: #{part_wise_emd.5} parent=15 // pred_check_branch
        %139 = sbr.rel (%p137) target = $region24
      $region23: #{part_wise_emd.5} parent=15 // pred_region
        %p140 = scmp.lt.s32.totalorder %s17, 0
        %s141 = scalar_select %p140, %s17, 0
        %p142 = scmp.lt.s32.totalorder %s18, 1
        %s143 = scalar_select %p142, %s18, 1
        %s144 = smul.addr %s143, 12
        %s145 = smul.addr %s141, 24
        %s146 = sadd.s32 %s144, %s145
        %s147 = smul.addr %s146, 8
        %s148 = scalar_lea.vmem %s2, %s147
      $region24: #{part_wise_emd.5} parent=15 // pred_fallthru
        _
    $region16: #{part_wise_emd.5} parent=5 // pred_fallthru
      _
    %p149 = scmp.le.s32.totalorder 1, %s10
    %p150 = scmp.lt.s32.totalorder %s10, 3
    %p151 = pnand %p149, %p150
    %p152 = pneg %p151
    // Predicated region
    $region25: #{part_wise_emd.5} parent=5 // pred_check
      _
    $region26: #{part_wise_emd.5} parent=5 // pred_check_branch
      %154 = sbr.rel (%p151) target = $region28
    $region27: #{part_wise_emd.5} parent=5 // pred_region
      %s155 = ssub.s32 %s10, 1
      %p156 = scmp.lt.s32.totalorder %s19, 0
      %s157 = scalar_select %p156, %s19, 0
      %p158 = scmp.lt.s32.totalorder %s20, 1
      %s159 = scalar_select %p158, %s20, 1
      %s160 = smul.addr %s159, 12
      %s161 = smul.addr %s157, 24
      %s162 = sadd.s32 %s160, %s161
      %s163 = smul.addr %s162, 8
      %s164 = scalar_lea.vmem %s1, %s163
      %p165 = pneg %p50
      %p166 = pneg %p47
      %p167 = scmp.lt.s32.totalorder %s19, 0
      %s168 = scalar_select %p167, %s19, 0
      %p169 = scmp.lt.s32.totalorder %s20, 1
      %s170 = scalar_select %p169, %s20, 1
      %s171 = smul.addr %s170, 12
      %s172 = smul.addr %s168, 24
      %s173 = sadd.s32 %s171, %s172
      %s174 = smul.addr %s173, 8
      %s175 = scalar_lea.vmem %s2, %s174
      %p176 = pneg %p78
      %p177 = pneg %p75
      %p178 = pneg %p106
      %p179 = pneg %p103
      %p180 = scmp.lt.s32.totalorder %s19, 0
      %s181 = scalar_select %p180, %s19, 0
      %p182 = scmp.lt.s32.totalorder %s20, 1
      %s183 = scalar_select %p182, %s20, 1
      %s184 = smul.addr %s181, 2
      %s185 = sadd.s32 %s183, %s184
      %s186 = scalar_lea.vmem %s3, %s185
      %p187 = scmp.lt.s32.totalorder %s19, 0
      %s188 = scalar_select %p187, %s19, 0
      %p189 = scmp.lt.s32.totalorder %s20, 1
      %s190 = scalar_select %p189, %s20, 1
      %s191 = smul.addr %s190, 12
      %s192 = smul.addr %s188, 24
      %s193 = sadd.s32 %s191, %s192
      %s194 = smul.addr %s193, 8
      %s195 = scalar_lea.vmem %s1, %s194
      %p196 = scmp.lt.s32.totalorder %s19, 0
      %s197 = scalar_select %p196, %s19, 0
      %p198 = scmp.lt.s32.totalorder %s20, 1
      %s199 = scalar_select %p198, %s20, 1
      %s200 = smul.addr %s199, 12
      %s201 = smul.addr %s197, 24
      %s202 = sadd.s32 %s200, %s201
      %s203 = smul.addr %s202, 8
      %s204 = scalar_lea.vmem %s2, %s203
      %p205 = scmp.lt.s32.totalorder %s19, 0
      %s206 = scalar_select %p205, %s19, 0
      %p207 = scmp.lt.s32.totalorder %s20, 1
      %s208 = scalar_select %p207, %s20, 1
      %s209 = smul.addr %s206, 2
      %s210 = sadd.s32 %s208, %s209
      %s211 = scalar_lea.vmem %s3, %s210
      %s212 = sld [smem:[#allocation3 + %s19]]
      %v213 = vld [vmem:[%s195] sm:$0xff]
      %v214 = vld [vmem:[%s195 + $0x8] sm:$0xff]
      %v215 = vld [vmem:[%s195 + $0x10] sm:$0xff]
      %v216 = vld [vmem:[%s195 + $0x18] sm:$0xff]
      %v217 = vld [vmem:[%s195 + $0x20] sm:$0xff]
      %v218 = vld [vmem:[%s195 + $0x28] sm:$0xff]
      %v219 = vld [vmem:[%s195 + $0x30] sm:$0xff]
      %v220 = vld [vmem:[%s195 + $0x38] sm:$0xff]
      %v221 = vld [vmem:[%s195 + $0x40] sm:$0xff]
      %v222 = vld [vmem:[%s195 + $0x48] sm:$0xff]
      %v223 = vld [vmem:[%s195 + $0x50] sm:$0xff]
      %v224 = vld [vmem:[%s195 + $0x58] sm:$0xff]
      %v225 = vld [vmem:[%s204] sm:$0xff]
      %v226 = vld [vmem:[%s204 + $0x8] sm:$0xff]
      %v227 = vld [vmem:[%s204 + $0x10] sm:$0xff]
      %v228 = vld [vmem:[%s204 + $0x18] sm:$0xff]
      %v229 = vld [vmem:[%s204 + $0x20] sm:$0xff]
      %v230 = vld [vmem:[%s204 + $0x28] sm:$0xff]
      %v231 = vld [vmem:[%s204 + $0x30] sm:$0xff]
      %v232 = vld [vmem:[%s204 + $0x38] sm:$0xff]
      %v233 = vld [vmem:[%s204 + $0x40] sm:$0xff]
      %v234 = vld [vmem:[%s204 + $0x48] sm:$0xff]
      %v235 = vld [vmem:[%s204 + $0x50] sm:$0xff]
      %v236 = vld [vmem:[%s204 + $0x58] sm:$0xff]
      %v237 = vlaneseq
      %v238 = vshrl.u32 %v237, 7
      %v239 = vadd.s32 %v238, 8
      %v240 = vadd.s32 %v238, 16
      %v241 = vadd.s32 %v238, 24
      %v242 = vadd.s32 %v238, 32
      %v243 = vadd.s32 %v238, 40
      %v244 = vadd.s32 %v238, 48
      %v245 = vadd.s32 %v238, 56
      %v246 = vadd.s32 %v238, 64
      %v247 = vadd.s32 %v238, 72
      %v248 = vadd.s32 %v238, 80
      %v249 = vadd.s32 %v238, 88
      %v250 = vlaneseq
      %v251 = vand.u32 %v250, 127
      %s252 = scvt.s32.f32 %s212
      %v253 = vstv %s252
      %v254 = vlog2.pop %v253
      %v255 = vmul.f32 %v254, 0.6931472
      %s256 = vtos %v255
      %v257 = vstv %s212
      %vm258 = vcmp.lt.s32.totalorder %v238, %v257
      %vm259 = vcmp.lt.s32.totalorder %v239, %v257
      %vm260 = vcmp.lt.s32.totalorder %v240, %v257
      %vm261 = vcmp.lt.s32.totalorder %v241, %v257
      %vm262 = vcmp.lt.s32.totalorder %v242, %v257
      %vm263 = vcmp.lt.s32.totalorder %v243, %v257
      %vm264 = vcmp.lt.s32.totalorder %v244, %v257
      %vm265 = vcmp.lt.s32.totalorder %v245, %v257
      %vm266 = vcmp.lt.s32.totalorder %v246, %v257
      %vm267 = vcmp.lt.s32.totalorder %v247, %v257
      %vm268 = vcmp.lt.s32.totalorder %v248, %v257
      %vm269 = vcmp.lt.s32.totalorder %v249, %v257
      %s270 = ssub.f32 0.0, %s256
      %v271 = vstv %s270
      %v272 = vsel %vm258, %v271, -1e+30
      %v273 = vsel %vm259, %v271, -1e+30
      %v274 = vsel %vm260, %v271, -1e+30
      %v275 = vsel %vm261, %v271, -1e+30
      %v276 = vsel %vm262, %v271, -1e+30
      %v277 = vsel %vm263, %v271, -1e+30
      %v278 = vsel %vm264, %v271, -1e+30
      %v279 = vsel %vm265, %v271, -1e+30
      %v280 = vsel %vm266, %v271, -1e+30
      %v281 = vsel %vm267, %v271, -1e+30
      %v282 = vsel %vm268, %v271, -1e+30
      %v283 = vsel %vm269, %v271, -1e+30
      %vm284 = vcmp.lt.s32.totalorder %v251, %v257
      %v285 = vsel %vm284, %v271, -1e+30
      %vm286 = vcmp.eq.s32.totalorder %v238, %v251
      %vm287 = vcmp.eq.s32.totalorder %v239, %v251
      %vm288 = vcmp.eq.s32.totalorder %v240, %v251
      %vm289 = vcmp.eq.s32.totalorder %v241, %v251
      %vm290 = vcmp.eq.s32.totalorder %v242, %v251
      %vm291 = vcmp.eq.s32.totalorder %v243, %v251
      %vm292 = vcmp.eq.s32.totalorder %v244, %v251
      %vm293 = vcmp.eq.s32.totalorder %v245, %v251
      %vm294 = vcmp.eq.s32.totalorder %v246, %v251
      %vm295 = vcmp.eq.s32.totalorder %v247, %v251
      %vm296 = vcmp.eq.s32.totalorder %v248, %v251
      %vm297 = vcmp.eq.s32.totalorder %v249, %v251
      %v298 = vsel %vm286, 1, 0
      %v299 = vsel %vm287, 1, 0
      %v300 = vsel %vm288, 1, 0
      %v301 = vsel %vm289, 1, 0
      %v302 = vsel %vm290, 1, 0
      %v303 = vsel %vm291, 1, 0
      %v304 = vsel %vm292, 1, 0
      %v305 = vsel %vm293, 1, 0
      %v306 = vsel %vm294, 1, 0
      %v307 = vsel %vm295, 1, 0
      %v308 = vsel %vm296, 1, 0
      %v309 = vsel %vm297, 1, 0
      %v310 = vcvt.s32.f32 %v298
      %v311 = vcvt.s32.f32 %v299
      %v312 = vcvt.s32.f32 %v300
      %v313 = vcvt.s32.f32 %v301
      %v314 = vcvt.s32.f32 %v302
      %v315 = vcvt.s32.f32 %v303
      %v316 = vcvt.s32.f32 %v304
      %v317 = vcvt.s32.f32 %v305
      %v318 = vcvt.s32.f32 %v306
      %v319 = vcvt.s32.f32 %v307
      %v320 = vcvt.s32.f32 %v308
      %v321 = vcvt.s32.f32 %v309
      %v322 = vmul.f32 %v213, %v213
      %v323 = vmul.f32 %v214, %v214
      %v324 = vmul.f32 %v215, %v215
      %v325 = vmul.f32 %v216, %v216
      %v326 = vmul.f32 %v217, %v217
      %v327 = vmul.f32 %v218, %v218
      %v328 = vmul.f32 %v219, %v219
      %v329 = vmul.f32 %v220, %v220
      %v330 = vmul.f32 %v221, %v221
      %v331 = vmul.f32 %v222, %v222
      %v332 = vmul.f32 %v223, %v223
      %v333 = vmul.f32 %v224, %v224
      %vm334 = vcmask 64512
      %v335 = vsel %vm334, %v322, 0.0
      %336 = vadd.xlane.f32.xlu0 %v335
      %v337 = vpop.xlane.xlu0 %336
      %v338 = vsel %vm334, %v323, 0.0
      %339 = vadd.xlane.f32.xlu0 %v338
      %v340 = vpop.xlane.xlu0 %339
      %v341 = vsel %vm334, %v324, 0.0
      %342 = vadd.xlane.f32.xlu0 %v341
      %v343 = vpop.xlane.xlu0 %342
      %v344 = vsel %vm334, %v325, 0.0
      %345 = vadd.xlane.f32.xlu0 %v344
      %v346 = vpop.xlane.xlu0 %345
      %v347 = vsel %vm334, %v326, 0.0
      %348 = vadd.xlane.f32.xlu0 %v347
      %v349 = vpop.xlane.xlu0 %348
      %v350 = vsel %vm334, %v327, 0.0
      %351 = vadd.xlane.f32.xlu0 %v350
      %v352 = vpop.xlane.xlu0 %351
      %v353 = vsel %vm334, %v328, 0.0
      %354 = vadd.xlane.f32.xlu0 %v353
      %v355 = vpop.xlane.xlu0 %354
      %v356 = vsel %vm334, %v329, 0.0
      %357 = vadd.xlane.f32.xlu0 %v356
      %v358 = vpop.xlane.xlu0 %357
      %v359 = vsel %vm334, %v330, 0.0
      %360 = vadd.xlane.f32.xlu0 %v359
      %v361 = vpop.xlane.xlu0 %360
      %v362 = vsel %vm334, %v331, 0.0
      %363 = vadd.xlane.f32.xlu0 %v362
      %v364 = vpop.xlane.xlu0 %363
      %v365 = vsel %vm334, %v332, 0.0
      %366 = vadd.xlane.f32.xlu0 %v365
      %v367 = vpop.xlane.xlu0 %366
      %v368 = vsel %vm334, %v333, 0.0
      %369 = vadd.xlane.f32.xlu0 %v368
      %v370 = vpop.xlane.xlu0 %369
      %v371 = vmul.f32 %v225, %v225
      %v372 = vmul.f32 %v226, %v226
      %v373 = vmul.f32 %v227, %v227
      %v374 = vmul.f32 %v228, %v228
      %v375 = vmul.f32 %v229, %v229
      %v376 = vmul.f32 %v230, %v230
      %v377 = vmul.f32 %v231, %v231
      %v378 = vmul.f32 %v232, %v232
      %v379 = vmul.f32 %v233, %v233
      %v380 = vmul.f32 %v234, %v234
      %v381 = vmul.f32 %v235, %v235
      %v382 = vmul.f32 %v236, %v236
      %v383 = vsel %vm334, %v371, 0.0
      %384 = vadd.xlane.f32.xlu0 %v383
      %v385 = vpop.xlane.xlu0 %384
      %v386 = vsel %vm334, %v372, 0.0
      %387 = vadd.xlane.f32.xlu0 %v386
      %v388 = vpop.xlane.xlu0 %387
      %v389 = vsel %vm334, %v373, 0.0
      %390 = vadd.xlane.f32.xlu0 %v389
      %v391 = vpop.xlane.xlu0 %390
      %v392 = vsel %vm334, %v374, 0.0
      %393 = vadd.xlane.f32.xlu0 %v392
      %v394 = vpop.xlane.xlu0 %393
      %v395 = vsel %vm334, %v375, 0.0
      %396 = vadd.xlane.f32.xlu0 %v395
      %v397 = vpop.xlane.xlu0 %396
      %v398 = vsel %vm334, %v376, 0.0
      %399 = vadd.xlane.f32.xlu0 %v398
      %v400 = vpop.xlane.xlu0 %399
      %v401 = vsel %vm334, %v377, 0.0
      %402 = vadd.xlane.f32.xlu0 %v401
      %v403 = vpop.xlane.xlu0 %402
      %v404 = vsel %vm334, %v378, 0.0
      %405 = vadd.xlane.f32.xlu0 %v404
      %v406 = vpop.xlane.xlu0 %405
      %v407 = vsel %vm334, %v379, 0.0
      %408 = vadd.xlane.f32.xlu0 %v407
      %v409 = vpop.xlane.xlu0 %408
      %v410 = vsel %vm334, %v380, 0.0
      %411 = vadd.xlane.f32.xlu0 %v410
      %v412 = vpop.xlane.xlu0 %411
      %v413 = vsel %vm334, %v381, 0.0
      %414 = vadd.xlane.f32.xlu0 %v413
      %v415 = vpop.xlane.xlu0 %414
      %v416 = vsel %vm334, %v382, 0.0
      %417 = vadd.xlane.f32.xlu0 %v416
      %v418 = vpop.xlane.xlu0 %417
      %419 = vxpose.xlu0.b32.start [1/16] %v337, 128
      %420 = vxpose.xlu0.b32.cont [2/16] %v340, 128
      %421 = vxpose.xlu0.b32.cont [3/16] %v343, 128
      %422 = vxpose.xlu0.b32.cont [4/16] %v346, 128
      %423 = vxpose.xlu0.b32.cont [5/16] %v349, 128
      %424 = vxpose.xlu0.b32.cont [6/16] %v352, 128
      %425 = vxpose.xlu0.b32.cont [7/16] %v355, 128
      %426 = vxpose.xlu0.b32.cont [8/16] %v358, 128
      %427 = vxpose.xlu0.b32.cont [9/16] %v361, 128
      %428 = vxpose.xlu0.b32.cont [10/16] %v364, 128
      %429 = vxpose.xlu0.b32.cont [11/16] %v367, 128
      %430 = vxpose.xlu0.b32.cont [12/16] %v370, 128
      %431 = vxpose.xlu0.b32.cont [13/16] 0.0, 128
      %432 = vxpose.xlu0.b32.cont [14/16] 0.0, 128
      %433 = vxpose.xlu0.b32.cont [15/16] 0.0, 128
      %434 = vxpose.xlu0.b32.end [16/16] 0.0, 128
      %v435 = vpop.trf.xlu0
      %v436 = vpop.trf.xlu0
      %v437 = vpop.trf.xlu0
      %v438 = vpop.trf.xlu0
      %v439 = vpop.trf.xlu0
      %v440 = vpop.trf.xlu0
      %v441 = vpop.trf.xlu0
      %v442 = vpop.trf.xlu0
      %v443 = vpop.trf.xlu0
      %v444 = vpop.trf.xlu0
      %v445 = vpop.trf.xlu0
      %v446 = vpop.trf.xlu0
      %v447 = vpop.trf.xlu0
      %v448 = vpop.trf.xlu0
      %v449 = vpop.trf.xlu0
      %v450 = vpop.trf.xlu0
      %vm451 = vcmask 785408
      %v453 = vsel %vm451, %v435, 0
      %455 = vmatpush.msra.mxu0 0.0
      %456 = vmatpush.msra.mxu0 0.0
      %457 = vmatpush.msra.mxu0 0.0
      %458 = vmatpush.msra.mxu0 0.0
      %459 = vmatpush.msra.mxu0 %v321
      %460 = vmatpush.msra.mxu0 %v320
      %461 = vmatpush.msra.mxu0 %v319
      %462 = vmatpush.msra.mxu0 %v318
      %463 = vmatpush.msra.mxu0 %v317
      %464 = vmatpush.msra.mxu0 %v316
      %465 = vmatpush.msra.mxu0 %v315
      %466 = vmatpush.msra.mxu0 %v314
      %467 = vmatpush.msra.mxu0 %v313
      %468 = vmatpush.msra.mxu0 %v312
      %469 = vmatpush.msra.mxu0 %v311
      %470 = vmatpush.msra.mxu0 %v310
      %471 = vmatmul.f32.gmra.mxu0 %v453
      %v472 = vpop.f32.mrf.mxu0
      %v473 = vadd.f32 0.0, %v472
      %474 = vdwg.mxu0
      %475 = vxpose.xlu0.b32.start [1/16] %v385, 128
      %476 = vxpose.xlu0.b32.cont [2/16] %v388, 128
      %477 = vxpose.xlu0.b32.cont [3/16] %v391, 128
      %478 = vxpose.xlu0.b32.cont [4/16] %v394, 128
      %479 = vxpose.xlu0.b32.cont [5/16] %v397, 128
      %480 = vxpose.xlu0.b32.cont [6/16] %v400, 128
      %481 = vxpose.xlu0.b32.cont [7/16] %v403, 128
      %482 = vxpose.xlu0.b32.cont [8/16] %v406, 128
      %483 = vxpose.xlu0.b32.cont [9/16] %v409, 128
      %484 = vxpose.xlu0.b32.cont [10/16] %v412, 128
      %485 = vxpose.xlu0.b32.cont [11/16] %v415, 128
      %486 = vxpose.xlu0.b32.cont [12/16] %v418, 128
      %487 = vxpose.xlu0.b32.cont [13/16] 0.0, 128
      %488 = vxpose.xlu0.b32.cont [14/16] 0.0, 128
      %489 = vxpose.xlu0.b32.cont [15/16] 0.0, 128
      %490 = vxpose.xlu0.b32.end [16/16] 0.0, 128
      %v491 = vpop.trf.xlu0
      %v492 = vpop.trf.xlu0
      %v493 = vpop.trf.xlu0
      %v494 = vpop.trf.xlu0
      %v495 = vpop.trf.xlu0
      %v496 = vpop.trf.xlu0
      %v497 = vpop.trf.xlu0
      %v498 = vpop.trf.xlu0
      %v499 = vpop.trf.xlu0
      %v500 = vpop.trf.xlu0
      %v501 = vpop.trf.xlu0
      %v502 = vpop.trf.xlu0
      %v503 = vpop.trf.xlu0
      %v504 = vpop.trf.xlu0
      %v505 = vpop.trf.xlu0
      %v506 = vpop.trf.xlu0
      %v508 = vsel %vm451, %v491, 0
      %510 = vmatpush.msra.mxu0 0.0
      %511 = vmatpush.msra.mxu0 0.0
      %512 = vmatpush.msra.mxu0 0.0
      %513 = vmatpush.msra.mxu0 0.0
      %514 = vmatpush.msra.mxu0 %v321
      %515 = vmatpush.msra.mxu0 %v320
      %516 = vmatpush.msra.mxu0 %v319
      %517 = vmatpush.msra.mxu0 %v318
      %518 = vmatpush.msra.mxu0 %v317
      %519 = vmatpush.msra.mxu0 %v316
      %520 = vmatpush.msra.mxu0 %v315
      %521 = vmatpush.msra.mxu0 %v314
      %522 = vmatpush.msra.mxu0 %v313
      %523 = vmatpush.msra.mxu0 %v312
      %524 = vmatpush.msra.mxu0 %v311
      %525 = vmatpush.msra.mxu0 %v310
      %526 = vmatmul.f32.gmra.mxu0 %v508
      %v527 = vpop.f32.mrf.mxu0
      %v528 = vadd.f32 0.0, %v527
      %529 = vdwg.mxu0
      %v531 = vsel %vm334, %v213, 0
      %v534 = vsel %vm334, %v214, 0
      %v537 = vsel %vm334, %v215, 0
      %v540 = vsel %vm334, %v216, 0
      %v543 = vsel %vm334, %v217, 0
      %v546 = vsel %vm334, %v218, 0
      %v549 = vsel %vm334, %v219, 0
      %v552 = vsel %vm334, %v220, 0
      %v555 = vsel %vm334, %v221, 0
      %v558 = vsel %vm334, %v222, 0
      %v561 = vsel %vm334, %v223, 0
      %v564 = vsel %vm334, %v224, 0
      %v567 = vsel %vm334, %v225, 0
      %v570 = vsel %vm334, %v226, 0
      %v573 = vsel %vm334, %v227, 0
      %v576 = vsel %vm334, %v228, 0
      %v579 = vsel %vm334, %v229, 0
      %v582 = vsel %vm334, %v230, 0
      %v585 = vsel %vm334, %v231, 0
      %v588 = vsel %vm334, %v232, 0
      %v591 = vsel %vm334, %v233, 0
      %v594 = vsel %vm334, %v234, 0
      %v597 = vsel %vm334, %v235, 0
      %v600 = vsel %vm334, %v236, 0
      %602 = vmatpush.xpose.msra.mxu0 0.0
      %603 = vmatpush.xpose.msra.mxu0 0.0
      %604 = vmatpush.xpose.msra.mxu0 0.0
      %605 = vmatpush.xpose.msra.mxu0 0.0
      %606 = vmatpush.xpose.msra.mxu0 %v600
      %607 = vmatpush.xpose.msra.mxu0 %v597
      %608 = vmatpush.xpose.msra.mxu0 %v594
      %609 = vmatpush.xpose.msra.mxu0 %v591
      %610 = vmatpush.xpose.msra.mxu0 %v588
      %611 = vmatpush.xpose.msra.mxu0 %v585
      %612 = vmatpush.xpose.msra.mxu0 %v582
      %613 = vmatpush.xpose.msra.mxu0 %v579
      %614 = vmatpush.xpose.msra.mxu0 %v576
      %615 = vmatpush.xpose.msra.mxu0 %v573
      %616 = vmatpush.xpose.msra.mxu0 %v570
      %617 = vmatpush.xpose.msra.mxu0 %v567
      %618 = vmatmul.f32.gmra.mxu0 %v531
      %v619 = vpop.f32.mrf.mxu0
      %v620 = vadd.f32 0.0, %v619
      %621 = vmatmul.f32.gmra.mxu0 %v534
      %v622 = vpop.f32.mrf.mxu0
      %v623 = vadd.f32 0.0, %v622
      %624 = vmatmul.f32.gmra.mxu0 %v537
      %v625 = vpop.f32.mrf.mxu0
      %v626 = vadd.f32 0.0, %v625
      %627 = vmatmul.f32.gmra.mxu0 %v540
      %v628 = vpop.f32.mrf.mxu0
      %v629 = vadd.f32 0.0, %v628
      %630 = vmatmul.f32.gmra.mxu0 %v543
      %v631 = vpop.f32.mrf.mxu0
      %v632 = vadd.f32 0.0, %v631
      %633 = vmatmul.f32.gmra.mxu0 %v546
      %v634 = vpop.f32.mrf.mxu0
      %v635 = vadd.f32 0.0, %v634
      %636 = vmatmul.f32.gmra.mxu0 %v549
      %v637 = vpop.f32.mrf.mxu0
      %v638 = vadd.f32 0.0, %v637
      %639 = vmatmul.f32.gmra.mxu0 %v552
      %v640 = vpop.f32.mrf.mxu0
      %v641 = vadd.f32 0.0, %v640
      %642 = vmatmul.f32.gmra.mxu0 %v555
      %v643 = vpop.f32.mrf.mxu0
      %v644 = vadd.f32 0.0, %v643
      %645 = vmatmul.f32.gmra.mxu0 %v558
      %v646 = vpop.f32.mrf.mxu0
      %v647 = vadd.f32 0.0, %v646
      %648 = vmatmul.f32.gmra.mxu0 %v561
      %v649 = vpop.f32.mrf.mxu0
      %v650 = vadd.f32 0.0, %v649
      %651 = vmatmul.f32.gmra.mxu0 %v564
      %v652 = vpop.f32.mrf.mxu0
      %v653 = vadd.f32 0.0, %v652
      %654 = vdwg.mxu0
      %655 = vmatpush.xpose.msra.mxu0 0.0
      %656 = vmatpush.xpose.msra.mxu0 0.0
      %657 = vmatpush.xpose.msra.mxu0 0.0
      %658 = vmatpush.xpose.msra.mxu0 0.0
      %659 = vmatpush.xpose.msra.mxu0 %v564
      %660 = vmatpush.xpose.msra.mxu0 %v561
      %661 = vmatpush.xpose.msra.mxu0 %v558
      %662 = vmatpush.xpose.msra.mxu0 %v555
      %663 = vmatpush.xpose.msra.mxu0 %v552
      %664 = vmatpush.xpose.msra.mxu0 %v549
      %665 = vmatpush.xpose.msra.mxu0 %v546
      %666 = vmatpush.xpose.msra.mxu0 %v543
      %667 = vmatpush.xpose.msra.mxu0 %v540
      %668 = vmatpush.xpose.msra.mxu0 %v537
      %669 = vmatpush.xpose.msra.mxu0 %v534
      %670 = vmatpush.xpose.msra.mxu0 %v531
      %671 = vmatmul.f32.gmra.mxu0 %v531
      %v672 = vpop.f32.mrf.mxu0
      %v673 = vadd.f32 0.0, %v672
      %674 = vmatmul.f32.gmra.mxu0 %v534
      %v675 = vpop.f32.mrf.mxu0
      %v676 = vadd.f32 0.0, %v675
      %677 = vmatmul.f32.gmra.mxu0 %v537
      %v678 = vpop.f32.mrf.mxu0
      %v679 = vadd.f32 0.0, %v678
      %680 = vmatmul.f32.gmra.mxu0 %v540
      %v681 = vpop.f32.mrf.mxu0
      %v682 = vadd.f32 0.0, %v681
      %683 = vmatmul.f32.gmra.mxu0 %v543
      %v684 = vpop.f32.mrf.mxu0
      %v685 = vadd.f32 0.0, %v684
      %686 = vmatmul.f32.gmra.mxu0 %v546
      %v687 = vpop.f32.mrf.mxu0
      %v688 = vadd.f32 0.0, %v687
      %689 = vmatmul.f32.gmra.mxu0 %v549
      %v690 = vpop.f32.mrf.mxu0
      %v691 = vadd.f32 0.0, %v690
      %692 = vmatmul.f32.gmra.mxu0 %v552
      %v693 = vpop.f32.mrf.mxu0
      %v694 = vadd.f32 0.0, %v693
      %695 = vmatmul.f32.gmra.mxu0 %v555
      %v696 = vpop.f32.mrf.mxu0
      %v697 = vadd.f32 0.0, %v696
      %698 = vmatmul.f32.gmra.mxu0 %v558
      %v699 = vpop.f32.mrf.mxu0
      %v700 = vadd.f32 0.0, %v699
      %701 = vmatmul.f32.gmra.mxu0 %v561
      %v702 = vpop.f32.mrf.mxu0
      %v703 = vadd.f32 0.0, %v702
      %704 = vmatmul.f32.gmra.mxu0 %v564
      %v705 = vpop.f32.mrf.mxu0
      %v706 = vadd.f32 0.0, %v705
      %707 = vdwg.mxu0
      %708 = vmatpush.xpose.msra.mxu0 0.0
      %709 = vmatpush.xpose.msra.mxu0 0.0
      %710 = vmatpush.xpose.msra.mxu0 0.0
      %711 = vmatpush.xpose.msra.mxu0 0.0
      %712 = vmatpush.xpose.msra.mxu0 %v600
      %713 = vmatpush.xpose.msra.mxu0 %v597
      %714 = vmatpush.xpose.msra.mxu0 %v594
      %715 = vmatpush.xpose.msra.mxu0 %v591
      %716 = vmatpush.xpose.msra.mxu0 %v588
      %717 = vmatpush.xpose.msra.mxu0 %v585
      %718 = vmatpush.xpose.msra.mxu0 %v582
      %719 = vmatpush.xpose.msra.mxu0 %v579
      %720 = vmatpush.xpose.msra.mxu0 %v576
      %721 = vmatpush.xpose.msra.mxu0 %v573
      %722 = vmatpush.xpose.msra.mxu0 %v570
      %723 = vmatpush.xpose.msra.mxu0 %v567
      %724 = vmatmul.f32.gmra.mxu0 %v567
      %v725 = vpop.f32.mrf.mxu0
      %v726 = vadd.f32 0.0, %v725
      %727 = vmatmul.f32.gmra.mxu0 %v570
      %v728 = vpop.f32.mrf.mxu0
      %v729 = vadd.f32 0.0, %v728
      %730 = vmatmul.f32.gmra.mxu0 %v573
      %v731 = vpop.f32.mrf.mxu0
      %v732 = vadd.f32 0.0, %v731
      %733 = vmatmul.f32.gmra.mxu0 %v576
      %v734 = vpop.f32.mrf.mxu0
      %v735 = vadd.f32 0.0, %v734
      %736 = vmatmul.f32.gmra.mxu0 %v579
      %v737 = vpop.f32.mrf.mxu0
      %v738 = vadd.f32 0.0, %v737
      %739 = vmatmul.f32.gmra.mxu0 %v582
      %v740 = vpop.f32.mrf.mxu0
      %v741 = vadd.f32 0.0, %v740
      %742 = vmatmul.f32.gmra.mxu0 %v585
      %v743 = vpop.f32.mrf.mxu0
      %v744 = vadd.f32 0.0, %v743
      %745 = vmatmul.f32.gmra.mxu0 %v588
      %v746 = vpop.f32.mrf.mxu0
      %v747 = vadd.f32 0.0, %v746
      %748 = vmatmul.f32.gmra.mxu0 %v591
      %v749 = vpop.f32.mrf.mxu0
      %v750 = vadd.f32 0.0, %v749
      %751 = vmatmul.f32.gmra.mxu0 %v594
      %v752 = vpop.f32.mrf.mxu0
      %v753 = vadd.f32 0.0, %v752
      %754 = vmatmul.f32.gmra.mxu0 %v597
      %v755 = vpop.f32.mrf.mxu0
      %v756 = vadd.f32 0.0, %v755
      %757 = vmatmul.f32.gmra.mxu0 %v600
      %v758 = vpop.f32.mrf.mxu0
      %v759 = vadd.f32 0.0, %v758
      %760 = vdwg.mxu0
      %v761 = vperm.slane %v528, 0
      %v762 = vadd.f32 %v337, %v761
      %v763 = vadd.f32 %v340, %v761
      %v764 = vadd.f32 %v343, %v761
      %v765 = vadd.f32 %v346, %v761
      %v766 = vadd.f32 %v349, %v761
      %v767 = vadd.f32 %v352, %v761
      %v768 = vadd.f32 %v355, %v761
      %v769 = vadd.f32 %v358, %v761
      %v770 = vadd.f32 %v361, %v761
      %v771 = vadd.f32 %v364, %v761
      %v772 = vadd.f32 %v367, %v761
      %v773 = vadd.f32 %v370, %v761
      %v774 = vmul.f32 %v762, 0.5
      %v775 = vmul.f32 %v763, 0.5
      %v776 = vmul.f32 %v764, 0.5
      %v777 = vmul.f32 %v765, 0.5
      %v778 = vmul.f32 %v766, 0.5
      %v779 = vmul.f32 %v767, 0.5
      %v780 = vmul.f32 %v768, 0.5
      %v781 = vmul.f32 %v769, 0.5
      %v782 = vmul.f32 %v770, 0.5
      %v783 = vmul.f32 %v771, 0.5
      %v784 = vmul.f32 %v772, 0.5
      %v785 = vmul.f32 %v773, 0.5
      %v786 = vsub.f32 %v774, %v620
      %v787 = vsub.f32 %v775, %v623
      %v788 = vsub.f32 %v776, %v626
      %v789 = vsub.f32 %v777, %v629
      %v790 = vsub.f32 %v778, %v632
      %v791 = vsub.f32 %v779, %v635
      %v792 = vsub.f32 %v780, %v638
      %v793 = vsub.f32 %v781, %v641
      %v794 = vsub.f32 %v782, %v644
      %v795 = vsub.f32 %v783, %v647
      %v796 = vsub.f32 %v784, %v650
      %v797 = vsub.f32 %v785, %v653
      %v798 = vmax.f32 %v786, 0.0
      %v799 = vmax.f32 %v787, 0.0
      %v800 = vmax.f32 %v788, 0.0
      %v801 = vmax.f32 %v789, 0.0
      %v802 = vmax.f32 %v790, 0.0
      %v803 = vmax.f32 %v791, 0.0
      %v804 = vmax.f32 %v792, 0.0
      %v805 = vmax.f32 %v793, 0.0
      %v806 = vmax.f32 %v794, 0.0
      %v807 = vmax.f32 %v795, 0.0
      %v808 = vmax.f32 %v796, 0.0
      %v809 = vmax.f32 %v797, 0.0
      %v810 = vperm.slane %v473, 0
      %v811 = vadd.f32 %v337, %v810
      %v812 = vadd.f32 %v340, %v810
      %v813 = vadd.f32 %v343, %v810
      %v814 = vadd.f32 %v346, %v810
      %v815 = vadd.f32 %v349, %v810
      %v816 = vadd.f32 %v352, %v810
      %v817 = vadd.f32 %v355, %v810
      %v818 = vadd.f32 %v358, %v810
      %v819 = vadd.f32 %v361, %v810
      %v820 = vadd.f32 %v364, %v810
      %v821 = vadd.f32 %v367, %v810
      %v822 = vadd.f32 %v370, %v810
      %v823 = vmul.f32 %v811, 0.5
      %v824 = vmul.f32 %v812, 0.5
      %v825 = vmul.f32 %v813, 0.5
      %v826 = vmul.f32 %v814, 0.5
      %v827 = vmul.f32 %v815, 0.5
      %v828 = vmul.f32 %v816, 0.5
      %v829 = vmul.f32 %v817, 0.5
      %v830 = vmul.f32 %v818, 0.5
      %v831 = vmul.f32 %v819, 0.5
      %v832 = vmul.f32 %v820, 0.5
      %v833 = vmul.f32 %v821, 0.5
      %v834 = vmul.f32 %v822, 0.5
      %v835 = vsub.f32 %v823, %v673
      %v836 = vsub.f32 %v824, %v676
      %v837 = vsub.f32 %v825, %v679
      %v838 = vsub.f32 %v826, %v682
      %v839 = vsub.f32 %v827, %v685
      %v840 = vsub.f32 %v828, %v688
      %v841 = vsub.f32 %v829, %v691
      %v842 = vsub.f32 %v830, %v694
      %v843 = vsub.f32 %v831, %v697
      %v844 = vsub.f32 %v832, %v700
      %v845 = vsub.f32 %v833, %v703
      %v846 = vsub.f32 %v834, %v706
      %v847 = vmax.f32 %v835, 0.0
      %v848 = vmax.f32 %v836, 0.0
      %v849 = vmax.f32 %v837, 0.0
      %v850 = vmax.f32 %v838, 0.0
      %v851 = vmax.f32 %v839, 0.0
      %v852 = vmax.f32 %v840, 0.0
      %v853 = vmax.f32 %v841, 0.0
      %v854 = vmax.f32 %v842, 0.0
      %v855 = vmax.f32 %v843, 0.0
      %v856 = vmax.f32 %v844, 0.0
      %v857 = vmax.f32 %v845, 0.0
      %v858 = vmax.f32 %v846, 0.0
      %v859 = vadd.f32 %v385, %v761
      %v860 = vadd.f32 %v388, %v761
      %v861 = vadd.f32 %v391, %v761
      %v862 = vadd.f32 %v394, %v761
      %v863 = vadd.f32 %v397, %v761
      %v864 = vadd.f32 %v400, %v761
      %v865 = vadd.f32 %v403, %v761
      %v866 = vadd.f32 %v406, %v761
      %v867 = vadd.f32 %v409, %v761
      %v868 = vadd.f32 %v412, %v761
      %v869 = vadd.f32 %v415, %v761
      %v870 = vadd.f32 %v418, %v761
      %v871 = vmul.f32 %v859, 0.5
      %v872 = vmul.f32 %v860, 0.5
      %v873 = vmul.f32 %v861, 0.5
      %v874 = vmul.f32 %v862, 0.5
      %v875 = vmul.f32 %v863, 0.5
      %v876 = vmul.f32 %v864, 0.5
      %v877 = vmul.f32 %v865, 0.5
      %v878 = vmul.f32 %v866, 0.5
      %v879 = vmul.f32 %v867, 0.5
      %v880 = vmul.f32 %v868, 0.5
      %v881 = vmul.f32 %v869, 0.5
      %v882 = vmul.f32 %v870, 0.5
      %v883 = vsub.f32 %v871, %v726
      %v884 = vsub.f32 %v872, %v729
      %v885 = vsub.f32 %v873, %v732
      %v886 = vsub.f32 %v874, %v735
      %v887 = vsub.f32 %v875, %v738
      %v888 = vsub.f32 %v876, %v741
      %v889 = vsub.f32 %v877, %v744
      %v890 = vsub.f32 %v878, %v747
      %v891 = vsub.f32 %v879, %v750
      %v892 = vsub.f32 %v880, %v753
      %v893 = vsub.f32 %v881, %v756
      %v894 = vsub.f32 %v882, %v759
      %v895 = vmax.f32 %v883, 0.0
      %v896 = vmax.f32 %v884, 0.0
      %v897 = vmax.f32 %v885, 0.0
      %v898 = vmax.f32 %v886, 0.0
      %v899 = vmax.f32 %v887, 0.0
      %v900 = vmax.f32 %v888, 0.0
      %v901 = vmax.f32 %v889, 0.0
      %v902 = vmax.f32 %v890, 0.0
      %v903 = vmax.f32 %v891, 0.0
      %v904 = vmax.f32 %v892, 0.0
      %v905 = vmax.f32 %v893, 0.0
      %v906 = vmax.f32 %v894, 0.0
      %v907 = vsel %vm258, 1, 0
      %v908 = vsel %vm259, 1, 0
      %v909 = vsel %vm260, 1, 0
      %v910 = vsel %vm261, 1, 0
      %v911 = vsel %vm262, 1, 0
      %v912 = vsel %vm263, 1, 0
      %v913 = vsel %vm264, 1, 0
      %v914 = vsel %vm265, 1, 0
      %v915 = vsel %vm266, 1, 0
      %v916 = vsel %vm267, 1, 0
      %v917 = vsel %vm268, 1, 0
      %v918 = vsel %vm269, 1, 0
      %vm919 = vcmp.eq.s32.totalorder %v907, 1
      %vm920 = vcmp.eq.s32.totalorder %v908, 1
      %vm921 = vcmp.eq.s32.totalorder %v909, 1
      %vm922 = vcmp.eq.s32.totalorder %v910, 1
      %vm923 = vcmp.eq.s32.totalorder %v911, 1
      %vm924 = vcmp.eq.s32.totalorder %v912, 1
      %vm925 = vcmp.eq.s32.totalorder %v913, 1
      %vm926 = vcmp.eq.s32.totalorder %v914, 1
      %vm927 = vcmp.eq.s32.totalorder %v915, 1
      %vm928 = vcmp.eq.s32.totalorder %v916, 1
      %vm929 = vcmp.eq.s32.totalorder %v917, 1
      %vm930 = vcmp.eq.s32.totalorder %v918, 1
      %v931 = vsel %vm284, 1, 0
      %vm932 = vcmp.eq.s32.totalorder %v931, 1
      %vm933 = vmand %vm919, %vm932
      %vm934 = vmand %vm920, %vm932
      %vm935 = vmand %vm921, %vm932
      %vm936 = vmand %vm922, %vm932
      %vm937 = vmand %vm923, %vm932
      %vm938 = vmand %vm924, %vm932
      %vm939 = vmand %vm925, %vm932
      %vm940 = vmand %vm926, %vm932
      %vm941 = vmand %vm927, %vm932
      %vm942 = vmand %vm928, %vm932
      %vm943 = vmand %vm929, %vm932
      %vm944 = vmand %vm930, %vm932
      %v945 = vsel %vm933, %v798, 0.0
      %v946 = vsel %vm934, %v799, 0.0
      %v947 = vsel %vm935, %v800, 0.0
      %v948 = vsel %vm936, %v801, 0.0
      %v949 = vsel %vm937, %v802, 0.0
      %v950 = vsel %vm938, %v803, 0.0
      %v951 = vsel %vm939, %v804, 0.0
      %v952 = vsel %vm940, %v805, 0.0
      %v953 = vsel %vm941, %v806, 0.0
      %v954 = vsel %vm942, %v807, 0.0
      %v955 = vsel %vm943, %v808, 0.0
      %v956 = vsel %vm944, %v809, 0.0
      %v957 = vsel %vm451, %v945, -inf
      %v958 = vsel %vm451, %v946, -inf
      %v959 = vsel %vm451, %v947, -inf
      %v960 = vsel %vm451, %v948, -inf
      %v961 = vsel %vm451, %v949, -inf
      %v962 = vmax.f32 %v957, %v961
      %v963 = vsel %vm451, %v950, -inf
      %v964 = vmax.f32 %v958, %v963
      %v965 = vsel %vm451, %v951, -inf
      %v966 = vmax.f32 %v959, %v965
      %v967 = vsel %vm451, %v952, -inf
      %v968 = vmax.f32 %v960, %v967
      %v969 = vsel %vm451, %v953, -inf
      %v970 = vmax.f32 %v962, %v969
      %v971 = vsel %vm451, %v954, -inf
      %v972 = vmax.f32 %v964, %v971
      %v973 = vsel %vm451, %v955, -inf
      %v974 = vmax.f32 %v966, %v973
      %v975 = vsel %vm451, %v956, -inf
      %v976 = vmax.f32 %v968, %v975
      %v977 = vmax.f32 %v970, %v972
      %v978 = vmax.f32 %v974, %v976
      %v979 = vmax.f32 %v977, %v978
      %980 = vmax.xlane.f32.xlu0 %v979
      %v981 = vpop.xlane.xlu0 %980
      %v982 = vrot.slane %v981, 4
      %v983 = vmax.f32 %v981, %v982
      %v984 = vrot.slane %v983, 2
      %v985 = vmax.f32 %v983, %v984
      %v986 = vrot.slane %v985, 1
      %v987 = vmax.f32 %v985, %v986
      %s988 = vtos %v987
      %v989 = vstv %s988
      %v990 = vmul.f32 %v989, 2.0
      %v991 = vadd.f32 %v990, 1e-06
      loop: start=0, step=1, limit=20
      $region29: #{part_wise_emd.5} parent=27 // loop_pre_header
        _
      $region30: #{part_wise_emd.5} parent=27 // loop_header
        %s993 = sphi 0, %s997
        %p994 = scmp.ge.s32.totalorder %s993, 20
        %v998 = vphi 0.0, %v1465
        %v999 = vphi 0.0, %v1466
        %v1000 = vphi 0.0, %v1467
        %v1001 = vphi 0.0, %v1468
        %v1002 = vphi 0.0, %v1469
        %v1003 = vphi 0.0, %v1470
        %v1004 = vphi 0.0, %v1471
        %v1005 = vphi 0.0, %v1472
        %v1006 = vphi 0.0, %v1473
        %v1007 = vphi 0.0, %v1474
        %v1008 = vphi 0.0, %v1475
        %v1009 = vphi 0.0, %v1476
        %v1010 = vphi 0.0, %v1478
        %v1011 = vphi %v991, %v1479
      $region31: #{part_wise_emd.5} parent=27 // loop_header_branch
        %996 = sbr.rel (%p994) target = $region35
      $region32: #{part_wise_emd.5} parent=27 // loop_body
        %v1012 = vmax.f32 %v1011, 0.0025
        %v1013 = vrcp.pop %v1012
        %v1014 = vmul.f32 %v1012, %v1013
        %v1015 = vsub.f32 1.0, %v1014
        %v1016 = vmul.f32 %v1013, %v1015
        %v1017 = vadd.f32 %v1013, %v1016
        %vm1018 = vweird.f32 %v1012
        %vm1019 = vweird.f32 %v1013
        %vm1020 = vmor %vm1018, %vm1019
        %v1021 = vsel %vm1020, %v1013, %v1017
        %v1022 = vand.u32 2147483647, %v1012
        %vm1023 = vcmp.eq.f32.partialorder %v1022, 8.507059e+37
        %v1024 = vand.u32 %v1012, 2147483648
        %v1025 = vor.u32 1.1754944e-38, %v1024
        %v1026 = vsel %vm1023, %v1025, %v1021
        %v1027 = vmul.f32 1.0, %v1026
        %v1028 = vmul.f32 %v798, %v1027
        %v1029 = vmul.f32 %v799, %v1027
        %v1030 = vmul.f32 %v800, %v1027
        %v1031 = vmul.f32 %v801, %v1027
        %v1032 = vmul.f32 %v802, %v1027
        %v1033 = vmul.f32 %v803, %v1027
        %v1034 = vmul.f32 %v804, %v1027
        %v1035 = vmul.f32 %v805, %v1027
        %v1036 = vmul.f32 %v806, %v1027
        %v1037 = vmul.f32 %v807, %v1027
        %v1038 = vmul.f32 %v808, %v1027
        %v1039 = vmul.f32 %v809, %v1027
        %v1040 = vmul.f32 %v1010, %v1027
        %v1041 = vadd.f32 %v285, %v1040
        %v1042 = vperm.slane %v1041, 0
        %v1043 = vsub.f32 %v1042, %v1028
        %v1044 = vsub.f32 %v1042, %v1029
        %v1045 = vsub.f32 %v1042, %v1030
        %v1046 = vsub.f32 %v1042, %v1031
        %v1047 = vsub.f32 %v1042, %v1032
        %v1048 = vsub.f32 %v1042, %v1033
        %v1049 = vsub.f32 %v1042, %v1034
        %v1050 = vsub.f32 %v1042, %v1035
        %v1051 = vsub.f32 %v1042, %v1036
        %v1052 = vsub.f32 %v1042, %v1037
        %v1053 = vsub.f32 %v1042, %v1038
        %v1054 = vsub.f32 %v1042, %v1039
        %v1055 = vsel %vm451, %v1043, -inf
        %1056 = vmax.xlane.f32.xlu0 %v1055
        %v1057 = vpop.xlane.xlu0 %1056
        %v1058 = vsel %vm451, %v1044, -inf
        %1059 = vmax.xlane.f32.xlu0 %v1058
        %v1060 = vpop.xlane.xlu0 %1059
        %v1061 = vsel %vm451, %v1045, -inf
        %1062 = vmax.xlane.f32.xlu0 %v1061
        %v1063 = vpop.xlane.xlu0 %1062
        %v1064 = vsel %vm451, %v1046, -inf
        %1065 = vmax.xlane.f32.xlu0 %v1064
        %v1066 = vpop.xlane.xlu0 %1065
        %v1067 = vsel %vm451, %v1047, -inf
        %1068 = vmax.xlane.f32.xlu0 %v1067
        %v1069 = vpop.xlane.xlu0 %1068
        %v1070 = vsel %vm451, %v1048, -inf
        %1071 = vmax.xlane.f32.xlu0 %v1070
        %v1072 = vpop.xlane.xlu0 %1071
        %v1073 = vsel %vm451, %v1049, -inf
        %1074 = vmax.xlane.f32.xlu0 %v1073
        %v1075 = vpop.xlane.xlu0 %1074
        %v1076 = vsel %vm451, %v1050, -inf
        %1077 = vmax.xlane.f32.xlu0 %v1076
        %v1078 = vpop.xlane.xlu0 %1077
        %v1079 = vsel %vm451, %v1051, -inf
        %1080 = vmax.xlane.f32.xlu0 %v1079
        %v1081 = vpop.xlane.xlu0 %1080
        %v1082 = vsel %vm451, %v1052, -inf
        %1083 = vmax.xlane.f32.xlu0 %v1082
        %v1084 = vpop.xlane.xlu0 %1083
        %v1085 = vsel %vm451, %v1053, -inf
        %1086 = vmax.xlane.f32.xlu0 %v1085
        %v1087 = vpop.xlane.xlu0 %1086
        %v1088 = vsel %vm451, %v1054, -inf
        %1089 = vmax.xlane.f32.xlu0 %v1088
        %v1090 = vpop.xlane.xlu0 %1089
        %v1091 = vsub.f32 %v1043, %v1057
        %v1092 = vsub.f32 %v1044, %v1060
        %v1093 = vsub.f32 %v1045, %v1063
        %v1094 = vsub.f32 %v1046, %v1066
        %v1095 = vsub.f32 %v1047, %v1069
        %v1096 = vsub.f32 %v1048, %v1072
        %v1097 = vsub.f32 %v1049, %v1075
        %v1098 = vsub.f32 %v1050, %v1078
        %v1099 = vsub.f32 %v1051, %v1081
        %v1100 = vsub.f32 %v1052, %v1084
        %v1101 = vsub.f32 %v1053, %v1087
        %v1102 = vsub.f32 %v1054, %v1090
        %v1103 = vmul.f32 %v1091, 1.442695
        %v1104 = vpow.pop %v1103
        %v1105 = vmul.f32 %v1092, 1.442695
        %v1106 = vpow.pop %v1105
        %v1107 = vmul.f32 %v1093, 1.442695
        %v1108 = vpow.pop %v1107
        %v1109 = vmul.f32 %v1094, 1.442695
        %v1110 = vpow.pop %v1109
        %v1111 = vmul.f32 %v1095, 1.442695
        %v1112 = vpow.pop %v1111
        %v1113 = vmul.f32 %v1096, 1.442695
        %v1114 = vpow.pop %v1113
        %v1115 = vmul.f32 %v1097, 1.442695
        %v1116 = vpow.pop %v1115
        %v1117 = vmul.f32 %v1098, 1.442695
        %v1118 = vpow.pop %v1117
        %v1119 = vmul.f32 %v1099, 1.442695
        %v1120 = vpow.pop %v1119
        %v1121 = vmul.f32 %v1100, 1.442695
        %v1122 = vpow.pop %v1121
        %v1123 = vmul.f32 %v1101, 1.442695
        %v1124 = vpow.pop %v1123
        %v1125 = vmul.f32 %v1102, 1.442695
        %v1126 = vpow.pop %v1125
        %v1128 = vsel %vm451, %v1104, 0
        %v1131 = vsel %vm451, %v1106, 0
        %v1134 = vsel %vm451, %v1108, 0
        %v1137 = vsel %vm451, %v1110, 0
        %v1140 = vsel %vm451, %v1112, 0
        %v1143 = vsel %vm451, %v1114, 0
        %v1146 = vsel %vm451, %v1116, 0
        %v1149 = vsel %vm451, %v1118, 0
        %v1152 = vsel %vm451, %v1120, 0
        %v1155 = vsel %vm451, %v1122, 0
        %v1158 = vsel %vm451, %v1124, 0
        %v1161 = vsel %vm451, %v1126, 0
        %1163 = vmatpush.msra.mxu0 0.0
        %1164 = vmatpush.msra.mxu0 0.0
        %1165 = vmatpush.msra.mxu0 0.0
        %1166 = vmatpush.msra.mxu0 0.0
        %1167 = vmatpush.msra.mxu0 1.0
        %1168 = vmatpush.msra.mxu0 1.0
        %1169 = vmatpush.msra.mxu0 1.0
        %1170 = vmatpush.msra.mxu0 1.0
        %1171 = vmatpush.msra.mxu0 1.0
        %1172 = vmatpush.msra.mxu0 1.0
        %1173 = vmatpush.msra.mxu0 1.0
        %1174 = vmatpush.msra.mxu0 1.0
        %1175 = vmatpush.msra.mxu0 1.0
        %1176 = vmatpush.msra.mxu0 1.0
        %1177 = vmatpush.msra.mxu0 1.0
        %1178 = vmatpush.msra.mxu0 1.0
        %1179 = vmatmul.f32.gmra.mxu0 %v1128
        %v1180 = vpop.f32.mrf.mxu0
        %v1181 = vadd.f32 0.0, %v1180
        %1182 = vmatmul.f32.gmra.mxu0 %v1131
        %v1183 = vpop.f32.mrf.mxu0
        %v1184 = vadd.f32 0.0, %v1183
        %1185 = vmatmul.f32.gmra.mxu0 %v1134
        %v1186 = vpop.f32.mrf.mxu0
        %v1187 = vadd.f32 0.0, %v1186
        %1188 = vmatmul.f32.gmra.mxu0 %v1137
        %v1189 = vpop.f32.mrf.mxu0
        %v1190 = vadd.f32 0.0, %v1189
        %1191 = vmatmul.f32.gmra.mxu0 %v1140
        %v1192 = vpop.f32.mrf.mxu0
        %v1193 = vadd.f32 0.0, %v1192
        %1194 = vmatmul.f32.gmra.mxu0 %v1143
        %v1195 = vpop.f32.mrf.mxu0
        %v1196 = vadd.f32 0.0, %v1195
        %1197 = vmatmul.f32.gmra.mxu0 %v1146
        %v1198 = vpop.f32.mrf.mxu0
        %v1199 = vadd.f32 0.0, %v1198
        %1200 = vmatmul.f32.gmra.mxu0 %v1149
        %v1201 = vpop.f32.mrf.mxu0
        %v1202 = vadd.f32 0.0, %v1201
        %1203 = vmatmul.f32.gmra.mxu0 %v1152
        %v1204 = vpop.f32.mrf.mxu0
        %v1205 = vadd.f32 0.0, %v1204
        %1206 = vmatmul.f32.gmra.mxu0 %v1155
        %v1207 = vpop.f32.mrf.mxu0
        %v1208 = vadd.f32 0.0, %v1207
        %1209 = vmatmul.f32.gmra.mxu0 %v1158
        %v1210 = vpop.f32.mrf.mxu0
        %v1211 = vadd.f32 0.0, %v1210
        %1212 = vmatmul.f32.gmra.mxu0 %v1161
        %v1213 = vpop.f32.mrf.mxu0
        %v1214 = vadd.f32 0.0, %v1213
        %1215 = vdwg.mxu0
        %v1216 = vsub.f32 0.0, %v1012
        %v1217 = vlog2.pop %v1181
        %v1218 = vmul.f32 %v1217, 0.6931472
        %v1219 = vlog2.pop %v1184
        %v1220 = vmul.f32 %v1219, 0.6931472
        %v1221 = vlog2.pop %v1187
        %v1222 = vmul.f32 %v1221, 0.6931472
        %v1223 = vlog2.pop %v1190
        %v1224 = vmul.f32 %v1223, 0.6931472
        %v1225 = vlog2.pop %v1193
        %v1226 = vmul.f32 %v1225, 0.6931472
        %v1227 = vlog2.pop %v1196
        %v1228 = vmul.f32 %v1227, 0.6931472
        %v1229 = vlog2.pop %v1199
        %v1230 = vmul.f32 %v1229, 0.6931472
        %v1231 = vlog2.pop %v1202
        %v1232 = vmul.f32 %v1231, 0.6931472
        %v1233 = vlog2.pop %v1205
        %v1234 = vmul.f32 %v1233, 0.6931472
        %v1235 = vlog2.pop %v1208
        %v1236 = vmul.f32 %v1235, 0.6931472
        %v1237 = vlog2.pop %v1211
        %v1238 = vmul.f32 %v1237, 0.6931472
        %v1239 = vlog2.pop %v1214
        %v1240 = vmul.f32 %v1239, 0.6931472
        %v1241 = vadd.f32 %v1057, %v1218
        %v1242 = vadd.f32 %v1060, %v1220
        %v1243 = vadd.f32 %v1063, %v1222
        %v1244 = vadd.f32 %v1066, %v1224
        %v1245 = vadd.f32 %v1069, %v1226
        %v1246 = vadd.f32 %v1072, %v1228
        %v1247 = vadd.f32 %v1075, %v1230
        %v1248 = vadd.f32 %v1078, %v1232
        %v1249 = vadd.f32 %v1081, %v1234
        %v1250 = vadd.f32 %v1084, %v1236
        %v1251 = vadd.f32 %v1087, %v1238
        %v1252 = vadd.f32 %v1090, %v1240
        %v1253 = vmul.f32 %v1216, %v1241
        %v1254 = vmul.f32 %v1216, %v1242
        %v1255 = vmul.f32 %v1216, %v1243
        %v1256 = vmul.f32 %v1216, %v1244
        %v1257 = vmul.f32 %v1216, %v1245
        %v1258 = vmul.f32 %v1216, %v1246
        %v1259 = vmul.f32 %v1216, %v1247
        %v1260 = vmul.f32 %v1216, %v1248
        %v1261 = vmul.f32 %v1216, %v1249
        %v1262 = vmul.f32 %v1216, %v1250
        %v1263 = vmul.f32 %v1216, %v1251
        %v1264 = vmul.f32 %v1216, %v1252
        %v1265 = vmul.f32 %v998, %v1027
        %v1266 = vmul.f32 %v999, %v1027
        %v1267 = vmul.f32 %v1000, %v1027
        %v1268 = vmul.f32 %v1001, %v1027
        %v1269 = vmul.f32 %v1002, %v1027
        %v1270 = vmul.f32 %v1003, %v1027
        %v1271 = vmul.f32 %v1004, %v1027
        %v1272 = vmul.f32 %v1005, %v1027
        %v1273 = vmul.f32 %v1006, %v1027
        %v1274 = vmul.f32 %v1007, %v1027
        %v1275 = vmul.f32 %v1008, %v1027
        %v1276 = vmul.f32 %v1009, %v1027
        %v1277 = vadd.f32 %v272, %v1265
        %v1278 = vadd.f32 %v273, %v1266
        %v1279 = vadd.f32 %v274, %v1267
        %v1280 = vadd.f32 %v275, %v1268
        %v1281 = vadd.f32 %v276, %v1269
        %v1282 = vadd.f32 %v277, %v1270
        %v1283 = vadd.f32 %v278, %v1271
        %v1284 = vadd.f32 %v279, %v1272
        %v1285 = vadd.f32 %v280, %v1273
        %v1286 = vadd.f32 %v281, %v1274
        %v1287 = vadd.f32 %v282, %v1275
        %v1288 = vadd.f32 %v283, %v1276
        %1290 = vset.pattern.permute.xlu0 0
        %1291 = vperm.xlu0 %1290, %v1277
        %v1292 = vpop.permute.xlu0 %1291
        %1295 = vset.pattern.permute.xlu0 0
        %1296 = vperm.xlu0 %1295, %v1278
        %v1297 = vpop.permute.xlu0 %1296
        %1300 = vset.pattern.permute.xlu0 0
        %1301 = vperm.xlu0 %1300, %v1279
        %v1302 = vpop.permute.xlu0 %1301
        %1305 = vset.pattern.permute.xlu0 0
        %1306 = vperm.xlu0 %1305, %v1280
        %v1307 = vpop.permute.xlu0 %1306
        %1310 = vset.pattern.permute.xlu0 0
        %1311 = vperm.xlu0 %1310, %v1281
        %v1312 = vpop.permute.xlu0 %1311
        %1315 = vset.pattern.permute.xlu0 0
        %1316 = vperm.xlu0 %1315, %v1282
        %v1317 = vpop.permute.xlu0 %1316
        %1320 = vset.pattern.permute.xlu0 0
        %1321 = vperm.xlu0 %1320, %v1283
        %v1322 = vpop.permute.xlu0 %1321
        %1325 = vset.pattern.permute.xlu0 0
        %1326 = vperm.xlu0 %1325, %v1284
        %v1327 = vpop.permute.xlu0 %1326
        %1330 = vset.pattern.permute.xlu0 0
        %1331 = vperm.xlu0 %1330, %v1285
        %v1332 = vpop.permute.xlu0 %1331
        %1335 = vset.pattern.permute.xlu0 0
        %1336 = vperm.xlu0 %1335, %v1286
        %v1337 = vpop.permute.xlu0 %1336
        %1340 = vset.pattern.permute.xlu0 0
        %1341 = vperm.xlu0 %1340, %v1287
        %v1342 = vpop.permute.xlu0 %1341
        %1345 = vset.pattern.permute.xlu0 0
        %1346 = vperm.xlu0 %1345, %v1288
        %v1347 = vpop.permute.xlu0 %1346
        %v1349 = vsub.f32 %v1292, %v1028
        %v1350 = vsub.f32 %v1297, %v1029
        %v1351 = vsub.f32 %v1302, %v1030
        %v1352 = vsub.f32 %v1307, %v1031
        %v1353 = vsub.f32 %v1312, %v1032
        %v1354 = vsub.f32 %v1317, %v1033
        %v1355 = vsub.f32 %v1322, %v1034
        %v1356 = vsub.f32 %v1327, %v1035
        %v1357 = vsub.f32 %v1332, %v1036
        %v1358 = vsub.f32 %v1337, %v1037
        %v1359 = vsub.f32 %v1342, %v1038
        %v1360 = vsub.f32 %v1347, %v1039
        %v1361 = vsel %vm451, %v1349, -inf
        %v1362 = vsel %vm451, %v1350, -inf
        %v1363 = vsel %vm451, %v1351, -inf
        %v1364 = vsel %vm451, %v1352, -inf
        %v1365 = vsel %vm451, %v1353, -inf
        %v1366 = vmax.f32 %v1361, %v1365
        %v1367 = vsel %vm451, %v1354, -inf
        %v1368 = vmax.f32 %v1362, %v1367
        %v1369 = vsel %vm451, %v1355, -inf
        %v1370 = vmax.f32 %v1363, %v1369
        %v1371 = vsel %vm451, %v1356, -inf
        %v1372 = vmax.f32 %v1364, %v1371
        %v1373 = vsel %vm451, %v1357, -inf
        %v1374 = vmax.f32 %v1366, %v1373
        %v1375 = vsel %vm451, %v1358, -inf
        %v1376 = vmax.f32 %v1368, %v1375
        %v1377 = vsel %vm451, %v1359, -inf
        %v1378 = vmax.f32 %v1370, %v1377
        %v1379 = vsel %vm451, %v1360, -inf
        %v1380 = vmax.f32 %v1372, %v1379
        %v1381 = vmax.f32 %v1374, %v1376
        %v1382 = vmax.f32 %v1378, %v1380
        %v1383 = vmax.f32 %v1381, %v1382
        %v1384 = vrot.slane %v1383, 4
        %v1385 = vmax.f32 %v1383, %v1384
        %v1386 = vrot.slane %v1385, 2
        %v1387 = vmax.f32 %v1385, %v1386
        %v1388 = vrot.slane %v1387, 1
        %v1389 = vmax.f32 %v1387, %v1388
        %v1390 = vsub.f32 %v1349, %v1389
        %v1391 = vsub.f32 %v1350, %v1389
        %v1392 = vsub.f32 %v1351, %v1389
        %v1393 = vsub.f32 %v1352, %v1389
        %v1394 = vsub.f32 %v1353, %v1389
        %v1395 = vsub.f32 %v1354, %v1389
        %v1396 = vsub.f32 %v1355, %v1389
        %v1397 = vsub.f32 %v1356, %v1389
        %v1398 = vsub.f32 %v1357, %v1389
        %v1399 = vsub.f32 %v1358, %v1389
        %v1400 = vsub.f32 %v1359, %v1389
        %v1401 = vsub.f32 %v1360, %v1389
        %v1402 = vmul.f32 %v1390, 1.442695
        %v1403 = vpow.pop %v1402
        %v1404 = vmul.f32 %v1391, 1.442695
        %v1405 = vpow.pop %v1404
        %v1406 = vmul.f32 %v1392, 1.442695
        %v1407 = vpow.pop %v1406
        %v1408 = vmul.f32 %v1393, 1.442695
        %v1409 = vpow.pop %v1408
        %v1410 = vmul.f32 %v1394, 1.442695
        %v1411 = vpow.pop %v1410
        %v1412 = vmul.f32 %v1395, 1.442695
        %v1413 = vpow.pop %v1412
        %v1414 = vmul.f32 %v1396, 1.442695
        %v1415 = vpow.pop %v1414
        %v1416 = vmul.f32 %v1397, 1.442695
        %v1417 = vpow.pop %v1416
        %v1418 = vmul.f32 %v1398, 1.442695
        %v1419 = vpow.pop %v1418
        %v1420 = vmul.f32 %v1399, 1.442695
        %v1421 = vpow.pop %v1420
        %v1422 = vmul.f32 %v1400, 1.442695
        %v1423 = vpow.pop %v1422
        %v1424 = vmul.f32 %v1401, 1.442695
        %v1425 = vpow.pop %v1424
        %v1427 = vsel %vm451, 1.0, 0
        %1429 = vmatpush.msra.mxu0 0.0
        %1430 = vmatpush.msra.mxu0 0.0
        %1431 = vmatpush.msra.mxu0 0.0
        %1432 = vmatpush.msra.mxu0 0.0
        %1433 = vmatpush.msra.mxu0 %v1425
        %1434 = vmatpush.msra.mxu0 %v1423
        %1435 = vmatpush.msra.mxu0 %v1421
        %1436 = vmatpush.msra.mxu0 %v1419
        %1437 = vmatpush.msra.mxu0 %v1417
        %1438 = vmatpush.msra.mxu0 %v1415
        %1439 = vmatpush.msra.mxu0 %v1413
        %1440 = vmatpush.msra.mxu0 %v1411
        %1441 = vmatpush.msra.mxu0 %v1409
        %1442 = vmatpush.msra.mxu0 %v1407
        %1443 = vmatpush.msra.mxu0 %v1405
        %1444 = vmatpush.msra.mxu0 %v1403
        %1445 = vmatmul.f32.gmra.mxu0 %v1427
        %v1446 = vpop.f32.mrf.mxu0
        %v1447 = vadd.f32 0.0, %v1446
        %1448 = vdwg.mxu0
        %v1449 = vlog2.pop %v1447
        %v1450 = vmul.f32 %v1449, 0.6931472
        %v1451 = vadd.f32 %v1389, %v1450
        %v1452 = vmul.f32 %v1216, %v1451
        %v1453 = vadd.f32 %v998, %v1253
        %v1454 = vadd.f32 %v999, %v1254
        %v1455 = vadd.f32 %v1000, %v1255
        %v1456 = vadd.f32 %v1001, %v1256
        %v1457 = vadd.f32 %v1002, %v1257
        %v1458 = vadd.f32 %v1003, %v1258
        %v1459 = vadd.f32 %v1004, %v1259
        %v1460 = vadd.f32 %v1005, %v1260
        %v1461 = vadd.f32 %v1006, %v1261
        %v1462 = vadd.f32 %v1007, %v1262
        %v1463 = vadd.f32 %v1008, %v1263
        %v1464 = vadd.f32 %v1009, %v1264
        %v1465 = vmul.f32 %v1453, 0.5
        %v1466 = vmul.f32 %v1454, 0.5
        %v1467 = vmul.f32 %v1455, 0.5
        %v1468 = vmul.f32 %v1456, 0.5
        %v1469 = vmul.f32 %v1457, 0.5
        %v1470 = vmul.f32 %v1458, 0.5
        %v1471 = vmul.f32 %v1459, 0.5
        %v1472 = vmul.f32 %v1460, 0.5
        %v1473 = vmul.f32 %v1461, 0.5
        %v1474 = vmul.f32 %v1462, 0.5
        %v1475 = vmul.f32 %v1463, 0.5
        %v1476 = vmul.f32 %v1464, 0.5
        %v1477 = vadd.f32 %v1010, %v1452
        %v1478 = vmul.f32 %v1477, 0.5
        %v1479 = vmul.f32 %v1011, 0.25
      $region33: #{part_wise_emd.5} parent=27 // loop_footer
        %s997 = sadd.s32 1, %s993
      $region34: #{part_wise_emd.5} parent=27 // loop_footer_branch
        %992 = sbr.rel target = $region30
      $region35: #{part_wise_emd.5} parent=27 // loop_exit
        _
      loop: start=0, step=1, limit=20
      $region36: #{part_wise_emd.5} parent=27 // loop_pre_header
        _
      $region37: #{part_wise_emd.5} parent=27 // loop_header
        %s1481 = sphi 0, %s1485
        %p1482 = scmp.ge.s32.totalorder %s1481, 20
        %v1486 = vphi 0.0, %v1695
        %v1487 = vphi %v991, %v1696
      $region38: #{part_wise_emd.5} parent=27 // loop_header_branch
        %1484 = sbr.rel (%p1482) target = $region42
      $region39: #{part_wise_emd.5} parent=27 // loop_body
        %v1488 = vmax.f32 %v1487, 0.0025
        %v1489 = vrcp.pop %v1488
        %v1490 = vmul.f32 %v1488, %v1489
        %v1491 = vsub.f32 1.0, %v1490
        %v1492 = vmul.f32 %v1489, %v1491
        %v1493 = vadd.f32 %v1489, %v1492
        %vm1494 = vweird.f32 %v1488
        %vm1495 = vweird.f32 %v1489
        %vm1496 = vmor %vm1494, %vm1495
        %v1497 = vsel %vm1496, %v1489, %v1493
        %v1498 = vand.u32 2147483647, %v1488
        %vm1499 = vcmp.eq.f32.partialorder %v1498, 8.507059e+37
        %v1500 = vand.u32 %v1488, 2147483648
        %v1501 = vor.u32 1.1754944e-38, %v1500
        %v1502 = vsel %vm1499, %v1501, %v1497
        %v1503 = vmul.f32 1.0, %v1502
        %v1504 = vmul.f32 %v847, %v1503
        %v1505 = vmul.f32 %v848, %v1503
        %v1506 = vmul.f32 %v849, %v1503
        %v1507 = vmul.f32 %v850, %v1503
        %v1508 = vmul.f32 %v851, %v1503
        %v1509 = vmul.f32 %v852, %v1503
        %v1510 = vmul.f32 %v853, %v1503
        %v1511 = vmul.f32 %v854, %v1503
        %v1512 = vmul.f32 %v855, %v1503
        %v1513 = vmul.f32 %v856, %v1503
        %v1514 = vmul.f32 %v857, %v1503
        %v1515 = vmul.f32 %v858, %v1503
        %v1516 = vperm.slane %v1486, 0
        %v1517 = vmul.f32 %v310, %v1516
        %v1518 = vmul.f32 %v311, %v1516
        %v1519 = vmul.f32 %v312, %v1516
        %v1520 = vmul.f32 %v313, %v1516
        %v1521 = vmul.f32 %v314, %v1516
        %v1522 = vmul.f32 %v315, %v1516
        %v1523 = vmul.f32 %v316, %v1516
        %v1524 = vmul.f32 %v317, %v1516
        %v1525 = vmul.f32 %v318, %v1516
        %v1526 = vmul.f32 %v319, %v1516
        %v1527 = vmul.f32 %v320, %v1516
        %v1528 = vmul.f32 %v321, %v1516
        %v1529 = vsel %vm451, %v1517, 0.0
        %1530 = vadd.xlane.f32.xlu0 %v1529
        %v1531 = vpop.xlane.xlu0 %1530
        %v1532 = vsel %vm451, %v1518, 0.0
        %1533 = vadd.xlane.f32.xlu0 %v1532
        %v1534 = vpop.xlane.xlu0 %1533
        %v1535 = vsel %vm451, %v1519, 0.0
        %1536 = vadd.xlane.f32.xlu0 %v1535
        %v1537 = vpop.xlane.xlu0 %1536
        %v1538 = vsel %vm451, %v1520, 0.0
        %1539 = vadd.xlane.f32.xlu0 %v1538
        %v1540 = vpop.xlane.xlu0 %1539
        %v1541 = vsel %vm451, %v1521, 0.0
        %1542 = vadd.xlane.f32.xlu0 %v1541
        %v1543 = vpop.xlane.xlu0 %1542
        %v1544 = vsel %vm451, %v1522, 0.0
        %1545 = vadd.xlane.f32.xlu0 %v1544
        %v1546 = vpop.xlane.xlu0 %1545
        %v1547 = vsel %vm451, %v1523, 0.0
        %1548 = vadd.xlane.f32.xlu0 %v1547
        %v1549 = vpop.xlane.xlu0 %1548
        %v1550 = vsel %vm451, %v1524, 0.0
        %1551 = vadd.xlane.f32.xlu0 %v1550
        %v1552 = vpop.xlane.xlu0 %1551
        %v1553 = vsel %vm451, %v1525, 0.0
        %1554 = vadd.xlane.f32.xlu0 %v1553
        %v1555 = vpop.xlane.xlu0 %1554
        %v1556 = vsel %vm451, %v1526, 0.0
        %1557 = vadd.xlane.f32.xlu0 %v1556
        %v1558 = vpop.xlane.xlu0 %1557
        %v1559 = vsel %vm451, %v1527, 0.0
        %1560 = vadd.xlane.f32.xlu0 %v1559
        %v1561 = vpop.xlane.xlu0 %1560
        %v1562 = vsel %vm451, %v1528, 0.0
        %1563 = vadd.xlane.f32.xlu0 %v1562
        %v1564 = vpop.xlane.xlu0 %1563
        %v1565 = vmul.f32 %v1531, %v1503
        %v1566 = vmul.f32 %v1534, %v1503
        %v1567 = vmul.f32 %v1537, %v1503
        %v1568 = vmul.f32 %v1540, %v1503
        %v1569 = vmul.f32 %v1543, %v1503
        %v1570 = vmul.f32 %v1546, %v1503
        %v1571 = vmul.f32 %v1549, %v1503
        %v1572 = vmul.f32 %v1552, %v1503
        %v1573 = vmul.f32 %v1555, %v1503
        %v1574 = vmul.f32 %v1558, %v1503
        %v1575 = vmul.f32 %v1561, %v1503
        %v1576 = vmul.f32 %v1564, %v1503
        %v1577 = vadd.f32 %v272, %v1565
        %v1578 = vadd.f32 %v273, %v1566
        %v1579 = vadd.f32 %v274, %v1567
        %v1580 = vadd.f32 %v275, %v1568
        %v1581 = vadd.f32 %v276, %v1569
        %v1582 = vadd.f32 %v277, %v1570
        %v1583 = vadd.f32 %v278, %v1571
        %v1584 = vadd.f32 %v279, %v1572
        %v1585 = vadd.f32 %v280, %v1573
        %v1586 = vadd.f32 %v281, %v1574
        %v1587 = vadd.f32 %v282, %v1575
        %v1588 = vadd.f32 %v283, %v1576
        %v1589 = vsub.f32 %v1577, %v1504
        %v1590 = vsub.f32 %v1578, %v1505
        %v1591 = vsub.f32 %v1579, %v1506
        %v1592 = vsub.f32 %v1580, %v1507
        %v1593 = vsub.f32 %v1581, %v1508
        %v1594 = vsub.f32 %v1582, %v1509
        %v1595 = vsub.f32 %v1583, %v1510
        %v1596 = vsub.f32 %v1584, %v1511
        %v1597 = vsub.f32 %v1585, %v1512
        %v1598 = vsub.f32 %v1586, %v1513
        %v1599 = vsub.f32 %v1587, %v1514
        %v1600 = vsub.f32 %v1588, %v1515
        %v1601 = vsel %vm451, %v1589, -inf
        %v1602 = vsel %vm451, %v1590, -inf
        %v1603 = vsel %vm451, %v1591, -inf
        %v1604 = vsel %vm451, %v1592, -inf
        %v1605 = vsel %vm451, %v1593, -inf
        %v1606 = vmax.f32 %v1601, %v1605
        %v1607 = vsel %vm451, %v1594, -inf
        %v1608 = vmax.f32 %v1602, %v1607
        %v1609 = vsel %vm451, %v1595, -inf
        %v1610 = vmax.f32 %v1603, %v1609
        %v1611 = vsel %vm451, %v1596, -inf
        %v1612 = vmax.f32 %v1604, %v1611
        %v1613 = vsel %vm451, %v1597, -inf
        %v1614 = vmax.f32 %v1606, %v1613
        %v1615 = vsel %vm451, %v1598, -inf
        %v1616 = vmax.f32 %v1608, %v1615
        %v1617 = vsel %vm451, %v1599, -inf
        %v1618 = vmax.f32 %v1610, %v1617
        %v1619 = vsel %vm451, %v1600, -inf
        %v1620 = vmax.f32 %v1612, %v1619
        %v1621 = vmax.f32 %v1614, %v1616
        %v1622 = vmax.f32 %v1618, %v1620
        %v1623 = vmax.f32 %v1621, %v1622
        %v1624 = vrot.slane %v1623, 4
        %v1625 = vmax.f32 %v1623, %v1624
        %v1626 = vrot.slane %v1625, 2
        %v1627 = vmax.f32 %v1625, %v1626
        %v1628 = vrot.slane %v1627, 1
        %v1629 = vmax.f32 %v1627, %v1628
        %v1630 = vsub.f32 %v1589, %v1629
        %v1631 = vsub.f32 %v1590, %v1629
        %v1632 = vsub.f32 %v1591, %v1629
        %v1633 = vsub.f32 %v1592, %v1629
        %v1634 = vsub.f32 %v1593, %v1629
        %v1635 = vsub.f32 %v1594, %v1629
        %v1636 = vsub.f32 %v1595, %v1629
        %v1637 = vsub.f32 %v1596, %v1629
        %v1638 = vsub.f32 %v1597, %v1629
        %v1639 = vsub.f32 %v1598, %v1629
        %v1640 = vsub.f32 %v1599, %v1629
        %v1641 = vsub.f32 %v1600, %v1629
        %v1642 = vmul.f32 %v1630, 1.442695
        %v1643 = vpow.pop %v1642
        %v1644 = vmul.f32 %v1631, 1.442695
        %v1645 = vpow.pop %v1644
        %v1646 = vmul.f32 %v1632, 1.442695
        %v1647 = vpow.pop %v1646
        %v1648 = vmul.f32 %v1633, 1.442695
        %v1649 = vpow.pop %v1648
        %v1650 = vmul.f32 %v1634, 1.442695
        %v1651 = vpow.pop %v1650
        %v1652 = vmul.f32 %v1635, 1.442695
        %v1653 = vpow.pop %v1652
        %v1654 = vmul.f32 %v1636, 1.442695
        %v1655 = vpow.pop %v1654
        %v1656 = vmul.f32 %v1637, 1.442695
        %v1657 = vpow.pop %v1656
        %v1658 = vmul.f32 %v1638, 1.442695
        %v1659 = vpow.pop %v1658
        %v1660 = vmul.f32 %v1639, 1.442695
        %v1661 = vpow.pop %v1660
        %v1662 = vmul.f32 %v1640, 1.442695
        %v1663 = vpow.pop %v1662
        %v1664 = vmul.f32 %v1641, 1.442695
        %v1665 = vpow.pop %v1664
        %v1667 = vsel %vm451, 1.0, 0
        %1669 = vmatpush.msra.mxu0 0.0
        %1670 = vmatpush.msra.mxu0 0.0
        %1671 = vmatpush.msra.mxu0 0.0
        %1672 = vmatpush.msra.mxu0 0.0
        %1673 = vmatpush.msra.mxu0 %v1665
        %1674 = vmatpush.msra.mxu0 %v1663
        %1675 = vmatpush.msra.mxu0 %v1661
        %1676 = vmatpush.msra.mxu0 %v1659
        %1677 = vmatpush.msra.mxu0 %v1657
        %1678 = vmatpush.msra.mxu0 %v1655
        %1679 = vmatpush.msra.mxu0 %v1653
        %1680 = vmatpush.msra.mxu0 %v1651
        %1681 = vmatpush.msra.mxu0 %v1649
        %1682 = vmatpush.msra.mxu0 %v1647
        %1683 = vmatpush.msra.mxu0 %v1645
        %1684 = vmatpush.msra.mxu0 %v1643
        %1685 = vmatmul.f32.gmra.mxu0 %v1667
        %v1686 = vpop.f32.mrf.mxu0
        %v1687 = vadd.f32 0.0, %v1686
        %1688 = vdwg.mxu0
        %v1689 = vsub.f32 0.0, %v1488
        %v1690 = vlog2.pop %v1687
        %v1691 = vmul.f32 %v1690, 0.6931472
        %v1692 = vadd.f32 %v1629, %v1691
        %v1693 = vmul.f32 %v1689, %v1692
        %v1694 = vadd.f32 %v1486, %v1693
        %v1695 = vmul.f32 %v1694, 0.5
        %v1696 = vmul.f32 %v1487, 0.25
      $region40: #{part_wise_emd.5} parent=27 // loop_footer
        %s1485 = sadd.s32 1, %s1481
      $region41: #{part_wise_emd.5} parent=27 // loop_footer_branch
        %1480 = sbr.rel target = $region37
      $region42: #{part_wise_emd.5} parent=27 // loop_exit
        _
      loop: start=0, step=1, limit=20
      $region43: #{part_wise_emd.5} parent=27 // loop_pre_header
        _
      $region44: #{part_wise_emd.5} parent=27 // loop_header
        %s1698 = sphi 0, %s1702
        %p1699 = scmp.ge.s32.totalorder %s1698, 20
        %v1703 = vphi 0.0, %v2036
        %v1704 = vphi 0.0, %v2037
        %v1705 = vphi 0.0, %v2038
        %v1706 = vphi 0.0, %v2039
        %v1707 = vphi 0.0, %v2040
        %v1708 = vphi 0.0, %v2041
        %v1709 = vphi 0.0, %v2042
        %v1710 = vphi 0.0, %v2043
        %v1711 = vphi 0.0, %v2044
        %v1712 = vphi 0.0, %v2045
        %v1713 = vphi 0.0, %v2046
        %v1714 = vphi 0.0, %v2047
        %v1715 = vphi %v991, %v2048
      $region45: #{part_wise_emd.5} parent=27 // loop_header_branch
        %1701 = sbr.rel (%p1699) target = $region49
      $region46: #{part_wise_emd.5} parent=27 // loop_body
        %v1716 = vmax.f32 %v1715, 0.0025
        %v1717 = vrcp.pop %v1716
        %v1718 = vmul.f32 %v1716, %v1717
        %v1719 = vsub.f32 1.0, %v1718
        %v1720 = vmul.f32 %v1717, %v1719
        %v1721 = vadd.f32 %v1717, %v1720
        %vm1722 = vweird.f32 %v1716
        %vm1723 = vweird.f32 %v1717
        %vm1724 = vmor %vm1722, %vm1723
        %v1725 = vsel %vm1724, %v1717, %v1721
        %v1726 = vand.u32 2147483647, %v1716
        %vm1727 = vcmp.eq.f32.partialorder %v1726, 8.507059e+37
        %v1728 = vand.u32 %v1716, 2147483648
        %v1729 = vor.u32 1.1754944e-38, %v1728
        %v1730 = vsel %vm1727, %v1729, %v1725
        %v1731 = vmul.f32 1.0, %v1730
        %v1732 = vmul.f32 %v895, %v1731
        %v1733 = vmul.f32 %v896, %v1731
        %v1734 = vmul.f32 %v897, %v1731
        %v1735 = vmul.f32 %v898, %v1731
        %v1736 = vmul.f32 %v899, %v1731
        %v1737 = vmul.f32 %v900, %v1731
        %v1738 = vmul.f32 %v901, %v1731
        %v1739 = vmul.f32 %v902, %v1731
        %v1740 = vmul.f32 %v903, %v1731
        %v1741 = vmul.f32 %v904, %v1731
        %v1742 = vmul.f32 %v905, %v1731
        %v1743 = vmul.f32 %v906, %v1731
        %1744 = vxpose.xlu0.b32.start [1/16] %v1703, 128
        %1745 = vxpose.xlu0.b32.cont [2/16] %v1704, 128
        %1746 = vxpose.xlu0.b32.cont [3/16] %v1705, 128
        %1747 = vxpose.xlu0.b32.cont [4/16] %v1706, 128
        %1748 = vxpose.xlu0.b32.cont [5/16] %v1707, 128
        %1749 = vxpose.xlu0.b32.cont [6/16] %v1708, 128
        %1750 = vxpose.xlu0.b32.cont [7/16] %v1709, 128
        %1751 = vxpose.xlu0.b32.cont [8/16] %v1710, 128
        %1752 = vxpose.xlu0.b32.cont [9/16] %v1711, 128
        %1753 = vxpose.xlu0.b32.cont [10/16] %v1712, 128
        %1754 = vxpose.xlu0.b32.cont [11/16] %v1713, 128
        %1755 = vxpose.xlu0.b32.cont [12/16] %v1714, 128
        %1756 = vxpose.xlu0.b32.cont [13/16] 0.0, 128
        %1757 = vxpose.xlu0.b32.cont [14/16] 0.0, 128
        %1758 = vxpose.xlu0.b32.cont [15/16] 0.0, 128
        %1759 = vxpose.xlu0.b32.end [16/16] 0.0, 128
        %v1760 = vpop.trf.xlu0
        %v1761 = vpop.trf.xlu0
        %v1762 = vpop.trf.xlu0
        %v1763 = vpop.trf.xlu0
        %v1764 = vpop.trf.xlu0
        %v1765 = vpop.trf.xlu0
        %v1766 = vpop.trf.xlu0
        %v1767 = vpop.trf.xlu0
        %v1768 = vpop.trf.xlu0
        %v1769 = vpop.trf.xlu0
        %v1770 = vpop.trf.xlu0
        %v1771 = vpop.trf.xlu0
        %v1772 = vpop.trf.xlu0
        %v1773 = vpop.trf.xlu0
        %v1774 = vpop.trf.xlu0
        %v1775 = vpop.trf.xlu0
        %v1777 = vsel %vm451, %v1760, 0
        %1779 = vmatpush.msra.mxu0 0.0
        %1780 = vmatpush.msra.mxu0 0.0
        %1781 = vmatpush.msra.mxu0 0.0
        %1782 = vmatpush.msra.mxu0 0.0
        %1783 = vmatpush.msra.mxu0 %v321
        %1784 = vmatpush.msra.mxu0 %v320
        %1785 = vmatpush.msra.mxu0 %v319
        %1786 = vmatpush.msra.mxu0 %v318
        %1787 = vmatpush.msra.mxu0 %v317
        %1788 = vmatpush.msra.mxu0 %v316
        %1789 = vmatpush.msra.mxu0 %v315
        %1790 = vmatpush.msra.mxu0 %v314
        %1791 = vmatpush.msra.mxu0 %v313
        %1792 = vmatpush.msra.mxu0 %v312
        %1793 = vmatpush.msra.mxu0 %v311
        %1794 = vmatpush.msra.mxu0 %v310
        %1795 = vmatmul.f32.gmra.mxu0 %v1777
        %v1796 = vpop.f32.mrf.mxu0
        %v1797 = vadd.f32 0.0, %v1796
        %1798 = vdwg.mxu0
        %v1799 = vmul.f32 %v1797, %v1731
        %v1800 = vadd.f32 %v285, %v1799
        %v1801 = vperm.slane %v1800, 0
        %v1802 = vsub.f32 %v1801, %v1732
        %v1803 = vsub.f32 %v1801, %v1733
        %v1804 = vsub.f32 %v1801, %v1734
        %v1805 = vsub.f32 %v1801, %v1735
        %v1806 = vsub.f32 %v1801, %v1736
        %v1807 = vsub.f32 %v1801, %v1737
        %v1808 = vsub.f32 %v1801, %v1738
        %v1809 = vsub.f32 %v1801, %v1739
        %v1810 = vsub.f32 %v1801, %v1740
        %v1811 = vsub.f32 %v1801, %v1741
        %v1812 = vsub.f32 %v1801, %v1742
        %v1813 = vsub.f32 %v1801, %v1743
        %v1814 = vsel %vm451, %v1802, -inf
        %1815 = vmax.xlane.f32.xlu0 %v1814
        %v1816 = vpop.xlane.xlu0 %1815
        %v1817 = vsel %vm451, %v1803, -inf
        %1818 = vmax.xlane.f32.xlu0 %v1817
        %v1819 = vpop.xlane.xlu0 %1818
        %v1820 = vsel %vm451, %v1804, -inf
        %1821 = vmax.xlane.f32.xlu0 %v1820
        %v1822 = vpop.xlane.xlu0 %1821
        %v1823 = vsel %vm451, %v1805, -inf
        %1824 = vmax.xlane.f32.xlu0 %v1823
        %v1825 = vpop.xlane.xlu0 %1824
        %v1826 = vsel %vm451, %v1806, -inf
        %1827 = vmax.xlane.f32.xlu0 %v1826
        %v1828 = vpop.xlane.xlu0 %1827
        %v1829 = vsel %vm451, %v1807, -inf
        %1830 = vmax.xlane.f32.xlu0 %v1829
        %v1831 = vpop.xlane.xlu0 %1830
        %v1832 = vsel %vm451, %v1808, -inf
        %1833 = vmax.xlane.f32.xlu0 %v1832
        %v1834 = vpop.xlane.xlu0 %1833
        %v1835 = vsel %vm451, %v1809, -inf
        %1836 = vmax.xlane.f32.xlu0 %v1835
        %v1837 = vpop.xlane.xlu0 %1836
        %v1838 = vsel %vm451, %v1810, -inf
        %1839 = vmax.xlane.f32.xlu0 %v1838
        %v1840 = vpop.xlane.xlu0 %1839
        %v1841 = vsel %vm451, %v1811, -inf
        %1842 = vmax.xlane.f32.xlu0 %v1841
        %v1843 = vpop.xlane.xlu0 %1842
        %v1844 = vsel %vm451, %v1812, -inf
        %1845 = vmax.xlane.f32.xlu0 %v1844
        %v1846 = vpop.xlane.xlu0 %1845
        %v1847 = vsel %vm451, %v1813, -inf
        %1848 = vmax.xlane.f32.xlu0 %v1847
        %v1849 = vpop.xlane.xlu0 %1848
        %v1850 = vsub.f32 %v1802, %v1816
        %v1851 = vsub.f32 %v1803, %v1819
        %v1852 = vsub.f32 %v1804, %v1822
        %v1853 = vsub.f32 %v1805, %v1825
        %v1854 = vsub.f32 %v1806, %v1828
        %v1855 = vsub.f32 %v1807, %v1831
        %v1856 = vsub.f32 %v1808, %v1834
        %v1857 = vsub.f32 %v1809, %v1837
        %v1858 = vsub.f32 %v1810, %v1840
        %v1859 = vsub.f32 %v1811, %v1843
        %v1860 = vsub.f32 %v1812, %v1846
        %v1861 = vsub.f32 %v1813, %v1849
        %v1862 = vmul.f32 %v1850, 1.442695
        %v1863 = vpow.pop %v1862
        %v1864 = vmul.f32 %v1851, 1.442695
        %v1865 = vpow.pop %v1864
        %v1866 = vmul.f32 %v1852, 1.442695
        %v1867 = vpow.pop %v1866
        %v1868 = vmul.f32 %v1853, 1.442695
        %v1869 = vpow.pop %v1868
        %v1870 = vmul.f32 %v1854, 1.442695
        %v1871 = vpow.pop %v1870
        %v1872 = vmul.f32 %v1855, 1.442695
        %v1873 = vpow.pop %v1872
        %v1874 = vmul.f32 %v1856, 1.442695
        %v1875 = vpow.pop %v1874
        %v1876 = vmul.f32 %v1857, 1.442695
        %v1877 = vpow.pop %v1876
        %v1878 = vmul.f32 %v1858, 1.442695
        %v1879 = vpow.pop %v1878
        %v1880 = vmul.f32 %v1859, 1.442695
        %v1881 = vpow.pop %v1880
        %v1882 = vmul.f32 %v1860, 1.442695
        %v1883 = vpow.pop %v1882
        %v1884 = vmul.f32 %v1861, 1.442695
        %v1885 = vpow.pop %v1884
        %v1887 = vsel %vm451, %v1863, 0
        %v1890 = vsel %vm451, %v1865, 0
        %v1893 = vsel %vm451, %v1867, 0
        %v1896 = vsel %vm451, %v1869, 0
        %v1899 = vsel %vm451, %v1871, 0
        %v1902 = vsel %vm451, %v1873, 0
        %v1905 = vsel %vm451, %v1875, 0
        %v1908 = vsel %vm451, %v1877, 0
        %v1911 = vsel %vm451, %v1879, 0
        %v1914 = vsel %vm451, %v1881, 0
        %v1917 = vsel %vm451, %v1883, 0
        %v1920 = vsel %vm451, %v1885, 0
        %1922 = vmatpush.msra.mxu0 0.0
        %1923 = vmatpush.msra.mxu0 0.0
        %1924 = vmatpush.msra.mxu0 0.0
        %1925 = vmatpush.msra.mxu0 0.0
        %1926 = vmatpush.msra.mxu0 1.0
        %1927 = vmatpush.msra.mxu0 1.0
        %1928 = vmatpush.msra.mxu0 1.0
        %1929 = vmatpush.msra.mxu0 1.0
        %1930 = vmatpush.msra.mxu0 1.0
        %1931 = vmatpush.msra.mxu0 1.0
        %1932 = vmatpush.msra.mxu0 1.0
        %1933 = vmatpush.msra.mxu0 1.0
        %1934 = vmatpush.msra.mxu0 1.0
        %1935 = vmatpush.msra.mxu0 1.0
        %1936 = vmatpush.msra.mxu0 1.0
        %1937 = vmatpush.msra.mxu0 1.0
        %1938 = vmatmul.f32.gmra.mxu0 %v1887
        %v1939 = vpop.f32.mrf.mxu0
        %v1940 = vadd.f32 0.0, %v1939
        %1941 = vmatmul.f32.gmra.mxu0 %v1890
        %v1942 = vpop.f32.mrf.mxu0
        %v1943 = vadd.f32 0.0, %v1942
        %1944 = vmatmul.f32.gmra.mxu0 %v1893
        %v1945 = vpop.f32.mrf.mxu0
        %v1946 = vadd.f32 0.0, %v1945
        %1947 = vmatmul.f32.gmra.mxu0 %v1896
        %v1948 = vpop.f32.mrf.mxu0
        %v1949 = vadd.f32 0.0, %v1948
        %1950 = vmatmul.f32.gmra.mxu0 %v1899
        %v1951 = vpop.f32.mrf.mxu0
        %v1952 = vadd.f32 0.0, %v1951
        %1953 = vmatmul.f32.gmra.mxu0 %v1902
        %v1954 = vpop.f32.mrf.mxu0
        %v1955 = vadd.f32 0.0, %v1954
        %1956 = vmatmul.f32.gmra.mxu0 %v1905
        %v1957 = vpop.f32.mrf.mxu0
        %v1958 = vadd.f32 0.0, %v1957
        %1959 = vmatmul.f32.gmra.mxu0 %v1908
        %v1960 = vpop.f32.mrf.mxu0
        %v1961 = vadd.f32 0.0, %v1960
        %1962 = vmatmul.f32.gmra.mxu0 %v1911
        %v1963 = vpop.f32.mrf.mxu0
        %v1964 = vadd.f32 0.0, %v1963
        %1965 = vmatmul.f32.gmra.mxu0 %v1914
        %v1966 = vpop.f32.mrf.mxu0
        %v1967 = vadd.f32 0.0, %v1966
        %1968 = vmatmul.f32.gmra.mxu0 %v1917
        %v1969 = vpop.f32.mrf.mxu0
        %v1970 = vadd.f32 0.0, %v1969
        %1971 = vmatmul.f32.gmra.mxu0 %v1920
        %v1972 = vpop.f32.mrf.mxu0
        %v1973 = vadd.f32 0.0, %v1972
        %1974 = vdwg.mxu0
        %v1975 = vsub.f32 0.0, %v1716
        %v1976 = vlog2.pop %v1940
        %v1977 = vmul.f32 %v1976, 0.6931472
        %v1978 = vlog2.pop %v1943
        %v1979 = vmul.f32 %v1978, 0.6931472
        %v1980 = vlog2.pop %v1946
        %v1981 = vmul.f32 %v1980, 0.6931472
        %v1982 = vlog2.pop %v1949
        %v1983 = vmul.f32 %v1982, 0.6931472
        %v1984 = vlog2.pop %v1952
        %v1985 = vmul.f32 %v1984, 0.6931472
        %v1986 = vlog2.pop %v1955
        %v1987 = vmul.f32 %v1986, 0.6931472
        %v1988 = vlog2.pop %v1958
        %v1989 = vmul.f32 %v1988, 0.6931472
        %v1990 = vlog2.pop %v1961
        %v1991 = vmul.f32 %v1990, 0.6931472
        %v1992 = vlog2.pop %v1964
        %v1993 = vmul.f32 %v1992, 0.6931472
        %v1994 = vlog2.pop %v1967
        %v1995 = vmul.f32 %v1994, 0.6931472
        %v1996 = vlog2.pop %v1970
        %v1997 = vmul.f32 %v1996, 0.6931472
        %v1998 = vlog2.pop %v1973
        %v1999 = vmul.f32 %v1998, 0.6931472
        %v2000 = vadd.f32 %v1816, %v1977
        %v2001 = vadd.f32 %v1819, %v1979
        %v2002 = vadd.f32 %v1822, %v1981
        %v2003 = vadd.f32 %v1825, %v1983
        %v2004 = vadd.f32 %v1828, %v1985
        %v2005 = vadd.f32 %v1831, %v1987
        %v2006 = vadd.f32 %v1834, %v1989
        %v2007 = vadd.f32 %v1837, %v1991
        %v2008 = vadd.f32 %v1840, %v1993
        %v2009 = vadd.f32 %v1843, %v1995
        %v2010 = vadd.f32 %v1846, %v1997
        %v2011 = vadd.f32 %v1849, %v1999
        %v2012 = vmul.f32 %v1975, %v2000
        %v2013 = vmul.f32 %v1975, %v2001
        %v2014 = vmul.f32 %v1975, %v2002
        %v2015 = vmul.f32 %v1975, %v2003
        %v2016 = vmul.f32 %v1975, %v2004
        %v2017 = vmul.f32 %v1975, %v2005
        %v2018 = vmul.f32 %v1975, %v2006
        %v2019 = vmul.f32 %v1975, %v2007
        %v2020 = vmul.f32 %v1975, %v2008
        %v2021 = vmul.f32 %v1975, %v2009
        %v2022 = vmul.f32 %v1975, %v2010
        %v2023 = vmul.f32 %v1975, %v2011
        %v2024 = vadd.f32 %v1703, %v2012
        %v2025 = vadd.f32 %v1704, %v2013
        %v2026 = vadd.f32 %v1705, %v2014
        %v2027 = vadd.f32 %v1706, %v2015
        %v2028 = vadd.f32 %v1707, %v2016
        %v2029 = vadd.f32 %v1708, %v2017
        %v2030 = vadd.f32 %v1709, %v2018
        %v2031 = vadd.f32 %v1710, %v2019
        %v2032 = vadd.f32 %v1711, %v2020
        %v2033 = vadd.f32 %v1712, %v2021
        %v2034 = vadd.f32 %v1713, %v2022
        %v2035 = vadd.f32 %v1714, %v2023
        %v2036 = vmul.f32 %v2024, 0.5
        %v2037 = vmul.f32 %v2025, 0.5
        %v2038 = vmul.f32 %v2026, 0.5
        %v2039 = vmul.f32 %v2027, 0.5
        %v2040 = vmul.f32 %v2028, 0.5
        %v2041 = vmul.f32 %v2029, 0.5
        %v2042 = vmul.f32 %v2030, 0.5
        %v2043 = vmul.f32 %v2031, 0.5
        %v2044 = vmul.f32 %v2032, 0.5
        %v2045 = vmul.f32 %v2033, 0.5
        %v2046 = vmul.f32 %v2034, 0.5
        %v2047 = vmul.f32 %v2035, 0.5
        %v2048 = vmul.f32 %v1715, 0.25
      $region47: #{part_wise_emd.5} parent=27 // loop_footer
        %s1702 = sadd.s32 1, %s1698
      $region48: #{part_wise_emd.5} parent=27 // loop_footer_branch
        %1697 = sbr.rel target = $region44
      $region49: #{part_wise_emd.5} parent=27 // loop_exit
        _
      %v2049 = vmul.f32 %v798, 400.0
      %v2050 = vmul.f32 %v799, 400.0
      %v2051 = vmul.f32 %v800, 400.0
      %v2052 = vmul.f32 %v801, 400.0
      %v2053 = vmul.f32 %v802, 400.0
      %v2054 = vmul.f32 %v803, 400.0
      %v2055 = vmul.f32 %v804, 400.0
      %v2056 = vmul.f32 %v805, 400.0
      %v2057 = vmul.f32 %v806, 400.0
      %v2058 = vmul.f32 %v807, 400.0
      %v2059 = vmul.f32 %v808, 400.0
      %v2060 = vmul.f32 %v809, 400.0
      %v2061 = vmul.f32 %v1010, 400.0
      %v2062 = vadd.f32 %v285, %v2061
      %v2063 = vperm.slane %v2062, 0
      %v2064 = vsub.f32 %v2063, %v2049
      %v2065 = vsub.f32 %v2063, %v2050
      %v2066 = vsub.f32 %v2063, %v2051
      %v2067 = vsub.f32 %v2063, %v2052
      %v2068 = vsub.f32 %v2063, %v2053
      %v2069 = vsub.f32 %v2063, %v2054
      %v2070 = vsub.f32 %v2063, %v2055
      %v2071 = vsub.f32 %v2063, %v2056
      %v2072 = vsub.f32 %v2063, %v2057
      %v2073 = vsub.f32 %v2063, %v2058
      %v2074 = vsub.f32 %v2063, %v2059
      %v2075 = vsub.f32 %v2063, %v2060
      %v2076 = vsel %vm451, %v2064, -inf
      %2077 = vmax.xlane.f32.xlu0 %v2076
      %v2078 = vpop.xlane.xlu0 %2077
      %v2079 = vsel %vm451, %v2065, -inf
      %2080 = vmax.xlane.f32.xlu0 %v2079
      %v2081 = vpop.xlane.xlu0 %2080
      %v2082 = vsel %vm451, %v2066, -inf
      %2083 = vmax.xlane.f32.xlu0 %v2082
      %v2084 = vpop.xlane.xlu0 %2083
      %v2085 = vsel %vm451, %v2067, -inf
      %2086 = vmax.xlane.f32.xlu0 %v2085
      %v2087 = vpop.xlane.xlu0 %2086
      %v2088 = vsel %vm451, %v2068, -inf
      %2089 = vmax.xlane.f32.xlu0 %v2088
      %v2090 = vpop.xlane.xlu0 %2089
      %v2091 = vsel %vm451, %v2069, -inf
      %2092 = vmax.xlane.f32.xlu0 %v2091
      %v2093 = vpop.xlane.xlu0 %2092
      %v2094 = vsel %vm451, %v2070, -inf
      %2095 = vmax.xlane.f32.xlu0 %v2094
      %v2096 = vpop.xlane.xlu0 %2095
      %v2097 = vsel %vm451, %v2071, -inf
      %2098 = vmax.xlane.f32.xlu0 %v2097
      %v2099 = vpop.xlane.xlu0 %2098
      %v2100 = vsel %vm451, %v2072, -inf
      %2101 = vmax.xlane.f32.xlu0 %v2100
      %v2102 = vpop.xlane.xlu0 %2101
      %v2103 = vsel %vm451, %v2073, -inf
      %2104 = vmax.xlane.f32.xlu0 %v2103
      %v2105 = vpop.xlane.xlu0 %2104
      %v2106 = vsel %vm451, %v2074, -inf
      %2107 = vmax.xlane.f32.xlu0 %v2106
      %v2108 = vpop.xlane.xlu0 %2107
      %v2109 = vsel %vm451, %v2075, -inf
      %2110 = vmax.xlane.f32.xlu0 %v2109
      %v2111 = vpop.xlane.xlu0 %2110
      %v2112 = vsub.f32 %v2064, %v2078
      %v2113 = vsub.f32 %v2065, %v2081
      %v2114 = vsub.f32 %v2066, %v2084
      %v2115 = vsub.f32 %v2067, %v2087
      %v2116 = vsub.f32 %v2068, %v2090
      %v2117 = vsub.f32 %v2069, %v2093
      %v2118 = vsub.f32 %v2070, %v2096
      %v2119 = vsub.f32 %v2071, %v2099
      %v2120 = vsub.f32 %v2072, %v2102
      %v2121 = vsub.f32 %v2073, %v2105
      %v2122 = vsub.f32 %v2074, %v2108
      %v2123 = vsub.f32 %v2075, %v2111
      %v2124 = vmul.f32 %v2112, 1.442695
      %v2125 = vpow.pop %v2124
      %v2126 = vmul.f32 %v2113, 1.442695
      %v2127 = vpow.pop %v2126
      %v2128 = vmul.f32 %v2114, 1.442695
      %v2129 = vpow.pop %v2128
      %v2130 = vmul.f32 %v2115, 1.442695
      %v2131 = vpow.pop %v2130
      %v2132 = vmul.f32 %v2116, 1.442695
      %v2133 = vpow.pop %v2132
      %v2134 = vmul.f32 %v2117, 1.442695
      %v2135 = vpow.pop %v2134
      %v2136 = vmul.f32 %v2118, 1.442695
      %v2137 = vpow.pop %v2136
      %v2138 = vmul.f32 %v2119, 1.442695
      %v2139 = vpow.pop %v2138
      %v2140 = vmul.f32 %v2120, 1.442695
      %v2141 = vpow.pop %v2140
      %v2142 = vmul.f32 %v2121, 1.442695
      %v2143 = vpow.pop %v2142
      %v2144 = vmul.f32 %v2122, 1.442695
      %v2145 = vpow.pop %v2144
      %v2146 = vmul.f32 %v2123, 1.442695
      %v2147 = vpow.pop %v2146
      %v2149 = vsel %vm451, %v2125, 0
      %v2152 = vsel %vm451, %v2127, 0
      %v2155 = vsel %vm451, %v2129, 0
      %v2158 = vsel %vm451, %v2131, 0
      %v2161 = vsel %vm451, %v2133, 0
      %v2164 = vsel %vm451, %v2135, 0
      %v2167 = vsel %vm451, %v2137, 0
      %v2170 = vsel %vm451, %v2139, 0
      %v2173 = vsel %vm451, %v2141, 0
      %v2176 = vsel %vm451, %v2143, 0
      %v2179 = vsel %vm451, %v2145, 0
      %v2182 = vsel %vm451, %v2147, 0
      %2184 = vmatpush.msra.mxu0 0.0
      %2185 = vmatpush.msra.mxu0 0.0
      %2186 = vmatpush.msra.mxu0 0.0
      %2187 = vmatpush.msra.mxu0 0.0
      %2188 = vmatpush.msra.mxu0 1.0
      %2189 = vmatpush.msra.mxu0 1.0
      %2190 = vmatpush.msra.mxu0 1.0
      %2191 = vmatpush.msra.mxu0 1.0
      %2192 = vmatpush.msra.mxu0 1.0
      %2193 = vmatpush.msra.mxu0 1.0
      %2194 = vmatpush.msra.mxu0 1.0
      %2195 = vmatpush.msra.mxu0 1.0
      %2196 = vmatpush.msra.mxu0 1.0
      %2197 = vmatpush.msra.mxu0 1.0
      %2198 = vmatpush.msra.mxu0 1.0
      %2199 = vmatpush.msra.mxu0 1.0
      %2200 = vmatmul.f32.gmra.mxu0 %v2149
      %v2201 = vpop.f32.mrf.mxu0
      %v2202 = vadd.f32 0.0, %v2201
      %2203 = vmatmul.f32.gmra.mxu0 %v2152
      %v2204 = vpop.f32.mrf.mxu0
      %v2205 = vadd.f32 0.0, %v2204
      %2206 = vmatmul.f32.gmra.mxu0 %v2155
      %v2207 = vpop.f32.mrf.mxu0
      %v2208 = vadd.f32 0.0, %v2207
      %2209 = vmatmul.f32.gmra.mxu0 %v2158
      %v2210 = vpop.f32.mrf.mxu0
      %v2211 = vadd.f32 0.0, %v2210
      %2212 = vmatmul.f32.gmra.mxu0 %v2161
      %v2213 = vpop.f32.mrf.mxu0
      %v2214 = vadd.f32 0.0, %v2213
      %2215 = vmatmul.f32.gmra.mxu0 %v2164
      %v2216 = vpop.f32.mrf.mxu0
      %v2217 = vadd.f32 0.0, %v2216
      %2218 = vmatmul.f32.gmra.mxu0 %v2167
      %v2219 = vpop.f32.mrf.mxu0
      %v2220 = vadd.f32 0.0, %v2219
      %2221 = vmatmul.f32.gmra.mxu0 %v2170
      %v2222 = vpop.f32.mrf.mxu0
      %v2223 = vadd.f32 0.0, %v2222
      %2224 = vmatmul.f32.gmra.mxu0 %v2173
      %v2225 = vpop.f32.mrf.mxu0
      %v2226 = vadd.f32 0.0, %v2225
      %2227 = vmatmul.f32.gmra.mxu0 %v2176
      %v2228 = vpop.f32.mrf.mxu0
      %v2229 = vadd.f32 0.0, %v2228
      %2230 = vmatmul.f32.gmra.mxu0 %v2179
      %v2231 = vpop.f32.mrf.mxu0
      %v2232 = vadd.f32 0.0, %v2231
      %2233 = vmatmul.f32.gmra.mxu0 %v2182
      %v2234 = vpop.f32.mrf.mxu0
      %v2235 = vadd.f32 0.0, %v2234
      %2236 = vdwg.mxu0
      %v2237 = vlog2.pop %v2202
      %v2238 = vmul.f32 %v2237, 0.6931472
      %v2239 = vlog2.pop %v2205
      %v2240 = vmul.f32 %v2239, 0.6931472
      %v2241 = vlog2.pop %v2208
      %v2242 = vmul.f32 %v2241, 0.6931472
      %v2243 = vlog2.pop %v2211
      %v2244 = vmul.f32 %v2243, 0.6931472
      %v2245 = vlog2.pop %v2214
      %v2246 = vmul.f32 %v2245, 0.6931472
      %v2247 = vlog2.pop %v2217
      %v2248 = vmul.f32 %v2247, 0.6931472
      %v2249 = vlog2.pop %v2220
      %v2250 = vmul.f32 %v2249, 0.6931472
      %v2251 = vlog2.pop %v2223
      %v2252 = vmul.f32 %v2251, 0.6931472
      %v2253 = vlog2.pop %v2226
      %v2254 = vmul.f32 %v2253, 0.6931472
      %v2255 = vlog2.pop %v2229
      %v2256 = vmul.f32 %v2255, 0.6931472
      %v2257 = vlog2.pop %v2232
      %v2258 = vmul.f32 %v2257, 0.6931472
      %v2259 = vlog2.pop %v2235
      %v2260 = vmul.f32 %v2259, 0.6931472
      %v2261 = vadd.f32 %v2078, %v2238
      %v2262 = vadd.f32 %v2081, %v2240
      %v2263 = vadd.f32 %v2084, %v2242
      %v2264 = vadd.f32 %v2087, %v2244
      %v2265 = vadd.f32 %v2090, %v2246
      %v2266 = vadd.f32 %v2093, %v2248
      %v2267 = vadd.f32 %v2096, %v2250
      %v2268 = vadd.f32 %v2099, %v2252
      %v2269 = vadd.f32 %v2102, %v2254
      %v2270 = vadd.f32 %v2105, %v2256
      %v2271 = vadd.f32 %v2108, %v2258
      %v2272 = vadd.f32 %v2111, %v2260
      %v2273 = vmul.f32 %v2261, -0.0025
      %v2274 = vmul.f32 %v2262, -0.0025
      %v2275 = vmul.f32 %v2263, -0.0025
      %v2276 = vmul.f32 %v2264, -0.0025
      %v2277 = vmul.f32 %v2265, -0.0025
      %v2278 = vmul.f32 %v2266, -0.0025
      %v2279 = vmul.f32 %v2267, -0.0025
      %v2280 = vmul.f32 %v2268, -0.0025
      %v2281 = vmul.f32 %v2269, -0.0025
      %v2282 = vmul.f32 %v2270, -0.0025
      %v2283 = vmul.f32 %v2271, -0.0025
      %v2284 = vmul.f32 %v2272, -0.0025
      %v2285 = vmul.f32 %v998, 400.0
      %v2286 = vmul.f32 %v999, 400.0
      %v2287 = vmul.f32 %v1000, 400.0
      %v2288 = vmul.f32 %v1001, 400.0
      %v2289 = vmul.f32 %v1002, 400.0
      %v2290 = vmul.f32 %v1003, 400.0
      %v2291 = vmul.f32 %v1004, 400.0
      %v2292 = vmul.f32 %v1005, 400.0
      %v2293 = vmul.f32 %v1006, 400.0
      %v2294 = vmul.f32 %v1007, 400.0
      %v2295 = vmul.f32 %v1008, 400.0
      %v2296 = vmul.f32 %v1009, 400.0
      %v2297 = vadd.f32 %v272, %v2285
      %v2298 = vadd.f32 %v273, %v2286
      %v2299 = vadd.f32 %v274, %v2287
      %v2300 = vadd.f32 %v275, %v2288
      %v2301 = vadd.f32 %v276, %v2289
      %v2302 = vadd.f32 %v277, %v2290
      %v2303 = vadd.f32 %v278, %v2291
      %v2304 = vadd.f32 %v279, %v2292
      %v2305 = vadd.f32 %v280, %v2293
      %v2306 = vadd.f32 %v281, %v2294
      %v2307 = vadd.f32 %v282, %v2295
      %v2308 = vadd.f32 %v283, %v2296
      %2310 = vset.pattern.permute.xlu0 0
      %2311 = vperm.xlu0 %2310, %v2297
      %v2312 = vpop.permute.xlu0 %2311
      %2315 = vset.pattern.permute.xlu0 0
      %2316 = vperm.xlu0 %2315, %v2298
      %v2317 = vpop.permute.xlu0 %2316
      %2320 = vset.pattern.permute.xlu0 0
      %2321 = vperm.xlu0 %2320, %v2299
      %v2322 = vpop.permute.xlu0 %2321
      %2325 = vset.pattern.permute.xlu0 0
      %2326 = vperm.xlu0 %2325, %v2300
      %v2327 = vpop.permute.xlu0 %2326
      %2330 = vset.pattern.permute.xlu0 0
      %2331 = vperm.xlu0 %2330, %v2301
      %v2332 = vpop.permute.xlu0 %2331
      %2335 = vset.pattern.permute.xlu0 0
      %2336 = vperm.xlu0 %2335, %v2302
      %v2337 = vpop.permute.xlu0 %2336
      %2340 = vset.pattern.permute.xlu0 0
      %2341 = vperm.xlu0 %2340, %v2303
      %v2342 = vpop.permute.xlu0 %2341
      %2345 = vset.pattern.permute.xlu0 0
      %2346 = vperm.xlu0 %2345, %v2304
      %v2347 = vpop.permute.xlu0 %2346
      %2350 = vset.pattern.permute.xlu0 0
      %2351 = vperm.xlu0 %2350, %v2305
      %v2352 = vpop.permute.xlu0 %2351
      %2355 = vset.pattern.permute.xlu0 0
      %2356 = vperm.xlu0 %2355, %v2306
      %v2357 = vpop.permute.xlu0 %2356
      %2360 = vset.pattern.permute.xlu0 0
      %2361 = vperm.xlu0 %2360, %v2307
      %v2362 = vpop.permute.xlu0 %2361
      %2365 = vset.pattern.permute.xlu0 0
      %2366 = vperm.xlu0 %2365, %v2308
      %v2367 = vpop.permute.xlu0 %2366
      %v2369 = vsub.f32 %v2312, %v2049
      %v2370 = vsub.f32 %v2317, %v2050
      %v2371 = vsub.f32 %v2322, %v2051
      %v2372 = vsub.f32 %v2327, %v2052
      %v2373 = vsub.f32 %v2332, %v2053
      %v2374 = vsub.f32 %v2337, %v2054
      %v2375 = vsub.f32 %v2342, %v2055
      %v2376 = vsub.f32 %v2347, %v2056
      %v2377 = vsub.f32 %v2352, %v2057
      %v2378 = vsub.f32 %v2357, %v2058
      %v2379 = vsub.f32 %v2362, %v2059
      %v2380 = vsub.f32 %v2367, %v2060
      %v2381 = vsel %vm451, %v2369, -inf
      %v2382 = vsel %vm451, %v2370, -inf
      %v2383 = vsel %vm451, %v2371, -inf
      %v2384 = vsel %vm451, %v2372, -inf
      %v2385 = vsel %vm451, %v2373, -inf
      %v2386 = vmax.f32 %v2381, %v2385
      %v2387 = vsel %vm451, %v2374, -inf
      %v2388 = vmax.f32 %v2382, %v2387
      %v2389 = vsel %vm451, %v2375, -inf
      %v2390 = vmax.f32 %v2383, %v2389
      %v2391 = vsel %vm451, %v2376, -inf
      %v2392 = vmax.f32 %v2384, %v2391
      %v2393 = vsel %vm451, %v2377, -inf
      %v2394 = vmax.f32 %v2386, %v2393
      %v2395 = vsel %vm451, %v2378, -inf
      %v2396 = vmax.f32 %v2388, %v2395
      %v2397 = vsel %vm451, %v2379, -inf
      %v2398 = vmax.f32 %v2390, %v2397
      %v2399 = vsel %vm451, %v2380, -inf
      %v2400 = vmax.f32 %v2392, %v2399
      %v2401 = vmax.f32 %v2394, %v2396
      %v2402 = vmax.f32 %v2398, %v2400
      %v2403 = vmax.f32 %v2401, %v2402
      %v2404 = vrot.slane %v2403, 4
      %v2405 = vmax.f32 %v2403, %v2404
      %v2406 = vrot.slane %v2405, 2
      %v2407 = vmax.f32 %v2405, %v2406
      %v2408 = vrot.slane %v2407, 1
      %v2409 = vmax.f32 %v2407, %v2408
      %v2410 = vsub.f32 %v2369, %v2409
      %v2411 = vsub.f32 %v2370, %v2409
      %v2412 = vsub.f32 %v2371, %v2409
      %v2413 = vsub.f32 %v2372, %v2409
      %v2414 = vsub.f32 %v2373, %v2409
      %v2415 = vsub.f32 %v2374, %v2409
      %v2416 = vsub.f32 %v2375, %v2409
      %v2417 = vsub.f32 %v2376, %v2409
      %v2418 = vsub.f32 %v2377, %v2409
      %v2419 = vsub.f32 %v2378, %v2409
      %v2420 = vsub.f32 %v2379, %v2409
      %v2421 = vsub.f32 %v2380, %v2409
      %v2422 = vmul.f32 %v2410, 1.442695
      %v2423 = vpow.pop %v2422
      %v2424 = vmul.f32 %v2411, 1.442695
      %v2425 = vpow.pop %v2424
      %v2426 = vmul.f32 %v2412, 1.442695
      %v2427 = vpow.pop %v2426
      %v2428 = vmul.f32 %v2413, 1.442695
      %v2429 = vpow.pop %v2428
      %v2430 = vmul.f32 %v2414, 1.442695
      %v2431 = vpow.pop %v2430
      %v2432 = vmul.f32 %v2415, 1.442695
      %v2433 = vpow.pop %v2432
      %v2434 = vmul.f32 %v2416, 1.442695
      %v2435 = vpow.pop %v2434
      %v2436 = vmul.f32 %v2417, 1.442695
      %v2437 = vpow.pop %v2436
      %v2438 = vmul.f32 %v2418, 1.442695
      %v2439 = vpow.pop %v2438
      %v2440 = vmul.f32 %v2419, 1.442695
      %v2441 = vpow.pop %v2440
      %v2442 = vmul.f32 %v2420, 1.442695
      %v2443 = vpow.pop %v2442
      %v2444 = vmul.f32 %v2421, 1.442695
      %v2445 = vpow.pop %v2444
      %v2447 = vsel %vm451, 1.0, 0
      %2449 = vmatpush.msra.mxu0 0.0
      %2450 = vmatpush.msra.mxu0 0.0
      %2451 = vmatpush.msra.mxu0 0.0
      %2452 = vmatpush.msra.mxu0 0.0
      %2453 = vmatpush.msra.mxu0 %v2445
      %2454 = vmatpush.msra.mxu0 %v2443
      %2455 = vmatpush.msra.mxu0 %v2441
      %2456 = vmatpush.msra.mxu0 %v2439
      %2457 = vmatpush.msra.mxu0 %v2437
      %2458 = vmatpush.msra.mxu0 %v2435
      %2459 = vmatpush.msra.mxu0 %v2433
      %2460 = vmatpush.msra.mxu0 %v2431
      %2461 = vmatpush.msra.mxu0 %v2429
      %2462 = vmatpush.msra.mxu0 %v2427
      %2463 = vmatpush.msra.mxu0 %v2425
      %2464 = vmatpush.msra.mxu0 %v2423
      %2465 = vmatmul.f32.gmra.mxu0 %v2447
      %v2466 = vpop.f32.mrf.mxu0
      %v2467 = vadd.f32 0.0, %v2466
      %2468 = vdwg.mxu0
      %v2469 = vlog2.pop %v2467
      %v2470 = vmul.f32 %v2469, 0.6931472
      %v2471 = vadd.f32 %v2409, %v2470
      %v2472 = vmul.f32 %v2471, -0.0025
      %v2473 = vmul.f32 %v847, 400.0
      %v2474 = vmul.f32 %v848, 400.0
      %v2475 = vmul.f32 %v849, 400.0
      %v2476 = vmul.f32 %v850, 400.0
      %v2477 = vmul.f32 %v851, 400.0
      %v2478 = vmul.f32 %v852, 400.0
      %v2479 = vmul.f32 %v853, 400.0
      %v2480 = vmul.f32 %v854, 400.0
      %v2481 = vmul.f32 %v855, 400.0
      %v2482 = vmul.f32 %v856, 400.0
      %v2483 = vmul.f32 %v857, 400.0
      %v2484 = vmul.f32 %v858, 400.0
      %v2485 = vmul.f32 %v1486, 400.0
      %v2486 = vadd.f32 %v285, %v2485
      %v2487 = vperm.slane %v2486, 0
      %v2488 = vsub.f32 %v2487, %v2473
      %v2489 = vsub.f32 %v2487, %v2474
      %v2490 = vsub.f32 %v2487, %v2475
      %v2491 = vsub.f32 %v2487, %v2476
      %v2492 = vsub.f32 %v2487, %v2477
      %v2493 = vsub.f32 %v2487, %v2478
      %v2494 = vsub.f32 %v2487, %v2479
      %v2495 = vsub.f32 %v2487, %v2480
      %v2496 = vsub.f32 %v2487, %v2481
      %v2497 = vsub.f32 %v2487, %v2482
      %v2498 = vsub.f32 %v2487, %v2483
      %v2499 = vsub.f32 %v2487, %v2484
      %v2500 = vsel %vm451, %v2488, -inf
      %2501 = vmax.xlane.f32.xlu0 %v2500
      %v2502 = vpop.xlane.xlu0 %2501
      %v2503 = vsel %vm451, %v2489, -inf
      %2504 = vmax.xlane.f32.xlu0 %v2503
      %v2505 = vpop.xlane.xlu0 %2504
      %v2506 = vsel %vm451, %v2490, -inf
      %2507 = vmax.xlane.f32.xlu0 %v2506
      %v2508 = vpop.xlane.xlu0 %2507
      %v2509 = vsel %vm451, %v2491, -inf
      %2510 = vmax.xlane.f32.xlu0 %v2509
      %v2511 = vpop.xlane.xlu0 %2510
      %v2512 = vsel %vm451, %v2492, -inf
      %2513 = vmax.xlane.f32.xlu0 %v2512
      %v2514 = vpop.xlane.xlu0 %2513
      %v2515 = vsel %vm451, %v2493, -inf
      %2516 = vmax.xlane.f32.xlu0 %v2515
      %v2517 = vpop.xlane.xlu0 %2516
      %v2518 = vsel %vm451, %v2494, -inf
      %2519 = vmax.xlane.f32.xlu0 %v2518
      %v2520 = vpop.xlane.xlu0 %2519
      %v2521 = vsel %vm451, %v2495, -inf
      %2522 = vmax.xlane.f32.xlu0 %v2521
      %v2523 = vpop.xlane.xlu0 %2522
      %v2524 = vsel %vm451, %v2496, -inf
      %2525 = vmax.xlane.f32.xlu0 %v2524
      %v2526 = vpop.xlane.xlu0 %2525
      %v2527 = vsel %vm451, %v2497, -inf
      %2528 = vmax.xlane.f32.xlu0 %v2527
      %v2529 = vpop.xlane.xlu0 %2528
      %v2530 = vsel %vm451, %v2498, -inf
      %2531 = vmax.xlane.f32.xlu0 %v2530
      %v2532 = vpop.xlane.xlu0 %2531
      %v2533 = vsel %vm451, %v2499, -inf
      %2534 = vmax.xlane.f32.xlu0 %v2533
      %v2535 = vpop.xlane.xlu0 %2534
      %v2536 = vsub.f32 %v2488, %v2502
      %v2537 = vsub.f32 %v2489, %v2505
      %v2538 = vsub.f32 %v2490, %v2508
      %v2539 = vsub.f32 %v2491, %v2511
      %v2540 = vsub.f32 %v2492, %v2514
      %v2541 = vsub.f32 %v2493, %v2517
      %v2542 = vsub.f32 %v2494, %v2520
      %v2543 = vsub.f32 %v2495, %v2523
      %v2544 = vsub.f32 %v2496, %v2526
      %v2545 = vsub.f32 %v2497, %v2529
      %v2546 = vsub.f32 %v2498, %v2532
      %v2547 = vsub.f32 %v2499, %v2535
      %v2548 = vmul.f32 %v2536, 1.442695
      %v2549 = vpow.pop %v2548
      %v2550 = vmul.f32 %v2537, 1.442695
      %v2551 = vpow.pop %v2550
      %v2552 = vmul.f32 %v2538, 1.442695
      %v2553 = vpow.pop %v2552
      %v2554 = vmul.f32 %v2539, 1.442695
      %v2555 = vpow.pop %v2554
      %v2556 = vmul.f32 %v2540, 1.442695
      %v2557 = vpow.pop %v2556
      %v2558 = vmul.f32 %v2541, 1.442695
      %v2559 = vpow.pop %v2558
      %v2560 = vmul.f32 %v2542, 1.442695
      %v2561 = vpow.pop %v2560
      %v2562 = vmul.f32 %v2543, 1.442695
      %v2563 = vpow.pop %v2562
      %v2564 = vmul.f32 %v2544, 1.442695
      %v2565 = vpow.pop %v2564
      %v2566 = vmul.f32 %v2545, 1.442695
      %v2567 = vpow.pop %v2566
      %v2568 = vmul.f32 %v2546, 1.442695
      %v2569 = vpow.pop %v2568
      %v2570 = vmul.f32 %v2547, 1.442695
      %v2571 = vpow.pop %v2570
      %v2573 = vsel %vm451, %v2549, 0
      %v2576 = vsel %vm451, %v2551, 0
      %v2579 = vsel %vm451, %v2553, 0
      %v2582 = vsel %vm451, %v2555, 0
      %v2585 = vsel %vm451, %v2557, 0
      %v2588 = vsel %vm451, %v2559, 0
      %v2591 = vsel %vm451, %v2561, 0
      %v2594 = vsel %vm451, %v2563, 0
      %v2597 = vsel %vm451, %v2565, 0
      %v2600 = vsel %vm451, %v2567, 0
      %v2603 = vsel %vm451, %v2569, 0
      %v2606 = vsel %vm451, %v2571, 0
      %2608 = vmatpush.msra.mxu0 0.0
      %2609 = vmatpush.msra.mxu0 0.0
      %2610 = vmatpush.msra.mxu0 0.0
      %2611 = vmatpush.msra.mxu0 0.0
      %2612 = vmatpush.msra.mxu0 1.0
      %2613 = vmatpush.msra.mxu0 1.0
      %2614 = vmatpush.msra.mxu0 1.0
      %2615 = vmatpush.msra.mxu0 1.0
      %2616 = vmatpush.msra.mxu0 1.0
      %2617 = vmatpush.msra.mxu0 1.0
      %2618 = vmatpush.msra.mxu0 1.0
      %2619 = vmatpush.msra.mxu0 1.0
      %2620 = vmatpush.msra.mxu0 1.0
      %2621 = vmatpush.msra.mxu0 1.0
      %2622 = vmatpush.msra.mxu0 1.0
      %2623 = vmatpush.msra.mxu0 1.0
      %2624 = vmatmul.f32.gmra.mxu0 %v2573
      %v2625 = vpop.f32.mrf.mxu0
      %v2626 = vadd.f32 0.0, %v2625
      %2627 = vmatmul.f32.gmra.mxu0 %v2576
      %v2628 = vpop.f32.mrf.mxu0
      %v2629 = vadd.f32 0.0, %v2628
      %2630 = vmatmul.f32.gmra.mxu0 %v2579
      %v2631 = vpop.f32.mrf.mxu0
      %v2632 = vadd.f32 0.0, %v2631
      %2633 = vmatmul.f32.gmra.mxu0 %v2582
      %v2634 = vpop.f32.mrf.mxu0
      %v2635 = vadd.f32 0.0, %v2634
      %2636 = vmatmul.f32.gmra.mxu0 %v2585
      %v2637 = vpop.f32.mrf.mxu0
      %v2638 = vadd.f32 0.0, %v2637
      %2639 = vmatmul.f32.gmra.mxu0 %v2588
      %v2640 = vpop.f32.mrf.mxu0
      %v2641 = vadd.f32 0.0, %v2640
      %2642 = vmatmul.f32.gmra.mxu0 %v2591
      %v2643 = vpop.f32.mrf.mxu0
      %v2644 = vadd.f32 0.0, %v2643
      %2645 = vmatmul.f32.gmra.mxu0 %v2594
      %v2646 = vpop.f32.mrf.mxu0
      %v2647 = vadd.f32 0.0, %v2646
      %2648 = vmatmul.f32.gmra.mxu0 %v2597
      %v2649 = vpop.f32.mrf.mxu0
      %v2650 = vadd.f32 0.0, %v2649
      %2651 = vmatmul.f32.gmra.mxu0 %v2600
      %v2652 = vpop.f32.mrf.mxu0
      %v2653 = vadd.f32 0.0, %v2652
      %2654 = vmatmul.f32.gmra.mxu0 %v2603
      %v2655 = vpop.f32.mrf.mxu0
      %v2656 = vadd.f32 0.0, %v2655
      %2657 = vmatmul.f32.gmra.mxu0 %v2606
      %v2658 = vpop.f32.mrf.mxu0
      %v2659 = vadd.f32 0.0, %v2658
      %2660 = vdwg.mxu0
      %v2661 = vlog2.pop %v2626
      %v2662 = vmul.f32 %v2661, 0.6931472
      %v2663 = vlog2.pop %v2629
      %v2664 = vmul.f32 %v2663, 0.6931472
      %v2665 = vlog2.pop %v2632
      %v2666 = vmul.f32 %v2665, 0.6931472
      %v2667 = vlog2.pop %v2635
      %v2668 = vmul.f32 %v2667, 0.6931472
      %v2669 = vlog2.pop %v2638
      %v2670 = vmul.f32 %v2669, 0.6931472
      %v2671 = vlog2.pop %v2641
      %v2672 = vmul.f32 %v2671, 0.6931472
      %v2673 = vlog2.pop %v2644
      %v2674 = vmul.f32 %v2673, 0.6931472
      %v2675 = vlog2.pop %v2647
      %v2676 = vmul.f32 %v2675, 0.6931472
      %v2677 = vlog2.pop %v2650
      %v2678 = vmul.f32 %v2677, 0.6931472
      %v2679 = vlog2.pop %v2653
      %v2680 = vmul.f32 %v2679, 0.6931472
      %v2681 = vlog2.pop %v2656
      %v2682 = vmul.f32 %v2681, 0.6931472
      %v2683 = vlog2.pop %v2659
      %v2684 = vmul.f32 %v2683, 0.6931472
      %v2685 = vadd.f32 %v2502, %v2662
      %v2686 = vadd.f32 %v2505, %v2664
      %v2687 = vadd.f32 %v2508, %v2666
      %v2688 = vadd.f32 %v2511, %v2668
      %v2689 = vadd.f32 %v2514, %v2670
      %v2690 = vadd.f32 %v2517, %v2672
      %v2691 = vadd.f32 %v2520, %v2674
      %v2692 = vadd.f32 %v2523, %v2676
      %v2693 = vadd.f32 %v2526, %v2678
      %v2694 = vadd.f32 %v2529, %v2680
      %v2695 = vadd.f32 %v2532, %v2682
      %v2696 = vadd.f32 %v2535, %v2684
      %v2697 = vmul.f32 %v2685, -0.0025
      %v2698 = vmul.f32 %v2686, -0.0025
      %v2699 = vmul.f32 %v2687, -0.0025
      %v2700 = vmul.f32 %v2688, -0.0025
      %v2701 = vmul.f32 %v2689, -0.0025
      %v2702 = vmul.f32 %v2690, -0.0025
      %v2703 = vmul.f32 %v2691, -0.0025
      %v2704 = vmul.f32 %v2692, -0.0025
      %v2705 = vmul.f32 %v2693, -0.0025
      %v2706 = vmul.f32 %v2694, -0.0025
      %v2707 = vmul.f32 %v2695, -0.0025
      %v2708 = vmul.f32 %v2696, -0.0025
      %v2709 = vmul.f32 %v895, 400.0
      %v2710 = vmul.f32 %v896, 400.0
      %v2711 = vmul.f32 %v897, 400.0
      %v2712 = vmul.f32 %v898, 400.0
      %v2713 = vmul.f32 %v899, 400.0
      %v2714 = vmul.f32 %v900, 400.0
      %v2715 = vmul.f32 %v901, 400.0
      %v2716 = vmul.f32 %v902, 400.0
      %v2717 = vmul.f32 %v903, 400.0
      %v2718 = vmul.f32 %v904, 400.0
      %v2719 = vmul.f32 %v905, 400.0
      %v2720 = vmul.f32 %v906, 400.0
      %v2721 = vmul.f32 %v1703, 400.0
      %v2722 = vmul.f32 %v1704, 400.0
      %v2723 = vmul.f32 %v1705, 400.0
      %v2724 = vmul.f32 %v1706, 400.0
      %v2725 = vmul.f32 %v1707, 400.0
      %v2726 = vmul.f32 %v1708, 400.0
      %v2727 = vmul.f32 %v1709, 400.0
      %v2728 = vmul.f32 %v1710, 400.0
      %v2729 = vmul.f32 %v1711, 400.0
      %v2730 = vmul.f32 %v1712, 400.0
      %v2731 = vmul.f32 %v1713, 400.0
      %v2732 = vmul.f32 %v1714, 400.0
      %v2733 = vadd.f32 %v272, %v2721
      %v2734 = vadd.f32 %v273, %v2722
      %v2735 = vadd.f32 %v274, %v2723
      %v2736 = vadd.f32 %v275, %v2724
      %v2737 = vadd.f32 %v276, %v2725
      %v2738 = vadd.f32 %v277, %v2726
      %v2739 = vadd.f32 %v278, %v2727
      %v2740 = vadd.f32 %v279, %v2728
      %v2741 = vadd.f32 %v280, %v2729
      %v2742 = vadd.f32 %v281, %v2730
      %v2743 = vadd.f32 %v282, %v2731
      %v2744 = vadd.f32 %v283, %v2732
      %2746 = vset.pattern.permute.xlu0 0
      %2747 = vperm.xlu0 %2746, %v2733
      %v2748 = vpop.permute.xlu0 %2747
      %2751 = vset.pattern.permute.xlu0 0
      %2752 = vperm.xlu0 %2751, %v2734
      %v2753 = vpop.permute.xlu0 %2752
      %2756 = vset.pattern.permute.xlu0 0
      %2757 = vperm.xlu0 %2756, %v2735
      %v2758 = vpop.permute.xlu0 %2757
      %2761 = vset.pattern.permute.xlu0 0
      %2762 = vperm.xlu0 %2761, %v2736
      %v2763 = vpop.permute.xlu0 %2762
      %2766 = vset.pattern.permute.xlu0 0
      %2767 = vperm.xlu0 %2766, %v2737
      %v2768 = vpop.permute.xlu0 %2767
      %2771 = vset.pattern.permute.xlu0 0
      %2772 = vperm.xlu0 %2771, %v2738
      %v2773 = vpop.permute.xlu0 %2772
      %2776 = vset.pattern.permute.xlu0 0
      %2777 = vperm.xlu0 %2776, %v2739
      %v2778 = vpop.permute.xlu0 %2777
      %2781 = vset.pattern.permute.xlu0 0
      %2782 = vperm.xlu0 %2781, %v2740
      %v2783 = vpop.permute.xlu0 %2782
      %2786 = vset.pattern.permute.xlu0 0
      %2787 = vperm.xlu0 %2786, %v2741
      %v2788 = vpop.permute.xlu0 %2787
      %2791 = vset.pattern.permute.xlu0 0
      %2792 = vperm.xlu0 %2791, %v2742
      %v2793 = vpop.permute.xlu0 %2792
      %2796 = vset.pattern.permute.xlu0 0
      %2797 = vperm.xlu0 %2796, %v2743
      %v2798 = vpop.permute.xlu0 %2797
      %2801 = vset.pattern.permute.xlu0 0
      %2802 = vperm.xlu0 %2801, %v2744
      %v2803 = vpop.permute.xlu0 %2802
      %v2805 = vsub.f32 %v2748, %v2709
      %v2806 = vsub.f32 %v2753, %v2710
      %v2807 = vsub.f32 %v2758, %v2711
      %v2808 = vsub.f32 %v2763, %v2712
      %v2809 = vsub.f32 %v2768, %v2713
      %v2810 = vsub.f32 %v2773, %v2714
      %v2811 = vsub.f32 %v2778, %v2715
      %v2812 = vsub.f32 %v2783, %v2716
      %v2813 = vsub.f32 %v2788, %v2717
      %v2814 = vsub.f32 %v2793, %v2718
      %v2815 = vsub.f32 %v2798, %v2719
      %v2816 = vsub.f32 %v2803, %v2720
      %v2817 = vsel %vm451, %v2805, -inf
      %v2818 = vsel %vm451, %v2806, -inf
      %v2819 = vsel %vm451, %v2807, -inf
      %v2820 = vsel %vm451, %v2808, -inf
      %v2821 = vsel %vm451, %v2809, -inf
      %v2822 = vmax.f32 %v2817, %v2821
      %v2823 = vsel %vm451, %v2810, -inf
      %v2824 = vmax.f32 %v2818, %v2823
      %v2825 = vsel %vm451, %v2811, -inf
      %v2826 = vmax.f32 %v2819, %v2825
      %v2827 = vsel %vm451, %v2812, -inf
      %v2828 = vmax.f32 %v2820, %v2827
      %v2829 = vsel %vm451, %v2813, -inf
      %v2830 = vmax.f32 %v2822, %v2829
      %v2831 = vsel %vm451, %v2814, -inf
      %v2832 = vmax.f32 %v2824, %v2831
      %v2833 = vsel %vm451, %v2815, -inf
      %v2834 = vmax.f32 %v2826, %v2833
      %v2835 = vsel %vm451, %v2816, -inf
      %v2836 = vmax.f32 %v2828, %v2835
      %v2837 = vmax.f32 %v2830, %v2832
      %v2838 = vmax.f32 %v2834, %v2836
      %v2839 = vmax.f32 %v2837, %v2838
      %v2840 = vrot.slane %v2839, 4
      %v2841 = vmax.f32 %v2839, %v2840
      %v2842 = vrot.slane %v2841, 2
      %v2843 = vmax.f32 %v2841, %v2842
      %v2844 = vrot.slane %v2843, 1
      %v2845 = vmax.f32 %v2843, %v2844
      %v2846 = vsub.f32 %v2805, %v2845
      %v2847 = vsub.f32 %v2806, %v2845
      %v2848 = vsub.f32 %v2807, %v2845
      %v2849 = vsub.f32 %v2808, %v2845
      %v2850 = vsub.f32 %v2809, %v2845
      %v2851 = vsub.f32 %v2810, %v2845
      %v2852 = vsub.f32 %v2811, %v2845
      %v2853 = vsub.f32 %v2812, %v2845
      %v2854 = vsub.f32 %v2813, %v2845
      %v2855 = vsub.f32 %v2814, %v2845
      %v2856 = vsub.f32 %v2815, %v2845
      %v2857 = vsub.f32 %v2816, %v2845
      %v2858 = vmul.f32 %v2846, 1.442695
      %v2859 = vpow.pop %v2858
      %v2860 = vmul.f32 %v2847, 1.442695
      %v2861 = vpow.pop %v2860
      %v2862 = vmul.f32 %v2848, 1.442695
      %v2863 = vpow.pop %v2862
      %v2864 = vmul.f32 %v2849, 1.442695
      %v2865 = vpow.pop %v2864
      %v2866 = vmul.f32 %v2850, 1.442695
      %v2867 = vpow.pop %v2866
      %v2868 = vmul.f32 %v2851, 1.442695
      %v2869 = vpow.pop %v2868
      %v2870 = vmul.f32 %v2852, 1.442695
      %v2871 = vpow.pop %v2870
      %v2872 = vmul.f32 %v2853, 1.442695
      %v2873 = vpow.pop %v2872
      %v2874 = vmul.f32 %v2854, 1.442695
      %v2875 = vpow.pop %v2874
      %v2876 = vmul.f32 %v2855, 1.442695
      %v2877 = vpow.pop %v2876
      %v2878 = vmul.f32 %v2856, 1.442695
      %v2879 = vpow.pop %v2878
      %v2880 = vmul.f32 %v2857, 1.442695
      %v2881 = vpow.pop %v2880
      %2882 = vmatpush.msra.mxu0 0.0
      %2883 = vmatpush.msra.mxu0 0.0
      %2884 = vmatpush.msra.mxu0 0.0
      %2885 = vmatpush.msra.mxu0 0.0
      %2886 = vmatpush.msra.mxu0 %v2881
      %2887 = vmatpush.msra.mxu0 %v2879
      %2888 = vmatpush.msra.mxu0 %v2877
      %2889 = vmatpush.msra.mxu0 %v2875
      %2890 = vmatpush.msra.mxu0 %v2873
      %2891 = vmatpush.msra.mxu0 %v2871
      %2892 = vmatpush.msra.mxu0 %v2869
      %2893 = vmatpush.msra.mxu0 %v2867
      %2894 = vmatpush.msra.mxu0 %v2865
      %2895 = vmatpush.msra.mxu0 %v2863
      %2896 = vmatpush.msra.mxu0 %v2861
      %2897 = vmatpush.msra.mxu0 %v2859
      %2898 = vmatmul.f32.gmra.mxu0 %v2447
      %v2899 = vpop.f32.mrf.mxu0
      %v2900 = vadd.f32 0.0, %v2899
      %2901 = vdwg.mxu0
      %v2902 = vlog2.pop %v2900
      %v2903 = vmul.f32 %v2902, 0.6931472
      %v2904 = vadd.f32 %v2845, %v2903
      %v2905 = vmul.f32 %v2904, -0.0025
      %v2906 = vmul.f32 %v272, 1.442695
      %v2907 = vpow.pop %v2906
      %v2908 = vmul.f32 %v273, 1.442695
      %v2909 = vpow.pop %v2908
      %v2910 = vmul.f32 %v274, 1.442695
      %v2911 = vpow.pop %v2910
      %v2912 = vmul.f32 %v275, 1.442695
      %v2913 = vpow.pop %v2912
      %v2914 = vmul.f32 %v276, 1.442695
      %v2915 = vpow.pop %v2914
      %v2916 = vmul.f32 %v277, 1.442695
      %v2917 = vpow.pop %v2916
      %v2918 = vmul.f32 %v278, 1.442695
      %v2919 = vpow.pop %v2918
      %v2920 = vmul.f32 %v279, 1.442695
      %v2921 = vpow.pop %v2920
      %v2922 = vmul.f32 %v280, 1.442695
      %v2923 = vpow.pop %v2922
      %v2924 = vmul.f32 %v281, 1.442695
      %v2925 = vpow.pop %v2924
      %v2926 = vmul.f32 %v282, 1.442695
      %v2927 = vpow.pop %v2926
      %v2928 = vmul.f32 %v283, 1.442695
      %v2929 = vpow.pop %v2928
      %v2930 = vmul.f32 %v285, 1.442695
      %v2931 = vpow.pop %v2930
      %v2932 = vsub.f32 %v2273, %v2697
      %v2933 = vsub.f32 %v2274, %v2698
      %v2934 = vsub.f32 %v2275, %v2699
      %v2935 = vsub.f32 %v2276, %v2700
      %v2936 = vsub.f32 %v2277, %v2701
      %v2937 = vsub.f32 %v2278, %v2702
      %v2938 = vsub.f32 %v2279, %v2703
      %v2939 = vsub.f32 %v2280, %v2704
      %v2940 = vsub.f32 %v2281, %v2705
      %v2941 = vsub.f32 %v2282, %v2706
      %v2942 = vsub.f32 %v2283, %v2707
      %v2943 = vsub.f32 %v2284, %v2708
      %v2944 = vmul.f32 %v2907, %v2932
      %v2945 = vmul.f32 %v2909, %v2933
      %v2946 = vmul.f32 %v2911, %v2934
      %v2947 = vmul.f32 %v2913, %v2935
      %v2948 = vmul.f32 %v2915, %v2936
      %v2949 = vmul.f32 %v2917, %v2937
      %v2950 = vmul.f32 %v2919, %v2938
      %v2951 = vmul.f32 %v2921, %v2939
      %v2952 = vmul.f32 %v2923, %v2940
      %v2953 = vmul.f32 %v2925, %v2941
      %v2954 = vmul.f32 %v2927, %v2942
      %v2955 = vmul.f32 %v2929, %v2943
      %vm2956 = vcmask 7168
      %v2957 = vsel %vm2956, %v2944, 0.0
      %v2958 = vsel %vm2956, %v2945, 0.0
      %v2959 = vadd.f32 %v2957, %v2958
      %v2960 = vsel %vm2956, %v2946, 0.0
      %v2961 = vadd.f32 %v2959, %v2960
      %v2962 = vsel %vm2956, %v2947, 0.0
      %v2963 = vadd.f32 %v2961, %v2962
      %v2964 = vsel %vm2956, %v2948, 0.0
      %v2965 = vadd.f32 %v2963, %v2964
      %v2966 = vsel %vm2956, %v2949, 0.0
      %v2967 = vadd.f32 %v2965, %v2966
      %v2968 = vsel %vm2956, %v2950, 0.0
      %v2969 = vadd.f32 %v2967, %v2968
      %v2970 = vsel %vm2956, %v2951, 0.0
      %v2971 = vadd.f32 %v2969, %v2970
      %v2972 = vsel %vm2956, %v2952, 0.0
      %v2973 = vadd.f32 %v2971, %v2972
      %v2974 = vsel %vm2956, %v2953, 0.0
      %v2975 = vadd.f32 %v2973, %v2974
      %v2976 = vsel %vm2956, %v2954, 0.0
      %v2977 = vadd.f32 %v2975, %v2976
      %v2978 = vsel %vm2956, %v2955, 0.0
      %v2979 = vadd.f32 %v2977, %v2978
      %2980 = vadd.xlane.f32.xlu0 %v2979
      %v2981 = vpop.xlane.xlu0 %2980
      %v2982 = vrot.slane %v2981, 4
      %v2983 = vadd.f32 %v2981, %v2982
      %v2984 = vrot.slane %v2983, 2
      %v2985 = vadd.f32 %v2983, %v2984
      %v2986 = vrot.slane %v2985, 1
      %v2987 = vadd.f32 %v2985, %v2986
      %s2988 = vtos %v2987
      %v2989 = vstv %s2988
      %v2990 = vsub.f32 %v2472, %v2905
      %v2991 = vmul.f32 %v2931, %v2990
      %vm2992 = vcmask 778240
      %v2993 = vsel %vm2992, %v2991, 0.0
      %2994 = vadd.xlane.f32.xlu0 %v2993
      %v2995 = vpop.xlane.xlu0 %2994
      %v2996 = vrot.slane %v2995, 4
      %v2997 = vadd.f32 %v2995, %v2996
      %v2998 = vrot.slane %v2997, 2
      %v2999 = vadd.f32 %v2997, %v2998
      %v3000 = vrot.slane %v2999, 1
      %v3001 = vadd.f32 %v2999, %v3000
      %s3002 = vtos %v3001
      %v3003 = vstv %s3002
      %v3004 = vadd.f32 %v2989, %v3003
      %vm3005 = vcmask 0
      %3006 = vst.msk [vmem:[%s211] sm:$0x1] %vm3005, %v3004
      %p3007 = scmp.lt.s32.totalorder %s19, 0
      %s3008 = scalar_select %p3007, %s19, 0
      %p3009 = scmp.lt.s32.totalorder %s20, 1
      %s3010 = scalar_select %p3009, %s20, 1
      %s3011 = smul.addr %s3008, 2
      %s3012 = sadd.s32 %s3010, %s3011
      %s3013 = scalar_lea.vmem %s3, %s3012
      // Predicated region
      $region50: #{part_wise_emd.5} parent=27 // pred_check
        %p3014 = pneg %p103
      $region51: #{part_wise_emd.5} parent=27 // pred_check_branch
        %3016 = sbr.rel (%p3014) target = $region53
      $region52: #{part_wise_emd.5} parent=27 // pred_region
        _
      $region53: #{part_wise_emd.5} parent=27 // pred_fallthru
        _
    $region28: #{part_wise_emd.5} parent=5 // pred_fallthru
      _
    %p3017 = scmp.le.s32.totalorder 2, %s10
    // Predicated region
    $region54: #{part_wise_emd.5} parent=5 // pred_check
      %p3018 = pneg %p3017
    $region55: #{part_wise_emd.5} parent=5 // pred_check_branch
      %3020 = sbr.rel (%p3018) target = $region57
    $region56: #{part_wise_emd.5} parent=5 // pred_region
      %s3021 = ssub.s32 %s10, 2
      // Predicated region
      $region58: #{part_wise_emd.5} parent=56 // pred_check
        %p3022 = pneg %p109
      $region59: #{part_wise_emd.5} parent=56 // pred_check_branch
        %3024 = sbr.rel (%p3022) target = $region61
      $region60: #{part_wise_emd.5} parent=56 // pred_region
        %p3025 = scmp.lt.s32.totalorder %s21, 0
        %s3026 = scalar_select %p3025, %s21, 0
        %p3027 = scmp.lt.s32.totalorder %s22, 1
        %s3028 = scalar_select %p3027, %s22, 1
        %s3029 = smul.addr %s3026, 2
        %s3030 = sadd.s32 %s3028, %s3029
        %s3031 = scalar_lea.vmem %s3, %s3030
      $region61: #{part_wise_emd.5} parent=56 // pred_fallthru
        _
    $region57: #{part_wise_emd.5} parent=5 // pred_fallthru
      _
  $region6: #{part_wise_emd.5} parent=0 // loop_footer
    %s14 = sadd.s32 1, %s10
  $region7: #{part_wise_emd.5} parent=0 // loop_footer_branch
    %9 = sbr.rel target = $region3
  $region8: #{part_wise_emd.5} parent=0 // loop_exit
    _

</llo_original>
